<compile_context>
chip_gen: v7x
topology: tpu7x:2x2x1
jax: 0.10.0
libtpu: 0.0.40
codegen_flags: <defaults>
</compile_context>

<pallas_src>
import functools
import math

import jax
import jax.numpy as jnp
from jax.experimental import pallas as pl
from jax.experimental.pallas import tpu as pltpu

IN_CH = 3
IMG = 32
CONV_CHANNELS = (8, 16, 32)
FEAT_HW = 4                                            # spatial size after 3 pools
FEAT_DIM = CONV_CHANNELS[-1] * FEAT_HW * FEAT_HW       # 512
SEL_HID = 512
CLS_PAD = 128                                          # lane-aligned head segment
BN_EPS = 1e-5
BATCH_TILE = 8                                         # images per grid step


# ----------------------------------------------------------------------------
# Fused feature extractor: 3 x (conv3x3 pad=1 + ReLU + maxpool2x2), all in VMEM
# ----------------------------------------------------------------------------
def _zero_halo(pad_ref, bt, h, c):
    """Zero only the 1-px halo of a (bt, h+2, h+2, c) f32 padded scratch."""
    pad_ref[:, 0:1, :, :] = jnp.zeros((bt, 1, h + 2, c), jnp.float32)
    pad_ref[:, h + 1:h + 2, :, :] = jnp.zeros((bt, 1, h + 2, c), jnp.float32)
    pad_ref[:, :, 0:1, :] = jnp.zeros((bt, h + 2, 1, c), jnp.float32)
    pad_ref[:, :, h + 1:h + 2, :] = jnp.zeros((bt, h + 2, 1, c), jnp.float32)


def _im2col_taps(pad_ref, im_ref, bt, h, cin):
    """Write the nine 3x3 taps side by side (already cast to bf16)."""
    for t in range(9):
        ki, kj = divmod(t, 3)
        im_ref[:, t * cin:(t + 1) * cin] = (
            pad_ref[:, ki:ki + h, kj:kj + h, :]
            .reshape(bt * h * h, cin).astype(jnp.bfloat16))


def _conv_relu_rowpool(im_bf16, w_ref, b_ref, rp_ref, bt, h, cout):
    """One fused-K MXU matmul + bias + ReLU, pooled over the H (row) axis.

    im_bf16 : (bt*h*h, 9*cin) bf16 matmul operand (value).
    rp_ref  : (bt, h//2, h, cout) f32 row-pooled output scratch.
    """
    ho = h // 2
    acc = jnp.dot(im_bf16, w_ref[...], preferred_element_type=jnp.float32)
    acc = jnp.maximum(acc + b_ref[...], 0.0)           # bias + ReLU in f32
    # Split the row index into (ho, 2) (leading-dim reshape, layout no-op) and
    # max the two leading slabs: pools the vertical direction with no strided
    # value slicing and no full-conv VMEM round trip.
    acc = acc.reshape(bt, ho, 2, h, cout)
    rp_ref[...] = jnp.maximum(acc[:, :, 0], acc[:, :, 1])


def _colpool(rp_ref, bt, ho):
    """Pool the W (sublane) axis with strided ref reads: (bt, ho, 2*ho, c) -> (bt, ho, ho, c)."""
    p0 = rp_ref[:, :, pl.ds(0, ho, stride=2), :]
    p1 = rp_ref[:, :, pl.ds(1, ho, stride=2), :]
    return jnp.maximum(p0, p1)


def _features_kernel(patch_ref, w1_ref, b1_ref, w2_ref, b2_ref, w3_ref, b3_ref,
                     o_ref,
                     rp1, pad2, im2, rp2, pad3, im3, rp3, *, bt):
    c1, c2, c3 = CONV_CHANNELS
    h1, h2, h3 = IMG, IMG // 2, IMG // 4

    # ---- layer 1: input already im2col'd in the wrapper -> one matmul ----
    im1 = patch_ref[...].reshape(bt * h1 * h1, 9 * IN_CH)          # bf16
    _conv_relu_rowpool(im1, w1_ref, b1_ref, rp1, bt, h1, c1)
    pooled1 = _colpool(rp1, bt, h1 // 2)                           # (bt,16,16,8)

    # ---- layer 2 ----
    _zero_halo(pad2, bt, h2, c1)
    pad2[:, 1:h2 + 1, 1:h2 + 1, :] = pooled1
    _im2col_taps(pad2, im2, bt, h2, c1)
    _conv_relu_rowpool(im2[...], w2_ref, b2_ref, rp2, bt, h2, c2)
    pooled2 = _colpool(rp2, bt, h2 // 2)                           # (bt,8,8,16)

    # ---- layer 3 ----
    _zero_halo(pad3, bt, h3, c2)
    pad3[:, 1:h3 + 1, 1:h3 + 1, :] = pooled2
    _im2col_taps(pad3, im3, bt, h3, c2)
    _conv_relu_rowpool(im3[...], w3_ref, b3_ref, rp3, bt, h3, c3)

    # ---- fused final W-pool + lane-dense (bt, 512) output in (h, w, c) order ----
    for i in range(FEAT_HW):
        for j in range(FEAT_HW):
            col = (i * FEAT_HW + j) * c3
            o_ref[:, col:col + c3] = jnp.maximum(rp3[:, i, 2 * j, :],
                                                 rp3[:, i, 2 * j + 1, :])


def extract_features(patches, conv_params, bt):
    n = patches.shape[0]
    (w1, b1), (w2, b2), (w3, b3) = conv_params
    c1, c2, c3 = CONV_CHANNELS
    h1, h2, h3 = IMG, IMG // 2, IMG // 4

    def whole(a):
        return pl.BlockSpec(a.shape, lambda i, _n=a.ndim: (0,) * _n)

    kernel = functools.partial(_features_kernel, bt=bt)
    return pl.pallas_call(
        kernel,
        out_shape=jax.ShapeDtypeStruct((n, FEAT_DIM), jnp.float32),
        grid_spec=pltpu.PrefetchScalarGridSpec(
            num_scalar_prefetch=0,
            grid=(pl.cdiv(n, bt),),
            in_specs=[
                pl.BlockSpec((bt, IMG * IMG, 9 * IN_CH), lambda i: (i, 0, 0)),
                whole(w1), whole(b1),
                whole(w2), whole(b2),
                whole(w3), whole(b3),
            ],
            out_specs=pl.BlockSpec((bt, FEAT_DIM), lambda i: (i, 0)),
            scratch_shapes=[
                pltpu.VMEM((bt, h1 // 2, h1, c1), jnp.float32),     # rp1
                pltpu.VMEM((bt, h2 + 2, h2 + 2, c1), jnp.float32),  # pad2
                pltpu.VMEM((bt * h2 * h2, 9 * c1), jnp.bfloat16),   # im2col 2
                pltpu.VMEM((bt, h2 // 2, h2, c2), jnp.float32),     # rp2
                pltpu.VMEM((bt, h3 + 2, h3 + 2, c2), jnp.float32),  # pad3
                pltpu.VMEM((bt * h3 * h3, 9 * c2), jnp.bfloat16),   # im2col 3
                pltpu.VMEM((bt, h3 // 2, h3, c3), jnp.float32),     # rp3
            ],
        ),
        compiler_params=pltpu.CompilerParams(
            dimension_semantics=("parallel",),
            vmem_limit_bytes=48 * 1024 * 1024),
    )(patches, w1, b1, w2, b2, w3, b3)


# ----------------------------------------------------------------------------
# Selective head: one fused lane-dense matmul for dense_class/selec_1/auxil,
# then softmax / ReLU+BatchNorm1d+Linear+sigmoid / softmax.
# ----------------------------------------------------------------------------
def _head_kernel(x_ref, wcat_ref, bcat_ref, gamma_ref, beta_ref,
                 w2_ref, b2_ref, h_ref, g_ref, a_ref, *,
                 out_dim, cls_off, aux_off):
    x = x_ref[...]                                           # (N, 512) f32
    z = jnp.dot(x.astype(jnp.bfloat16), wcat_ref[...],
                preferred_element_type=jnp.float32) + bcat_ref[...]

    def softmax(t):
        t = t - jnp.max(t, axis=-1, keepdims=True)
        e = jnp.exp(t)
        return e / jnp.sum(e, axis=-1, keepdims=True)

    # dense_class / dense_auxil branches (lane-aligned slices of the fused matmul)
    h_ref[...] = softmax(z[:, cls_off:cls_off + out_dim])
    a_ref[...] = softmax(z[:, aux_off:aux_off + out_dim])

    # selection branch: dense_selec_1 -> ReLU -> BatchNorm1d -> dense_selec_2 -> sigmoid
    # TODO(synk): eval-mode BatchNorm (running stats) is not modeled; this uses
    # train-mode batch statistics (biased variance) with gamma=1/beta=0, which
    # matches a freshly constructed PyTorch model in train().  The batch-coupled
    # statistics are also why the head stays a single (un-tiled) program.
    s = jnp.maximum(z[:, :SEL_HID], 0.0)
    mu = jnp.mean(s, axis=0, keepdims=True)
    var = jnp.mean((s - mu) * (s - mu), axis=0, keepdims=True)
    s = (s - mu) * jax.lax.rsqrt(var + BN_EPS) * gamma_ref[...] + beta_ref[...]
    gl = jnp.dot(s.astype(jnp.bfloat16), w2_ref[...],
                 preferred_element_type=jnp.float32) + b2_ref[...]
    gl1 = gl[:, :1]
    e = jnp.exp(-jnp.abs(gl1))                               # stable sigmoid
    g_ref[...] = jnp.where(gl1 >= 0.0, 1.0 / (1.0 + e), e / (1.0 + e))


def selective_head(x_flat, head_params, out_dim):
    n = x_flat.shape[0]
    kernel = functools.partial(_head_kernel, out_dim=out_dim,
                               cls_off=SEL_HID, aux_off=SEL_HID + CLS_PAD)
    vmem = pl.BlockSpec(memory_space=pltpu.MemorySpace.VMEM)   # whole array in VMEM
    return pl.pallas_call(
        kernel,
        out_shape=(jax.ShapeDtypeStruct((n, out_dim), jnp.float32),
                   jax.ShapeDtypeStruct((n, 1), jnp.float32),
                   jax.ShapeDtypeStruct((n, out_dim), jnp.float32)),
        in_specs=[vmem] * 7,
        out_specs=(vmem, vmem, vmem),
    )(x_flat, head_params["wcat"], head_params["bcat"],
      head_params["gamma"], head_params["beta"],
      head_params["w2"], head_params["b2"])


# ----------------------------------------------------------------------------
# Parameter init (mirrors SelVGG._initialize_weights) and kernel-layout packing
# ----------------------------------------------------------------------------
def init_params(key, out_dim=10):
    params = {"convs": []}
    cin = IN_CH
    for cout in CONV_CHANNELS:
        key, kw = jax.random.split(key)
        std = math.sqrt(2.0 / (3 * 3 * cout))      # Conv2d: N(0, sqrt(2/n)), bias 0
        w = jax.random.normal(kw, (3, 3, cin, cout), jnp.float32) * std
        params["convs"].append((w, jnp.zeros((cout,), jnp.float32)))
        cin = cout

    def linear(k, d_in, d_out):                    # Linear: N(0, 0.01), bias 0
        return (jax.random.normal(k, (d_in, d_out), jnp.float32) * 0.01,
                jnp.zeros((d_out,), jnp.float32))

    key, kc, ks1, ks2, ka = jax.random.split(key, 5)
    params["wc"], params["bc"] = linear(kc, FEAT_DIM, out_dim)      # dense_class
    params["ws1"], params["bs1"] = linear(ks1, FEAT_DIM, SEL_HID)   # dense_selec_1
    params["ws2"], params["bs2"] = linear(ks2, SEL_HID, 1)          # dense_selec_2
    params["wa"], params["ba"] = linear(ka, FEAT_DIM, out_dim)      # dense_auxil
    params["gamma"] = jnp.ones((SEL_HID,), jnp.float32)             # BatchNorm1d
    params["beta"] = jnp.zeros((SEL_HID,), jnp.float32)
    return params


def pack_params(params, out_dim=10):
    """Repack PyTorch-layout parameters into the kernel-friendly layout."""
    assert out_dim <= CLS_PAD
    # Conv weights: (3,3,Cin,Cout) -> (9*Cin, Cout) rows ordered (ki, kj, cin);
    # bf16 operands (f32 accumulation in the kernel), biases kept f32.
    convs = tuple((w.reshape(-1, w.shape[-1]).astype(jnp.bfloat16), b[None, :])
                  for w, b in params["convs"])

    # The feature kernel flattens features in (h, w, c) order while PyTorch's
    # x.view(N, -1) flattens in (c, h, w) order: permute the rows of every
    # x-facing Linear weight so the fused matmul reproduces PyTorch exactly.
    hw = jnp.arange(FEAT_HW * FEAT_HW)
    cc = jnp.arange(CONV_CHANNELS[-1])
    perm = (cc[None, :] * (FEAT_HW * FEAT_HW) + hw[:, None]).reshape(-1)

    def pad_cols(w, width):
        return jnp.pad(w, ((0, 0), (0, width - w.shape[1])))

    # Concatenated head weight: [selec_1 (512) | class (pad->128) | auxil (pad->128)]
    wcat = jnp.concatenate([params["ws1"],
                            pad_cols(params["wc"], CLS_PAD),
                            pad_cols(params["wa"], CLS_PAD)], axis=1)   # (512, 768)
    wcat = wcat[perm, :].astype(jnp.bfloat16)
    bcat = jnp.concatenate([params["bs1"],
                            jnp.pad(params["bc"], (0, CLS_PAD - out_dim)),
                            jnp.pad(params["ba"], (0, CLS_PAD - out_dim))])[None, :]
    head = {
        "wcat": wcat,
        "bcat": bcat,
        "gamma": params["gamma"][None, :],
        "beta": params["beta"][None, :],
        "w2": pad_cols(params["ws2"], CLS_PAD).astype(jnp.bfloat16),    # (512, 128)
        "b2": jnp.pad(params["bs2"], (0, CLS_PAD - 1))[None, :],
    }
    return convs, head


# ----------------------------------------------------------------------------
# Full forward
# ----------------------------------------------------------------------------
def _im2col_layer1(x_nhwc):
    """Wrapper-side im2col of the 3-channel input: (N,32,32,3) -> (N,1024,27) bf16."""
    n = x_nhwc.shape[0]
    xp = jnp.pad(x_nhwc, ((0, 0), (1, 1), (1, 1), (0, 0)))
    taps = [xp[:, ki:ki + IMG, kj:kj + IMG, :]
            for ki in range(3) for kj in range(3)]
    patches = jnp.concatenate(taps, axis=-1)               # (N, 32, 32, 27)
    return patches.reshape(n, IMG * IMG, 9 * IN_CH).astype(jnp.bfloat16)


def sel_vgg_forward(x_nchw, conv_params, head_params, out_dim):
    # NCHW (PyTorch) -> NHWC for the TPU kernels (channels on the lane axis).
    x = jnp.transpose(x_nchw, (0, 2, 3, 1)).astype(jnp.float32)
    patches = _im2col_layer1(x)                              # (N, 1024, 27) bf16
    n = x.shape[0]
    bt = min(BATCH_TILE, n)                                  # batch tile per grid step
    x_flat = extract_features(patches, conv_params, bt)      # lane-dense (N, 512)
    h, g, a = selective_head(x_flat, head_params, out_dim)
    hg = jnp.concatenate([h, g], axis=1)                     # torch.cat([h, g], 1)
    return hg, a


if __name__ == "__main__":
    OUT_DIM = 10
    key = jax.random.PRNGKey(0)
    k_in, k_par = jax.random.split(key)
    x = jax.random.normal(k_in, (2, IN_CH, IMG, IMG), jnp.float32)   # NCHW input
    raw_params = init_params(k_par, out_dim=OUT_DIM)
    conv_p, head_p = pack_params(raw_params, out_dim=OUT_DIM)

    fwd = jax.jit(lambda inp: sel_vgg_forward(inp, conv_p, head_p, OUT_DIM))
    hg, a = fwd(x)
    jax.block_until_ready((hg, a))

    assert hg.shape == (2, OUT_DIM + 1)
    assert a.shape == (2, OUT_DIM)
    assert bool(jnp.all(jnp.isfinite(hg))) and bool(jnp.all(jnp.isfinite(a)))
    # softmax rows sum to 1, selector in [0, 1]
    assert bool(jnp.allclose(jnp.sum(hg[:, :OUT_DIM], axis=1), 1.0, atol=1e-3))
    assert bool(jnp.allclose(jnp.sum(a, axis=1), 1.0, atol=1e-3))
    assert bool(jnp.all((hg[:, OUT_DIM] >= 0.0) & (hg[:, OUT_DIM] <= 1.0)))
    print("KERNEL_OK")
</pallas_src>

<mosaic_0001>
module attributes {stable_mosaic.version = 11 : i64} {
  func.func @_features_kernel(%arg0: i32, %arg1: memref<2x1024x27xbf16, #tpu.memory_space<vmem>>, %arg2: memref<27x8xbf16, #tpu.memory_space<vmem>>, %arg3: memref<1x8xf32, #tpu.memory_space<vmem>>, %arg4: memref<72x16xbf16, #tpu.memory_space<vmem>>, %arg5: memref<1x16xf32, #tpu.memory_space<vmem>>, %arg6: memref<144x32xbf16, #tpu.memory_space<vmem>>, %arg7: memref<1x32xf32, #tpu.memory_space<vmem>>, %arg8: memref<2x512xf32, #tpu.memory_space<vmem>>, %arg9: memref<2x16x32x8xf32, #tpu.memory_space<vmem>>, %arg10: memref<2x18x18x8xf32, #tpu.memory_space<vmem>>, %arg11: memref<512x72xbf16, #tpu.memory_space<vmem>>, %arg12: memref<2x8x16x16xf32, #tpu.memory_space<vmem>>, %arg13: memref<2x10x10x16xf32, #tpu.memory_space<vmem>>, %arg14: memref<128x144xbf16, #tpu.memory_space<vmem>>, %arg15: memref<2x4x8x32xf32, #tpu.memory_space<vmem>>) attributes {dimension_semantics = [#tpu.dimension_semantics<parallel>], iteration_bounds = array<i64: 1>, scalar_prefetch = 0 : i64, scratch_operands = 7 : i64, tpu.core_type = #tpu.core_type<tc>, window_params = [{transform_indices = @transform_0, window_bounds = array<i64: 2, 1024, 27>}, {pipeline_mode = #tpu.pipeline_mode<synchronous>, transform_indices = @transform_1, window_bounds = array<i64: 27, 8>}, {pipeline_mode = #tpu.pipeline_mode<synchronous>, transform_indices = @transform_2, window_bounds = array<i64: 1, 8>}, {pipeline_mode = #tpu.pipeline_mode<synchronous>, transform_indices = @transform_3, window_bounds = array<i64: 72, 16>}, {pipeline_mode = #tpu.pipeline_mode<synchronous>, transform_indices = @transform_4, window_bounds = array<i64: 1, 16>}, {pipeline_mode = #tpu.pipeline_mode<synchronous>, transform_indices = @transform_5, window_bounds = array<i64: 144, 32>}, {pipeline_mode = #tpu.pipeline_mode<synchronous>, transform_indices = @transform_6, window_bounds = array<i64: 1, 32>}, {transform_indices = @transform_7, window_bounds = array<i64: 2, 512>}]} {
    %c0 = arith.constant 0 : index
    %c0_0 = arith.constant 0 : index
    %c0_1 = arith.constant 0 : index
    %0 = vector.load %arg1[%c0, %c0_0, %c0_1] : memref<2x1024x27xbf16, #tpu.memory_space<vmem>>, vector<2x1024x27xbf16>
    %1 = vector.shape_cast %0 : vector<2x1024x27xbf16> to vector<2048x27xbf16>
    %c0_2 = arith.constant 0 : index
    %c0_3 = arith.constant 0 : index
    %2 = vector.load %arg2[%c0_2, %c0_3] : memref<27x8xbf16, #tpu.memory_space<vmem>>, vector<27x8xbf16>
    %cst = arith.constant dense<0.000000e+00> : vector<2048x8xf32>
    %3 = tpu.matmul %1, %2, %cst {dimension_numbers = #tpu.dot_dimension_numbers<[1], [0], [0], [1], [0, 0, 1, 1], [], []>} : vector<2048x27xbf16>, vector<27x8xbf16>, vector<2048x8xf32> -> vector<2048x8xf32>
    %c0_4 = arith.constant 0 : index
    %c0_5 = arith.constant 0 : index
    %4 = vector.load %arg3[%c0_4, %c0_5] : memref<1x8xf32, #tpu.memory_space<vmem>>, vector<1x8xf32>
    %5 = vector.broadcast %4 : vector<1x8xf32> to vector<2048x8xf32>
    %6 = arith.addf %3, %5 : vector<2048x8xf32>
    %cst_6 = arith.constant 0.000000e+00 : f32
    %7 = vector.broadcast %cst_6 : f32 to vector<2048x8xf32>
    %8 = arith.maximumf %6, %7 : vector<2048x8xf32>
    %9 = vector.shape_cast %8 : vector<2048x8xf32> to vector<2x16x2x32x8xf32>
    %10 = vector.extract_strided_slice %9 {offsets = [0, 0, 0, 0, 0], sizes = [2, 16, 1, 32, 8], strides = [1, 1, 1, 1, 1]} : vector<2x16x2x32x8xf32> to vector<2x16x1x32x8xf32>
    %11 = vector.shape_cast %10 : vector<2x16x1x32x8xf32> to vector<2x16x32x8xf32>
    %12 = vector.extract_strided_slice %9 {offsets = [0, 0, 1, 0, 0], sizes = [2, 16, 1, 32, 8], strides = [1, 1, 1, 1, 1]} : vector<2x16x2x32x8xf32> to vector<2x16x1x32x8xf32>
    %13 = vector.shape_cast %12 : vector<2x16x1x32x8xf32> to vector<2x16x32x8xf32>
    %14 = arith.maximumf %11, %13 : vector<2x16x32x8xf32>
    %c0_7 = arith.constant 0 : index
    %c0_8 = arith.constant 0 : index
    %c0_9 = arith.constant 0 : index
    %c0_10 = arith.constant 0 : index
    %15 = vector.load %arg9[%c0_7, %c0_8, %c0_9, %c0_10] : memref<2x16x32x8xf32, #tpu.memory_space<vmem>>, vector<2x16x32x8xf32>
    tpu.vector_store %arg9[%c0_7, %c0_8, %c0_9, %c0_10], %14 {strides = array<i32>} : memref<2x16x32x8xf32, #tpu.memory_space<vmem>>, vector<2x16x32x8xf32>,
    %c0_11 = arith.constant 0 : index
    %c0_12 = arith.constant 0 : index
    %c0_13 = arith.constant 0 : index
    %c0_14 = arith.constant 0 : index
    %16 = tpu.strided_load %arg9[%c0_11, %c0_12, %c0_13, %c0_14] {strides = array<i32: 1, 1, 2, 1>} : memref<2x16x32x8xf32, #tpu.memory_space<vmem>>, vector<2x16x16x8xf32>
    %c0_15 = arith.constant 0 : index
    %c0_16 = arith.constant 0 : index
    %c1 = arith.constant 1 : index
    %c0_17 = arith.constant 0 : index
    %17 = tpu.strided_load %arg9[%c0_15, %c0_16, %c1, %c0_17] {strides = array<i32: 1, 1, 2, 1>} : memref<2x16x32x8xf32, #tpu.memory_space<vmem>>, vector<2x16x16x8xf32>
    %18 = arith.maximumf %16, %17 : vector<2x16x16x8xf32>
    %cst_18 = arith.constant 0.000000e+00 : f32
    %19 = vector.broadcast %cst_18 : f32 to vector<2x1x18x8xf32>
    %c0_19 = arith.constant 0 : index
    %c0_20 = arith.constant 0 : index
    %c0_21 = arith.constant 0 : index
    %c0_22 = arith.constant 0 : index
    %20 = vector.load %arg10[%c0_19, %c0_20, %c0_21, %c0_22] : memref<2x18x18x8xf32, #tpu.memory_space<vmem>>, vector<2x1x18x8xf32>
    tpu.vector_store %arg10[%c0_19, %c0_20, %c0_21, %c0_22], %19 {strides = array<i32>} : memref<2x18x18x8xf32, #tpu.memory_space<vmem>>, vector<2x1x18x8xf32>,
    %cst_23 = arith.constant 0.000000e+00 : f32
    %21 = vector.broadcast %cst_23 : f32 to vector<2x1x18x8xf32>
    %c0_24 = arith.constant 0 : index
    %c17 = arith.constant 17 : index
    %c0_25 = arith.constant 0 : index
    %c0_26 = arith.constant 0 : index
    %22 = vector.load %arg10[%c0_24, %c17, %c0_25, %c0_26] : memref<2x18x18x8xf32, #tpu.memory_space<vmem>>, vector<2x1x18x8xf32>
    tpu.vector_store %arg10[%c0_24, %c17, %c0_25, %c0_26], %21 {strides = array<i32>} : memref<2x18x18x8xf32, #tpu.memory_space<vmem>>, vector<2x1x18x8xf32>,
    %cst_27 = arith.constant 0.000000e+00 : f32
    %23 = vector.broadcast %cst_27 : f32 to vector<2x18x1x8xf32>
    %c0_28 = arith.constant 0 : index
    %c0_29 = arith.constant 0 : index
    %c0_30 = arith.constant 0 : index
    %c0_31 = arith.constant 0 : index
    %24 = vector.load %arg10[%c0_28, %c0_29, %c0_30, %c0_31] : memref<2x18x18x8xf32, #tpu.memory_space<vmem>>, vector<2x18x1x8xf32>
    tpu.vector_store %arg10[%c0_28, %c0_29, %c0_30, %c0_31], %23 {strides = array<i32>} : memref<2x18x18x8xf32, #tpu.memory_space<vmem>>, vector<2x18x1x8xf32>,
    %cst_32 = arith.constant 0.000000e+00 : f32
    %25 = vector.broadcast %cst_32 : f32 to vector<2x18x1x8xf32>
    %c0_33 = arith.constant 0 : index
    %c0_34 = arith.constant 0 : index
    %c17_35 = arith.constant 17 : index
    %c0_36 = arith.constant 0 : index
    %26 = vector.load %arg10[%c0_33, %c0_34, %c17_35, %c0_36] : memref<2x18x18x8xf32, #tpu.memory_space<vmem>>, vector<2x18x1x8xf32>
    tpu.vector_store %arg10[%c0_33, %c0_34, %c17_35, %c0_36], %25 {strides = array<i32>} : memref<2x18x18x8xf32, #tpu.memory_space<vmem>>, vector<2x18x1x8xf32>,
    %c0_37 = arith.constant 0 : index
    %c1_38 = arith.constant 1 : index
    %c1_39 = arith.constant 1 : index
    %c0_40 = arith.constant 0 : index
    %27 = vector.load %arg10[%c0_37, %c1_38, %c1_39, %c0_40] : memref<2x18x18x8xf32, #tpu.memory_space<vmem>>, vector<2x16x16x8xf32>
    tpu.vector_store %arg10[%c0_37, %c1_38, %c1_39, %c0_40], %18 {strides = array<i32>} : memref<2x18x18x8xf32, #tpu.memory_space<vmem>>, vector<2x16x16x8xf32>,
    %c0_41 = arith.constant 0 : index
    %c0_42 = arith.constant 0 : index
    %c0_43 = arith.constant 0 : index
    %c0_44 = arith.constant 0 : index
    %28 = vector.load %arg10[%c0_41, %c0_42, %c0_43, %c0_44] : memref<2x18x18x8xf32, #tpu.memory_space<vmem>>, vector<2x16x16x8xf32>
    %29 = vector.shape_cast %28 : vector<2x16x16x8xf32> to vector<512x8xf32>
    %30 = arith.truncf %29 : vector<512x8xf32> to vector<512x8xbf16>
    %c0_45 = arith.constant 0 : index
    %c0_46 = arith.constant 0 : index
    %31 = vector.load %arg11[%c0_45, %c0_46] : memref<512x72xbf16, #tpu.memory_space<vmem>>, vector<512x8xbf16>
    tpu.vector_store %arg11[%c0_45, %c0_46], %30 {strides = array<i32>} : memref<512x72xbf16, #tpu.memory_space<vmem>>, vector<512x8xbf16>,
    %c0_47 = arith.constant 0 : index
    %c0_48 = arith.constant 0 : index
    %c1_49 = arith.constant 1 : index
    %c0_50 = arith.constant 0 : index
    %32 = vector.load %arg10[%c0_47, %c0_48, %c1_49, %c0_50] : memref<2x18x18x8xf32, #tpu.memory_space<vmem>>, vector<2x16x16x8xf32>
    %33 = vector.shape_cast %32 : vector<2x16x16x8xf32> to vector<512x8xf32>
    %34 = arith.truncf %33 : vector<512x8xf32> to vector<512x8xbf16>
    %c0_51 = arith.constant 0 : index
    %c8 = arith.constant 8 : index
    %35 = vector.load %arg11[%c0_51, %c8] : memref<512x72xbf16, #tpu.memory_space<vmem>>, vector<512x8xbf16>
    tpu.vector_store %arg11[%c0_51, %c8], %34 {strides = array<i32>} : memref<512x72xbf16, #tpu.memory_space<vmem>>, vector<512x8xbf16>,
    %c0_52 = arith.constant 0 : index
    %c0_53 = arith.constant 0 : index
    %c2 = arith.constant 2 : index
    %c0_54 = arith.constant 0 : index
    %36 = vector.load %arg10[%c0_52, %c0_53, %c2, %c0_54] : memref<2x18x18x8xf32, #tpu.memory_space<vmem>>, vector<2x16x16x8xf32>
    %37 = vector.shape_cast %36 : vector<2x16x16x8xf32> to vector<512x8xf32>
    %38 = arith.truncf %37 : vector<512x8xf32> to vector<512x8xbf16>
    %c0_55 = arith.constant 0 : index
    %c16 = arith.constant 16 : index
    %39 = vector.load %arg11[%c0_55, %c16] : memref<512x72xbf16, #tpu.memory_space<vmem>>, vector<512x8xbf16>
    tpu.vector_store %arg11[%c0_55, %c16], %38 {strides = array<i32>} : memref<512x72xbf16, #tpu.memory_space<vmem>>, vector<512x8xbf16>,
    %c0_56 = arith.constant 0 : index
    %c1_57 = arith.constant 1 : index
    %c0_58 = arith.constant 0 : index
    %c0_59 = arith.constant 0 : index
    %40 = vector.load %arg10[%c0_56, %c1_57, %c0_58, %c0_59] : memref<2x18x18x8xf32, #tpu.memory_space<vmem>>, vector<2x16x16x8xf32>
    %41 = vector.shape_cast %40 : vector<2x16x16x8xf32> to vector<512x8xf32>
    %42 = arith.truncf %41 : vector<512x8xf32> to vector<512x8xbf16>
    %c0_60 = arith.constant 0 : index
    %c24 = arith.constant 24 : index
    %43 = vector.load %arg11[%c0_60, %c24] : memref<512x72xbf16, #tpu.memory_space<vmem>>, vector<512x8xbf16>
    tpu.vector_store %arg11[%c0_60, %c24], %42 {strides = array<i32>} : memref<512x72xbf16, #tpu.memory_space<vmem>>, vector<512x8xbf16>,
    %c0_61 = arith.constant 0 : index
    %c1_62 = arith.constant 1 : index
    %c1_63 = arith.constant 1 : index
    %c0_64 = arith.constant 0 : index
    %44 = vector.load %arg10[%c0_61, %c1_62, %c1_63, %c0_64] : memref<2x18x18x8xf32, #tpu.memory_space<vmem>>, vector<2x16x16x8xf32>
    %45 = vector.shape_cast %44 : vector<2x16x16x8xf32> to vector<512x8xf32>
    %46 = arith.truncf %45 : vector<512x8xf32> to vector<512x8xbf16>
    %c0_65 = arith.constant 0 : index
    %c32 = arith.constant 32 : index
    %47 = vector.load %arg11[%c0_65, %c32] : memref<512x72xbf16, #tpu.memory_space<vmem>>, vector<512x8xbf16>
    tpu.vector_store %arg11[%c0_65, %c32], %46 {strides = array<i32>} : memref<512x72xbf16, #tpu.memory_space<vmem>>, vector<512x8xbf16>,
    %c0_66 = arith.constant 0 : index
    %c1_67 = arith.constant 1 : index
    %c2_68 = arith.constant 2 : index
    %c0_69 = arith.constant 0 : index
    %48 = vector.load %arg10[%c0_66, %c1_67, %c2_68, %c0_69] : memref<2x18x18x8xf32, #tpu.memory_space<vmem>>, vector<2x16x16x8xf32>
    %49 = vector.shape_cast %48 : vector<2x16x16x8xf32> to vector<512x8xf32>
    %50 = arith.truncf %49 : vector<512x8xf32> to vector<512x8xbf16>
    %c0_70 = arith.constant 0 : index
    %c40 = arith.constant 40 : index
    %51 = vector.load %arg11[%c0_70, %c40] : memref<512x72xbf16, #tpu.memory_space<vmem>>, vector<512x8xbf16>
    tpu.vector_store %arg11[%c0_70, %c40], %50 {strides = array<i32>} : memref<512x72xbf16, #tpu.memory_space<vmem>>, vector<512x8xbf16>,
    %c0_71 = arith.constant 0 : index
    %c2_72 = arith.constant 2 : index
    %c0_73 = arith.constant 0 : index
    %c0_74 = arith.constant 0 : index
    %52 = vector.load %arg10[%c0_71, %c2_72, %c0_73, %c0_74] : memref<2x18x18x8xf32, #tpu.memory_space<vmem>>, vector<2x16x16x8xf32>
    %53 = vector.shape_cast %52 : vector<2x16x16x8xf32> to vector<512x8xf32>
    %54 = arith.truncf %53 : vector<512x8xf32> to vector<512x8xbf16>
    %c0_75 = arith.constant 0 : index
    %c48 = arith.constant 48 : index
    %55 = vector.load %arg11[%c0_75, %c48] : memref<512x72xbf16, #tpu.memory_space<vmem>>, vector<512x8xbf16>
    tpu.vector_store %arg11[%c0_75, %c48], %54 {strides = array<i32>} : memref<512x72xbf16, #tpu.memory_space<vmem>>, vector<512x8xbf16>,
    %c0_76 = arith.constant 0 : index
    %c2_77 = arith.constant 2 : index
    %c1_78 = arith.constant 1 : index
    %c0_79 = arith.constant 0 : index
    %56 = vector.load %arg10[%c0_76, %c2_77, %c1_78, %c0_79] : memref<2x18x18x8xf32, #tpu.memory_space<vmem>>, vector<2x16x16x8xf32>
    %57 = vector.shape_cast %56 : vector<2x16x16x8xf32> to vector<512x8xf32>
    %58 = arith.truncf %57 : vector<512x8xf32> to vector<512x8xbf16>
    %c0_80 = arith.constant 0 : index
    %c56 = arith.constant 56 : index
    %59 = vector.load %arg11[%c0_80, %c56] : memref<512x72xbf16, #tpu.memory_space<vmem>>, vector<512x8xbf16>
    tpu.vector_store %arg11[%c0_80, %c56], %58 {strides = array<i32>} : memref<512x72xbf16, #tpu.memory_space<vmem>>, vector<512x8xbf16>,
    %c0_81 = arith.constant 0 : index
    %c2_82 = arith.constant 2 : index
    %c2_83 = arith.constant 2 : index
    %c0_84 = arith.constant 0 : index
    %60 = vector.load %arg10[%c0_81, %c2_82, %c2_83, %c0_84] : memref<2x18x18x8xf32, #tpu.memory_space<vmem>>, vector<2x16x16x8xf32>
    %61 = vector.shape_cast %60 : vector<2x16x16x8xf32> to vector<512x8xf32>
    %62 = arith.truncf %61 : vector<512x8xf32> to vector<512x8xbf16>
    %c0_85 = arith.constant 0 : index
    %c64 = arith.constant 64 : index
    %63 = vector.load %arg11[%c0_85, %c64] : memref<512x72xbf16, #tpu.memory_space<vmem>>, vector<512x8xbf16>
    tpu.vector_store %arg11[%c0_85, %c64], %62 {strides = array<i32>} : memref<512x72xbf16, #tpu.memory_space<vmem>>, vector<512x8xbf16>,
    %c0_86 = arith.constant 0 : index
    %c0_87 = arith.constant 0 : index
    %64 = vector.load %arg11[%c0_86, %c0_87] : memref<512x72xbf16, #tpu.memory_space<vmem>>, vector<512x72xbf16>
    %c0_88 = arith.constant 0 : index
    %c0_89 = arith.constant 0 : index
    %65 = vector.load %arg4[%c0_88, %c0_89] : memref<72x16xbf16, #tpu.memory_space<vmem>>, vector<72x16xbf16>
    %cst_90 = arith.constant dense<0.000000e+00> : vector<512x16xf32>
    %66 = tpu.matmul %64, %65, %cst_90 {dimension_numbers = #tpu.dot_dimension_numbers<[1], [0], [0], [1], [0, 0, 1, 1], [], []>} : vector<512x72xbf16>, vector<72x16xbf16>, vector<512x16xf32> -> vector<512x16xf32>
    %c0_91 = arith.constant 0 : index
    %c0_92 = arith.constant 0 : index
    %67 = vector.load %arg5[%c0_91, %c0_92] : memref<1x16xf32, #tpu.memory_space<vmem>>, vector<1x16xf32>
    %68 = vector.broadcast %67 : vector<1x16xf32> to vector<512x16xf32>
    %69 = arith.addf %66, %68 : vector<512x16xf32>
    %cst_93 = arith.constant 0.000000e+00 : f32
    %70 = vector.broadcast %cst_93 : f32 to vector<512x16xf32>
    %71 = arith.maximumf %69, %70 : vector<512x16xf32>
    %72 = vector.shape_cast %71 : vector<512x16xf32> to vector<2x8x2x16x16xf32>
    %73 = vector.extract_strided_slice %72 {offsets = [0, 0, 0, 0, 0], sizes = [2, 8, 1, 16, 16], strides = [1, 1, 1, 1, 1]} : vector<2x8x2x16x16xf32> to vector<2x8x1x16x16xf32>
    %74 = vector.shape_cast %73 : vector<2x8x1x16x16xf32> to vector<2x8x16x16xf32>
    %75 = vector.extract_strided_slice %72 {offsets = [0, 0, 1, 0, 0], sizes = [2, 8, 1, 16, 16], strides = [1, 1, 1, 1, 1]} : vector<2x8x2x16x16xf32> to vector<2x8x1x16x16xf32>
    %76 = vector.shape_cast %75 : vector<2x8x1x16x16xf32> to vector<2x8x16x16xf32>
    %77 = arith.maximumf %74, %76 : vector<2x8x16x16xf32>
    %c0_94 = arith.constant 0 : index
    %c0_95 = arith.constant 0 : index
    %c0_96 = arith.constant 0 : index
    %c0_97 = arith.constant 0 : index
    %78 = vector.load %arg12[%c0_94, %c0_95, %c0_96, %c0_97] : memref<2x8x16x16xf32, #tpu.memory_space<vmem>>, vector<2x8x16x16xf32>
    tpu.vector_store %arg12[%c0_94, %c0_95, %c0_96, %c0_97], %77 {strides = array<i32>} : memref<2x8x16x16xf32, #tpu.memory_space<vmem>>, vector<2x8x16x16xf32>,
    %c0_98 = arith.constant 0 : index
    %c0_99 = arith.constant 0 : index
    %c0_100 = arith.constant 0 : index
    %c0_101 = arith.constant 0 : index
    %79 = tpu.strided_load %arg12[%c0_98, %c0_99, %c0_100, %c0_101] {strides = array<i32: 1, 1, 2, 1>} : memref<2x8x16x16xf32, #tpu.memory_space<vmem>>, vector<2x8x8x16xf32>
    %c0_102 = arith.constant 0 : index
    %c0_103 = arith.constant 0 : index
    %c1_104 = arith.constant 1 : index
    %c0_105 = arith.constant 0 : index
    %80 = tpu.strided_load %arg12[%c0_102, %c0_103, %c1_104, %c0_105] {strides = array<i32: 1, 1, 2, 1>} : memref<2x8x16x16xf32, #tpu.memory_space<vmem>>, vector<2x8x8x16xf32>
    %81 = arith.maximumf %79, %80 : vector<2x8x8x16xf32>
    %cst_106 = arith.constant 0.000000e+00 : f32
    %82 = vector.broadcast %cst_106 : f32 to vector<2x1x10x16xf32>
    %c0_107 = arith.constant 0 : index
    %c0_108 = arith.constant 0 : index
    %c0_109 = arith.constant 0 : index
    %c0_110 = arith.constant 0 : index
    %83 = vector.load %arg13[%c0_107, %c0_108, %c0_109, %c0_110] : memref<2x10x10x16xf32, #tpu.memory_space<vmem>>, vector<2x1x10x16xf32>
    tpu.vector_store %arg13[%c0_107, %c0_108, %c0_109, %c0_110], %82 {strides = array<i32>} : memref<2x10x10x16xf32, #tpu.memory_space<vmem>>, vector<2x1x10x16xf32>,
    %cst_111 = arith.constant 0.000000e+00 : f32
    %84 = vector.broadcast %cst_111 : f32 to vector<2x1x10x16xf32>
    %c0_112 = arith.constant 0 : index
    %c9 = arith.constant 9 : index
    %c0_113 = arith.constant 0 : index
    %c0_114 = arith.constant 0 : index
    %85 = vector.load %arg13[%c0_112, %c9, %c0_113, %c0_114] : memref<2x10x10x16xf32, #tpu.memory_space<vmem>>, vector<2x1x10x16xf32>
    tpu.vector_store %arg13[%c0_112, %c9, %c0_113, %c0_114], %84 {strides = array<i32>} : memref<2x10x10x16xf32, #tpu.memory_space<vmem>>, vector<2x1x10x16xf32>,
    %cst_115 = arith.constant 0.000000e+00 : f32
    %86 = vector.broadcast %cst_115 : f32 to vector<2x10x1x16xf32>
    %c0_116 = arith.constant 0 : index
    %c0_117 = arith.constant 0 : index
    %c0_118 = arith.constant 0 : index
    %c0_119 = arith.constant 0 : index
    %87 = vector.load %arg13[%c0_116, %c0_117, %c0_118, %c0_119] : memref<2x10x10x16xf32, #tpu.memory_space<vmem>>, vector<2x10x1x16xf32>
    tpu.vector_store %arg13[%c0_116, %c0_117, %c0_118, %c0_119], %86 {strides = array<i32>} : memref<2x10x10x16xf32, #tpu.memory_space<vmem>>, vector<2x10x1x16xf32>,
    %cst_120 = arith.constant 0.000000e+00 : f32
    %88 = vector.broadcast %cst_120 : f32 to vector<2x10x1x16xf32>
    %c0_121 = arith.constant 0 : index
    %c0_122 = arith.constant 0 : index
    %c9_123 = arith.constant 9 : index
    %c0_124 = arith.constant 0 : index
    %89 = vector.load %arg13[%c0_121, %c0_122, %c9_123, %c0_124] : memref<2x10x10x16xf32, #tpu.memory_space<vmem>>, vector<2x10x1x16xf32>
    tpu.vector_store %arg13[%c0_121, %c0_122, %c9_123, %c0_124], %88 {strides = array<i32>} : memref<2x10x10x16xf32, #tpu.memory_space<vmem>>, vector<2x10x1x16xf32>,
    %c0_125 = arith.constant 0 : index
    %c1_126 = arith.constant 1 : index
    %c1_127 = arith.constant 1 : index
    %c0_128 = arith.constant 0 : index
    %90 = vector.load %arg13[%c0_125, %c1_126, %c1_127, %c0_128] : memref<2x10x10x16xf32, #tpu.memory_space<vmem>>, vector<2x8x8x16xf32>
    tpu.vector_store %arg13[%c0_125, %c1_126, %c1_127, %c0_128], %81 {strides = array<i32>} : memref<2x10x10x16xf32, #tpu.memory_space<vmem>>, vector<2x8x8x16xf32>,
    %c0_129 = arith.constant 0 : index
    %c0_130 = arith.constant 0 : index
    %c0_131 = arith.constant 0 : index
    %c0_132 = arith.constant 0 : index
    %91 = vector.load %arg13[%c0_129, %c0_130, %c0_131, %c0_132] : memref<2x10x10x16xf32, #tpu.memory_space<vmem>>, vector<2x8x8x16xf32>
    %92 = vector.shape_cast %91 : vector<2x8x8x16xf32> to vector<128x16xf32>
    %93 = arith.truncf %92 : vector<128x16xf32> to vector<128x16xbf16>
    %c0_133 = arith.constant 0 : index
    %c0_134 = arith.constant 0 : index
    %94 = vector.load %arg14[%c0_133, %c0_134] : memref<128x144xbf16, #tpu.memory_space<vmem>>, vector<128x16xbf16>
    tpu.vector_store %arg14[%c0_133, %c0_134], %93 {strides = array<i32>} : memref<128x144xbf16, #tpu.memory_space<vmem>>, vector<128x16xbf16>,
    %c0_135 = arith.constant 0 : index
    %c0_136 = arith.constant 0 : index
    %c1_137 = arith.constant 1 : index
    %c0_138 = arith.constant 0 : index
    %95 = vector.load %arg13[%c0_135, %c0_136, %c1_137, %c0_138] : memref<2x10x10x16xf32, #tpu.memory_space<vmem>>, vector<2x8x8x16xf32>
    %96 = vector.shape_cast %95 : vector<2x8x8x16xf32> to vector<128x16xf32>
    %97 = arith.truncf %96 : vector<128x16xf32> to vector<128x16xbf16>
    %c0_139 = arith.constant 0 : index
    %c16_140 = arith.constant 16 : index
    %98 = vector.load %arg14[%c0_139, %c16_140] : memref<128x144xbf16, #tpu.memory_space<vmem>>, vector<128x16xbf16>
    tpu.vector_store %arg14[%c0_139, %c16_140], %97 {strides = array<i32>} : memref<128x144xbf16, #tpu.memory_space<vmem>>, vector<128x16xbf16>,
    %c0_141 = arith.constant 0 : index
    %c0_142 = arith.constant 0 : index
    %c2_143 = arith.constant 2 : index
    %c0_144 = arith.constant 0 : index
    %99 = vector.load %arg13[%c0_141, %c0_142, %c2_143, %c0_144] : memref<2x10x10x16xf32, #tpu.memory_space<vmem>>, vector<2x8x8x16xf32>
    %100 = vector.shape_cast %99 : vector<2x8x8x16xf32> to vector<128x16xf32>
    %101 = arith.truncf %100 : vector<128x16xf32> to vector<128x16xbf16>
    %c0_145 = arith.constant 0 : index
    %c32_146 = arith.constant 32 : index
    %102 = vector.load %arg14[%c0_145, %c32_146] : memref<128x144xbf16, #tpu.memory_space<vmem>>, vector<128x16xbf16>
    tpu.vector_store %arg14[%c0_145, %c32_146], %101 {strides = array<i32>} : memref<128x144xbf16, #tpu.memory_space<vmem>>, vector<128x16xbf16>,
    %c0_147 = arith.constant 0 : index
    %c1_148 = arith.constant 1 : index
    %c0_149 = arith.constant 0 : index
    %c0_150 = arith.constant 0 : index
    %103 = vector.load %arg13[%c0_147, %c1_148, %c0_149, %c0_150] : memref<2x10x10x16xf32, #tpu.memory_space<vmem>>, vector<2x8x8x16xf32>
    %104 = vector.shape_cast %103 : vector<2x8x8x16xf32> to vector<128x16xf32>
    %105 = arith.truncf %104 : vector<128x16xf32> to vector<128x16xbf16>
    %c0_151 = arith.constant 0 : index
    %c48_152 = arith.constant 48 : index
    %106 = vector.load %arg14[%c0_151, %c48_152] : memref<128x144xbf16, #tpu.memory_space<vmem>>, vector<128x16xbf16>
    tpu.vector_store %arg14[%c0_151, %c48_152], %105 {strides = array<i32>} : memref<128x144xbf16, #tpu.memory_space<vmem>>, vector<128x16xbf16>,
    %c0_153 = arith.constant 0 : index
    %c1_154 = arith.constant 1 : index
    %c1_155 = arith.constant 1 : index
    %c0_156 = arith.constant 0 : index
    %107 = vector.load %arg13[%c0_153, %c1_154, %c1_155, %c0_156] : memref<2x10x10x16xf32, #tpu.memory_space<vmem>>, vector<2x8x8x16xf32>
    %108 = vector.shape_cast %107 : vector<2x8x8x16xf32> to vector<128x16xf32>
    %109 = arith.truncf %108 : vector<128x16xf32> to vector<128x16xbf16>
    %c0_157 = arith.constant 0 : index
    %c64_158 = arith.constant 64 : index
    %110 = vector.load %arg14[%c0_157, %c64_158] : memref<128x144xbf16, #tpu.memory_space<vmem>>, vector<128x16xbf16>
    tpu.vector_store %arg14[%c0_157, %c64_158], %109 {strides = array<i32>} : memref<128x144xbf16, #tpu.memory_space<vmem>>, vector<128x16xbf16>,
    %c0_159 = arith.constant 0 : index
    %c1_160 = arith.constant 1 : index
    %c2_161 = arith.constant 2 : index
    %c0_162 = arith.constant 0 : index
    %111 = vector.load %arg13[%c0_159, %c1_160, %c2_161, %c0_162] : memref<2x10x10x16xf32, #tpu.memory_space<vmem>>, vector<2x8x8x16xf32>
    %112 = vector.shape_cast %111 : vector<2x8x8x16xf32> to vector<128x16xf32>
    %113 = arith.truncf %112 : vector<128x16xf32> to vector<128x16xbf16>
    %c0_163 = arith.constant 0 : index
    %c80 = arith.constant 80 : index
    %114 = vector.load %arg14[%c0_163, %c80] : memref<128x144xbf16, #tpu.memory_space<vmem>>, vector<128x16xbf16>
    tpu.vector_store %arg14[%c0_163, %c80], %113 {strides = array<i32>} : memref<128x144xbf16, #tpu.memory_space<vmem>>, vector<128x16xbf16>,
    %c0_164 = arith.constant 0 : index
    %c2_165 = arith.constant 2 : index
    %c0_166 = arith.constant 0 : index
    %c0_167 = arith.constant 0 : index
    %115 = vector.load %arg13[%c0_164, %c2_165, %c0_166, %c0_167] : memref<2x10x10x16xf32, #tpu.memory_space<vmem>>, vector<2x8x8x16xf32>
    %116 = vector.shape_cast %115 : vector<2x8x8x16xf32> to vector<128x16xf32>
    %117 = arith.truncf %116 : vector<128x16xf32> to vector<128x16xbf16>
    %c0_168 = arith.constant 0 : index
    %c96 = arith.constant 96 : index
    %118 = vector.load %arg14[%c0_168, %c96] : memref<128x144xbf16, #tpu.memory_space<vmem>>, vector<128x16xbf16>
    tpu.vector_store %arg14[%c0_168, %c96], %117 {strides = array<i32>} : memref<128x144xbf16, #tpu.memory_space<vmem>>, vector<128x16xbf16>,
    %c0_169 = arith.constant 0 : index
    %c2_170 = arith.constant 2 : index
    %c1_171 = arith.constant 1 : index
    %c0_172 = arith.constant 0 : index
    %119 = vector.load %arg13[%c0_169, %c2_170, %c1_171, %c0_172] : memref<2x10x10x16xf32, #tpu.memory_space<vmem>>, vector<2x8x8x16xf32>
    %120 = vector.shape_cast %119 : vector<2x8x8x16xf32> to vector<128x16xf32>
    %121 = arith.truncf %120 : vector<128x16xf32> to vector<128x16xbf16>
    %c0_173 = arith.constant 0 : index
    %c112 = arith.constant 112 : index
    %122 = vector.load %arg14[%c0_173, %c112] : memref<128x144xbf16, #tpu.memory_space<vmem>>, vector<128x16xbf16>
    tpu.vector_store %arg14[%c0_173, %c112], %121 {strides = array<i32>} : memref<128x144xbf16, #tpu.memory_space<vmem>>, vector<128x16xbf16>,
    %c0_174 = arith.constant 0 : index
    %c2_175 = arith.constant 2 : index
    %c2_176 = arith.constant 2 : index
    %c0_177 = arith.constant 0 : index
    %123 = vector.load %arg13[%c0_174, %c2_175, %c2_176, %c0_177] : memref<2x10x10x16xf32, #tpu.memory_space<vmem>>, vector<2x8x8x16xf32>
    %124 = vector.shape_cast %123 : vector<2x8x8x16xf32> to vector<128x16xf32>
    %125 = arith.truncf %124 : vector<128x16xf32> to vector<128x16xbf16>
    %c0_178 = arith.constant 0 : index
    %c128 = arith.constant 128 : index
    %126 = vector.load %arg14[%c0_178, %c128] : memref<128x144xbf16, #tpu.memory_space<vmem>>, vector<128x16xbf16>
    tpu.vector_store %arg14[%c0_178, %c128], %125 {strides = array<i32>} : memref<128x144xbf16, #tpu.memory_space<vmem>>, vector<128x16xbf16>,
    %c0_179 = arith.constant 0 : index
    %c0_180 = arith.constant 0 : index
    %127 = vector.load %arg14[%c0_179, %c0_180] : memref<128x144xbf16, #tpu.memory_space<vmem>>, vector<128x144xbf16>
    %c0_181 = arith.constant 0 : index
    %c0_182 = arith.constant 0 : index
    %128 = vector.load %arg6[%c0_181, %c0_182] : memref<144x32xbf16, #tpu.memory_space<vmem>>, vector<144x32xbf16>
    %cst_183 = arith.constant dense<0.000000e+00> : vector<128x32xf32>
    %129 = tpu.matmul %127, %128, %cst_183 {dimension_numbers = #tpu.dot_dimension_numbers<[1], [0], [0], [1], [0, 0, 1, 1], [], []>} : vector<128x144xbf16>, vector<144x32xbf16>, vector<128x32xf32> -> vector<128x32xf32>
    %c0_184 = arith.constant 0 : index
    %c0_185 = arith.constant 0 : index
    %130 = vector.load %arg7[%c0_184, %c0_185] : memref<1x32xf32, #tpu.memory_space<vmem>>, vector<1x32xf32>
    %131 = vector.broadcast %130 : vector<1x32xf32> to vector<128x32xf32>
    %132 = arith.addf %129, %131 : vector<128x32xf32>
    %cst_186 = arith.constant 0.000000e+00 : f32
    %133 = vector.broadcast %cst_186 : f32 to vector<128x32xf32>
    %134 = arith.maximumf %132, %133 : vector<128x32xf32>
    %135 = vector.shape_cast %134 : vector<128x32xf32> to vector<2x4x2x8x32xf32>
    %136 = vector.extract_strided_slice %135 {offsets = [0, 0, 0, 0, 0], sizes = [2, 4, 1, 8, 32], strides = [1, 1, 1, 1, 1]} : vector<2x4x2x8x32xf32> to vector<2x4x1x8x32xf32>
    %137 = vector.shape_cast %136 : vector<2x4x1x8x32xf32> to vector<2x4x8x32xf32>
    %138 = vector.extract_strided_slice %135 {offsets = [0, 0, 1, 0, 0], sizes = [2, 4, 1, 8, 32], strides = [1, 1, 1, 1, 1]} : vector<2x4x2x8x32xf32> to vector<2x4x1x8x32xf32>
    %139 = vector.shape_cast %138 : vector<2x4x1x8x32xf32> to vector<2x4x8x32xf32>
    %140 = arith.maximumf %137, %139 : vector<2x4x8x32xf32>
    %c0_187 = arith.constant 0 : index
    %c0_188 = arith.constant 0 : index
    %c0_189 = arith.constant 0 : index
    %c0_190 = arith.constant 0 : index
    %141 = vector.load %arg15[%c0_187, %c0_188, %c0_189, %c0_190] : memref<2x4x8x32xf32, #tpu.memory_space<vmem>>, vector<2x4x8x32xf32>
    tpu.vector_store %arg15[%c0_187, %c0_188, %c0_189, %c0_190], %140 {strides = array<i32>} : memref<2x4x8x32xf32, #tpu.memory_space<vmem>>, vector<2x4x8x32xf32>,
    %c0_191 = arith.constant 0 : index
    %c0_192 = arith.constant 0 : index
    %c0_193 = arith.constant 0 : index
    %c0_194 = arith.constant 0 : index
    %142 = vector.load %arg15[%c0_191, %c0_192, %c0_193, %c0_194] : memref<2x4x8x32xf32, #tpu.memory_space<vmem>>, vector<2x1x1x32xf32>
    %143 = vector.shape_cast %142 : vector<2x1x1x32xf32> to vector<2x32xf32>
    %c0_195 = arith.constant 0 : index
    %c0_196 = arith.constant 0 : index
    %c1_197 = arith.constant 1 : index
    %c0_198 = arith.constant 0 : index
    %144 = vector.load %arg15[%c0_195, %c0_196, %c1_197, %c0_198] : memref<2x4x8x32xf32, #tpu.memory_space<vmem>>, vector<2x1x1x32xf32>
    %145 = vector.shape_cast %144 : vector<2x1x1x32xf32> to vector<2x32xf32>
    %146 = arith.maximumf %143, %145 : vector<2x32xf32>
    %c0_199 = arith.constant 0 : index
    %c0_200 = arith.constant 0 : index
    %147 = vector.load %arg8[%c0_199, %c0_200] : memref<2x512xf32, #tpu.memory_space<vmem>>, vector<2x32xf32>
    tpu.vector_store %arg8[%c0_199, %c0_200], %146 {strides = array<i32>} : memref<2x512xf32, #tpu.memory_space<vmem>>, vector<2x32xf32>,
    %c0_201 = arith.constant 0 : index
    %c0_202 = arith.constant 0 : index
    %c2_203 = arith.constant 2 : index
    %c0_204 = arith.constant 0 : index
    %148 = vector.load %arg15[%c0_201, %c0_202, %c2_203, %c0_204] : memref<2x4x8x32xf32, #tpu.memory_space<vmem>>, vector<2x1x1x32xf32>
    %149 = vector.shape_cast %148 : vector<2x1x1x32xf32> to vector<2x32xf32>
    %c0_205 = arith.constant 0 : index
    %c0_206 = arith.constant 0 : index
    %c3 = arith.constant 3 : index
    %c0_207 = arith.constant 0 : index
    %150 = vector.load %arg15[%c0_205, %c0_206, %c3, %c0_207] : memref<2x4x8x32xf32, #tpu.memory_space<vmem>>, vector<2x1x1x32xf32>
    %151 = vector.shape_cast %150 : vector<2x1x1x32xf32> to vector<2x32xf32>
    %152 = arith.maximumf %149, %151 : vector<2x32xf32>
    %c0_208 = arith.constant 0 : index
    %c32_209 = arith.constant 32 : index
    %153 = vector.load %arg8[%c0_208, %c32_209] : memref<2x512xf32, #tpu.memory_space<vmem>>, vector<2x32xf32>
    tpu.vector_store %arg8[%c0_208, %c32_209], %152 {strides = array<i32>} : memref<2x512xf32, #tpu.memory_space<vmem>>, vector<2x32xf32>,
    %c0_210 = arith.constant 0 : index
    %c0_211 = arith.constant 0 : index
    %c4 = arith.constant 4 : index
    %c0_212 = arith.constant 0 : index
    %154 = vector.load %arg15[%c0_210, %c0_211, %c4, %c0_212] : memref<2x4x8x32xf32, #tpu.memory_space<vmem>>, vector<2x1x1x32xf32>
    %155 = vector.shape_cast %154 : vector<2x1x1x32xf32> to vector<2x32xf32>
    %c0_213 = arith.constant 0 : index
    %c0_214 = arith.constant 0 : index
    %c5 = arith.constant 5 : index
    %c0_215 = arith.constant 0 : index
    %156 = vector.load %arg15[%c0_213, %c0_214, %c5, %c0_215] : memref<2x4x8x32xf32, #tpu.memory_space<vmem>>, vector<2x1x1x32xf32>
    %157 = vector.shape_cast %156 : vector<2x1x1x32xf32> to vector<2x32xf32>
    %158 = arith.maximumf %155, %157 : vector<2x32xf32>
    %c0_216 = arith.constant 0 : index
    %c64_217 = arith.constant 64 : index
    %159 = vector.load %arg8[%c0_216, %c64_217] : memref<2x512xf32, #tpu.memory_space<vmem>>, vector<2x32xf32>
    tpu.vector_store %arg8[%c0_216, %c64_217], %158 {strides = array<i32>} : memref<2x512xf32, #tpu.memory_space<vmem>>, vector<2x32xf32>,
    %c0_218 = arith.constant 0 : index
    %c0_219 = arith.constant 0 : index
    %c6 = arith.constant 6 : index
    %c0_220 = arith.constant 0 : index
    %160 = vector.load %arg15[%c0_218, %c0_219, %c6, %c0_220] : memref<2x4x8x32xf32, #tpu.memory_space<vmem>>, vector<2x1x1x32xf32>
    %161 = vector.shape_cast %160 : vector<2x1x1x32xf32> to vector<2x32xf32>
    %c0_221 = arith.constant 0 : index
    %c0_222 = arith.constant 0 : index
    %c7 = arith.constant 7 : index
    %c0_223 = arith.constant 0 : index
    %162 = vector.load %arg15[%c0_221, %c0_222, %c7, %c0_223] : memref<2x4x8x32xf32, #tpu.memory_space<vmem>>, vector<2x1x1x32xf32>
    %163 = vector.shape_cast %162 : vector<2x1x1x32xf32> to vector<2x32xf32>
    %164 = arith.maximumf %161, %163 : vector<2x32xf32>
    %c0_224 = arith.constant 0 : index
    %c96_225 = arith.constant 96 : index
    %165 = vector.load %arg8[%c0_224, %c96_225] : memref<2x512xf32, #tpu.memory_space<vmem>>, vector<2x32xf32>
    tpu.vector_store %arg8[%c0_224, %c96_225], %164 {strides = array<i32>} : memref<2x512xf32, #tpu.memory_space<vmem>>, vector<2x32xf32>,
    %c0_226 = arith.constant 0 : index
    %c1_227 = arith.constant 1 : index
    %c0_228 = arith.constant 0 : index
    %c0_229 = arith.constant 0 : index
    %166 = vector.load %arg15[%c0_226, %c1_227, %c0_228, %c0_229] : memref<2x4x8x32xf32, #tpu.memory_space<vmem>>, vector<2x1x1x32xf32>
    %167 = vector.shape_cast %166 : vector<2x1x1x32xf32> to vector<2x32xf32>
    %c0_230 = arith.constant 0 : index
    %c1_231 = arith.constant 1 : index
    %c1_232 = arith.constant 1 : index
    %c0_233 = arith.constant 0 : index
    %168 = vector.load %arg15[%c0_230, %c1_231, %c1_232, %c0_233] : memref<2x4x8x32xf32, #tpu.memory_space<vmem>>, vector<2x1x1x32xf32>
    %169 = vector.shape_cast %168 : vector<2x1x1x32xf32> to vector<2x32xf32>
    %170 = arith.maximumf %167, %169 : vector<2x32xf32>
    %c0_234 = arith.constant 0 : index
    %c128_235 = arith.constant 128 : index
    %171 = vector.load %arg8[%c0_234, %c128_235] : memref<2x512xf32, #tpu.memory_space<vmem>>, vector<2x32xf32>
    tpu.vector_store %arg8[%c0_234, %c128_235], %170 {strides = array<i32>} : memref<2x512xf32, #tpu.memory_space<vmem>>, vector<2x32xf32>,
    %c0_236 = arith.constant 0 : index
    %c1_237 = arith.constant 1 : index
    %c2_238 = arith.constant 2 : index
    %c0_239 = arith.constant 0 : index
    %172 = vector.load %arg15[%c0_236, %c1_237, %c2_238, %c0_239] : memref<2x4x8x32xf32, #tpu.memory_space<vmem>>, vector<2x1x1x32xf32>
    %173 = vector.shape_cast %172 : vector<2x1x1x32xf32> to vector<2x32xf32>
    %c0_240 = arith.constant 0 : index
    %c1_241 = arith.constant 1 : index
    %c3_242 = arith.constant 3 : index
    %c0_243 = arith.constant 0 : index
    %174 = vector.load %arg15[%c0_240, %c1_241, %c3_242, %c0_243] : memref<2x4x8x32xf32, #tpu.memory_space<vmem>>, vector<2x1x1x32xf32>
    %175 = vector.shape_cast %174 : vector<2x1x1x32xf32> to vector<2x32xf32>
    %176 = arith.maximumf %173, %175 : vector<2x32xf32>
    %c0_244 = arith.constant 0 : index
    %c160 = arith.constant 160 : index
    %177 = vector.load %arg8[%c0_244, %c160] : memref<2x512xf32, #tpu.memory_space<vmem>>, vector<2x32xf32>
    tpu.vector_store %arg8[%c0_244, %c160], %176 {strides = array<i32>} : memref<2x512xf32, #tpu.memory_space<vmem>>, vector<2x32xf32>,
    %c0_245 = arith.constant 0 : index
    %c1_246 = arith.constant 1 : index
    %c4_247 = arith.constant 4 : index
    %c0_248 = arith.constant 0 : index
    %178 = vector.load %arg15[%c0_245, %c1_246, %c4_247, %c0_248] : memref<2x4x8x32xf32, #tpu.memory_space<vmem>>, vector<2x1x1x32xf32>
    %179 = vector.shape_cast %178 : vector<2x1x1x32xf32> to vector<2x32xf32>
    %c0_249 = arith.constant 0 : index
    %c1_250 = arith.constant 1 : index
    %c5_251 = arith.constant 5 : index
    %c0_252 = arith.constant 0 : index
    %180 = vector.load %arg15[%c0_249, %c1_250, %c5_251, %c0_252] : memref<2x4x8x32xf32, #tpu.memory_space<vmem>>, vector<2x1x1x32xf32>
    %181 = vector.shape_cast %180 : vector<2x1x1x32xf32> to vector<2x32xf32>
    %182 = arith.maximumf %179, %181 : vector<2x32xf32>
    %c0_253 = arith.constant 0 : index
    %c192 = arith.constant 192 : index
    %183 = vector.load %arg8[%c0_253, %c192] : memref<2x512xf32, #tpu.memory_space<vmem>>, vector<2x32xf32>
    tpu.vector_store %arg8[%c0_253, %c192], %182 {strides = array<i32>} : memref<2x512xf32, #tpu.memory_space<vmem>>, vector<2x32xf32>,
    %c0_254 = arith.constant 0 : index
    %c1_255 = arith.constant 1 : index
    %c6_256 = arith.constant 6 : index
    %c0_257 = arith.constant 0 : index
    %184 = vector.load %arg15[%c0_254, %c1_255, %c6_256, %c0_257] : memref<2x4x8x32xf32, #tpu.memory_space<vmem>>, vector<2x1x1x32xf32>
    %185 = vector.shape_cast %184 : vector<2x1x1x32xf32> to vector<2x32xf32>
    %c0_258 = arith.constant 0 : index
    %c1_259 = arith.constant 1 : index
    %c7_260 = arith.constant 7 : index
    %c0_261 = arith.constant 0 : index
    %186 = vector.load %arg15[%c0_258, %c1_259, %c7_260, %c0_261] : memref<2x4x8x32xf32, #tpu.memory_space<vmem>>, vector<2x1x1x32xf32>
    %187 = vector.shape_cast %186 : vector<2x1x1x32xf32> to vector<2x32xf32>
    %188 = arith.maximumf %185, %187 : vector<2x32xf32>
    %c0_262 = arith.constant 0 : index
    %c224 = arith.constant 224 : index
    %189 = vector.load %arg8[%c0_262, %c224] : memref<2x512xf32, #tpu.memory_space<vmem>>, vector<2x32xf32>
    tpu.vector_store %arg8[%c0_262, %c224], %188 {strides = array<i32>} : memref<2x512xf32, #tpu.memory_space<vmem>>, vector<2x32xf32>,
    %c0_263 = arith.constant 0 : index
    %c2_264 = arith.constant 2 : index
    %c0_265 = arith.constant 0 : index
    %c0_266 = arith.constant 0 : index
    %190 = vector.load %arg15[%c0_263, %c2_264, %c0_265, %c0_266] : memref<2x4x8x32xf32, #tpu.memory_space<vmem>>, vector<2x1x1x32xf32>
    %191 = vector.shape_cast %190 : vector<2x1x1x32xf32> to vector<2x32xf32>
    %c0_267 = arith.constant 0 : index
    %c2_268 = arith.constant 2 : index
    %c1_269 = arith.constant 1 : index
    %c0_270 = arith.constant 0 : index
    %192 = vector.load %arg15[%c0_267, %c2_268, %c1_269, %c0_270] : memref<2x4x8x32xf32, #tpu.memory_space<vmem>>, vector<2x1x1x32xf32>
    %193 = vector.shape_cast %192 : vector<2x1x1x32xf32> to vector<2x32xf32>
    %194 = arith.maximumf %191, %193 : vector<2x32xf32>
    %c0_271 = arith.constant 0 : index
    %c256 = arith.constant 256 : index
    %195 = vector.load %arg8[%c0_271, %c256] : memref<2x512xf32, #tpu.memory_space<vmem>>, vector<2x32xf32>
    tpu.vector_store %arg8[%c0_271, %c256], %194 {strides = array<i32>} : memref<2x512xf32, #tpu.memory_space<vmem>>, vector<2x32xf32>,
    %c0_272 = arith.constant 0 : index
    %c2_273 = arith.constant 2 : index
    %c2_274 = arith.constant 2 : index
    %c0_275 = arith.constant 0 : index
    %196 = vector.load %arg15[%c0_272, %c2_273, %c2_274, %c0_275] : memref<2x4x8x32xf32, #tpu.memory_space<vmem>>, vector<2x1x1x32xf32>
    %197 = vector.shape_cast %196 : vector<2x1x1x32xf32> to vector<2x32xf32>
    %c0_276 = arith.constant 0 : index
    %c2_277 = arith.constant 2 : index
    %c3_278 = arith.constant 3 : index
    %c0_279 = arith.constant 0 : index
    %198 = vector.load %arg15[%c0_276, %c2_277, %c3_278, %c0_279] : memref<2x4x8x32xf32, #tpu.memory_space<vmem>>, vector<2x1x1x32xf32>
    %199 = vector.shape_cast %198 : vector<2x1x1x32xf32> to vector<2x32xf32>
    %200 = arith.maximumf %197, %199 : vector<2x32xf32>
    %c0_280 = arith.constant 0 : index
    %c288 = arith.constant 288 : index
    %201 = vector.load %arg8[%c0_280, %c288] : memref<2x512xf32, #tpu.memory_space<vmem>>, vector<2x32xf32>
    tpu.vector_store %arg8[%c0_280, %c288], %200 {strides = array<i32>} : memref<2x512xf32, #tpu.memory_space<vmem>>, vector<2x32xf32>,
    %c0_281 = arith.constant 0 : index
    %c2_282 = arith.constant 2 : index
    %c4_283 = arith.constant 4 : index
    %c0_284 = arith.constant 0 : index
    %202 = vector.load %arg15[%c0_281, %c2_282, %c4_283, %c0_284] : memref<2x4x8x32xf32, #tpu.memory_space<vmem>>, vector<2x1x1x32xf32>
    %203 = vector.shape_cast %202 : vector<2x1x1x32xf32> to vector<2x32xf32>
    %c0_285 = arith.constant 0 : index
    %c2_286 = arith.constant 2 : index
    %c5_287 = arith.constant 5 : index
    %c0_288 = arith.constant 0 : index
    %204 = vector.load %arg15[%c0_285, %c2_286, %c5_287, %c0_288] : memref<2x4x8x32xf32, #tpu.memory_space<vmem>>, vector<2x1x1x32xf32>
    %205 = vector.shape_cast %204 : vector<2x1x1x32xf32> to vector<2x32xf32>
    %206 = arith.maximumf %203, %205 : vector<2x32xf32>
    %c0_289 = arith.constant 0 : index
    %c320 = arith.constant 320 : index
    %207 = vector.load %arg8[%c0_289, %c320] : memref<2x512xf32, #tpu.memory_space<vmem>>, vector<2x32xf32>
    tpu.vector_store %arg8[%c0_289, %c320], %206 {strides = array<i32>} : memref<2x512xf32, #tpu.memory_space<vmem>>, vector<2x32xf32>,
    %c0_290 = arith.constant 0 : index
    %c2_291 = arith.constant 2 : index
    %c6_292 = arith.constant 6 : index
    %c0_293 = arith.constant 0 : index
    %208 = vector.load %arg15[%c0_290, %c2_291, %c6_292, %c0_293] : memref<2x4x8x32xf32, #tpu.memory_space<vmem>>, vector<2x1x1x32xf32>
    %209 = vector.shape_cast %208 : vector<2x1x1x32xf32> to vector<2x32xf32>
    %c0_294 = arith.constant 0 : index
    %c2_295 = arith.constant 2 : index
    %c7_296 = arith.constant 7 : index
    %c0_297 = arith.constant 0 : index
    %210 = vector.load %arg15[%c0_294, %c2_295, %c7_296, %c0_297] : memref<2x4x8x32xf32, #tpu.memory_space<vmem>>, vector<2x1x1x32xf32>
    %211 = vector.shape_cast %210 : vector<2x1x1x32xf32> to vector<2x32xf32>
    %212 = arith.maximumf %209, %211 : vector<2x32xf32>
    %c0_298 = arith.constant 0 : index
    %c352 = arith.constant 352 : index
    %213 = vector.load %arg8[%c0_298, %c352] : memref<2x512xf32, #tpu.memory_space<vmem>>, vector<2x32xf32>
    tpu.vector_store %arg8[%c0_298, %c352], %212 {strides = array<i32>} : memref<2x512xf32, #tpu.memory_space<vmem>>, vector<2x32xf32>,
    %c0_299 = arith.constant 0 : index
    %c3_300 = arith.constant 3 : index
    %c0_301 = arith.constant 0 : index
    %c0_302 = arith.constant 0 : index
    %214 = vector.load %arg15[%c0_299, %c3_300, %c0_301, %c0_302] : memref<2x4x8x32xf32, #tpu.memory_space<vmem>>, vector<2x1x1x32xf32>
    %215 = vector.shape_cast %214 : vector<2x1x1x32xf32> to vector<2x32xf32>
    %c0_303 = arith.constant 0 : index
    %c3_304 = arith.constant 3 : index
    %c1_305 = arith.constant 1 : index
    %c0_306 = arith.constant 0 : index
    %216 = vector.load %arg15[%c0_303, %c3_304, %c1_305, %c0_306] : memref<2x4x8x32xf32, #tpu.memory_space<vmem>>, vector<2x1x1x32xf32>
    %217 = vector.shape_cast %216 : vector<2x1x1x32xf32> to vector<2x32xf32>
    %218 = arith.maximumf %215, %217 : vector<2x32xf32>
    %c0_307 = arith.constant 0 : index
    %c384 = arith.constant 384 : index
    %219 = vector.load %arg8[%c0_307, %c384] : memref<2x512xf32, #tpu.memory_space<vmem>>, vector<2x32xf32>
    tpu.vector_store %arg8[%c0_307, %c384], %218 {strides = array<i32>} : memref<2x512xf32, #tpu.memory_space<vmem>>, vector<2x32xf32>,
    %c0_308 = arith.constant 0 : index
    %c3_309 = arith.constant 3 : index
    %c2_310 = arith.constant 2 : index
    %c0_311 = arith.constant 0 : index
    %220 = vector.load %arg15[%c0_308, %c3_309, %c2_310, %c0_311] : memref<2x4x8x32xf32, #tpu.memory_space<vmem>>, vector<2x1x1x32xf32>
    %221 = vector.shape_cast %220 : vector<2x1x1x32xf32> to vector<2x32xf32>
    %c0_312 = arith.constant 0 : index
    %c3_313 = arith.constant 3 : index
    %c3_314 = arith.constant 3 : index
    %c0_315 = arith.constant 0 : index
    %222 = vector.load %arg15[%c0_312, %c3_313, %c3_314, %c0_315] : memref<2x4x8x32xf32, #tpu.memory_space<vmem>>, vector<2x1x1x32xf32>
    %223 = vector.shape_cast %222 : vector<2x1x1x32xf32> to vector<2x32xf32>
    %224 = arith.maximumf %221, %223 : vector<2x32xf32>
    %c0_316 = arith.constant 0 : index
    %c416 = arith.constant 416 : index
    %225 = vector.load %arg8[%c0_316, %c416] : memref<2x512xf32, #tpu.memory_space<vmem>>, vector<2x32xf32>
    tpu.vector_store %arg8[%c0_316, %c416], %224 {strides = array<i32>} : memref<2x512xf32, #tpu.memory_space<vmem>>, vector<2x32xf32>,
    %c0_317 = arith.constant 0 : index
    %c3_318 = arith.constant 3 : index
    %c4_319 = arith.constant 4 : index
    %c0_320 = arith.constant 0 : index
    %226 = vector.load %arg15[%c0_317, %c3_318, %c4_319, %c0_320] : memref<2x4x8x32xf32, #tpu.memory_space<vmem>>, vector<2x1x1x32xf32>
    %227 = vector.shape_cast %226 : vector<2x1x1x32xf32> to vector<2x32xf32>
    %c0_321 = arith.constant 0 : index
    %c3_322 = arith.constant 3 : index
    %c5_323 = arith.constant 5 : index
    %c0_324 = arith.constant 0 : index
    %228 = vector.load %arg15[%c0_321, %c3_322, %c5_323, %c0_324] : memref<2x4x8x32xf32, #tpu.memory_space<vmem>>, vector<2x1x1x32xf32>
    %229 = vector.shape_cast %228 : vector<2x1x1x32xf32> to vector<2x32xf32>
    %230 = arith.maximumf %227, %229 : vector<2x32xf32>
    %c0_325 = arith.constant 0 : index
    %c448 = arith.constant 448 : index
    %231 = vector.load %arg8[%c0_325, %c448] : memref<2x512xf32, #tpu.memory_space<vmem>>, vector<2x32xf32>
    tpu.vector_store %arg8[%c0_325, %c448], %230 {strides = array<i32>} : memref<2x512xf32, #tpu.memory_space<vmem>>, vector<2x32xf32>,
    %c0_326 = arith.constant 0 : index
    %c3_327 = arith.constant 3 : index
    %c6_328 = arith.constant 6 : index
    %c0_329 = arith.constant 0 : index
    %232 = vector.load %arg15[%c0_326, %c3_327, %c6_328, %c0_329] : memref<2x4x8x32xf32, #tpu.memory_space<vmem>>, vector<2x1x1x32xf32>
    %233 = vector.shape_cast %232 : vector<2x1x1x32xf32> to vector<2x32xf32>
    %c0_330 = arith.constant 0 : index
    %c3_331 = arith.constant 3 : index
    %c7_332 = arith.constant 7 : index
    %c0_333 = arith.constant 0 : index
    %234 = vector.load %arg15[%c0_330, %c3_331, %c7_332, %c0_333] : memref<2x4x8x32xf32, #tpu.memory_space<vmem>>, vector<2x1x1x32xf32>
    %235 = vector.shape_cast %234 : vector<2x1x1x32xf32> to vector<2x32xf32>
    %236 = arith.maximumf %233, %235 : vector<2x32xf32>
    %c0_334 = arith.constant 0 : index
    %c480 = arith.constant 480 : index
    %237 = vector.load %arg8[%c0_334, %c480] : memref<2x512xf32, #tpu.memory_space<vmem>>, vector<2x32xf32>
    tpu.vector_store %arg8[%c0_334, %c480], %236 {strides = array<i32>} : memref<2x512xf32, #tpu.memory_space<vmem>>, vector<2x32xf32>,
    return
  }
  func.func @transform_0(%arg0: i32) -> (i32, i32, i32) {
    %c0_i32 = arith.constant 0 : i32
    %c0_i32_0 = arith.constant 0 : i32
    %c0_i32_1 = arith.constant 0 : i32
    return %arg0, %c0_i32, %c0_i32_0 : i32, i32, i32
  }
  func.func @transform_1(%arg0: i32) -> (i32, i32) {
    %c0_i32 = arith.constant 0 : i32
    %c0_i32_0 = arith.constant 0 : i32
    %c0_i32_1 = arith.constant 0 : i32
    return %c0_i32, %c0_i32_0 : i32, i32
  }
  func.func @transform_2(%arg0: i32) -> (i32, i32) {
    %c0_i32 = arith.constant 0 : i32
    %c0_i32_0 = arith.constant 0 : i32
    %c0_i32_1 = arith.constant 0 : i32
    return %c0_i32, %c0_i32_0 : i32, i32
  }
  func.func @transform_3(%arg0: i32) -> (i32, i32) {
    %c0_i32 = arith.constant 0 : i32
    %c0_i32_0 = arith.constant 0 : i32
    %c0_i32_1 = arith.constant 0 : i32
    return %c0_i32, %c0_i32_0 : i32, i32
  }
  func.func @transform_4(%arg0: i32) -> (i32, i32) {
    %c0_i32 = arith.constant 0 : i32
    %c0_i32_0 = arith.constant 0 : i32
    %c0_i32_1 = arith.constant 0 : i32
    return %c0_i32, %c0_i32_0 : i32, i32
  }
  func.func @transform_5(%arg0: i32) -> (i32, i32) {
    %c0_i32 = arith.constant 0 : i32
    %c0_i32_0 = arith.constant 0 : i32
    %c0_i32_1 = arith.constant 0 : i32
    return %c0_i32, %c0_i32_0 : i32, i32
  }
  func.func @transform_6(%arg0: i32) -> (i32, i32) {
    %c0_i32 = arith.constant 0 : i32
    %c0_i32_0 = arith.constant 0 : i32
    %c0_i32_1 = arith.constant 0 : i32
    return %c0_i32, %c0_i32_0 : i32, i32
  }
  func.func @transform_7(%arg0: i32) -> (i32, i32) {
    %c0_i32 = arith.constant 0 : i32
    %c0_i32_0 = arith.constant 0 : i32
    return %arg0, %c0_i32 : i32, i32
  }
}

module attributes {stable_mosaic.version = 11 : i64} {
  func.func @_head_kernel(%arg0: memref<2x512xf32, #tpu.memory_space<vmem>>, %arg1: memref<512x768xbf16, #tpu.memory_space<vmem>>, %arg2: memref<1x768xf32, #tpu.memory_space<vmem>>, %arg3: memref<1x512xf32, #tpu.memory_space<vmem>>, %arg4: memref<1x512xf32, #tpu.memory_space<vmem>>, %arg5: memref<512x128xbf16, #tpu.memory_space<vmem>>, %arg6: memref<1x128xf32, #tpu.memory_space<vmem>>, %arg7: memref<2x10xf32, #tpu.memory_space<vmem>>, %arg8: memref<2x1xf32, #tpu.memory_space<vmem>>, %arg9: memref<2x10xf32, #tpu.memory_space<vmem>>) attributes {dimension_semantics = [], scalar_prefetch = 0 : i64, scratch_operands = 0 : i64, tpu.core_type = #tpu.core_type<tc>} {
    %c0 = arith.constant 0 : index
    %c0_0 = arith.constant 0 : index
    %0 = vector.load %arg0[%c0, %c0_0] : memref<2x512xf32, #tpu.memory_space<vmem>>, vector<2x512xf32>
    %1 = arith.truncf %0 : vector<2x512xf32> to vector<2x512xbf16>
    %c0_1 = arith.constant 0 : index
    %c0_2 = arith.constant 0 : index
    %2 = vector.load %arg1[%c0_1, %c0_2] : memref<512x768xbf16, #tpu.memory_space<vmem>>, vector<512x768xbf16>
    %cst = arith.constant dense<0.000000e+00> : vector<2x768xf32>
    %3 = tpu.matmul %1, %2, %cst {dimension_numbers = #tpu.dot_dimension_numbers<[1], [0], [0], [1], [0, 0, 1, 1], [], []>} : vector<2x512xbf16>, vector<512x768xbf16>, vector<2x768xf32> -> vector<2x768xf32>
    %c0_3 = arith.constant 0 : index
    %c0_4 = arith.constant 0 : index
    %4 = vector.load %arg2[%c0_3, %c0_4] : memref<1x768xf32, #tpu.memory_space<vmem>>, vector<1x768xf32>
    %5 = vector.broadcast %4 : vector<1x768xf32> to vector<2x768xf32>
    %6 = arith.addf %3, %5 : vector<2x768xf32>
    %7 = vector.extract_strided_slice %6 {offsets = [0, 512], sizes = [2, 10], strides = [1, 1]} : vector<2x768xf32> to vector<2x10xf32>
    %cst_5 = arith.constant dense<0xFF800000> : vector<2xf32>
    %8 = vector.multi_reduction <maximumf>, %7, %cst_5 [1] : vector<2x10xf32> to vector<2xf32>
    %9 = vector.shape_cast %8 : vector<2xf32> to vector<2x1xf32>
    %10 = vector.broadcast %9 : vector<2x1xf32> to vector<2x10xf32>
    %11 = arith.subf %7, %10 : vector<2x10xf32>
    %12 = math.exp %11 : vector<2x10xf32>
    %cst_6 = arith.constant dense<0.000000e+00> : vector<2xf32>
    %13 = vector.multi_reduction <add>, %12, %cst_6 [1] : vector<2x10xf32> to vector<2xf32>
    %14 = vector.shape_cast %13 : vector<2xf32> to vector<2x1xf32>
    %15 = vector.broadcast %14 : vector<2x1xf32> to vector<2x10xf32>
    %16 = arith.divf %12, %15 : vector<2x10xf32>
    %c0_7 = arith.constant 0 : index
    %c0_8 = arith.constant 0 : index
    %17 = vector.load %arg7[%c0_7, %c0_8] : memref<2x10xf32, #tpu.memory_space<vmem>>, vector<2x10xf32>
    tpu.vector_store %arg7[%c0_7, %c0_8], %16 {strides = array<i32>} : memref<2x10xf32, #tpu.memory_space<vmem>>, vector<2x10xf32>,
    %18 = vector.extract_strided_slice %6 {offsets = [0, 640], sizes = [2, 10], strides = [1, 1]} : vector<2x768xf32> to vector<2x10xf32>
    %cst_9 = arith.constant dense<0xFF800000> : vector<2xf32>
    %19 = vector.multi_reduction <maximumf>, %18, %cst_9 [1] : vector<2x10xf32> to vector<2xf32>
    %20 = vector.shape_cast %19 : vector<2xf32> to vector<2x1xf32>
    %21 = vector.broadcast %20 : vector<2x1xf32> to vector<2x10xf32>
    %22 = arith.subf %18, %21 : vector<2x10xf32>
    %23 = math.exp %22 : vector<2x10xf32>
    %cst_10 = arith.constant dense<0.000000e+00> : vector<2xf32>
    %24 = vector.multi_reduction <add>, %23, %cst_10 [1] : vector<2x10xf32> to vector<2xf32>
    %25 = vector.shape_cast %24 : vector<2xf32> to vector<2x1xf32>
    %26 = vector.broadcast %25 : vector<2x1xf32> to vector<2x10xf32>
    %27 = arith.divf %23, %26 : vector<2x10xf32>
    %c0_11 = arith.constant 0 : index
    %c0_12 = arith.constant 0 : index
    %28 = vector.load %arg9[%c0_11, %c0_12] : memref<2x10xf32, #tpu.memory_space<vmem>>, vector<2x10xf32>
    tpu.vector_store %arg9[%c0_11, %c0_12], %27 {strides = array<i32>} : memref<2x10xf32, #tpu.memory_space<vmem>>, vector<2x10xf32>,
    %29 = vector.extract_strided_slice %6 {offsets = [0, 0], sizes = [2, 512], strides = [1, 1]} : vector<2x768xf32> to vector<2x512xf32>
    %cst_13 = arith.constant 0.000000e+00 : f32
    %30 = vector.broadcast %cst_13 : f32 to vector<2x512xf32>
    %31 = arith.maximumf %29, %30 : vector<2x512xf32>
    %cst_14 = arith.constant dense<0.000000e+00> : vector<512xf32>
    %32 = vector.multi_reduction <add>, %31, %cst_14 [0] : vector<2x512xf32> to vector<512xf32>
    %33 = vector.shape_cast %32 : vector<512xf32> to vector<1x512xf32>
    %cst_15 = arith.constant 2.000000e+00 : f32
    %34 = vector.broadcast %cst_15 : f32 to vector<1x512xf32>
    %35 = arith.divf %33, %34 : vector<1x512xf32>
    %36 = vector.broadcast %35 : vector<1x512xf32> to vector<2x512xf32>
    %37 = arith.subf %31, %36 : vector<2x512xf32>
    %38 = vector.broadcast %35 : vector<1x512xf32> to vector<2x512xf32>
    %39 = arith.subf %31, %38 : vector<2x512xf32>
    %40 = arith.mulf %37, %39 : vector<2x512xf32>
    %cst_16 = arith.constant dense<0.000000e+00> : vector<512xf32>
    %41 = vector.multi_reduction <add>, %40, %cst_16 [0] : vector<2x512xf32> to vector<512xf32>
    %42 = vector.shape_cast %41 : vector<512xf32> to vector<1x512xf32>
    %cst_17 = arith.constant 2.000000e+00 : f32
    %43 = vector.broadcast %cst_17 : f32 to vector<1x512xf32>
    %44 = arith.divf %42, %43 : vector<1x512xf32>
    %45 = vector.broadcast %35 : vector<1x512xf32> to vector<2x512xf32>
    %46 = arith.subf %31, %45 : vector<2x512xf32>
    %cst_18 = arith.constant 9.99999974E-6 : f32
    %47 = vector.broadcast %cst_18 : f32 to vector<1x512xf32>
    %48 = arith.addf %44, %47 : vector<1x512xf32>
    %49 = math.rsqrt %48 : vector<1x512xf32>
    %50 = vector.broadcast %49 : vector<1x512xf32> to vector<2x512xf32>
    %51 = arith.mulf %46, %50 : vector<2x512xf32>
    %c0_19 = arith.constant 0 : index
    %c0_20 = arith.constant 0 : index
    %52 = vector.load %arg3[%c0_19, %c0_20] : memref<1x512xf32, #tpu.memory_space<vmem>>, vector<1x512xf32>
    %53 = vector.broadcast %52 : vector<1x512xf32> to vector<2x512xf32>
    %54 = arith.mulf %51, %53 : vector<2x512xf32>
    %c0_21 = arith.constant 0 : index
    %c0_22 = arith.constant 0 : index
    %55 = vector.load %arg4[%c0_21, %c0_22] : memref<1x512xf32, #tpu.memory_space<vmem>>, vector<1x512xf32>
    %56 = vector.broadcast %55 : vector<1x512xf32> to vector<2x512xf32>
    %57 = arith.addf %54, %56 : vector<2x512xf32>
    %58 = arith.truncf %57 : vector<2x512xf32> to vector<2x512xbf16>
    %c0_23 = arith.constant 0 : index
    %c0_24 = arith.constant 0 : index
    %59 = vector.load %arg5[%c0_23, %c0_24] : memref<512x128xbf16, #tpu.memory_space<vmem>>, vector<512x128xbf16>
    %cst_25 = arith.constant dense<0.000000e+00> : vector<2x128xf32>
    %60 = tpu.matmul %58, %59, %cst_25 {dimension_numbers = #tpu.dot_dimension_numbers<[1], [0], [0], [1], [0, 0, 1, 1], [], []>} : vector<2x512xbf16>, vector<512x128xbf16>, vector<2x128xf32> -> vector<2x128xf32>
    %c0_26 = arith.constant 0 : index
    %c0_27 = arith.constant 0 : index
    %61 = vector.load %arg6[%c0_26, %c0_27] : memref<1x128xf32, #tpu.memory_space<vmem>>, vector<1x128xf32>
    %62 = vector.broadcast %61 : vector<1x128xf32> to vector<2x128xf32>
    %63 = arith.addf %60, %62 : vector<2x128xf32>
    %64 = vector.extract_strided_slice %63 {offsets = [0, 0], sizes = [2, 1], strides = [1, 1]} : vector<2x128xf32> to vector<2x1xf32>
    %65 = math.absf %64 : vector<2x1xf32>
    %cst_28 = arith.constant 0.000000e+00 : f32
    %66 = vector.broadcast %cst_28 : f32 to vector<2x1xf32>
    %67 = arith.subf %66, %65 : vector<2x1xf32>
    %68 = math.exp %67 : vector<2x1xf32>
    %cst_29 = arith.constant 0.000000e+00 : f32
    %69 = vector.broadcast %cst_29 : f32 to vector<2x1xf32>
    %70 = arith.cmpf oge, %64, %69 : vector<2x1xf32>
    %cst_30 = arith.constant 1.000000e+00 : f32
    %71 = vector.broadcast %cst_30 : f32 to vector<2x1xf32>
    %72 = arith.addf %71, %68 : vector<2x1xf32>
    %cst_31 = arith.constant 1.000000e+00 : f32
    %73 = vector.broadcast %cst_31 : f32 to vector<2x1xf32>
    %74 = arith.divf %73, %72 : vector<2x1xf32>
    %cst_32 = arith.constant 1.000000e+00 : f32
    %75 = vector.broadcast %cst_32 : f32 to vector<2x1xf32>
    %76 = arith.addf %75, %68 : vector<2x1xf32>
    %77 = arith.divf %68, %76 : vector<2x1xf32>
    %78 = arith.select %70, %74, %77 : vector<2x1xi1>, vector<2x1xf32>
    %c0_33 = arith.constant 0 : index
    %c0_34 = arith.constant 0 : index
    %79 = vector.load %arg8[%c0_33, %c0_34] : memref<2x1xf32, #tpu.memory_space<vmem>>, vector<2x1xf32>
    tpu.vector_store %arg8[%c0_33, %c0_34], %78 {strides = array<i32>} : memref<2x1xf32, #tpu.memory_space<vmem>>, vector<2x1xf32>,
    return
  }
}

</mosaic_0001>

<llo_original>
// kernel: _lambda_.3
$region0: #{_lambda_.3}
  #allocation0 [shape = 'u32[]', space=smem, size = 0x4, offset = 0x4, fixed_abs, tag = 'smem constant byte address 0x4 - core index']
  #allocation1 [shape = 'u32[144,128]{1,0:T(1,128)}', space=vmem, size = 0x12000, scoped, tag = 'internal scratch']
  %s0 = inlined_call_operand.vmem [shape: f32[2,512], index: 0, kind: input, shape index: {}]
  %s1 = inlined_call_operand.vmem [shape: bf16[512,768], index: 1, kind: input, shape index: {}]
  %s2 = inlined_call_operand.vmem [shape: f32[1,768], index: 2, kind: input, shape index: {}]
  %s3 = inlined_call_operand.vmem [shape: f32[1,512], index: 3, kind: input, shape index: {}]
  %s4 = inlined_call_operand.vmem [shape: f32[1,512], index: 4, kind: input, shape index: {}]
  %s5 = inlined_call_operand.vmem [shape: bf16[512,128], index: 5, kind: input, shape index: {}]
  %s6 = inlined_call_operand.vmem [shape: f32[1,128], index: 6, kind: input, shape index: {}]
  %s7 = inlined_call_operand.vmem [shape: f32[2,10], index: 7, kind: output, shape index: {0}]
  %s8 = inlined_call_operand.vmem [shape: f32[2,1], index: 8, kind: output, shape index: {1}]
  %s9 = inlined_call_operand.hbm [shape: f32[2,10], index: 9, kind: output, shape index: {2}]
  %10 = xla_tuple %s7, %s8, %s9
  %s11 = sld [smem:[#allocation0]]
  $region54: #{_lambda_.3} parent=0
    _
  %s13 = ssub.s32 1, %s11
  %s14 = scalar_select 0, %s13, %s11
  $region1: #{_lambda_.3} parent=0
    #allocation2 [shape = 'u8[1024]{0}', space=vmem, size = 0x400, scoped, tag = 'output window, operand 2, single buffered']
    #allocation3 [shape = 's32[1]{0}', space=sflag, size = 0x4, scoped, tag = 'scoped memory for _lambda_.3']
    %15 = vsyncpa [#allocation3], 0
    // Predicated region
    $region2: #{_lambda_.3} parent=1 // pred_check
      _
    $region3: #{_lambda_.3} parent=1 // pred_check_branch
      %17 = sbr.rel (0) target = $region5
    $region4: #{_lambda_.3} parent=1 // pred_region
      _
    $region5: #{_lambda_.3} parent=1 // pred_fallthru
      _
    // Predicated region
    $region6: #{_lambda_.3} parent=1 // pred_check
      _
    $region7: #{_lambda_.3} parent=1 // pred_check_branch
      %19 = sbr.rel (0) target = $region9
    $region8: #{_lambda_.3} parent=1 // pred_region
      _
    $region9: #{_lambda_.3} parent=1 // pred_fallthru
      _
    // Predicated region
    $region10: #{_lambda_.3} parent=1 // pred_check
      _
    $region11: #{_lambda_.3} parent=1 // pred_check_branch
      %21 = sbr.rel (0) target = $region13
    $region12: #{_lambda_.3} parent=1 // pred_region
      _
    $region13: #{_lambda_.3} parent=1 // pred_fallthru
      _
    // Predicated region
    $region14: #{_lambda_.3} parent=1 // pred_check
      _
    $region15: #{_lambda_.3} parent=1 // pred_check_branch
      %23 = sbr.rel (0) target = $region17
    $region16: #{_lambda_.3} parent=1 // pred_region
      _
    $region17: #{_lambda_.3} parent=1 // pred_fallthru
      _
    // Predicated region
    $region18: #{_lambda_.3} parent=1 // pred_check
      _
    $region19: #{_lambda_.3} parent=1 // pred_check_branch
      %25 = sbr.rel (0) target = $region21
    $region20: #{_lambda_.3} parent=1 // pred_region
      _
    $region21: #{_lambda_.3} parent=1 // pred_fallthru
      _
    // Predicated region
    $region22: #{_lambda_.3} parent=1 // pred_check
      _
    $region23: #{_lambda_.3} parent=1 // pred_check_branch
      %27 = sbr.rel (0) target = $region25
    $region24: #{_lambda_.3} parent=1 // pred_region
      _
    $region25: #{_lambda_.3} parent=1 // pred_fallthru
      _
    // Predicated region
    $region26: #{_lambda_.3} parent=1 // pred_check
      _
    $region27: #{_lambda_.3} parent=1 // pred_check_branch
      %29 = sbr.rel (0) target = $region29
    $region28: #{_lambda_.3} parent=1 // pred_region
      _
    $region29: #{_lambda_.3} parent=1 // pred_fallthru
      _
    %v31 = vld [vmem:[%s0] sm:$0xff]
    %v33 = vcombine.high %v31, %v31
    %v35 = vunpack.c.l.s4 1983009808
    %v36 = vunpack.c.0.s8 %v35
    %v37 = vlaneseq
    %v38 = vshrl.u32 %v37, 7
    %v39 = vsub.s32 %v36, %v38
    %v40 = vrot.slane %v31, %v39
    %v42 = vunpack.c.l.s4 1983009808
    %v43 = vunpack.c.0.s8 %v42
    %v44 = vlaneseq
    %v45 = vshrl.u32 %v44, 7
    %v46 = vsub.s32 %v43, %v45
    %v47 = vrot.slane %v33, %v46
    %v48 = vcombine.high %v40, %v40
    %v49 = vcombine.high %v47, %v47
    %v54 = vpack.c.bf16 %v40, %v40
    %v55 = vpack.c.bf16 %v48, %v48
    %v56 = vpack.c.bf16 %v47, %v47
    %v57 = vpack.c.bf16 %v49, %v49
    %v58 = vld [vmem:[%s1] sm:$0xff]
    %v59 = vld [vmem:[%s1 + $0x8] sm:$0xff]
    %v60 = vld [vmem:[%s1 + $0x10] sm:$0xff]
    %v61 = vld [vmem:[%s1 + $0x18] sm:$0xff]
    %v62 = vld [vmem:[%s1 + $0x20] sm:$0xff]
    %v63 = vld [vmem:[%s1 + $0x28] sm:$0xff]
    %v64 = vld [vmem:[%s1 + $0x30] sm:$0xff]
    %v65 = vld [vmem:[%s1 + $0x38] sm:$0xff]
    %v66 = vld [vmem:[%s1 + $0x40] sm:$0xff]
    %v67 = vld [vmem:[%s1 + $0x48] sm:$0xff]
    %v68 = vld [vmem:[%s1 + $0x50] sm:$0xff]
    %v69 = vld [vmem:[%s1 + $0x58] sm:$0xff]
    %v70 = vld [vmem:[%s1 + $0x60] sm:$0xff]
    %v71 = vld [vmem:[%s1 + $0x68] sm:$0xff]
    %v72 = vld [vmem:[%s1 + $0x70] sm:$0xff]
    %v73 = vld [vmem:[%s1 + $0x78] sm:$0xff]
    %v74 = vld [vmem:[%s1 + $0x80] sm:$0xff]
    %v75 = vld [vmem:[%s1 + $0x88] sm:$0xff]
    %v76 = vld [vmem:[%s1 + $0x90] sm:$0xff]
    %v77 = vld [vmem:[%s1 + $0x98] sm:$0xff]
    %v78 = vld [vmem:[%s1 + $0xa0] sm:$0xff]
    %v79 = vld [vmem:[%s1 + $0xa8] sm:$0xff]
    %v80 = vld [vmem:[%s1 + $0xb0] sm:$0xff]
    %v81 = vld [vmem:[%s1 + $0xb8] sm:$0xff]
    %v82 = vld [vmem:[%s1 + $0xc0] sm:$0xff]
    %v83 = vld [vmem:[%s1 + $0xc8] sm:$0xff]
    %v84 = vld [vmem:[%s1 + $0xd0] sm:$0xff]
    %v85 = vld [vmem:[%s1 + $0xd8] sm:$0xff]
    %v86 = vld [vmem:[%s1 + $0xe0] sm:$0xff]
    %v87 = vld [vmem:[%s1 + $0xe8] sm:$0xff]
    %v88 = vld [vmem:[%s1 + $0xf0] sm:$0xff]
    %v89 = vld [vmem:[%s1 + $0xf8] sm:$0xff]
    %v90 = vld [vmem:[%s1 + $0x100] sm:$0xff]
    %v91 = vld [vmem:[%s1 + $0x108] sm:$0xff]
    %v92 = vld [vmem:[%s1 + $0x110] sm:$0xff]
    %v93 = vld [vmem:[%s1 + $0x118] sm:$0xff]
    %v94 = vld [vmem:[%s1 + $0x120] sm:$0xff]
    %v95 = vld [vmem:[%s1 + $0x128] sm:$0xff]
    %v96 = vld [vmem:[%s1 + $0x130] sm:$0xff]
    %v97 = vld [vmem:[%s1 + $0x138] sm:$0xff]
    %v98 = vld [vmem:[%s1 + $0x140] sm:$0xff]
    %v99 = vld [vmem:[%s1 + $0x148] sm:$0xff]
    %v100 = vld [vmem:[%s1 + $0x150] sm:$0xff]
    %v101 = vld [vmem:[%s1 + $0x158] sm:$0xff]
    %v102 = vld [vmem:[%s1 + $0x160] sm:$0xff]
    %v103 = vld [vmem:[%s1 + $0x168] sm:$0xff]
    %v104 = vld [vmem:[%s1 + $0x170] sm:$0xff]
    %v105 = vld [vmem:[%s1 + $0x178] sm:$0xff]
    %v106 = vld [vmem:[%s1 + $0x180] sm:$0xff]
    %v107 = vld [vmem:[%s1 + $0x188] sm:$0xff]
    %v108 = vld [vmem:[%s1 + $0x190] sm:$0xff]
    %v109 = vld [vmem:[%s1 + $0x198] sm:$0xff]
    %v110 = vld [vmem:[%s1 + $0x1a0] sm:$0xff]
    %v111 = vld [vmem:[%s1 + $0x1a8] sm:$0xff]
    %v112 = vld [vmem:[%s1 + $0x1b0] sm:$0xff]
    %v113 = vld [vmem:[%s1 + $0x1b8] sm:$0xff]
    %v114 = vld [vmem:[%s1 + $0x1c0] sm:$0xff]
    %v115 = vld [vmem:[%s1 + $0x1c8] sm:$0xff]
    %v116 = vld [vmem:[%s1 + $0x1d0] sm:$0xff]
    %v117 = vld [vmem:[%s1 + $0x1d8] sm:$0xff]
    %v118 = vld [vmem:[%s1 + $0x1e0] sm:$0xff]
    %v119 = vld [vmem:[%s1 + $0x1e8] sm:$0xff]
    %v120 = vld [vmem:[%s1 + $0x1f0] sm:$0xff]
    %v121 = vld [vmem:[%s1 + $0x1f8] sm:$0xff]
    %v122 = vld [vmem:[%s1 + $0x200] sm:$0xff]
    %v123 = vld [vmem:[%s1 + $0x208] sm:$0xff]
    %v124 = vld [vmem:[%s1 + $0x210] sm:$0xff]
    %v125 = vld [vmem:[%s1 + $0x218] sm:$0xff]
    %v126 = vld [vmem:[%s1 + $0x220] sm:$0xff]
    %v127 = vld [vmem:[%s1 + $0x228] sm:$0xff]
    %v128 = vld [vmem:[%s1 + $0x230] sm:$0xff]
    %v129 = vld [vmem:[%s1 + $0x238] sm:$0xff]
    %v130 = vld [vmem:[%s1 + $0x240] sm:$0xff]
    %v131 = vld [vmem:[%s1 + $0x248] sm:$0xff]
    %v132 = vld [vmem:[%s1 + $0x250] sm:$0xff]
    %v133 = vld [vmem:[%s1 + $0x258] sm:$0xff]
    %v134 = vld [vmem:[%s1 + $0x260] sm:$0xff]
    %v135 = vld [vmem:[%s1 + $0x268] sm:$0xff]
    %v136 = vld [vmem:[%s1 + $0x270] sm:$0xff]
    %v137 = vld [vmem:[%s1 + $0x278] sm:$0xff]
    %v138 = vld [vmem:[%s1 + $0x280] sm:$0xff]
    %v139 = vld [vmem:[%s1 + $0x288] sm:$0xff]
    %v140 = vld [vmem:[%s1 + $0x290] sm:$0xff]
    %v141 = vld [vmem:[%s1 + $0x298] sm:$0xff]
    %v142 = vld [vmem:[%s1 + $0x2a0] sm:$0xff]
    %v143 = vld [vmem:[%s1 + $0x2a8] sm:$0xff]
    %v144 = vld [vmem:[%s1 + $0x2b0] sm:$0xff]
    %v145 = vld [vmem:[%s1 + $0x2b8] sm:$0xff]
    %v146 = vld [vmem:[%s1 + $0x2c0] sm:$0xff]
    %v147 = vld [vmem:[%s1 + $0x2c8] sm:$0xff]
    %v148 = vld [vmem:[%s1 + $0x2d0] sm:$0xff]
    %v149 = vld [vmem:[%s1 + $0x2d8] sm:$0xff]
    %v150 = vld [vmem:[%s1 + $0x2e0] sm:$0xff]
    %v151 = vld [vmem:[%s1 + $0x2e8] sm:$0xff]
    %v152 = vld [vmem:[%s1 + $0x2f0] sm:$0xff]
    %v153 = vld [vmem:[%s1 + $0x2f8] sm:$0xff]
    %v154 = vld [vmem:[%s1 + $0x300] sm:$0xff]
    %v155 = vld [vmem:[%s1 + $0x308] sm:$0xff]
    %v156 = vld [vmem:[%s1 + $0x310] sm:$0xff]
    %v157 = vld [vmem:[%s1 + $0x318] sm:$0xff]
    %v158 = vld [vmem:[%s1 + $0x320] sm:$0xff]
    %v159 = vld [vmem:[%s1 + $0x328] sm:$0xff]
    %v160 = vld [vmem:[%s1 + $0x330] sm:$0xff]
    %v161 = vld [vmem:[%s1 + $0x338] sm:$0xff]
    %v162 = vld [vmem:[%s1 + $0x340] sm:$0xff]
    %v163 = vld [vmem:[%s1 + $0x348] sm:$0xff]
    %v164 = vld [vmem:[%s1 + $0x350] sm:$0xff]
    %v165 = vld [vmem:[%s1 + $0x358] sm:$0xff]
    %v166 = vld [vmem:[%s1 + $0x360] sm:$0xff]
    %v167 = vld [vmem:[%s1 + $0x368] sm:$0xff]
    %v168 = vld [vmem:[%s1 + $0x370] sm:$0xff]
    %v169 = vld [vmem:[%s1 + $0x378] sm:$0xff]
    %v170 = vld [vmem:[%s1 + $0x380] sm:$0xff]
    %v171 = vld [vmem:[%s1 + $0x388] sm:$0xff]
    %v172 = vld [vmem:[%s1 + $0x390] sm:$0xff]
    %v173 = vld [vmem:[%s1 + $0x398] sm:$0xff]
    %v174 = vld [vmem:[%s1 + $0x3a0] sm:$0xff]
    %v175 = vld [vmem:[%s1 + $0x3a8] sm:$0xff]
    %v176 = vld [vmem:[%s1 + $0x3b0] sm:$0xff]
    %v177 = vld [vmem:[%s1 + $0x3b8] sm:$0xff]
    %v178 = vld [vmem:[%s1 + $0x3c0] sm:$0xff]
    %v179 = vld [vmem:[%s1 + $0x3c8] sm:$0xff]
    %v180 = vld [vmem:[%s1 + $0x3d0] sm:$0xff]
    %v181 = vld [vmem:[%s1 + $0x3d8] sm:$0xff]
    %v182 = vld [vmem:[%s1 + $0x3e0] sm:$0xff]
    %v183 = vld [vmem:[%s1 + $0x3e8] sm:$0xff]
    %v184 = vld [vmem:[%s1 + $0x3f0] sm:$0xff]
    %v185 = vld [vmem:[%s1 + $0x3f8] sm:$0xff]
    %v186 = vld [vmem:[%s1 + $0x400] sm:$0xff]
    %v187 = vld [vmem:[%s1 + $0x408] sm:$0xff]
    %v188 = vld [vmem:[%s1 + $0x410] sm:$0xff]
    %v189 = vld [vmem:[%s1 + $0x418] sm:$0xff]
    %v190 = vld [vmem:[%s1 + $0x420] sm:$0xff]
    %v191 = vld [vmem:[%s1 + $0x428] sm:$0xff]
    %v192 = vld [vmem:[%s1 + $0x430] sm:$0xff]
    %v193 = vld [vmem:[%s1 + $0x438] sm:$0xff]
    %v194 = vld [vmem:[%s1 + $0x440] sm:$0xff]
    %v195 = vld [vmem:[%s1 + $0x448] sm:$0xff]
    %v196 = vld [vmem:[%s1 + $0x450] sm:$0xff]
    %v197 = vld [vmem:[%s1 + $0x458] sm:$0xff]
    %v198 = vld [vmem:[%s1 + $0x460] sm:$0xff]
    %v199 = vld [vmem:[%s1 + $0x468] sm:$0xff]
    %v200 = vld [vmem:[%s1 + $0x470] sm:$0xff]
    %v201 = vld [vmem:[%s1 + $0x478] sm:$0xff]
    %v202 = vld [vmem:[%s1 + $0x480] sm:$0xff]
    %v203 = vld [vmem:[%s1 + $0x488] sm:$0xff]
    %v204 = vld [vmem:[%s1 + $0x490] sm:$0xff]
    %v205 = vld [vmem:[%s1 + $0x498] sm:$0xff]
    %v206 = vld [vmem:[%s1 + $0x4a0] sm:$0xff]
    %v207 = vld [vmem:[%s1 + $0x4a8] sm:$0xff]
    %v208 = vld [vmem:[%s1 + $0x4b0] sm:$0xff]
    %v209 = vld [vmem:[%s1 + $0x4b8] sm:$0xff]
    %v210 = vld [vmem:[%s1 + $0x4c0] sm:$0xff]
    %v211 = vld [vmem:[%s1 + $0x4c8] sm:$0xff]
    %v212 = vld [vmem:[%s1 + $0x4d0] sm:$0xff]
    %v213 = vld [vmem:[%s1 + $0x4d8] sm:$0xff]
    %v214 = vld [vmem:[%s1 + $0x4e0] sm:$0xff]
    %v215 = vld [vmem:[%s1 + $0x4e8] sm:$0xff]
    %v216 = vld [vmem:[%s1 + $0x4f0] sm:$0xff]
    %v217 = vld [vmem:[%s1 + $0x4f8] sm:$0xff]
    %v218 = vld [vmem:[%s1 + $0x500] sm:$0xff]
    %v219 = vld [vmem:[%s1 + $0x508] sm:$0xff]
    %v220 = vld [vmem:[%s1 + $0x510] sm:$0xff]
    %v221 = vld [vmem:[%s1 + $0x518] sm:$0xff]
    %v222 = vld [vmem:[%s1 + $0x520] sm:$0xff]
    %v223 = vld [vmem:[%s1 + $0x528] sm:$0xff]
    %v224 = vld [vmem:[%s1 + $0x530] sm:$0xff]
    %v225 = vld [vmem:[%s1 + $0x538] sm:$0xff]
    %v226 = vld [vmem:[%s1 + $0x540] sm:$0xff]
    %v227 = vld [vmem:[%s1 + $0x548] sm:$0xff]
    %v228 = vld [vmem:[%s1 + $0x550] sm:$0xff]
    %v229 = vld [vmem:[%s1 + $0x558] sm:$0xff]
    %v230 = vld [vmem:[%s1 + $0x560] sm:$0xff]
    %v231 = vld [vmem:[%s1 + $0x568] sm:$0xff]
    %v232 = vld [vmem:[%s1 + $0x570] sm:$0xff]
    %v233 = vld [vmem:[%s1 + $0x578] sm:$0xff]
    %v234 = vld [vmem:[%s1 + $0x580] sm:$0xff]
    %v235 = vld [vmem:[%s1 + $0x588] sm:$0xff]
    %v236 = vld [vmem:[%s1 + $0x590] sm:$0xff]
    %v237 = vld [vmem:[%s1 + $0x598] sm:$0xff]
    %v238 = vld [vmem:[%s1 + $0x5a0] sm:$0xff]
    %v239 = vld [vmem:[%s1 + $0x5a8] sm:$0xff]
    %v240 = vld [vmem:[%s1 + $0x5b0] sm:$0xff]
    %v241 = vld [vmem:[%s1 + $0x5b8] sm:$0xff]
    %v242 = vld [vmem:[%s1 + $0x5c0] sm:$0xff]
    %v243 = vld [vmem:[%s1 + $0x5c8] sm:$0xff]
    %v244 = vld [vmem:[%s1 + $0x5d0] sm:$0xff]
    %v245 = vld [vmem:[%s1 + $0x5d8] sm:$0xff]
    %v246 = vld [vmem:[%s1 + $0x5e0] sm:$0xff]
    %v247 = vld [vmem:[%s1 + $0x5e8] sm:$0xff]
    %v248 = vld [vmem:[%s1 + $0x5f0] sm:$0xff]
    %v249 = vld [vmem:[%s1 + $0x5f8] sm:$0xff]
    %v250 = vld [vmem:[%s2] sm:$0x3f]
    %v252 = vlaneseq
    %v253 = vshrl.u32 %v252, 7
    %v254 = vsub.s32 0, %v253
    %v255 = vrot.slane %v250, %v254
    %v256 = vlaneseq
    %v257 = vshrl.u32 %v256, 7
    %v258 = vsub.s32 1, %v257
    %v259 = vrot.slane %v250, %v258
    %v260 = vlaneseq
    %v261 = vshrl.u32 %v260, 7
    %v262 = vsub.s32 2, %v261
    %v263 = vrot.slane %v250, %v262
    %v264 = vlaneseq
    %v265 = vshrl.u32 %v264, 7
    %v266 = vsub.s32 3, %v265
    %v267 = vrot.slane %v250, %v266
    %v268 = vlaneseq
    %v269 = vshrl.u32 %v268, 7
    %v270 = vsub.s32 4, %v269
    %v271 = vrot.slane %v250, %v270
    %v272 = vlaneseq
    %v273 = vshrl.u32 %v272, 7
    %v274 = vsub.s32 5, %v273
    %v275 = vrot.slane %v250, %v274
    %v474 = vunpack.c.l.b16 %v58
    %v475 = vunpack.c.h.b16 %v58
    %v476 = vunpack.c.l.b16 %v59
    %v477 = vunpack.c.h.b16 %v59
    %v478 = vunpack.c.l.b16 %v60
    %v479 = vunpack.c.h.b16 %v60
    %v480 = vunpack.c.l.b16 %v61
    %v481 = vunpack.c.h.b16 %v61
    %v482 = vunpack.c.l.b16 %v62
    %v483 = vunpack.c.h.b16 %v62
    %v484 = vunpack.c.l.b16 %v63
    %v485 = vunpack.c.h.b16 %v63
    %v486 = vunpack.c.l.b16 %v64
    %v487 = vunpack.c.h.b16 %v64
    %v488 = vunpack.c.l.b16 %v65
    %v489 = vunpack.c.h.b16 %v65
    %v490 = vunpack.c.l.b16 %v66
    %v491 = vunpack.c.h.b16 %v66
    %v492 = vunpack.c.l.b16 %v67
    %v493 = vunpack.c.h.b16 %v67
    %v494 = vunpack.c.l.b16 %v68
    %v495 = vunpack.c.h.b16 %v68
    %v496 = vunpack.c.l.b16 %v69
    %v497 = vunpack.c.h.b16 %v69
    %v498 = vunpack.c.l.b16 %v70
    %v499 = vunpack.c.h.b16 %v70
    %v500 = vunpack.c.l.b16 %v71
    %v501 = vunpack.c.h.b16 %v71
    %v502 = vunpack.c.l.b16 %v72
    %v503 = vunpack.c.h.b16 %v72
    %v504 = vunpack.c.l.b16 %v73
    %v505 = vunpack.c.h.b16 %v73
    %v506 = vunpack.c.l.b16 %v74
    %v507 = vunpack.c.h.b16 %v74
    %v508 = vunpack.c.l.b16 %v75
    %v509 = vunpack.c.h.b16 %v75
    %v510 = vunpack.c.l.b16 %v76
    %v511 = vunpack.c.h.b16 %v76
    %v512 = vunpack.c.l.b16 %v77
    %v513 = vunpack.c.h.b16 %v77
    %v514 = vunpack.c.l.b16 %v78
    %v515 = vunpack.c.h.b16 %v78
    %v516 = vunpack.c.l.b16 %v79
    %v517 = vunpack.c.h.b16 %v79
    %v518 = vunpack.c.l.b16 %v80
    %v519 = vunpack.c.h.b16 %v80
    %v520 = vunpack.c.l.b16 %v81
    %v521 = vunpack.c.h.b16 %v81
    %v522 = vunpack.c.l.b16 %v82
    %v523 = vunpack.c.h.b16 %v82
    %v524 = vunpack.c.l.b16 %v83
    %v525 = vunpack.c.h.b16 %v83
    %v526 = vunpack.c.l.b16 %v84
    %v527 = vunpack.c.h.b16 %v84
    %v528 = vunpack.c.l.b16 %v85
    %v529 = vunpack.c.h.b16 %v85
    %v530 = vunpack.c.l.b16 %v86
    %v531 = vunpack.c.h.b16 %v86
    %v532 = vunpack.c.l.b16 %v87
    %v533 = vunpack.c.h.b16 %v87
    %v534 = vunpack.c.l.b16 %v88
    %v535 = vunpack.c.h.b16 %v88
    %v536 = vunpack.c.l.b16 %v89
    %v537 = vunpack.c.h.b16 %v89
    %v538 = vunpack.c.l.b16 %v90
    %v539 = vunpack.c.h.b16 %v90
    %v540 = vunpack.c.l.b16 %v91
    %v541 = vunpack.c.h.b16 %v91
    %v542 = vunpack.c.l.b16 %v92
    %v543 = vunpack.c.h.b16 %v92
    %v544 = vunpack.c.l.b16 %v93
    %v545 = vunpack.c.h.b16 %v93
    %v546 = vunpack.c.l.b16 %v94
    %v547 = vunpack.c.h.b16 %v94
    %v548 = vunpack.c.l.b16 %v95
    %v549 = vunpack.c.h.b16 %v95
    %v550 = vunpack.c.l.b16 %v96
    %v551 = vunpack.c.h.b16 %v96
    %v552 = vunpack.c.l.b16 %v97
    %v553 = vunpack.c.h.b16 %v97
    %v554 = vunpack.c.l.b16 %v98
    %v555 = vunpack.c.h.b16 %v98
    %v556 = vunpack.c.l.b16 %v99
    %v557 = vunpack.c.h.b16 %v99
    %v558 = vunpack.c.l.b16 %v100
    %v559 = vunpack.c.h.b16 %v100
    %v560 = vunpack.c.l.b16 %v101
    %v561 = vunpack.c.h.b16 %v101
    %v562 = vunpack.c.l.b16 %v102
    %v563 = vunpack.c.h.b16 %v102
    %v564 = vunpack.c.l.b16 %v103
    %v565 = vunpack.c.h.b16 %v103
    %v566 = vunpack.c.l.b16 %v104
    %v567 = vunpack.c.h.b16 %v104
    %v568 = vunpack.c.l.b16 %v105
    %v569 = vunpack.c.h.b16 %v105
    %v570 = vunpack.c.l.b16 %v106
    %v571 = vunpack.c.h.b16 %v106
    %v572 = vunpack.c.l.b16 %v107
    %v573 = vunpack.c.h.b16 %v107
    %v574 = vunpack.c.l.b16 %v108
    %v575 = vunpack.c.h.b16 %v108
    %v576 = vunpack.c.l.b16 %v109
    %v577 = vunpack.c.h.b16 %v109
    %v578 = vunpack.c.l.b16 %v110
    %v579 = vunpack.c.h.b16 %v110
    %v580 = vunpack.c.l.b16 %v111
    %v581 = vunpack.c.h.b16 %v111
    %v582 = vunpack.c.l.b16 %v112
    %v583 = vunpack.c.h.b16 %v112
    %v584 = vunpack.c.l.b16 %v113
    %v585 = vunpack.c.h.b16 %v113
    %v586 = vunpack.c.l.b16 %v114
    %v587 = vunpack.c.h.b16 %v114
    %v588 = vunpack.c.l.b16 %v115
    %v589 = vunpack.c.h.b16 %v115
    %v590 = vunpack.c.l.b16 %v116
    %v591 = vunpack.c.h.b16 %v116
    %v592 = vunpack.c.l.b16 %v117
    %v593 = vunpack.c.h.b16 %v117
    %v594 = vunpack.c.l.b16 %v118
    %v595 = vunpack.c.h.b16 %v118
    %v596 = vunpack.c.l.b16 %v119
    %v597 = vunpack.c.h.b16 %v119
    %v598 = vunpack.c.l.b16 %v120
    %v599 = vunpack.c.h.b16 %v120
    %v600 = vunpack.c.l.b16 %v121
    %v601 = vunpack.c.h.b16 %v121
    %v602 = vunpack.c.l.b16 %v122
    %v603 = vunpack.c.h.b16 %v122
    %v604 = vunpack.c.l.b16 %v123
    %v605 = vunpack.c.h.b16 %v123
    %v606 = vunpack.c.l.b16 %v124
    %v607 = vunpack.c.h.b16 %v124
    %v608 = vunpack.c.l.b16 %v125
    %v609 = vunpack.c.h.b16 %v125
    %v610 = vunpack.c.l.b16 %v126
    %v611 = vunpack.c.h.b16 %v126
    %v612 = vunpack.c.l.b16 %v127
    %v613 = vunpack.c.h.b16 %v127
    %v614 = vunpack.c.l.b16 %v128
    %v615 = vunpack.c.h.b16 %v128
    %v616 = vunpack.c.l.b16 %v129
    %v617 = vunpack.c.h.b16 %v129
    %v618 = vunpack.c.l.b16 %v130
    %v619 = vunpack.c.h.b16 %v130
    %v620 = vunpack.c.l.b16 %v131
    %v621 = vunpack.c.h.b16 %v131
    %v622 = vunpack.c.l.b16 %v132
    %v623 = vunpack.c.h.b16 %v132
    %v624 = vunpack.c.l.b16 %v133
    %v625 = vunpack.c.h.b16 %v133
    %v626 = vunpack.c.l.b16 %v134
    %v627 = vunpack.c.h.b16 %v134
    %v628 = vunpack.c.l.b16 %v135
    %v629 = vunpack.c.h.b16 %v135
    %v630 = vunpack.c.l.b16 %v136
    %v631 = vunpack.c.h.b16 %v136
    %v632 = vunpack.c.l.b16 %v137
    %v633 = vunpack.c.h.b16 %v137
    %v634 = vunpack.c.l.b16 %v138
    %v635 = vunpack.c.h.b16 %v138
    %v636 = vunpack.c.l.b16 %v139
    %v637 = vunpack.c.h.b16 %v139
    %v638 = vunpack.c.l.b16 %v140
    %v639 = vunpack.c.h.b16 %v140
    %v640 = vunpack.c.l.b16 %v141
    %v641 = vunpack.c.h.b16 %v141
    %v642 = vunpack.c.l.b16 %v142
    %v643 = vunpack.c.h.b16 %v142
    %v644 = vunpack.c.l.b16 %v143
    %v645 = vunpack.c.h.b16 %v143
    %v646 = vunpack.c.l.b16 %v144
    %v647 = vunpack.c.h.b16 %v144
    %v648 = vunpack.c.l.b16 %v145
    %v649 = vunpack.c.h.b16 %v145
    %v650 = vunpack.c.l.b16 %v146
    %v651 = vunpack.c.h.b16 %v146
    %v652 = vunpack.c.l.b16 %v147
    %v653 = vunpack.c.h.b16 %v147
    %v654 = vunpack.c.l.b16 %v148
    %v655 = vunpack.c.h.b16 %v148
    %v656 = vunpack.c.l.b16 %v149
    %v657 = vunpack.c.h.b16 %v149
    %v658 = vunpack.c.l.b16 %v150
    %v659 = vunpack.c.h.b16 %v150
    %v660 = vunpack.c.l.b16 %v151
    %v661 = vunpack.c.h.b16 %v151
    %v662 = vunpack.c.l.b16 %v152
    %v663 = vunpack.c.h.b16 %v152
    %v664 = vunpack.c.l.b16 %v153
    %v665 = vunpack.c.h.b16 %v153
    %v666 = vunpack.c.l.b16 %v154
    %v667 = vunpack.c.h.b16 %v154
    %v668 = vunpack.c.l.b16 %v155
    %v669 = vunpack.c.h.b16 %v155
    %v670 = vunpack.c.l.b16 %v156
    %v671 = vunpack.c.h.b16 %v156
    %v672 = vunpack.c.l.b16 %v157
    %v673 = vunpack.c.h.b16 %v157
    %v674 = vunpack.c.l.b16 %v158
    %v675 = vunpack.c.h.b16 %v158
    %v676 = vunpack.c.l.b16 %v159
    %v677 = vunpack.c.h.b16 %v159
    %v678 = vunpack.c.l.b16 %v160
    %v679 = vunpack.c.h.b16 %v160
    %v680 = vunpack.c.l.b16 %v161
    %v681 = vunpack.c.h.b16 %v161
    %v682 = vunpack.c.l.b16 %v162
    %v683 = vunpack.c.h.b16 %v162
    %v684 = vunpack.c.l.b16 %v163
    %v685 = vunpack.c.h.b16 %v163
    %v686 = vunpack.c.l.b16 %v164
    %v687 = vunpack.c.h.b16 %v164
    %v688 = vunpack.c.l.b16 %v165
    %v689 = vunpack.c.h.b16 %v165
    %v690 = vunpack.c.l.b16 %v166
    %v691 = vunpack.c.h.b16 %v166
    %v692 = vunpack.c.l.b16 %v167
    %v693 = vunpack.c.h.b16 %v167
    %v694 = vunpack.c.l.b16 %v168
    %v695 = vunpack.c.h.b16 %v168
    %v696 = vunpack.c.l.b16 %v169
    %v697 = vunpack.c.h.b16 %v169
    %v698 = vunpack.c.l.b16 %v170
    %v699 = vunpack.c.h.b16 %v170
    %v700 = vunpack.c.l.b16 %v171
    %v701 = vunpack.c.h.b16 %v171
    %v702 = vunpack.c.l.b16 %v172
    %v703 = vunpack.c.h.b16 %v172
    %v704 = vunpack.c.l.b16 %v173
    %v705 = vunpack.c.h.b16 %v173
    %v706 = vunpack.c.l.b16 %v174
    %v707 = vunpack.c.h.b16 %v174
    %v708 = vunpack.c.l.b16 %v175
    %v709 = vunpack.c.h.b16 %v175
    %v710 = vunpack.c.l.b16 %v176
    %v711 = vunpack.c.h.b16 %v176
    %v712 = vunpack.c.l.b16 %v177
    %v713 = vunpack.c.h.b16 %v177
    %v714 = vunpack.c.l.b16 %v178
    %v715 = vunpack.c.h.b16 %v178
    %v716 = vunpack.c.l.b16 %v179
    %v717 = vunpack.c.h.b16 %v179
    %v718 = vunpack.c.l.b16 %v180
    %v719 = vunpack.c.h.b16 %v180
    %v720 = vunpack.c.l.b16 %v181
    %v721 = vunpack.c.h.b16 %v181
    %v722 = vunpack.c.l.b16 %v182
    %v723 = vunpack.c.h.b16 %v182
    %v724 = vunpack.c.l.b16 %v183
    %v725 = vunpack.c.h.b16 %v183
    %v726 = vunpack.c.l.b16 %v184
    %v727 = vunpack.c.h.b16 %v184
    %v728 = vunpack.c.l.b16 %v185
    %v729 = vunpack.c.h.b16 %v185
    %v730 = vunpack.c.l.b16 %v186
    %v731 = vunpack.c.h.b16 %v186
    %v732 = vunpack.c.l.b16 %v187
    %v733 = vunpack.c.h.b16 %v187
    %v734 = vunpack.c.l.b16 %v188
    %v735 = vunpack.c.h.b16 %v188
    %v736 = vunpack.c.l.b16 %v189
    %v737 = vunpack.c.h.b16 %v189
    %v738 = vunpack.c.l.b16 %v190
    %v739 = vunpack.c.h.b16 %v190
    %v740 = vunpack.c.l.b16 %v191
    %v741 = vunpack.c.h.b16 %v191
    %v742 = vunpack.c.l.b16 %v192
    %v743 = vunpack.c.h.b16 %v192
    %v744 = vunpack.c.l.b16 %v193
    %v745 = vunpack.c.h.b16 %v193
    %v746 = vunpack.c.l.b16 %v194
    %v747 = vunpack.c.h.b16 %v194
    %v748 = vunpack.c.l.b16 %v195
    %v749 = vunpack.c.h.b16 %v195
    %v750 = vunpack.c.l.b16 %v196
    %v751 = vunpack.c.h.b16 %v196
    %v752 = vunpack.c.l.b16 %v197
    %v753 = vunpack.c.h.b16 %v197
    %v754 = vunpack.c.l.b16 %v198
    %v755 = vunpack.c.h.b16 %v198
    %v756 = vunpack.c.l.b16 %v199
    %v757 = vunpack.c.h.b16 %v199
    %v758 = vunpack.c.l.b16 %v200
    %v759 = vunpack.c.h.b16 %v200
    %v760 = vunpack.c.l.b16 %v201
    %v761 = vunpack.c.h.b16 %v201
    %v762 = vunpack.c.l.b16 %v202
    %v763 = vunpack.c.h.b16 %v202
    %v764 = vunpack.c.l.b16 %v203
    %v765 = vunpack.c.h.b16 %v203
    %v766 = vunpack.c.l.b16 %v204
    %v767 = vunpack.c.h.b16 %v204
    %v768 = vunpack.c.l.b16 %v205
    %v769 = vunpack.c.h.b16 %v205
    %v770 = vunpack.c.l.b16 %v206
    %v771 = vunpack.c.h.b16 %v206
    %v772 = vunpack.c.l.b16 %v207
    %v773 = vunpack.c.h.b16 %v207
    %v774 = vunpack.c.l.b16 %v208
    %v775 = vunpack.c.h.b16 %v208
    %v776 = vunpack.c.l.b16 %v209
    %v777 = vunpack.c.h.b16 %v209
    %v778 = vunpack.c.l.b16 %v210
    %v779 = vunpack.c.h.b16 %v210
    %v780 = vunpack.c.l.b16 %v211
    %v781 = vunpack.c.h.b16 %v211
    %v782 = vunpack.c.l.b16 %v212
    %v783 = vunpack.c.h.b16 %v212
    %v784 = vunpack.c.l.b16 %v213
    %v785 = vunpack.c.h.b16 %v213
    %v786 = vunpack.c.l.b16 %v214
    %v787 = vunpack.c.h.b16 %v214
    %v788 = vunpack.c.l.b16 %v215
    %v789 = vunpack.c.h.b16 %v215
    %v790 = vunpack.c.l.b16 %v216
    %v791 = vunpack.c.h.b16 %v216
    %v792 = vunpack.c.l.b16 %v217
    %v793 = vunpack.c.h.b16 %v217
    %v794 = vunpack.c.l.b16 %v218
    %v795 = vunpack.c.h.b16 %v218
    %v796 = vunpack.c.l.b16 %v219
    %v797 = vunpack.c.h.b16 %v219
    %v798 = vunpack.c.l.b16 %v220
    %v799 = vunpack.c.h.b16 %v220
    %v800 = vunpack.c.l.b16 %v221
    %v801 = vunpack.c.h.b16 %v221
    %v802 = vunpack.c.l.b16 %v222
    %v803 = vunpack.c.h.b16 %v222
    %v804 = vunpack.c.l.b16 %v223
    %v805 = vunpack.c.h.b16 %v223
    %v806 = vunpack.c.l.b16 %v224
    %v807 = vunpack.c.h.b16 %v224
    %v808 = vunpack.c.l.b16 %v225
    %v809 = vunpack.c.h.b16 %v225
    %v810 = vunpack.c.l.b16 %v226
    %v811 = vunpack.c.h.b16 %v226
    %v812 = vunpack.c.l.b16 %v227
    %v813 = vunpack.c.h.b16 %v227
    %v814 = vunpack.c.l.b16 %v228
    %v815 = vunpack.c.h.b16 %v228
    %v816 = vunpack.c.l.b16 %v229
    %v817 = vunpack.c.h.b16 %v229
    %v818 = vunpack.c.l.b16 %v230
    %v819 = vunpack.c.h.b16 %v230
    %v820 = vunpack.c.l.b16 %v231
    %v821 = vunpack.c.h.b16 %v231
    %v822 = vunpack.c.l.b16 %v232
    %v823 = vunpack.c.h.b16 %v232
    %v824 = vunpack.c.l.b16 %v233
    %v825 = vunpack.c.h.b16 %v233
    %v826 = vunpack.c.l.b16 %v234
    %v827 = vunpack.c.h.b16 %v234
    %v828 = vunpack.c.l.b16 %v235
    %v829 = vunpack.c.h.b16 %v235
    %v830 = vunpack.c.l.b16 %v236
    %v831 = vunpack.c.h.b16 %v236
    %v832 = vunpack.c.l.b16 %v237
    %v833 = vunpack.c.h.b16 %v237
    %v834 = vunpack.c.l.b16 %v238
    %v835 = vunpack.c.h.b16 %v238
    %v836 = vunpack.c.l.b16 %v239
    %v837 = vunpack.c.h.b16 %v239
    %v838 = vunpack.c.l.b16 %v240
    %v839 = vunpack.c.h.b16 %v240
    %v840 = vunpack.c.l.b16 %v241
    %v841 = vunpack.c.h.b16 %v241
    %v842 = vunpack.c.l.b16 %v242
    %v843 = vunpack.c.h.b16 %v242
    %v844 = vunpack.c.l.b16 %v243
    %v845 = vunpack.c.h.b16 %v243
    %v846 = vunpack.c.l.b16 %v244
    %v847 = vunpack.c.h.b16 %v244
    %v848 = vunpack.c.l.b16 %v245
    %v849 = vunpack.c.h.b16 %v245
    %v850 = vunpack.c.l.b16 %v246
    %v851 = vunpack.c.h.b16 %v246
    %v852 = vunpack.c.l.b16 %v247
    %v853 = vunpack.c.h.b16 %v247
    %v854 = vunpack.c.l.b16 %v248
    %v855 = vunpack.c.h.b16 %v248
    %v856 = vunpack.c.l.b16 %v249
    %v857 = vunpack.c.h.b16 %v249
    %v858 = vpack.c.b16 %v480, %v474
    %v859 = vpack.c.b16 %v481, %v475
    %v860 = vpack.c.b16 %v482, %v476
    %v861 = vpack.c.b16 %v483, %v477
    %v862 = vpack.c.b16 %v484, %v478
    %v863 = vpack.c.b16 %v485, %v479
    %v864 = vpack.c.b16 %v492, %v486
    %v865 = vpack.c.b16 %v493, %v487
    %v866 = vpack.c.b16 %v494, %v488
    %v867 = vpack.c.b16 %v495, %v489
    %v868 = vpack.c.b16 %v496, %v490
    %v869 = vpack.c.b16 %v497, %v491
    %v870 = vpack.c.b16 %v504, %v498
    %v871 = vpack.c.b16 %v505, %v499
    %v872 = vpack.c.b16 %v506, %v500
    %v873 = vpack.c.b16 %v507, %v501
    %v874 = vpack.c.b16 %v508, %v502
    %v875 = vpack.c.b16 %v509, %v503
    %v876 = vpack.c.b16 %v516, %v510
    %v877 = vpack.c.b16 %v517, %v511
    %v878 = vpack.c.b16 %v518, %v512
    %v879 = vpack.c.b16 %v519, %v513
    %v880 = vpack.c.b16 %v520, %v514
    %v881 = vpack.c.b16 %v521, %v515
    %v882 = vpack.c.b16 %v528, %v522
    %v883 = vpack.c.b16 %v529, %v523
    %v884 = vpack.c.b16 %v530, %v524
    %v885 = vpack.c.b16 %v531, %v525
    %v886 = vpack.c.b16 %v532, %v526
    %v887 = vpack.c.b16 %v533, %v527
    %v888 = vpack.c.b16 %v540, %v534
    %v889 = vpack.c.b16 %v541, %v535
    %v890 = vpack.c.b16 %v542, %v536
    %v891 = vpack.c.b16 %v543, %v537
    %v892 = vpack.c.b16 %v544, %v538
    %v893 = vpack.c.b16 %v545, %v539
    %v894 = vpack.c.b16 %v552, %v546
    %v895 = vpack.c.b16 %v553, %v547
    %v896 = vpack.c.b16 %v554, %v548
    %v897 = vpack.c.b16 %v555, %v549
    %v898 = vpack.c.b16 %v556, %v550
    %v899 = vpack.c.b16 %v557, %v551
    %v900 = vpack.c.b16 %v564, %v558
    %v901 = vpack.c.b16 %v565, %v559
    %v902 = vpack.c.b16 %v566, %v560
    %v903 = vpack.c.b16 %v567, %v561
    %v904 = vpack.c.b16 %v568, %v562
    %v905 = vpack.c.b16 %v569, %v563
    %v906 = vpack.c.b16 %v576, %v570
    %v907 = vpack.c.b16 %v577, %v571
    %v908 = vpack.c.b16 %v578, %v572
    %v909 = vpack.c.b16 %v579, %v573
    %v910 = vpack.c.b16 %v580, %v574
    %v911 = vpack.c.b16 %v581, %v575
    %v912 = vpack.c.b16 %v588, %v582
    %v913 = vpack.c.b16 %v589, %v583
    %v914 = vpack.c.b16 %v590, %v584
    %v915 = vpack.c.b16 %v591, %v585
    %v916 = vpack.c.b16 %v592, %v586
    %v917 = vpack.c.b16 %v593, %v587
    %v918 = vpack.c.b16 %v600, %v594
    %v919 = vpack.c.b16 %v601, %v595
    %v920 = vpack.c.b16 %v602, %v596
    %v921 = vpack.c.b16 %v603, %v597
    %v922 = vpack.c.b16 %v604, %v598
    %v923 = vpack.c.b16 %v605, %v599
    %v924 = vpack.c.b16 %v612, %v606
    %v925 = vpack.c.b16 %v613, %v607
    %v926 = vpack.c.b16 %v614, %v608
    %v927 = vpack.c.b16 %v615, %v609
    %v928 = vpack.c.b16 %v616, %v610
    %v929 = vpack.c.b16 %v617, %v611
    %v930 = vpack.c.b16 %v624, %v618
    %v931 = vpack.c.b16 %v625, %v619
    %v932 = vpack.c.b16 %v626, %v620
    %v933 = vpack.c.b16 %v627, %v621
    %v934 = vpack.c.b16 %v628, %v622
    %v935 = vpack.c.b16 %v629, %v623
    %v936 = vpack.c.b16 %v636, %v630
    %v937 = vpack.c.b16 %v637, %v631
    %v938 = vpack.c.b16 %v638, %v632
    %v939 = vpack.c.b16 %v639, %v633
    %v940 = vpack.c.b16 %v640, %v634
    %v941 = vpack.c.b16 %v641, %v635
    %v942 = vpack.c.b16 %v648, %v642
    %v943 = vpack.c.b16 %v649, %v643
    %v944 = vpack.c.b16 %v650, %v644
    %v945 = vpack.c.b16 %v651, %v645
    %v946 = vpack.c.b16 %v652, %v646
    %v947 = vpack.c.b16 %v653, %v647
    %v948 = vpack.c.b16 %v660, %v654
    %v949 = vpack.c.b16 %v661, %v655
    %v950 = vpack.c.b16 %v662, %v656
    %v951 = vpack.c.b16 %v663, %v657
    %v952 = vpack.c.b16 %v664, %v658
    %v953 = vpack.c.b16 %v665, %v659
    %v954 = vpack.c.b16 %v672, %v666
    %v955 = vpack.c.b16 %v673, %v667
    %v956 = vpack.c.b16 %v674, %v668
    %v957 = vpack.c.b16 %v675, %v669
    %v958 = vpack.c.b16 %v676, %v670
    %v959 = vpack.c.b16 %v677, %v671
    %v960 = vpack.c.b16 %v684, %v678
    %v961 = vpack.c.b16 %v685, %v679
    %v962 = vpack.c.b16 %v686, %v680
    %v963 = vpack.c.b16 %v687, %v681
    %v964 = vpack.c.b16 %v688, %v682
    %v965 = vpack.c.b16 %v689, %v683
    %v966 = vpack.c.b16 %v696, %v690
    %v967 = vpack.c.b16 %v697, %v691
    %v968 = vpack.c.b16 %v698, %v692
    %v969 = vpack.c.b16 %v699, %v693
    %v970 = vpack.c.b16 %v700, %v694
    %v971 = vpack.c.b16 %v701, %v695
    %v972 = vpack.c.b16 %v708, %v702
    %v973 = vpack.c.b16 %v709, %v703
    %v974 = vpack.c.b16 %v710, %v704
    %v975 = vpack.c.b16 %v711, %v705
    %v976 = vpack.c.b16 %v712, %v706
    %v977 = vpack.c.b16 %v713, %v707
    %v978 = vpack.c.b16 %v720, %v714
    %v979 = vpack.c.b16 %v721, %v715
    %v980 = vpack.c.b16 %v722, %v716
    %v981 = vpack.c.b16 %v723, %v717
    %v982 = vpack.c.b16 %v724, %v718
    %v983 = vpack.c.b16 %v725, %v719
    %v984 = vpack.c.b16 %v732, %v726
    %v985 = vpack.c.b16 %v733, %v727
    %v986 = vpack.c.b16 %v734, %v728
    %v987 = vpack.c.b16 %v735, %v729
    %v988 = vpack.c.b16 %v736, %v730
    %v989 = vpack.c.b16 %v737, %v731
    %v990 = vpack.c.b16 %v744, %v738
    %v991 = vpack.c.b16 %v745, %v739
    %v992 = vpack.c.b16 %v746, %v740
    %v993 = vpack.c.b16 %v747, %v741
    %v994 = vpack.c.b16 %v748, %v742
    %v995 = vpack.c.b16 %v749, %v743
    %v996 = vpack.c.b16 %v756, %v750
    %v997 = vpack.c.b16 %v757, %v751
    %v998 = vpack.c.b16 %v758, %v752
    %v999 = vpack.c.b16 %v759, %v753
    %v1000 = vpack.c.b16 %v760, %v754
    %v1001 = vpack.c.b16 %v761, %v755
    %v1002 = vpack.c.b16 %v768, %v762
    %v1003 = vpack.c.b16 %v769, %v763
    %v1004 = vpack.c.b16 %v770, %v764
    %v1005 = vpack.c.b16 %v771, %v765
    %v1006 = vpack.c.b16 %v772, %v766
    %v1007 = vpack.c.b16 %v773, %v767
    %v1008 = vpack.c.b16 %v780, %v774
    %v1009 = vpack.c.b16 %v781, %v775
    %v1010 = vpack.c.b16 %v782, %v776
    %v1011 = vpack.c.b16 %v783, %v777
    %v1012 = vpack.c.b16 %v784, %v778
    %v1013 = vpack.c.b16 %v785, %v779
    %v1014 = vpack.c.b16 %v792, %v786
    %v1015 = vpack.c.b16 %v793, %v787
    %v1016 = vpack.c.b16 %v794, %v788
    %v1017 = vpack.c.b16 %v795, %v789
    %v1018 = vpack.c.b16 %v796, %v790
    %v1019 = vpack.c.b16 %v797, %v791
    %v1020 = vpack.c.b16 %v804, %v798
    %v1021 = vpack.c.b16 %v805, %v799
    %v1022 = vpack.c.b16 %v806, %v800
    %v1023 = vpack.c.b16 %v807, %v801
    %v1024 = vpack.c.b16 %v808, %v802
    %v1025 = vpack.c.b16 %v809, %v803
    %v1026 = vpack.c.b16 %v816, %v810
    %v1027 = vpack.c.b16 %v817, %v811
    %v1028 = vpack.c.b16 %v818, %v812
    %v1029 = vpack.c.b16 %v819, %v813
    %v1030 = vpack.c.b16 %v820, %v814
    %v1031 = vpack.c.b16 %v821, %v815
    %v1032 = vpack.c.b16 %v828, %v822
    %v1033 = vpack.c.b16 %v829, %v823
    %v1034 = vpack.c.b16 %v830, %v824
    %v1035 = vpack.c.b16 %v831, %v825
    %v1036 = vpack.c.b16 %v832, %v826
    %v1037 = vpack.c.b16 %v833, %v827
    %v1038 = vpack.c.b16 %v840, %v834
    %v1039 = vpack.c.b16 %v841, %v835
    %v1040 = vpack.c.b16 %v842, %v836
    %v1041 = vpack.c.b16 %v843, %v837
    %v1042 = vpack.c.b16 %v844, %v838
    %v1043 = vpack.c.b16 %v845, %v839
    %v1044 = vpack.c.b16 %v852, %v846
    %v1045 = vpack.c.b16 %v853, %v847
    %v1046 = vpack.c.b16 %v854, %v848
    %v1047 = vpack.c.b16 %v855, %v849
    %v1048 = vpack.c.b16 %v856, %v850
    %v1049 = vpack.c.b16 %v857, %v851
    %1242 = vmatprep.subr.bf16.mxu0 %v859
    %1243 = vmatpush1.bf16.msra.mxu0 %v858
    %1244 = vmatprep.subr.bf16.mxu0 %v865
    %1245 = vmatpush1.bf16.msra.mxu0 %v864
    %1246 = vmatprep.subr.bf16.mxu0 %v871
    %1247 = vmatpush1.bf16.msra.mxu0 %v870
    %1248 = vmatprep.subr.bf16.mxu0 %v877
    %1249 = vmatpush1.bf16.msra.mxu0 %v876
    %1250 = vmatprep.subr.bf16.mxu0 %v883
    %1251 = vmatpush1.bf16.msra.mxu0 %v882
    %1252 = vmatprep.subr.bf16.mxu0 %v889
    %1253 = vmatpush1.bf16.msra.mxu0 %v888
    %1254 = vmatprep.subr.bf16.mxu0 %v895
    %1255 = vmatpush1.bf16.msra.mxu0 %v894
    %1256 = vmatprep.subr.bf16.mxu0 %v901
    %1257 = vmatpush1.bf16.msra.mxu0 %v900
    %1258 = vmatprep.subr.bf16.mxu0 %v907
    %1259 = vmatpush1.bf16.msra.mxu0 %v906
    %1260 = vmatprep.subr.bf16.mxu0 %v913
    %1261 = vmatpush1.bf16.msra.mxu0 %v912
    %1262 = vmatprep.subr.bf16.mxu0 %v919
    %1263 = vmatpush1.bf16.msra.mxu0 %v918
    %1264 = vmatprep.subr.bf16.mxu0 %v925
    %1265 = vmatpush1.bf16.msra.mxu0 %v924
    %1266 = vmatprep.subr.bf16.mxu0 %v931
    %1267 = vmatpush1.bf16.msra.mxu0 %v930
    %1268 = vmatprep.subr.bf16.mxu0 %v937
    %1269 = vmatpush1.bf16.msra.mxu0 %v936
    %1270 = vmatprep.subr.bf16.mxu0 %v943
    %1271 = vmatpush1.bf16.msra.mxu0 %v942
    %1272 = vmatprep.subr.bf16.mxu0 %v949
    %1273 = vmatpush1.bf16.msra.mxu0 %v948
    %1274 = vmatprep.mubr.bf16.mxu0 %v55
    %1275 = vmatmul.mubr.bf16.gmra.mrb[0].mxu0 %v54
    %v1276 = vpop.f32.mrb[0].mxu0
    %v1277 = vadd.f32 %v255, %v1276
    %v1278 = vpop.f32.mrb[0].mxu0
    %v1279 = vadd.f32 %v259, %v1278
    %v1280 = vpop.f32.mrb[0].mxu0
    %v1281 = vpop.f32.mrb[0].mxu0
    %1282 = vdwg.mxu0
    %1283 = vmatprep.subr.bf16.mxu0 %v955
    %1284 = vmatpush1.bf16.msra.mxu0 %v954
    %1285 = vmatprep.subr.bf16.mxu0 %v961
    %1286 = vmatpush1.bf16.msra.mxu0 %v960
    %1287 = vmatprep.subr.bf16.mxu0 %v967
    %1288 = vmatpush1.bf16.msra.mxu0 %v966
    %1289 = vmatprep.subr.bf16.mxu0 %v973
    %1290 = vmatpush1.bf16.msra.mxu0 %v972
    %1291 = vmatprep.subr.bf16.mxu0 %v979
    %1292 = vmatpush1.bf16.msra.mxu0 %v978
    %1293 = vmatprep.subr.bf16.mxu0 %v985
    %1294 = vmatpush1.bf16.msra.mxu0 %v984
    %1295 = vmatprep.subr.bf16.mxu0 %v991
    %1296 = vmatpush1.bf16.msra.mxu0 %v990
    %1297 = vmatprep.subr.bf16.mxu0 %v997
    %1298 = vmatpush1.bf16.msra.mxu0 %v996
    %1299 = vmatprep.subr.bf16.mxu0 %v1003
    %1300 = vmatpush1.bf16.msra.mxu0 %v1002
    %1301 = vmatprep.subr.bf16.mxu0 %v1009
    %1302 = vmatpush1.bf16.msra.mxu0 %v1008
    %1303 = vmatprep.subr.bf16.mxu0 %v1015
    %1304 = vmatpush1.bf16.msra.mxu0 %v1014
    %1305 = vmatprep.subr.bf16.mxu0 %v1021
    %1306 = vmatpush1.bf16.msra.mxu0 %v1020
    %1307 = vmatprep.subr.bf16.mxu0 %v1027
    %1308 = vmatpush1.bf16.msra.mxu0 %v1026
    %1309 = vmatprep.subr.bf16.mxu0 %v1033
    %1310 = vmatpush1.bf16.msra.mxu0 %v1032
    %1311 = vmatprep.subr.bf16.mxu0 %v1039
    %1312 = vmatpush1.bf16.msra.mxu0 %v1038
    %1313 = vmatprep.subr.bf16.mxu0 %v1045
    %1314 = vmatpush1.bf16.msra.mxu0 %v1044
    %1315 = vmatprep.mubr.bf16.mxu0 %v57
    %1316 = vmatmul.mubr.bf16.gmra.mrb[0].mxu0 %v56
    %v1317 = vpop.f32.mrb[0].mxu0
    %v1318 = vadd.f32 %v1277, %v1317
    %v1319 = vpop.f32.mrb[0].mxu0
    %v1320 = vadd.f32 %v1279, %v1319
    %v1321 = vpop.f32.mrb[0].mxu0
    %v1322 = vpop.f32.mrb[0].mxu0
    %1323 = vdwg.mxu0
    %1324 = vmatprep.subr.bf16.mxu0 %v861
    %1325 = vmatpush1.bf16.msra.mxu0 %v860
    %1326 = vmatprep.subr.bf16.mxu0 %v867
    %1327 = vmatpush1.bf16.msra.mxu0 %v866
    %1328 = vmatprep.subr.bf16.mxu0 %v873
    %1329 = vmatpush1.bf16.msra.mxu0 %v872
    %1330 = vmatprep.subr.bf16.mxu0 %v879
    %1331 = vmatpush1.bf16.msra.mxu0 %v878
    %1332 = vmatprep.subr.bf16.mxu0 %v885
    %1333 = vmatpush1.bf16.msra.mxu0 %v884
    %1334 = vmatprep.subr.bf16.mxu0 %v891
    %1335 = vmatpush1.bf16.msra.mxu0 %v890
    %1336 = vmatprep.subr.bf16.mxu0 %v897
    %1337 = vmatpush1.bf16.msra.mxu0 %v896
    %1338 = vmatprep.subr.bf16.mxu0 %v903
    %1339 = vmatpush1.bf16.msra.mxu0 %v902
    %1340 = vmatprep.subr.bf16.mxu0 %v909
    %1341 = vmatpush1.bf16.msra.mxu0 %v908
    %1342 = vmatprep.subr.bf16.mxu0 %v915
    %1343 = vmatpush1.bf16.msra.mxu0 %v914
    %1344 = vmatprep.subr.bf16.mxu0 %v921
    %1345 = vmatpush1.bf16.msra.mxu0 %v920
    %1346 = vmatprep.subr.bf16.mxu0 %v927
    %1347 = vmatpush1.bf16.msra.mxu0 %v926
    %1348 = vmatprep.subr.bf16.mxu0 %v933
    %1349 = vmatpush1.bf16.msra.mxu0 %v932
    %1350 = vmatprep.subr.bf16.mxu0 %v939
    %1351 = vmatpush1.bf16.msra.mxu0 %v938
    %1352 = vmatprep.subr.bf16.mxu0 %v945
    %1353 = vmatpush1.bf16.msra.mxu0 %v944
    %1354 = vmatprep.subr.bf16.mxu0 %v951
    %1355 = vmatpush1.bf16.msra.mxu0 %v950
    %1356 = vmatprep.mubr.bf16.mxu0 %v55
    %1357 = vmatmul.mubr.bf16.gmra.mrb[0].mxu0 %v54
    %v1358 = vpop.f32.mrb[0].mxu0
    %v1359 = vadd.f32 %v263, %v1358
    %v1360 = vpop.f32.mrb[0].mxu0
    %v1361 = vadd.f32 %v267, %v1360
    %v1362 = vpop.f32.mrb[0].mxu0
    %v1363 = vpop.f32.mrb[0].mxu0
    %1364 = vdwg.mxu0
    %1365 = vmatprep.subr.bf16.mxu0 %v957
    %1366 = vmatpush1.bf16.msra.mxu0 %v956
    %1367 = vmatprep.subr.bf16.mxu0 %v963
    %1368 = vmatpush1.bf16.msra.mxu0 %v962
    %1369 = vmatprep.subr.bf16.mxu0 %v969
    %1370 = vmatpush1.bf16.msra.mxu0 %v968
    %1371 = vmatprep.subr.bf16.mxu0 %v975
    %1372 = vmatpush1.bf16.msra.mxu0 %v974
    %1373 = vmatprep.subr.bf16.mxu0 %v981
    %1374 = vmatpush1.bf16.msra.mxu0 %v980
    %1375 = vmatprep.subr.bf16.mxu0 %v987
    %1376 = vmatpush1.bf16.msra.mxu0 %v986
    %1377 = vmatprep.subr.bf16.mxu0 %v993
    %1378 = vmatpush1.bf16.msra.mxu0 %v992
    %1379 = vmatprep.subr.bf16.mxu0 %v999
    %1380 = vmatpush1.bf16.msra.mxu0 %v998
    %1381 = vmatprep.subr.bf16.mxu0 %v1005
    %1382 = vmatpush1.bf16.msra.mxu0 %v1004
    %1383 = vmatprep.subr.bf16.mxu0 %v1011
    %1384 = vmatpush1.bf16.msra.mxu0 %v1010
    %1385 = vmatprep.subr.bf16.mxu0 %v1017
    %1386 = vmatpush1.bf16.msra.mxu0 %v1016
    %1387 = vmatprep.subr.bf16.mxu0 %v1023
    %1388 = vmatpush1.bf16.msra.mxu0 %v1022
    %1389 = vmatprep.subr.bf16.mxu0 %v1029
    %1390 = vmatpush1.bf16.msra.mxu0 %v1028
    %1391 = vmatprep.subr.bf16.mxu0 %v1035
    %1392 = vmatpush1.bf16.msra.mxu0 %v1034
    %1393 = vmatprep.subr.bf16.mxu0 %v1041
    %1394 = vmatpush1.bf16.msra.mxu0 %v1040
    %1395 = vmatprep.subr.bf16.mxu0 %v1047
    %1396 = vmatpush1.bf16.msra.mxu0 %v1046
    %1397 = vmatprep.mubr.bf16.mxu0 %v57
    %1398 = vmatmul.mubr.bf16.gmra.mrb[0].mxu0 %v56
    %v1399 = vpop.f32.mrb[0].mxu0
    %v1400 = vadd.f32 %v1359, %v1399
    %v1401 = vpop.f32.mrb[0].mxu0
    %v1402 = vadd.f32 %v1361, %v1401
    %v1403 = vpop.f32.mrb[0].mxu0
    %v1404 = vpop.f32.mrb[0].mxu0
    %1405 = vdwg.mxu0
    %1406 = vmatprep.subr.bf16.mxu0 %v863
    %1407 = vmatpush1.bf16.msra.mxu0 %v862
    %1408 = vmatprep.subr.bf16.mxu0 %v869
    %1409 = vmatpush1.bf16.msra.mxu0 %v868
    %1410 = vmatprep.subr.bf16.mxu0 %v875
    %1411 = vmatpush1.bf16.msra.mxu0 %v874
    %1412 = vmatprep.subr.bf16.mxu0 %v881
    %1413 = vmatpush1.bf16.msra.mxu0 %v880
    %1414 = vmatprep.subr.bf16.mxu0 %v887
    %1415 = vmatpush1.bf16.msra.mxu0 %v886
    %1416 = vmatprep.subr.bf16.mxu0 %v893
    %1417 = vmatpush1.bf16.msra.mxu0 %v892
    %1418 = vmatprep.subr.bf16.mxu0 %v899
    %1419 = vmatpush1.bf16.msra.mxu0 %v898
    %1420 = vmatprep.subr.bf16.mxu0 %v905
    %1421 = vmatpush1.bf16.msra.mxu0 %v904
    %1422 = vmatprep.subr.bf16.mxu0 %v911
    %1423 = vmatpush1.bf16.msra.mxu0 %v910
    %1424 = vmatprep.subr.bf16.mxu0 %v917
    %1425 = vmatpush1.bf16.msra.mxu0 %v916
    %1426 = vmatprep.subr.bf16.mxu0 %v923
    %1427 = vmatpush1.bf16.msra.mxu0 %v922
    %1428 = vmatprep.subr.bf16.mxu0 %v929
    %1429 = vmatpush1.bf16.msra.mxu0 %v928
    %1430 = vmatprep.subr.bf16.mxu0 %v935
    %1431 = vmatpush1.bf16.msra.mxu0 %v934
    %1432 = vmatprep.subr.bf16.mxu0 %v941
    %1433 = vmatpush1.bf16.msra.mxu0 %v940
    %1434 = vmatprep.subr.bf16.mxu0 %v947
    %1435 = vmatpush1.bf16.msra.mxu0 %v946
    %1436 = vmatprep.subr.bf16.mxu0 %v953
    %1437 = vmatpush1.bf16.msra.mxu0 %v952
    %1438 = vmatprep.mubr.bf16.mxu0 %v55
    %1439 = vmatmul.mubr.bf16.gmra.mrb[0].mxu0 %v54
    %v1440 = vpop.f32.mrb[0].mxu0
    %v1441 = vadd.f32 %v271, %v1440
    %v1442 = vpop.f32.mrb[0].mxu0
    %v1443 = vadd.f32 %v275, %v1442
    %v1444 = vpop.f32.mrb[0].mxu0
    %v1445 = vpop.f32.mrb[0].mxu0
    %1446 = vdwg.mxu0
    %1447 = vmatprep.subr.bf16.mxu0 %v959
    %1448 = vmatpush1.bf16.msra.mxu0 %v958
    %1449 = vmatprep.subr.bf16.mxu0 %v965
    %1450 = vmatpush1.bf16.msra.mxu0 %v964
    %1451 = vmatprep.subr.bf16.mxu0 %v971
    %1452 = vmatpush1.bf16.msra.mxu0 %v970
    %1453 = vmatprep.subr.bf16.mxu0 %v977
    %1454 = vmatpush1.bf16.msra.mxu0 %v976
    %1455 = vmatprep.subr.bf16.mxu0 %v983
    %1456 = vmatpush1.bf16.msra.mxu0 %v982
    %1457 = vmatprep.subr.bf16.mxu0 %v989
    %1458 = vmatpush1.bf16.msra.mxu0 %v988
    %1459 = vmatprep.subr.bf16.mxu0 %v995
    %1460 = vmatpush1.bf16.msra.mxu0 %v994
    %1461 = vmatprep.subr.bf16.mxu0 %v1001
    %1462 = vmatpush1.bf16.msra.mxu0 %v1000
    %1463 = vmatprep.subr.bf16.mxu0 %v1007
    %1464 = vmatpush1.bf16.msra.mxu0 %v1006
    %1465 = vmatprep.subr.bf16.mxu0 %v1013
    %1466 = vmatpush1.bf16.msra.mxu0 %v1012
    %1467 = vmatprep.subr.bf16.mxu0 %v1019
    %1468 = vmatpush1.bf16.msra.mxu0 %v1018
    %1469 = vmatprep.subr.bf16.mxu0 %v1025
    %1470 = vmatpush1.bf16.msra.mxu0 %v1024
    %1471 = vmatprep.subr.bf16.mxu0 %v1031
    %1472 = vmatpush1.bf16.msra.mxu0 %v1030
    %1473 = vmatprep.subr.bf16.mxu0 %v1037
    %1474 = vmatpush1.bf16.msra.mxu0 %v1036
    %1475 = vmatprep.subr.bf16.mxu0 %v1043
    %1476 = vmatpush1.bf16.msra.mxu0 %v1042
    %1477 = vmatprep.subr.bf16.mxu0 %v1049
    %1478 = vmatpush1.bf16.msra.mxu0 %v1048
    %1479 = vmatprep.mubr.bf16.mxu0 %v57
    %1480 = vmatmul.mubr.bf16.gmra.mrb[0].mxu0 %v56
    %v1481 = vpop.f32.mrb[0].mxu0
    %v1482 = vadd.f32 %v1441, %v1481
    %v1483 = vpop.f32.mrb[0].mxu0
    %v1484 = vadd.f32 %v1443, %v1483
    %v1485 = vpop.f32.mrb[0].mxu0
    %v1486 = vpop.f32.mrb[0].mxu0
    %1487 = vdwg.mxu0
    %vm1488 = vcmask 74752
    %v1489 = vsel %vm1488, %v1482, -inf
    %1490 = vmax.xlane.f32.xlu0 %v1489
    %v1491 = vpop.xlane.xlu0 %1490
    %v1492 = vsub.f32 %v1482, %v1491
    %v1493 = vmul.f32 %v1492, 1.442695
    %v1494 = vpow.pop %v1493
    %v1495 = vsel %vm1488, %v1494, 0.0
    %1496 = vadd.xlane.f32.xlu0 %v1495
    %v1497 = vpop.xlane.xlu0 %1496
    %v1498 = vrcp.pop %v1497
    %v1499 = vmul.f32 %v1494, %v1498
    %1500 = vst.msk [vmem:[%s7] sm:$0x3] %vm1488, %v1499
    %v1501 = vsel %vm1488, %v1484, -inf
    %1502 = vmax.xlane.f32.xlu0 %v1501
    %v1503 = vpop.xlane.xlu0 %1502
    %v1504 = vsub.f32 %v1484, %v1503
    %v1505 = vmul.f32 %v1504, 1.442695
    %v1506 = vpow.pop %v1505
    %v1507 = vsel %vm1488, %v1506, 0.0
    %1508 = vadd.xlane.f32.xlu0 %v1507
    %v1509 = vpop.xlane.xlu0 %1508
    %v1510 = vrcp.pop %v1509
    %v1511 = vmul.f32 %v1506, %v1510
    %1512 = vst.msk [vmem:[#allocation2] sm:$0x3] %vm1488, %v1511
    %v1513 = vmax.f32 %v1318, 0.0
    %v1514 = vmax.f32 %v1320, 0.0
    %v1515 = vmax.f32 %v1400, 0.0
    %v1516 = vmax.f32 %v1402, 0.0
    %vm1517 = vcmask 1041408
    %v1518 = vsel %vm1517, %v1513, 0.0
    %v1519 = vrot.slane %v1518, 4
    %v1520 = vadd.f32 %v1518, %v1519
    %v1521 = vrot.slane %v1520, 2
    %v1522 = vadd.f32 %v1520, %v1521
    %v1523 = vrot.slane %v1522, 1
    %v1524 = vadd.f32 %v1522, %v1523
    %v1525 = vsel %vm1517, %v1514, 0.0
    %v1526 = vrot.slane %v1525, 4
    %v1527 = vadd.f32 %v1525, %v1526
    %v1528 = vrot.slane %v1527, 2
    %v1529 = vadd.f32 %v1527, %v1528
    %v1530 = vrot.slane %v1529, 1
    %v1531 = vadd.f32 %v1529, %v1530
    %v1532 = vsel %vm1517, %v1515, 0.0
    %v1533 = vrot.slane %v1532, 4
    %v1534 = vadd.f32 %v1532, %v1533
    %v1535 = vrot.slane %v1534, 2
    %v1536 = vadd.f32 %v1534, %v1535
    %v1537 = vrot.slane %v1536, 1
    %v1538 = vadd.f32 %v1536, %v1537
    %v1539 = vsel %vm1517, %v1516, 0.0
    %v1540 = vrot.slane %v1539, 4
    %v1541 = vadd.f32 %v1539, %v1540
    %v1542 = vrot.slane %v1541, 2
    %v1543 = vadd.f32 %v1541, %v1542
    %v1544 = vrot.slane %v1543, 1
    %v1545 = vadd.f32 %v1543, %v1544
    %v1546 = vrcp.pop 2.0
    %v1547 = vmul.f32 %v1524, %v1546
    %v1548 = vmul.f32 %v1531, %v1546
    %v1549 = vmul.f32 %v1538, %v1546
    %v1550 = vmul.f32 %v1545, %v1546
    %v1551 = vsub.f32 %v1513, %v1547
    %v1552 = vsub.f32 %v1514, %v1548
    %v1553 = vsub.f32 %v1515, %v1549
    %v1554 = vsub.f32 %v1516, %v1550
    %v1555 = vmul.f32 %v1551, %v1551
    %v1556 = vmul.f32 %v1552, %v1552
    %v1557 = vmul.f32 %v1553, %v1553
    %v1558 = vmul.f32 %v1554, %v1554
    %v1559 = vsel %vm1517, %v1555, 0.0
    %v1560 = vrot.slane %v1559, 4
    %v1561 = vadd.f32 %v1559, %v1560
    %v1562 = vrot.slane %v1561, 2
    %v1563 = vadd.f32 %v1561, %v1562
    %v1564 = vrot.slane %v1563, 1
    %v1565 = vadd.f32 %v1563, %v1564
    %v1566 = vsel %vm1517, %v1556, 0.0
    %v1567 = vrot.slane %v1566, 4
    %v1568 = vadd.f32 %v1566, %v1567
    %v1569 = vrot.slane %v1568, 2
    %v1570 = vadd.f32 %v1568, %v1569
    %v1571 = vrot.slane %v1570, 1
    %v1572 = vadd.f32 %v1570, %v1571
    %v1573 = vsel %vm1517, %v1557, 0.0
    %v1574 = vrot.slane %v1573, 4
    %v1575 = vadd.f32 %v1573, %v1574
    %v1576 = vrot.slane %v1575, 2
    %v1577 = vadd.f32 %v1575, %v1576
    %v1578 = vrot.slane %v1577, 1
    %v1579 = vadd.f32 %v1577, %v1578
    %v1580 = vsel %vm1517, %v1558, 0.0
    %v1581 = vrot.slane %v1580, 4
    %v1582 = vadd.f32 %v1580, %v1581
    %v1583 = vrot.slane %v1582, 2
    %v1584 = vadd.f32 %v1582, %v1583
    %v1585 = vrot.slane %v1584, 1
    %v1586 = vadd.f32 %v1584, %v1585
    %v1587 = vmul.f32 %v1565, %v1546
    %v1588 = vmul.f32 %v1572, %v1546
    %v1589 = vmul.f32 %v1579, %v1546
    %v1590 = vmul.f32 %v1586, %v1546
    %v1591 = vadd.f32 %v1587, 1e-05
    %v1592 = vadd.f32 %v1588, 1e-05
    %v1593 = vadd.f32 %v1589, 1e-05
    %v1594 = vadd.f32 %v1590, 1e-05
    %v1595 = vrsqrt.pop %v1591
    %v1596 = vrsqrt.pop %v1592
    %v1597 = vrsqrt.pop %v1593
    %v1598 = vrsqrt.pop %v1594
    %v1599 = vmul.f32 %v1551, %v1595
    %v1600 = vmul.f32 %v1552, %v1596
    %v1601 = vmul.f32 %v1553, %v1597
    %v1602 = vmul.f32 %v1554, %v1598
    %v1603 = vld [vmem:[%s3] sm:$0xf]
    %v1605 = vlaneseq
    %v1606 = vshrl.u32 %v1605, 7
    %v1607 = vsub.s32 0, %v1606
    %v1608 = vrot.slane %v1603, %v1607
    %v1609 = vlaneseq
    %v1610 = vshrl.u32 %v1609, 7
    %v1611 = vsub.s32 1, %v1610
    %v1612 = vrot.slane %v1603, %v1611
    %v1613 = vlaneseq
    %v1614 = vshrl.u32 %v1613, 7
    %v1615 = vsub.s32 2, %v1614
    %v1616 = vrot.slane %v1603, %v1615
    %v1617 = vlaneseq
    %v1618 = vshrl.u32 %v1617, 7
    %v1619 = vsub.s32 3, %v1618
    %v1620 = vrot.slane %v1603, %v1619
    %v1625 = vmul.f32 %v1599, %v1608
    %v1626 = vmul.f32 %v1600, %v1612
    %v1627 = vmul.f32 %v1601, %v1616
    %v1628 = vmul.f32 %v1602, %v1620
    %v1629 = vld [vmem:[%s4] sm:$0xf]
    %v1631 = vlaneseq
    %v1632 = vshrl.u32 %v1631, 7
    %v1633 = vsub.s32 0, %v1632
    %v1634 = vrot.slane %v1629, %v1633
    %v1635 = vlaneseq
    %v1636 = vshrl.u32 %v1635, 7
    %v1637 = vsub.s32 1, %v1636
    %v1638 = vrot.slane %v1629, %v1637
    %v1639 = vlaneseq
    %v1640 = vshrl.u32 %v1639, 7
    %v1641 = vsub.s32 2, %v1640
    %v1642 = vrot.slane %v1629, %v1641
    %v1643 = vlaneseq
    %v1644 = vshrl.u32 %v1643, 7
    %v1645 = vsub.s32 3, %v1644
    %v1646 = vrot.slane %v1629, %v1645
    %v1651 = vadd.f32 %v1625, %v1634
    %v1652 = vadd.f32 %v1626, %v1638
    %v1653 = vadd.f32 %v1627, %v1642
    %v1654 = vadd.f32 %v1628, %v1646
    %v1655 = vpack.c.bf16 %v1651, %v1651
    %v1656 = vpack.c.bf16 %v1652, %v1652
    %v1657 = vpack.c.bf16 %v1653, %v1653
    %v1658 = vpack.c.bf16 %v1654, %v1654
    %v1659 = vld [vmem:[%s5] sm:$0xf]
    %v1660 = vld [vmem:[%s5 + $0x4] sm:$0xf]
    %v1661 = vld [vmem:[%s5 + $0x8] sm:$0xf]
    %v1662 = vld [vmem:[%s5 + $0xc] sm:$0xf]
    %v1663 = vld [vmem:[%s5 + $0x10] sm:$0xf]
    %v1664 = vld [vmem:[%s5 + $0x14] sm:$0xf]
    %v1665 = vld [vmem:[%s5 + $0x18] sm:$0xf]
    %v1666 = vld [vmem:[%s5 + $0x1c] sm:$0xf]
    %v1667 = vld [vmem:[%s5 + $0x20] sm:$0xf]
    %v1668 = vld [vmem:[%s5 + $0x24] sm:$0xf]
    %v1669 = vld [vmem:[%s5 + $0x28] sm:$0xf]
    %v1670 = vld [vmem:[%s5 + $0x2c] sm:$0xf]
    %v1671 = vld [vmem:[%s5 + $0x30] sm:$0xf]
    %v1672 = vld [vmem:[%s5 + $0x34] sm:$0xf]
    %v1673 = vld [vmem:[%s5 + $0x38] sm:$0xf]
    %v1674 = vld [vmem:[%s5 + $0x3c] sm:$0xf]
    %v1675 = vld [vmem:[%s5 + $0x40] sm:$0xf]
    %v1676 = vld [vmem:[%s5 + $0x44] sm:$0xf]
    %v1677 = vld [vmem:[%s5 + $0x48] sm:$0xf]
    %v1678 = vld [vmem:[%s5 + $0x4c] sm:$0xf]
    %v1679 = vld [vmem:[%s5 + $0x50] sm:$0xf]
    %v1680 = vld [vmem:[%s5 + $0x54] sm:$0xf]
    %v1681 = vld [vmem:[%s5 + $0x58] sm:$0xf]
    %v1682 = vld [vmem:[%s5 + $0x5c] sm:$0xf]
    %v1683 = vld [vmem:[%s5 + $0x60] sm:$0xf]
    %v1684 = vld [vmem:[%s5 + $0x64] sm:$0xf]
    %v1685 = vld [vmem:[%s5 + $0x68] sm:$0xf]
    %v1686 = vld [vmem:[%s5 + $0x6c] sm:$0xf]
    %v1687 = vld [vmem:[%s5 + $0x70] sm:$0xf]
    %v1688 = vld [vmem:[%s5 + $0x74] sm:$0xf]
    %v1689 = vld [vmem:[%s5 + $0x78] sm:$0xf]
    %v1690 = vld [vmem:[%s5 + $0x7c] sm:$0xf]
    %v1691 = vld [vmem:[%s5 + $0x80] sm:$0xf]
    %v1692 = vld [vmem:[%s5 + $0x84] sm:$0xf]
    %v1693 = vld [vmem:[%s5 + $0x88] sm:$0xf]
    %v1694 = vld [vmem:[%s5 + $0x8c] sm:$0xf]
    %v1695 = vld [vmem:[%s5 + $0x90] sm:$0xf]
    %v1696 = vld [vmem:[%s5 + $0x94] sm:$0xf]
    %v1697 = vld [vmem:[%s5 + $0x98] sm:$0xf]
    %v1698 = vld [vmem:[%s5 + $0x9c] sm:$0xf]
    %v1699 = vld [vmem:[%s5 + $0xa0] sm:$0xf]
    %v1700 = vld [vmem:[%s5 + $0xa4] sm:$0xf]
    %v1701 = vld [vmem:[%s5 + $0xa8] sm:$0xf]
    %v1702 = vld [vmem:[%s5 + $0xac] sm:$0xf]
    %v1703 = vld [vmem:[%s5 + $0xb0] sm:$0xf]
    %v1704 = vld [vmem:[%s5 + $0xb4] sm:$0xf]
    %v1705 = vld [vmem:[%s5 + $0xb8] sm:$0xf]
    %v1706 = vld [vmem:[%s5 + $0xbc] sm:$0xf]
    %v1707 = vld [vmem:[%s5 + $0xc0] sm:$0xf]
    %v1708 = vld [vmem:[%s5 + $0xc4] sm:$0xf]
    %v1709 = vld [vmem:[%s5 + $0xc8] sm:$0xf]
    %v1710 = vld [vmem:[%s5 + $0xcc] sm:$0xf]
    %v1711 = vld [vmem:[%s5 + $0xd0] sm:$0xf]
    %v1712 = vld [vmem:[%s5 + $0xd4] sm:$0xf]
    %v1713 = vld [vmem:[%s5 + $0xd8] sm:$0xf]
    %v1714 = vld [vmem:[%s5 + $0xdc] sm:$0xf]
    %v1715 = vld [vmem:[%s5 + $0xe0] sm:$0xf]
    %v1716 = vld [vmem:[%s5 + $0xe4] sm:$0xf]
    %v1717 = vld [vmem:[%s5 + $0xe8] sm:$0xf]
    %v1718 = vld [vmem:[%s5 + $0xec] sm:$0xf]
    %v1719 = vld [vmem:[%s5 + $0xf0] sm:$0xf]
    %v1720 = vld [vmem:[%s5 + $0xf4] sm:$0xf]
    %v1721 = vld [vmem:[%s5 + $0xf8] sm:$0xf]
    %v1722 = vld [vmem:[%s5 + $0xfc] sm:$0xf]
    %v1723 = vld [vmem:[%s6] sm:$0x1]
    %v1725 = vlaneseq
    %v1726 = vshrl.u32 %v1725, 7
    %v1727 = vsub.s32 0, %v1726
    %v1728 = vrot.slane %v1723, %v1727
    %v1794 = vunpack.c.l.b16 %v1659
    %v1795 = vunpack.c.l.b16 %v1660
    %v1796 = vunpack.c.l.b16 %v1661
    %v1797 = vunpack.c.l.b16 %v1662
    %v1798 = vunpack.c.l.b16 %v1663
    %v1799 = vunpack.c.l.b16 %v1664
    %v1800 = vunpack.c.l.b16 %v1665
    %v1801 = vunpack.c.l.b16 %v1666
    %v1802 = vunpack.c.l.b16 %v1667
    %v1803 = vunpack.c.l.b16 %v1668
    %v1804 = vunpack.c.l.b16 %v1669
    %v1805 = vunpack.c.l.b16 %v1670
    %v1806 = vunpack.c.l.b16 %v1671
    %v1807 = vunpack.c.l.b16 %v1672
    %v1808 = vunpack.c.l.b16 %v1673
    %v1809 = vunpack.c.l.b16 %v1674
    %v1810 = vunpack.c.l.b16 %v1675
    %v1811 = vunpack.c.l.b16 %v1676
    %v1812 = vunpack.c.l.b16 %v1677
    %v1813 = vunpack.c.l.b16 %v1678
    %v1814 = vunpack.c.l.b16 %v1679
    %v1815 = vunpack.c.l.b16 %v1680
    %v1816 = vunpack.c.l.b16 %v1681
    %v1817 = vunpack.c.l.b16 %v1682
    %v1818 = vunpack.c.l.b16 %v1683
    %v1819 = vunpack.c.l.b16 %v1684
    %v1820 = vunpack.c.l.b16 %v1685
    %v1821 = vunpack.c.l.b16 %v1686
    %v1822 = vunpack.c.l.b16 %v1687
    %v1823 = vunpack.c.l.b16 %v1688
    %v1824 = vunpack.c.l.b16 %v1689
    %v1825 = vunpack.c.l.b16 %v1690
    %v1826 = vunpack.c.l.b16 %v1691
    %v1827 = vunpack.c.l.b16 %v1692
    %v1828 = vunpack.c.l.b16 %v1693
    %v1829 = vunpack.c.l.b16 %v1694
    %v1830 = vunpack.c.l.b16 %v1695
    %v1831 = vunpack.c.l.b16 %v1696
    %v1832 = vunpack.c.l.b16 %v1697
    %v1833 = vunpack.c.l.b16 %v1698
    %v1834 = vunpack.c.l.b16 %v1699
    %v1835 = vunpack.c.l.b16 %v1700
    %v1836 = vunpack.c.l.b16 %v1701
    %v1837 = vunpack.c.l.b16 %v1702
    %v1838 = vunpack.c.l.b16 %v1703
    %v1839 = vunpack.c.l.b16 %v1704
    %v1840 = vunpack.c.l.b16 %v1705
    %v1841 = vunpack.c.l.b16 %v1706
    %v1842 = vunpack.c.l.b16 %v1707
    %v1843 = vunpack.c.l.b16 %v1708
    %v1844 = vunpack.c.l.b16 %v1709
    %v1845 = vunpack.c.l.b16 %v1710
    %v1846 = vunpack.c.l.b16 %v1711
    %v1847 = vunpack.c.l.b16 %v1712
    %v1848 = vunpack.c.l.b16 %v1713
    %v1849 = vunpack.c.l.b16 %v1714
    %v1850 = vunpack.c.l.b16 %v1715
    %v1851 = vunpack.c.l.b16 %v1716
    %v1852 = vunpack.c.l.b16 %v1717
    %v1853 = vunpack.c.l.b16 %v1718
    %v1854 = vunpack.c.l.b16 %v1719
    %v1855 = vunpack.c.l.b16 %v1720
    %v1856 = vunpack.c.l.b16 %v1721
    %v1857 = vunpack.c.l.b16 %v1722
    %v1858 = vpack.c.b16 %v1795, %v1794
    %v1859 = vpack.c.b16 %v1797, %v1796
    %v1860 = vpack.c.b16 %v1799, %v1798
    %v1861 = vpack.c.b16 %v1801, %v1800
    %v1862 = vpack.c.b16 %v1803, %v1802
    %v1863 = vpack.c.b16 %v1805, %v1804
    %v1864 = vpack.c.b16 %v1807, %v1806
    %v1865 = vpack.c.b16 %v1809, %v1808
    %v1866 = vpack.c.b16 %v1811, %v1810
    %v1867 = vpack.c.b16 %v1813, %v1812
    %v1868 = vpack.c.b16 %v1815, %v1814
    %v1869 = vpack.c.b16 %v1817, %v1816
    %v1870 = vpack.c.b16 %v1819, %v1818
    %v1871 = vpack.c.b16 %v1821, %v1820
    %v1872 = vpack.c.b16 %v1823, %v1822
    %v1873 = vpack.c.b16 %v1825, %v1824
    %v1874 = vpack.c.b16 %v1827, %v1826
    %v1875 = vpack.c.b16 %v1829, %v1828
    %v1876 = vpack.c.b16 %v1831, %v1830
    %v1877 = vpack.c.b16 %v1833, %v1832
    %v1878 = vpack.c.b16 %v1835, %v1834
    %v1879 = vpack.c.b16 %v1837, %v1836
    %v1880 = vpack.c.b16 %v1839, %v1838
    %v1881 = vpack.c.b16 %v1841, %v1840
    %v1882 = vpack.c.b16 %v1843, %v1842
    %v1883 = vpack.c.b16 %v1845, %v1844
    %v1884 = vpack.c.b16 %v1847, %v1846
    %v1885 = vpack.c.b16 %v1849, %v1848
    %v1886 = vpack.c.b16 %v1851, %v1850
    %v1887 = vpack.c.b16 %v1853, %v1852
    %v1888 = vpack.c.b16 %v1855, %v1854
    %v1889 = vpack.c.b16 %v1857, %v1856
    %1922 = vmatprep.subr.bf16.mxu0 0
    %1923 = vmatpush1.bf16.msra.mxu0 %v1858
    %1924 = vmatprep.subr.bf16.mxu0 0
    %1925 = vmatpush1.bf16.msra.mxu0 %v1859
    %1926 = vmatprep.subr.bf16.mxu0 0
    %1927 = vmatpush1.bf16.msra.mxu0 %v1860
    %1928 = vmatprep.subr.bf16.mxu0 0
    %1929 = vmatpush1.bf16.msra.mxu0 %v1861
    %1930 = vmatprep.subr.bf16.mxu0 0
    %1931 = vmatpush1.bf16.msra.mxu0 %v1862
    %1932 = vmatprep.subr.bf16.mxu0 0
    %1933 = vmatpush1.bf16.msra.mxu0 %v1863
    %1934 = vmatprep.subr.bf16.mxu0 0
    %1935 = vmatpush1.bf16.msra.mxu0 %v1864
    %1936 = vmatprep.subr.bf16.mxu0 0
    %1937 = vmatpush1.bf16.msra.mxu0 %v1865
    %1938 = vmatprep.subr.bf16.mxu0 0
    %1939 = vmatpush1.bf16.msra.mxu0 %v1866
    %1940 = vmatprep.subr.bf16.mxu0 0
    %1941 = vmatpush1.bf16.msra.mxu0 %v1867
    %1942 = vmatprep.subr.bf16.mxu0 0
    %1943 = vmatpush1.bf16.msra.mxu0 %v1868
    %1944 = vmatprep.subr.bf16.mxu0 0
    %1945 = vmatpush1.bf16.msra.mxu0 %v1869
    %1946 = vmatprep.subr.bf16.mxu0 0
    %1947 = vmatpush1.bf16.msra.mxu0 %v1870
    %1948 = vmatprep.subr.bf16.mxu0 0
    %1949 = vmatpush1.bf16.msra.mxu0 %v1871
    %1950 = vmatprep.subr.bf16.mxu0 0
    %1951 = vmatpush1.bf16.msra.mxu0 %v1872
    %1952 = vmatprep.subr.bf16.mxu0 0
    %1953 = vmatpush1.bf16.msra.mxu0 %v1873
    %1954 = vmatprep.mubr.bf16.mxu0 %v1656
    %1955 = vmatmul.mubr.bf16.gmra.mrb[0].mxu0 %v1655
    %v1956 = vpop.f32.mrb[0].mxu0
    %v1957 = vadd.f32 %v1728, %v1956
    %v1958 = vpop.f32.mrb[0].mxu0
    %v1959 = vpop.f32.mrb[0].mxu0
    %v1960 = vpop.f32.mrb[0].mxu0
    %1961 = vdwg.mxu0
    %1962 = vmatprep.subr.bf16.mxu0 0
    %1963 = vmatpush1.bf16.msra.mxu0 %v1874
    %1964 = vmatprep.subr.bf16.mxu0 0
    %1965 = vmatpush1.bf16.msra.mxu0 %v1875
    %1966 = vmatprep.subr.bf16.mxu0 0
    %1967 = vmatpush1.bf16.msra.mxu0 %v1876
    %1968 = vmatprep.subr.bf16.mxu0 0
    %1969 = vmatpush1.bf16.msra.mxu0 %v1877
    %1970 = vmatprep.subr.bf16.mxu0 0
    %1971 = vmatpush1.bf16.msra.mxu0 %v1878
    %1972 = vmatprep.subr.bf16.mxu0 0
    %1973 = vmatpush1.bf16.msra.mxu0 %v1879
    %1974 = vmatprep.subr.bf16.mxu0 0
    %1975 = vmatpush1.bf16.msra.mxu0 %v1880
    %1976 = vmatprep.subr.bf16.mxu0 0
    %1977 = vmatpush1.bf16.msra.mxu0 %v1881
    %1978 = vmatprep.subr.bf16.mxu0 0
    %1979 = vmatpush1.bf16.msra.mxu0 %v1882
    %1980 = vmatprep.subr.bf16.mxu0 0
    %1981 = vmatpush1.bf16.msra.mxu0 %v1883
    %1982 = vmatprep.subr.bf16.mxu0 0
    %1983 = vmatpush1.bf16.msra.mxu0 %v1884
    %1984 = vmatprep.subr.bf16.mxu0 0
    %1985 = vmatpush1.bf16.msra.mxu0 %v1885
    %1986 = vmatprep.subr.bf16.mxu0 0
    %1987 = vmatpush1.bf16.msra.mxu0 %v1886
    %1988 = vmatprep.subr.bf16.mxu0 0
    %1989 = vmatpush1.bf16.msra.mxu0 %v1887
    %1990 = vmatprep.subr.bf16.mxu0 0
    %1991 = vmatpush1.bf16.msra.mxu0 %v1888
    %1992 = vmatprep.subr.bf16.mxu0 0
    %1993 = vmatpush1.bf16.msra.mxu0 %v1889
    %1994 = vmatprep.mubr.bf16.mxu0 %v1658
    %1995 = vmatmul.mubr.bf16.gmra.mrb[0].mxu0 %v1657
    %v1996 = vpop.f32.mrb[0].mxu0
    %v1997 = vadd.f32 %v1957, %v1996
    %v1998 = vpop.f32.mrb[0].mxu0
    %v1999 = vpop.f32.mrb[0].mxu0
    %v2000 = vpop.f32.mrb[0].mxu0
    %2001 = vdwg.mxu0
    %v2002 = vand.u32 2147483647, %v1997
    %v2003 = vsub.f32 0.0, %v2002
    %v2004 = vmul.f32 %v2003, 1.442695
    %v2005 = vpow.pop %v2004
    %vm2006 = vcmp.ge.f32.partialorder %v1997, 0.0
    %v2007 = vadd.f32 %v2005, 1.0
    %v2008 = vrcp.pop %v2007
    %v2009 = vmul.f32 1.0, %v2008
    %v2010 = vmul.f32 %v2005, %v2008
    %v2011 = vsel %vm2006, %v2009, %v2010
    %vm2012 = vcmask 1024
    %2013 = vst.msk [vmem:[%s8] sm:$0x3] %vm2012, %v2011
    // Predicated region
    $region30: #{_lambda_.3} parent=1 // pred_check
      _
    $region31: #{_lambda_.3} parent=1 // pred_check_branch
      %2015 = sbr.rel (0) target = $region33
    $region32: #{_lambda_.3} parent=1 // pred_region
      _
    $region33: #{_lambda_.3} parent=1 // pred_fallthru
      _
    // Predicated region
    $region34: #{_lambda_.3} parent=1 // pred_check
      _
    $region35: #{_lambda_.3} parent=1 // pred_check_branch
      %2017 = sbr.rel (0) target = $region37
    $region36: #{_lambda_.3} parent=1 // pred_region
      _
    $region37: #{_lambda_.3} parent=1 // pred_fallthru
      _
    // Predicated region
    $region38: #{_lambda_.3} parent=1 // pred_check
      _
    $region39: #{_lambda_.3} parent=1 // pred_check_branch
      %2019 = sbr.rel (0) target = $region41
    $region40: #{_lambda_.3} parent=1 // pred_region
      %s2021 = ssub.s32 32, 32
      %2022 = vsyncadd [#allocation3], %s2021
      %s2024 = sshll.u32 [#allocation2], 4
      %s2025 = int_to_ptr.vmem [resolvable:$true] %s2024
      %2027 = dma.vmem_to_hbm [thread:$0]  %s2025, 32, %s9, [#allocation3]
    $region41: #{_lambda_.3} parent=1 // pred_fallthru
      _
    // Predicated region
    $region42: #{_lambda_.3} parent=1 // pred_check
      _
    $region43: #{_lambda_.3} parent=1 // pred_check_branch
      %2029 = sbr.rel (0) target = $region45
    $region44: #{_lambda_.3} parent=1 // pred_region
      _
    $region45: #{_lambda_.3} parent=1 // pred_fallthru
      _
    // Predicated region
    $region46: #{_lambda_.3} parent=1 // pred_check
      _
    $region47: #{_lambda_.3} parent=1 // pred_check_branch
      %2031 = sbr.rel (0) target = $region49
    $region48: #{_lambda_.3} parent=1 // pred_region
      _
    $region49: #{_lambda_.3} parent=1 // pred_fallthru
      _
    // Predicated region
    $region50: #{_lambda_.3} parent=1 // pred_check
      _
    $region51: #{_lambda_.3} parent=1 // pred_check_branch
      %2033 = sbr.rel (0) target = $region53
    $region52: #{_lambda_.3} parent=1 // pred_region
      %2034 = dma.done [#allocation3], 32
    $region53: #{_lambda_.3} parent=1 // pred_fallthru
      _
    %2035 = vsyncpa [#allocation3], 1

// kernel: _lambda_.2
$region0: #{_lambda_.2}
  #allocation0 [shape = 'u32[]', space=smem, size = 0x4, offset = 0x4, fixed_abs, tag = 'smem constant byte address 0x4 - core index']
  #allocation1 [shape = 'u32[144,128]{1,0:T(1,128)}', space=vmem, size = 0x12000, scoped, tag = 'internal scratch']
  #allocation2 [shape = 'f32[2,16,32,8]{3,2,1,0:T(8,128)}', space=vmem, size = 0x80000, scoped, tag = 'scratch operand']
  #allocation3 [shape = 'f32[2,18,18,8]{3,2,1,0:T(8,128)}', space=vmem, size = 0x6c000, scoped, tag = 'scratch operand']
  #allocation4 [shape = 'bf16[512,72]{1,0:T(16,128)(2,1)}', space=vmem, size = 0x20000, scoped, tag = 'scratch operand']
  #allocation5 [shape = 'f32[2,8,16,16]{3,2,1,0:T(8,128)}', space=vmem, size = 0x20000, scoped, tag = 'scratch operand']
  #allocation6 [shape = 'f32[2,10,10,16]{3,2,1,0:T(8,128)}', space=vmem, size = 0x28000, scoped, tag = 'scratch operand']
  #allocation7 [shape = 'bf16[128,144]{1,0:T(16,128)(2,1)}', space=vmem, size = 0x10000, scoped, tag = 'scratch operand']
  #allocation8 [shape = 'f32[2,4,8,32]{3,2,1,0:T(8,128)}', space=vmem, size = 0x8000, scoped, tag = 'scratch operand']
  %s0 = inlined_call_operand.vmem [shape: bf16[2,1024,27], index: 0, kind: input, shape index: {}]
  %s1 = inlined_call_operand.vmem [shape: bf16[27,8], index: 1, kind: input, shape index: {}]
  %s2 = inlined_call_operand.vmem [shape: f32[1,8], index: 2, kind: input, shape index: {}]
  %s3 = inlined_call_operand.vmem [shape: bf16[72,16], index: 3, kind: input, shape index: {}]
  %s4 = inlined_call_operand.vmem [shape: f32[1,16], index: 4, kind: input, shape index: {}]
  %s5 = inlined_call_operand.vmem [shape: bf16[144,32], index: 5, kind: input, shape index: {}]
  %s6 = inlined_call_operand.vmem [shape: f32[1,32], index: 6, kind: input, shape index: {}]
  %s7 = inlined_call_operand.vmem [shape: f32[2,512], index: 7, kind: output, shape index: {}]
  %s8 = sld [smem:[#allocation0]]
  $region38: #{_lambda_.2} parent=0
    _
  %s10 = ssub.s32 1, %s8
  %s11 = scalar_select 0, %s10, %s8
  // Predicated region
  $region2: #{_lambda_.2} parent=0 // pred_check
    _
  $region3: #{_lambda_.2} parent=0 // pred_check_branch
    %13 = sbr.rel (0) target = $region5
  $region4: #{_lambda_.2} parent=0 // pred_region
    _
  $region5: #{_lambda_.2} parent=0 // pred_fallthru
    _
  // Predicated region
  $region6: #{_lambda_.2} parent=0 // pred_check
    _
  $region7: #{_lambda_.2} parent=0 // pred_check_branch
    %15 = sbr.rel (0) target = $region9
  $region8: #{_lambda_.2} parent=0 // pred_region
    _
  $region9: #{_lambda_.2} parent=0 // pred_fallthru
    _
  // Predicated region
  $region10: #{_lambda_.2} parent=0 // pred_check
    _
  $region11: #{_lambda_.2} parent=0 // pred_check_branch
    %17 = sbr.rel (0) target = $region13
  $region12: #{_lambda_.2} parent=0 // pred_region
    _
  $region13: #{_lambda_.2} parent=0 // pred_fallthru
    _
  // Predicated region
  $region14: #{_lambda_.2} parent=0 // pred_check
    _
  $region15: #{_lambda_.2} parent=0 // pred_check_branch
    %19 = sbr.rel (0) target = $region17
  $region16: #{_lambda_.2} parent=0 // pred_region
    _
  $region17: #{_lambda_.2} parent=0 // pred_fallthru
    _
  // Predicated region
  $region18: #{_lambda_.2} parent=0 // pred_check
    _
  $region19: #{_lambda_.2} parent=0 // pred_check_branch
    %21 = sbr.rel (0) target = $region21
  $region20: #{_lambda_.2} parent=0 // pred_region
    _
  $region21: #{_lambda_.2} parent=0 // pred_fallthru
    _
  // Predicated region
  $region22: #{_lambda_.2} parent=0 // pred_check
    _
  $region23: #{_lambda_.2} parent=0 // pred_check_branch
    %23 = sbr.rel (0) target = $region25
  $region24: #{_lambda_.2} parent=0 // pred_region
    _
  $region25: #{_lambda_.2} parent=0 // pred_fallthru
    _
  // Predicated region
  $region26: #{_lambda_.2} parent=0 // pred_check
    _
  $region27: #{_lambda_.2} parent=0 // pred_check_branch
    %25 = sbr.rel (0) target = $region29
  $region28: #{_lambda_.2} parent=0 // pred_region
    _
  $region29: #{_lambda_.2} parent=0 // pred_fallthru
    _
  %v27 = vld [vmem:[%s0] sm:$0xf]
  %v28 = vld [vmem:[%s0 + $0x4] sm:$0xf]
  %v29 = vld [vmem:[%s0 + $0x8] sm:$0xf]
  %v30 = vld [vmem:[%s0 + $0xc] sm:$0xf]
  %v31 = vld [vmem:[%s0 + $0x10] sm:$0xf]
  %v32 = vld [vmem:[%s0 + $0x14] sm:$0xf]
  %v33 = vld [vmem:[%s0 + $0x18] sm:$0xf]
  %v34 = vld [vmem:[%s0 + $0x1c] sm:$0xf]
  %v35 = vld [vmem:[%s0 + $0x20] sm:$0xf]
  %v36 = vld [vmem:[%s0 + $0x24] sm:$0xf]
  %v37 = vld [vmem:[%s0 + $0x28] sm:$0xf]
  %v38 = vld [vmem:[%s0 + $0x2c] sm:$0xf]
  %v39 = vld [vmem:[%s0 + $0x30] sm:$0xf]
  %v40 = vld [vmem:[%s0 + $0x34] sm:$0xf]
  %v41 = vld [vmem:[%s0 + $0x38] sm:$0xf]
  %v42 = vld [vmem:[%s0 + $0x3c] sm:$0xf]
  %v43 = vld [vmem:[%s0 + $0x40] sm:$0xf]
  %v44 = vld [vmem:[%s0 + $0x44] sm:$0xf]
  %v45 = vld [vmem:[%s0 + $0x48] sm:$0xf]
  %v46 = vld [vmem:[%s0 + $0x4c] sm:$0xf]
  %v47 = vld [vmem:[%s0 + $0x50] sm:$0xf]
  %v48 = vld [vmem:[%s0 + $0x54] sm:$0xf]
  %v49 = vld [vmem:[%s0 + $0x58] sm:$0xf]
  %v50 = vld [vmem:[%s0 + $0x5c] sm:$0xf]
  %v51 = vld [vmem:[%s0 + $0x60] sm:$0xf]
  %v52 = vld [vmem:[%s0 + $0x64] sm:$0xf]
  %v53 = vld [vmem:[%s0 + $0x68] sm:$0xf]
  %v54 = vld [vmem:[%s0 + $0x6c] sm:$0xf]
  %v55 = vld [vmem:[%s0 + $0x70] sm:$0xf]
  %v56 = vld [vmem:[%s0 + $0x74] sm:$0xf]
  %v57 = vld [vmem:[%s0 + $0x78] sm:$0xf]
  %v58 = vld [vmem:[%s0 + $0x7c] sm:$0xf]
  %v59 = vld [vmem:[%s0 + $0x80] sm:$0xf]
  %v60 = vld [vmem:[%s0 + $0x84] sm:$0xf]
  %v61 = vld [vmem:[%s0 + $0x88] sm:$0xf]
  %v62 = vld [vmem:[%s0 + $0x8c] sm:$0xf]
  %v63 = vld [vmem:[%s0 + $0x90] sm:$0xf]
  %v64 = vld [vmem:[%s0 + $0x94] sm:$0xf]
  %v65 = vld [vmem:[%s0 + $0x98] sm:$0xf]
  %v66 = vld [vmem:[%s0 + $0x9c] sm:$0xf]
  %v67 = vld [vmem:[%s0 + $0xa0] sm:$0xf]
  %v68 = vld [vmem:[%s0 + $0xa4] sm:$0xf]
  %v69 = vld [vmem:[%s0 + $0xa8] sm:$0xf]
  %v70 = vld [vmem:[%s0 + $0xac] sm:$0xf]
  %v71 = vld [vmem:[%s0 + $0xb0] sm:$0xf]
  %v72 = vld [vmem:[%s0 + $0xb4] sm:$0xf]
  %v73 = vld [vmem:[%s0 + $0xb8] sm:$0xf]
  %v74 = vld [vmem:[%s0 + $0xbc] sm:$0xf]
  %v75 = vld [vmem:[%s0 + $0xc0] sm:$0xf]
  %v76 = vld [vmem:[%s0 + $0xc4] sm:$0xf]
  %v77 = vld [vmem:[%s0 + $0xc8] sm:$0xf]
  %v78 = vld [vmem:[%s0 + $0xcc] sm:$0xf]
  %v79 = vld [vmem:[%s0 + $0xd0] sm:$0xf]
  %v80 = vld [vmem:[%s0 + $0xd4] sm:$0xf]
  %v81 = vld [vmem:[%s0 + $0xd8] sm:$0xf]
  %v82 = vld [vmem:[%s0 + $0xdc] sm:$0xf]
  %v83 = vld [vmem:[%s0 + $0xe0] sm:$0xf]
  %v84 = vld [vmem:[%s0 + $0xe4] sm:$0xf]
  %v85 = vld [vmem:[%s0 + $0xe8] sm:$0xf]
  %v86 = vld [vmem:[%s0 + $0xec] sm:$0xf]
  %v87 = vld [vmem:[%s0 + $0xf0] sm:$0xf]
  %v88 = vld [vmem:[%s0 + $0xf4] sm:$0xf]
  %v89 = vld [vmem:[%s0 + $0xf8] sm:$0xf]
  %v90 = vld [vmem:[%s0 + $0xfc] sm:$0xf]
  %v91 = vld [vmem:[%s0 + $0x100] sm:$0xf]
  %v92 = vld [vmem:[%s0 + $0x104] sm:$0xf]
  %v93 = vld [vmem:[%s0 + $0x108] sm:$0xf]
  %v94 = vld [vmem:[%s0 + $0x10c] sm:$0xf]
  %v95 = vld [vmem:[%s0 + $0x110] sm:$0xf]
  %v96 = vld [vmem:[%s0 + $0x114] sm:$0xf]
  %v97 = vld [vmem:[%s0 + $0x118] sm:$0xf]
  %v98 = vld [vmem:[%s0 + $0x11c] sm:$0xf]
  %v99 = vld [vmem:[%s0 + $0x120] sm:$0xf]
  %v100 = vld [vmem:[%s0 + $0x124] sm:$0xf]
  %v101 = vld [vmem:[%s0 + $0x128] sm:$0xf]
  %v102 = vld [vmem:[%s0 + $0x12c] sm:$0xf]
  %v103 = vld [vmem:[%s0 + $0x130] sm:$0xf]
  %v104 = vld [vmem:[%s0 + $0x134] sm:$0xf]
  %v105 = vld [vmem:[%s0 + $0x138] sm:$0xf]
  %v106 = vld [vmem:[%s0 + $0x13c] sm:$0xf]
  %v107 = vld [vmem:[%s0 + $0x140] sm:$0xf]
  %v108 = vld [vmem:[%s0 + $0x144] sm:$0xf]
  %v109 = vld [vmem:[%s0 + $0x148] sm:$0xf]
  %v110 = vld [vmem:[%s0 + $0x14c] sm:$0xf]
  %v111 = vld [vmem:[%s0 + $0x150] sm:$0xf]
  %v112 = vld [vmem:[%s0 + $0x154] sm:$0xf]
  %v113 = vld [vmem:[%s0 + $0x158] sm:$0xf]
  %v114 = vld [vmem:[%s0 + $0x15c] sm:$0xf]
  %v115 = vld [vmem:[%s0 + $0x160] sm:$0xf]
  %v116 = vld [vmem:[%s0 + $0x164] sm:$0xf]
  %v117 = vld [vmem:[%s0 + $0x168] sm:$0xf]
  %v118 = vld [vmem:[%s0 + $0x16c] sm:$0xf]
  %v119 = vld [vmem:[%s0 + $0x170] sm:$0xf]
  %v120 = vld [vmem:[%s0 + $0x174] sm:$0xf]
  %v121 = vld [vmem:[%s0 + $0x178] sm:$0xf]
  %v122 = vld [vmem:[%s0 + $0x17c] sm:$0xf]
  %v123 = vld [vmem:[%s0 + $0x180] sm:$0xf]
  %v124 = vld [vmem:[%s0 + $0x184] sm:$0xf]
  %v125 = vld [vmem:[%s0 + $0x188] sm:$0xf]
  %v126 = vld [vmem:[%s0 + $0x18c] sm:$0xf]
  %v127 = vld [vmem:[%s0 + $0x190] sm:$0xf]
  %v128 = vld [vmem:[%s0 + $0x194] sm:$0xf]
  %v129 = vld [vmem:[%s0 + $0x198] sm:$0xf]
  %v130 = vld [vmem:[%s0 + $0x19c] sm:$0xf]
  %v131 = vld [vmem:[%s0 + $0x1a0] sm:$0xf]
  %v132 = vld [vmem:[%s0 + $0x1a4] sm:$0xf]
  %v133 = vld [vmem:[%s0 + $0x1a8] sm:$0xf]
  %v134 = vld [vmem:[%s0 + $0x1ac] sm:$0xf]
  %v135 = vld [vmem:[%s0 + $0x1b0] sm:$0xf]
  %v136 = vld [vmem:[%s0 + $0x1b4] sm:$0xf]
  %v137 = vld [vmem:[%s0 + $0x1b8] sm:$0xf]
  %v138 = vld [vmem:[%s0 + $0x1bc] sm:$0xf]
  %v139 = vld [vmem:[%s0 + $0x1c0] sm:$0xf]
  %v140 = vld [vmem:[%s0 + $0x1c4] sm:$0xf]
  %v141 = vld [vmem:[%s0 + $0x1c8] sm:$0xf]
  %v142 = vld [vmem:[%s0 + $0x1cc] sm:$0xf]
  %v143 = vld [vmem:[%s0 + $0x1d0] sm:$0xf]
  %v144 = vld [vmem:[%s0 + $0x1d4] sm:$0xf]
  %v145 = vld [vmem:[%s0 + $0x1d8] sm:$0xf]
  %v146 = vld [vmem:[%s0 + $0x1dc] sm:$0xf]
  %v147 = vld [vmem:[%s0 + $0x1e0] sm:$0xf]
  %v148 = vld [vmem:[%s0 + $0x1e4] sm:$0xf]
  %v149 = vld [vmem:[%s0 + $0x1e8] sm:$0xf]
  %v150 = vld [vmem:[%s0 + $0x1ec] sm:$0xf]
  %v151 = vld [vmem:[%s0 + $0x1f0] sm:$0xf]
  %v152 = vld [vmem:[%s0 + $0x1f4] sm:$0xf]
  %v153 = vld [vmem:[%s0 + $0x1f8] sm:$0xf]
  %v154 = vld [vmem:[%s0 + $0x1fc] sm:$0xf]
  %v155 = vld [vmem:[%s0 + $0x200] sm:$0xf]
  %v156 = vld [vmem:[%s0 + $0x204] sm:$0xf]
  %v157 = vld [vmem:[%s0 + $0x208] sm:$0xf]
  %v158 = vld [vmem:[%s0 + $0x20c] sm:$0xf]
  %v159 = vld [vmem:[%s0 + $0x210] sm:$0xf]
  %v160 = vld [vmem:[%s0 + $0x214] sm:$0xf]
  %v161 = vld [vmem:[%s0 + $0x218] sm:$0xf]
  %v162 = vld [vmem:[%s0 + $0x21c] sm:$0xf]
  %v163 = vld [vmem:[%s0 + $0x220] sm:$0xf]
  %v164 = vld [vmem:[%s0 + $0x224] sm:$0xf]
  %v165 = vld [vmem:[%s0 + $0x228] sm:$0xf]
  %v166 = vld [vmem:[%s0 + $0x22c] sm:$0xf]
  %v167 = vld [vmem:[%s0 + $0x230] sm:$0xf]
  %v168 = vld [vmem:[%s0 + $0x234] sm:$0xf]
  %v169 = vld [vmem:[%s0 + $0x238] sm:$0xf]
  %v170 = vld [vmem:[%s0 + $0x23c] sm:$0xf]
  %v171 = vld [vmem:[%s0 + $0x240] sm:$0xf]
  %v172 = vld [vmem:[%s0 + $0x244] sm:$0xf]
  %v173 = vld [vmem:[%s0 + $0x248] sm:$0xf]
  %v174 = vld [vmem:[%s0 + $0x24c] sm:$0xf]
  %v175 = vld [vmem:[%s0 + $0x250] sm:$0xf]
  %v176 = vld [vmem:[%s0 + $0x254] sm:$0xf]
  %v177 = vld [vmem:[%s0 + $0x258] sm:$0xf]
  %v178 = vld [vmem:[%s0 + $0x25c] sm:$0xf]
  %v179 = vld [vmem:[%s0 + $0x260] sm:$0xf]
  %v180 = vld [vmem:[%s0 + $0x264] sm:$0xf]
  %v181 = vld [vmem:[%s0 + $0x268] sm:$0xf]
  %v182 = vld [vmem:[%s0 + $0x26c] sm:$0xf]
  %v183 = vld [vmem:[%s0 + $0x270] sm:$0xf]
  %v184 = vld [vmem:[%s0 + $0x274] sm:$0xf]
  %v185 = vld [vmem:[%s0 + $0x278] sm:$0xf]
  %v186 = vld [vmem:[%s0 + $0x27c] sm:$0xf]
  %v187 = vld [vmem:[%s0 + $0x280] sm:$0xf]
  %v188 = vld [vmem:[%s0 + $0x284] sm:$0xf]
  %v189 = vld [vmem:[%s0 + $0x288] sm:$0xf]
  %v190 = vld [vmem:[%s0 + $0x28c] sm:$0xf]
  %v191 = vld [vmem:[%s0 + $0x290] sm:$0xf]
  %v192 = vld [vmem:[%s0 + $0x294] sm:$0xf]
  %v193 = vld [vmem:[%s0 + $0x298] sm:$0xf]
  %v194 = vld [vmem:[%s0 + $0x29c] sm:$0xf]
  %v195 = vld [vmem:[%s0 + $0x2a0] sm:$0xf]
  %v196 = vld [vmem:[%s0 + $0x2a4] sm:$0xf]
  %v197 = vld [vmem:[%s0 + $0x2a8] sm:$0xf]
  %v198 = vld [vmem:[%s0 + $0x2ac] sm:$0xf]
  %v199 = vld [vmem:[%s0 + $0x2b0] sm:$0xf]
  %v200 = vld [vmem:[%s0 + $0x2b4] sm:$0xf]
  %v201 = vld [vmem:[%s0 + $0x2b8] sm:$0xf]
  %v202 = vld [vmem:[%s0 + $0x2bc] sm:$0xf]
  %v203 = vld [vmem:[%s0 + $0x2c0] sm:$0xf]
  %v204 = vld [vmem:[%s0 + $0x2c4] sm:$0xf]
  %v205 = vld [vmem:[%s0 + $0x2c8] sm:$0xf]
  %v206 = vld [vmem:[%s0 + $0x2cc] sm:$0xf]
  %v207 = vld [vmem:[%s0 + $0x2d0] sm:$0xf]
  %v208 = vld [vmem:[%s0 + $0x2d4] sm:$0xf]
  %v209 = vld [vmem:[%s0 + $0x2d8] sm:$0xf]
  %v210 = vld [vmem:[%s0 + $0x2dc] sm:$0xf]
  %v211 = vld [vmem:[%s0 + $0x2e0] sm:$0xf]
  %v212 = vld [vmem:[%s0 + $0x2e4] sm:$0xf]
  %v213 = vld [vmem:[%s0 + $0x2e8] sm:$0xf]
  %v214 = vld [vmem:[%s0 + $0x2ec] sm:$0xf]
  %v215 = vld [vmem:[%s0 + $0x2f0] sm:$0xf]
  %v216 = vld [vmem:[%s0 + $0x2f4] sm:$0xf]
  %v217 = vld [vmem:[%s0 + $0x2f8] sm:$0xf]
  %v218 = vld [vmem:[%s0 + $0x2fc] sm:$0xf]
  %v219 = vld [vmem:[%s0 + $0x300] sm:$0xf]
  %v220 = vld [vmem:[%s0 + $0x304] sm:$0xf]
  %v221 = vld [vmem:[%s0 + $0x308] sm:$0xf]
  %v222 = vld [vmem:[%s0 + $0x30c] sm:$0xf]
  %v223 = vld [vmem:[%s0 + $0x310] sm:$0xf]
  %v224 = vld [vmem:[%s0 + $0x314] sm:$0xf]
  %v225 = vld [vmem:[%s0 + $0x318] sm:$0xf]
  %v226 = vld [vmem:[%s0 + $0x31c] sm:$0xf]
  %v227 = vld [vmem:[%s0 + $0x320] sm:$0xf]
  %v228 = vld [vmem:[%s0 + $0x324] sm:$0xf]
  %v229 = vld [vmem:[%s0 + $0x328] sm:$0xf]
  %v230 = vld [vmem:[%s0 + $0x32c] sm:$0xf]
  %v231 = vld [vmem:[%s0 + $0x330] sm:$0xf]
  %v232 = vld [vmem:[%s0 + $0x334] sm:$0xf]
  %v233 = vld [vmem:[%s0 + $0x338] sm:$0xf]
  %v234 = vld [vmem:[%s0 + $0x33c] sm:$0xf]
  %v235 = vld [vmem:[%s0 + $0x340] sm:$0xf]
  %v236 = vld [vmem:[%s0 + $0x344] sm:$0xf]
  %v237 = vld [vmem:[%s0 + $0x348] sm:$0xf]
  %v238 = vld [vmem:[%s0 + $0x34c] sm:$0xf]
  %v239 = vld [vmem:[%s0 + $0x350] sm:$0xf]
  %v240 = vld [vmem:[%s0 + $0x354] sm:$0xf]
  %v241 = vld [vmem:[%s0 + $0x358] sm:$0xf]
  %v242 = vld [vmem:[%s0 + $0x35c] sm:$0xf]
  %v243 = vld [vmem:[%s0 + $0x360] sm:$0xf]
  %v244 = vld [vmem:[%s0 + $0x364] sm:$0xf]
  %v245 = vld [vmem:[%s0 + $0x368] sm:$0xf]
  %v246 = vld [vmem:[%s0 + $0x36c] sm:$0xf]
  %v247 = vld [vmem:[%s0 + $0x370] sm:$0xf]
  %v248 = vld [vmem:[%s0 + $0x374] sm:$0xf]
  %v249 = vld [vmem:[%s0 + $0x378] sm:$0xf]
  %v250 = vld [vmem:[%s0 + $0x37c] sm:$0xf]
  %v251 = vld [vmem:[%s0 + $0x380] sm:$0xf]
  %v252 = vld [vmem:[%s0 + $0x384] sm:$0xf]
  %v253 = vld [vmem:[%s0 + $0x388] sm:$0xf]
  %v254 = vld [vmem:[%s0 + $0x38c] sm:$0xf]
  %v255 = vld [vmem:[%s0 + $0x390] sm:$0xf]
  %v256 = vld [vmem:[%s0 + $0x394] sm:$0xf]
  %v257 = vld [vmem:[%s0 + $0x398] sm:$0xf]
  %v258 = vld [vmem:[%s0 + $0x39c] sm:$0xf]
  %v259 = vld [vmem:[%s0 + $0x3a0] sm:$0xf]
  %v260 = vld [vmem:[%s0 + $0x3a4] sm:$0xf]
  %v261 = vld [vmem:[%s0 + $0x3a8] sm:$0xf]
  %v262 = vld [vmem:[%s0 + $0x3ac] sm:$0xf]
  %v263 = vld [vmem:[%s0 + $0x3b0] sm:$0xf]
  %v264 = vld [vmem:[%s0 + $0x3b4] sm:$0xf]
  %v265 = vld [vmem:[%s0 + $0x3b8] sm:$0xf]
  %v266 = vld [vmem:[%s0 + $0x3bc] sm:$0xf]
  %v267 = vld [vmem:[%s0 + $0x3c0] sm:$0xf]
  %v268 = vld [vmem:[%s0 + $0x3c4] sm:$0xf]
  %v269 = vld [vmem:[%s0 + $0x3c8] sm:$0xf]
  %v270 = vld [vmem:[%s0 + $0x3cc] sm:$0xf]
  %v271 = vld [vmem:[%s0 + $0x3d0] sm:$0xf]
  %v272 = vld [vmem:[%s0 + $0x3d4] sm:$0xf]
  %v273 = vld [vmem:[%s0 + $0x3d8] sm:$0xf]
  %v274 = vld [vmem:[%s0 + $0x3dc] sm:$0xf]
  %v275 = vld [vmem:[%s0 + $0x3e0] sm:$0xf]
  %v276 = vld [vmem:[%s0 + $0x3e4] sm:$0xf]
  %v277 = vld [vmem:[%s0 + $0x3e8] sm:$0xf]
  %v278 = vld [vmem:[%s0 + $0x3ec] sm:$0xf]
  %v279 = vld [vmem:[%s0 + $0x3f0] sm:$0xf]
  %v280 = vld [vmem:[%s0 + $0x3f4] sm:$0xf]
  %v281 = vld [vmem:[%s0 + $0x3f8] sm:$0xf]
  %v282 = vld [vmem:[%s0 + $0x3fc] sm:$0xf]
  %v283 = vld [vmem:[%s1] sm:$0xf]
  %v284 = vld [vmem:[%s1 + $0x4] sm:$0xf]
  %v285 = vld [vmem:[%s1 + $0x8] sm:$0xf]
  %v286 = vld [vmem:[%s1 + $0xc] sm:$0x3]
  %v287 = vld [vmem:[%s2] sm:$0x1]
  %v289 = vlaneseq
  %v290 = vshrl.u32 %v289, 7
  %v291 = vsub.s32 0, %v290
  %v292 = vrot.slane %v287, %v291
  %v550 = vunpack.c.l.b16 %v27
  %v551 = vunpack.c.l.b16 %v28
  %v552 = vunpack.c.l.b16 %v29
  %v553 = vunpack.c.l.b16 %v30
  %v554 = vunpack.c.l.b16 %v31
  %v555 = vunpack.c.l.b16 %v32
  %v556 = vunpack.c.l.b16 %v33
  %v557 = vunpack.c.l.b16 %v34
  %v558 = vunpack.c.l.b16 %v35
  %v559 = vunpack.c.l.b16 %v36
  %v560 = vunpack.c.l.b16 %v37
  %v561 = vunpack.c.l.b16 %v38
  %v562 = vunpack.c.l.b16 %v39
  %v563 = vunpack.c.l.b16 %v40
  %v564 = vunpack.c.l.b16 %v41
  %v565 = vunpack.c.l.b16 %v42
  %v566 = vunpack.c.l.b16 %v43
  %v567 = vunpack.c.l.b16 %v44
  %v568 = vunpack.c.l.b16 %v45
  %v569 = vunpack.c.l.b16 %v46
  %v570 = vunpack.c.l.b16 %v47
  %v571 = vunpack.c.l.b16 %v48
  %v572 = vunpack.c.l.b16 %v49
  %v573 = vunpack.c.l.b16 %v50
  %v574 = vunpack.c.l.b16 %v51
  %v575 = vunpack.c.l.b16 %v52
  %v576 = vunpack.c.l.b16 %v53
  %v577 = vunpack.c.l.b16 %v54
  %v578 = vunpack.c.l.b16 %v55
  %v579 = vunpack.c.l.b16 %v56
  %v580 = vunpack.c.l.b16 %v57
  %v581 = vunpack.c.l.b16 %v58
  %v582 = vunpack.c.l.b16 %v59
  %v583 = vunpack.c.l.b16 %v60
  %v584 = vunpack.c.l.b16 %v61
  %v585 = vunpack.c.l.b16 %v62
  %v586 = vunpack.c.l.b16 %v63
  %v587 = vunpack.c.l.b16 %v64
  %v588 = vunpack.c.l.b16 %v65
  %v589 = vunpack.c.l.b16 %v66
  %v590 = vunpack.c.l.b16 %v67
  %v591 = vunpack.c.l.b16 %v68
  %v592 = vunpack.c.l.b16 %v69
  %v593 = vunpack.c.l.b16 %v70
  %v594 = vunpack.c.l.b16 %v71
  %v595 = vunpack.c.l.b16 %v72
  %v596 = vunpack.c.l.b16 %v73
  %v597 = vunpack.c.l.b16 %v74
  %v598 = vunpack.c.l.b16 %v75
  %v599 = vunpack.c.l.b16 %v76
  %v600 = vunpack.c.l.b16 %v77
  %v601 = vunpack.c.l.b16 %v78
  %v602 = vunpack.c.l.b16 %v79
  %v603 = vunpack.c.l.b16 %v80
  %v604 = vunpack.c.l.b16 %v81
  %v605 = vunpack.c.l.b16 %v82
  %v606 = vunpack.c.l.b16 %v83
  %v607 = vunpack.c.l.b16 %v84
  %v608 = vunpack.c.l.b16 %v85
  %v609 = vunpack.c.l.b16 %v86
  %v610 = vunpack.c.l.b16 %v87
  %v611 = vunpack.c.l.b16 %v88
  %v612 = vunpack.c.l.b16 %v89
  %v613 = vunpack.c.l.b16 %v90
  %v614 = vunpack.c.l.b16 %v91
  %v615 = vunpack.c.l.b16 %v92
  %v616 = vunpack.c.l.b16 %v93
  %v617 = vunpack.c.l.b16 %v94
  %v618 = vunpack.c.l.b16 %v95
  %v619 = vunpack.c.l.b16 %v96
  %v620 = vunpack.c.l.b16 %v97
  %v621 = vunpack.c.l.b16 %v98
  %v622 = vunpack.c.l.b16 %v99
  %v623 = vunpack.c.l.b16 %v100
  %v624 = vunpack.c.l.b16 %v101
  %v625 = vunpack.c.l.b16 %v102
  %v626 = vunpack.c.l.b16 %v103
  %v627 = vunpack.c.l.b16 %v104
  %v628 = vunpack.c.l.b16 %v105
  %v629 = vunpack.c.l.b16 %v106
  %v630 = vunpack.c.l.b16 %v107
  %v631 = vunpack.c.l.b16 %v108
  %v632 = vunpack.c.l.b16 %v109
  %v633 = vunpack.c.l.b16 %v110
  %v634 = vunpack.c.l.b16 %v111
  %v635 = vunpack.c.l.b16 %v112
  %v636 = vunpack.c.l.b16 %v113
  %v637 = vunpack.c.l.b16 %v114
  %v638 = vunpack.c.l.b16 %v115
  %v639 = vunpack.c.l.b16 %v116
  %v640 = vunpack.c.l.b16 %v117
  %v641 = vunpack.c.l.b16 %v118
  %v642 = vunpack.c.l.b16 %v119
  %v643 = vunpack.c.l.b16 %v120
  %v644 = vunpack.c.l.b16 %v121
  %v645 = vunpack.c.l.b16 %v122
  %v646 = vunpack.c.l.b16 %v123
  %v647 = vunpack.c.l.b16 %v124
  %v648 = vunpack.c.l.b16 %v125
  %v649 = vunpack.c.l.b16 %v126
  %v650 = vunpack.c.l.b16 %v127
  %v651 = vunpack.c.l.b16 %v128
  %v652 = vunpack.c.l.b16 %v129
  %v653 = vunpack.c.l.b16 %v130
  %v654 = vunpack.c.l.b16 %v131
  %v655 = vunpack.c.l.b16 %v132
  %v656 = vunpack.c.l.b16 %v133
  %v657 = vunpack.c.l.b16 %v134
  %v658 = vunpack.c.l.b16 %v135
  %v659 = vunpack.c.l.b16 %v136
  %v660 = vunpack.c.l.b16 %v137
  %v661 = vunpack.c.l.b16 %v138
  %v662 = vunpack.c.l.b16 %v139
  %v663 = vunpack.c.l.b16 %v140
  %v664 = vunpack.c.l.b16 %v141
  %v665 = vunpack.c.l.b16 %v142
  %v666 = vunpack.c.l.b16 %v143
  %v667 = vunpack.c.l.b16 %v144
  %v668 = vunpack.c.l.b16 %v145
  %v669 = vunpack.c.l.b16 %v146
  %v670 = vunpack.c.l.b16 %v147
  %v671 = vunpack.c.l.b16 %v148
  %v672 = vunpack.c.l.b16 %v149
  %v673 = vunpack.c.l.b16 %v150
  %v674 = vunpack.c.l.b16 %v151
  %v675 = vunpack.c.l.b16 %v152
  %v676 = vunpack.c.l.b16 %v153
  %v677 = vunpack.c.l.b16 %v154
  %v678 = vunpack.c.l.b16 %v155
  %v679 = vunpack.c.l.b16 %v156
  %v680 = vunpack.c.l.b16 %v157
  %v681 = vunpack.c.l.b16 %v158
  %v682 = vunpack.c.l.b16 %v159
  %v683 = vunpack.c.l.b16 %v160
  %v684 = vunpack.c.l.b16 %v161
  %v685 = vunpack.c.l.b16 %v162
  %v686 = vunpack.c.l.b16 %v163
  %v687 = vunpack.c.l.b16 %v164
  %v688 = vunpack.c.l.b16 %v165
  %v689 = vunpack.c.l.b16 %v166
  %v690 = vunpack.c.l.b16 %v167
  %v691 = vunpack.c.l.b16 %v168
  %v692 = vunpack.c.l.b16 %v169
  %v693 = vunpack.c.l.b16 %v170
  %v694 = vunpack.c.l.b16 %v171
  %v695 = vunpack.c.l.b16 %v172
  %v696 = vunpack.c.l.b16 %v173
  %v697 = vunpack.c.l.b16 %v174
  %v698 = vunpack.c.l.b16 %v175
  %v699 = vunpack.c.l.b16 %v176
  %v700 = vunpack.c.l.b16 %v177
  %v701 = vunpack.c.l.b16 %v178
  %v702 = vunpack.c.l.b16 %v179
  %v703 = vunpack.c.l.b16 %v180
  %v704 = vunpack.c.l.b16 %v181
  %v705 = vunpack.c.l.b16 %v182
  %v706 = vunpack.c.l.b16 %v183
  %v707 = vunpack.c.l.b16 %v184
  %v708 = vunpack.c.l.b16 %v185
  %v709 = vunpack.c.l.b16 %v186
  %v710 = vunpack.c.l.b16 %v187
  %v711 = vunpack.c.l.b16 %v188
  %v712 = vunpack.c.l.b16 %v189
  %v713 = vunpack.c.l.b16 %v190
  %v714 = vunpack.c.l.b16 %v191
  %v715 = vunpack.c.l.b16 %v192
  %v716 = vunpack.c.l.b16 %v193
  %v717 = vunpack.c.l.b16 %v194
  %v718 = vunpack.c.l.b16 %v195
  %v719 = vunpack.c.l.b16 %v196
  %v720 = vunpack.c.l.b16 %v197
  %v721 = vunpack.c.l.b16 %v198
  %v722 = vunpack.c.l.b16 %v199
  %v723 = vunpack.c.l.b16 %v200
  %v724 = vunpack.c.l.b16 %v201
  %v725 = vunpack.c.l.b16 %v202
  %v726 = vunpack.c.l.b16 %v203
  %v727 = vunpack.c.l.b16 %v204
  %v728 = vunpack.c.l.b16 %v205
  %v729 = vunpack.c.l.b16 %v206
  %v730 = vunpack.c.l.b16 %v207
  %v731 = vunpack.c.l.b16 %v208
  %v732 = vunpack.c.l.b16 %v209
  %v733 = vunpack.c.l.b16 %v210
  %v734 = vunpack.c.l.b16 %v211
  %v735 = vunpack.c.l.b16 %v212
  %v736 = vunpack.c.l.b16 %v213
  %v737 = vunpack.c.l.b16 %v214
  %v738 = vunpack.c.l.b16 %v215
  %v739 = vunpack.c.l.b16 %v216
  %v740 = vunpack.c.l.b16 %v217
  %v741 = vunpack.c.l.b16 %v218
  %v742 = vunpack.c.l.b16 %v219
  %v743 = vunpack.c.l.b16 %v220
  %v744 = vunpack.c.l.b16 %v221
  %v745 = vunpack.c.l.b16 %v222
  %v746 = vunpack.c.l.b16 %v223
  %v747 = vunpack.c.l.b16 %v224
  %v748 = vunpack.c.l.b16 %v225
  %v749 = vunpack.c.l.b16 %v226
  %v750 = vunpack.c.l.b16 %v227
  %v751 = vunpack.c.l.b16 %v228
  %v752 = vunpack.c.l.b16 %v229
  %v753 = vunpack.c.l.b16 %v230
  %v754 = vunpack.c.l.b16 %v231
  %v755 = vunpack.c.l.b16 %v232
  %v756 = vunpack.c.l.b16 %v233
  %v757 = vunpack.c.l.b16 %v234
  %v758 = vunpack.c.l.b16 %v235
  %v759 = vunpack.c.l.b16 %v236
  %v760 = vunpack.c.l.b16 %v237
  %v761 = vunpack.c.l.b16 %v238
  %v762 = vunpack.c.l.b16 %v239
  %v763 = vunpack.c.l.b16 %v240
  %v764 = vunpack.c.l.b16 %v241
  %v765 = vunpack.c.l.b16 %v242
  %v766 = vunpack.c.l.b16 %v243
  %v767 = vunpack.c.l.b16 %v244
  %v768 = vunpack.c.l.b16 %v245
  %v769 = vunpack.c.l.b16 %v246
  %v770 = vunpack.c.l.b16 %v247
  %v771 = vunpack.c.l.b16 %v248
  %v772 = vunpack.c.l.b16 %v249
  %v773 = vunpack.c.l.b16 %v250
  %v774 = vunpack.c.l.b16 %v251
  %v775 = vunpack.c.l.b16 %v252
  %v776 = vunpack.c.l.b16 %v253
  %v777 = vunpack.c.l.b16 %v254
  %v778 = vunpack.c.l.b16 %v255
  %v779 = vunpack.c.l.b16 %v256
  %v780 = vunpack.c.l.b16 %v257
  %v781 = vunpack.c.l.b16 %v258
  %v782 = vunpack.c.l.b16 %v259
  %v783 = vunpack.c.l.b16 %v260
  %v784 = vunpack.c.l.b16 %v261
  %v785 = vunpack.c.l.b16 %v262
  %v786 = vunpack.c.l.b16 %v263
  %v787 = vunpack.c.l.b16 %v264
  %v788 = vunpack.c.l.b16 %v265
  %v789 = vunpack.c.l.b16 %v266
  %v790 = vunpack.c.l.b16 %v267
  %v791 = vunpack.c.l.b16 %v268
  %v792 = vunpack.c.l.b16 %v269
  %v793 = vunpack.c.l.b16 %v270
  %v794 = vunpack.c.l.b16 %v271
  %v795 = vunpack.c.l.b16 %v272
  %v796 = vunpack.c.l.b16 %v273
  %v797 = vunpack.c.l.b16 %v274
  %v798 = vunpack.c.l.b16 %v275
  %v799 = vunpack.c.l.b16 %v276
  %v800 = vunpack.c.l.b16 %v277
  %v801 = vunpack.c.l.b16 %v278
  %v802 = vunpack.c.l.b16 %v279
  %v803 = vunpack.c.l.b16 %v280
  %v804 = vunpack.c.l.b16 %v281
  %v805 = vunpack.c.l.b16 %v282
  %v806 = vpack.c.b16 %v551, %v550
  %v807 = vpack.c.b16 %v553, %v552
  %v808 = vpack.c.b16 %v555, %v554
  %v809 = vpack.c.b16 %v557, %v556
  %v810 = vpack.c.b16 %v559, %v558
  %v811 = vpack.c.b16 %v561, %v560
  %v812 = vpack.c.b16 %v563, %v562
  %v813 = vpack.c.b16 %v565, %v564
  %v814 = vpack.c.b16 %v567, %v566
  %v815 = vpack.c.b16 %v569, %v568
  %v816 = vpack.c.b16 %v571, %v570
  %v817 = vpack.c.b16 %v573, %v572
  %v818 = vpack.c.b16 %v575, %v574
  %v819 = vpack.c.b16 %v577, %v576
  %v820 = vpack.c.b16 %v579, %v578
  %v821 = vpack.c.b16 %v581, %v580
  %v822 = vpack.c.b16 %v583, %v582
  %v823 = vpack.c.b16 %v585, %v584
  %v824 = vpack.c.b16 %v587, %v586
  %v825 = vpack.c.b16 %v589, %v588
  %v826 = vpack.c.b16 %v591, %v590
  %v827 = vpack.c.b16 %v593, %v592
  %v828 = vpack.c.b16 %v595, %v594
  %v829 = vpack.c.b16 %v597, %v596
  %v830 = vpack.c.b16 %v599, %v598
  %v831 = vpack.c.b16 %v601, %v600
  %v832 = vpack.c.b16 %v603, %v602
  %v833 = vpack.c.b16 %v605, %v604
  %v834 = vpack.c.b16 %v607, %v606
  %v835 = vpack.c.b16 %v609, %v608
  %v836 = vpack.c.b16 %v611, %v610
  %v837 = vpack.c.b16 %v613, %v612
  %v838 = vpack.c.b16 %v615, %v614
  %v839 = vpack.c.b16 %v617, %v616
  %v840 = vpack.c.b16 %v619, %v618
  %v841 = vpack.c.b16 %v621, %v620
  %v842 = vpack.c.b16 %v623, %v622
  %v843 = vpack.c.b16 %v625, %v624
  %v844 = vpack.c.b16 %v627, %v626
  %v845 = vpack.c.b16 %v629, %v628
  %v846 = vpack.c.b16 %v631, %v630
  %v847 = vpack.c.b16 %v633, %v632
  %v848 = vpack.c.b16 %v635, %v634
  %v849 = vpack.c.b16 %v637, %v636
  %v850 = vpack.c.b16 %v639, %v638
  %v851 = vpack.c.b16 %v641, %v640
  %v852 = vpack.c.b16 %v643, %v642
  %v853 = vpack.c.b16 %v645, %v644
  %v854 = vpack.c.b16 %v647, %v646
  %v855 = vpack.c.b16 %v649, %v648
  %v856 = vpack.c.b16 %v651, %v650
  %v857 = vpack.c.b16 %v653, %v652
  %v858 = vpack.c.b16 %v655, %v654
  %v859 = vpack.c.b16 %v657, %v656
  %v860 = vpack.c.b16 %v659, %v658
  %v861 = vpack.c.b16 %v661, %v660
  %v862 = vpack.c.b16 %v663, %v662
  %v863 = vpack.c.b16 %v665, %v664
  %v864 = vpack.c.b16 %v667, %v666
  %v865 = vpack.c.b16 %v669, %v668
  %v866 = vpack.c.b16 %v671, %v670
  %v867 = vpack.c.b16 %v673, %v672
  %v868 = vpack.c.b16 %v675, %v674
  %v869 = vpack.c.b16 %v677, %v676
  %v870 = vpack.c.b16 %v679, %v678
  %v871 = vpack.c.b16 %v681, %v680
  %v872 = vpack.c.b16 %v683, %v682
  %v873 = vpack.c.b16 %v685, %v684
  %v874 = vpack.c.b16 %v687, %v686
  %v875 = vpack.c.b16 %v689, %v688
  %v876 = vpack.c.b16 %v691, %v690
  %v877 = vpack.c.b16 %v693, %v692
  %v878 = vpack.c.b16 %v695, %v694
  %v879 = vpack.c.b16 %v697, %v696
  %v880 = vpack.c.b16 %v699, %v698
  %v881 = vpack.c.b16 %v701, %v700
  %v882 = vpack.c.b16 %v703, %v702
  %v883 = vpack.c.b16 %v705, %v704
  %v884 = vpack.c.b16 %v707, %v706
  %v885 = vpack.c.b16 %v709, %v708
  %v886 = vpack.c.b16 %v711, %v710
  %v887 = vpack.c.b16 %v713, %v712
  %v888 = vpack.c.b16 %v715, %v714
  %v889 = vpack.c.b16 %v717, %v716
  %v890 = vpack.c.b16 %v719, %v718
  %v891 = vpack.c.b16 %v721, %v720
  %v892 = vpack.c.b16 %v723, %v722
  %v893 = vpack.c.b16 %v725, %v724
  %v894 = vpack.c.b16 %v727, %v726
  %v895 = vpack.c.b16 %v729, %v728
  %v896 = vpack.c.b16 %v731, %v730
  %v897 = vpack.c.b16 %v733, %v732
  %v898 = vpack.c.b16 %v735, %v734
  %v899 = vpack.c.b16 %v737, %v736
  %v900 = vpack.c.b16 %v739, %v738
  %v901 = vpack.c.b16 %v741, %v740
  %v902 = vpack.c.b16 %v743, %v742
  %v903 = vpack.c.b16 %v745, %v744
  %v904 = vpack.c.b16 %v747, %v746
  %v905 = vpack.c.b16 %v749, %v748
  %v906 = vpack.c.b16 %v751, %v750
  %v907 = vpack.c.b16 %v753, %v752
  %v908 = vpack.c.b16 %v755, %v754
  %v909 = vpack.c.b16 %v757, %v756
  %v910 = vpack.c.b16 %v759, %v758
  %v911 = vpack.c.b16 %v761, %v760
  %v912 = vpack.c.b16 %v763, %v762
  %v913 = vpack.c.b16 %v765, %v764
  %v914 = vpack.c.b16 %v767, %v766
  %v915 = vpack.c.b16 %v769, %v768
  %v916 = vpack.c.b16 %v771, %v770
  %v917 = vpack.c.b16 %v773, %v772
  %v918 = vpack.c.b16 %v775, %v774
  %v919 = vpack.c.b16 %v777, %v776
  %v920 = vpack.c.b16 %v779, %v778
  %v921 = vpack.c.b16 %v781, %v780
  %v922 = vpack.c.b16 %v783, %v782
  %v923 = vpack.c.b16 %v785, %v784
  %v924 = vpack.c.b16 %v787, %v786
  %v925 = vpack.c.b16 %v789, %v788
  %v926 = vpack.c.b16 %v791, %v790
  %v927 = vpack.c.b16 %v793, %v792
  %v928 = vpack.c.b16 %v795, %v794
  %v929 = vpack.c.b16 %v797, %v796
  %v930 = vpack.c.b16 %v799, %v798
  %v931 = vpack.c.b16 %v801, %v800
  %v932 = vpack.c.b16 %v803, %v802
  %v933 = vpack.c.b16 %v805, %v804
  %v938 = vunpack.c.l.b16 %v283
  %v939 = vunpack.c.l.b16 %v284
  %v940 = vunpack.c.l.b16 %v285
  %v941 = vunpack.c.l.b16 %v286
  %v942 = vpack.c.b16 %v939, %v938
  %v943 = vpack.c.b16 %v941, %v940
  %vm945 = vcmask 220160
  %v947 = vsel %vm945, %v806, 0
  %v950 = vsel %vm945, %v807, 0
  %v953 = vsel %vm945, %v808, 0
  %v956 = vsel %vm945, %v809, 0
  %v959 = vsel %vm945, %v810, 0
  %v962 = vsel %vm945, %v811, 0
  %v965 = vsel %vm945, %v812, 0
  %v968 = vsel %vm945, %v813, 0
  %v971 = vsel %vm945, %v814, 0
  %v974 = vsel %vm945, %v815, 0
  %v977 = vsel %vm945, %v816, 0
  %v980 = vsel %vm945, %v817, 0
  %v983 = vsel %vm945, %v818, 0
  %v986 = vsel %vm945, %v819, 0
  %v989 = vsel %vm945, %v820, 0
  %v992 = vsel %vm945, %v821, 0
  %v995 = vsel %vm945, %v822, 0
  %v998 = vsel %vm945, %v823, 0
  %v1001 = vsel %vm945, %v824, 0
  %v1004 = vsel %vm945, %v825, 0
  %v1007 = vsel %vm945, %v826, 0
  %v1010 = vsel %vm945, %v827, 0
  %v1013 = vsel %vm945, %v828, 0
  %v1016 = vsel %vm945, %v829, 0
  %v1019 = vsel %vm945, %v830, 0
  %v1022 = vsel %vm945, %v831, 0
  %v1025 = vsel %vm945, %v832, 0
  %v1028 = vsel %vm945, %v833, 0
  %v1031 = vsel %vm945, %v834, 0
  %v1034 = vsel %vm945, %v835, 0
  %v1037 = vsel %vm945, %v836, 0
  %v1040 = vsel %vm945, %v837, 0
  %v1043 = vsel %vm945, %v838, 0
  %v1046 = vsel %vm945, %v839, 0
  %v1049 = vsel %vm945, %v840, 0
  %v1052 = vsel %vm945, %v841, 0
  %v1055 = vsel %vm945, %v842, 0
  %v1058 = vsel %vm945, %v843, 0
  %v1061 = vsel %vm945, %v844, 0
  %v1064 = vsel %vm945, %v845, 0
  %v1067 = vsel %vm945, %v846, 0
  %v1070 = vsel %vm945, %v847, 0
  %v1073 = vsel %vm945, %v848, 0
  %v1076 = vsel %vm945, %v849, 0
  %v1079 = vsel %vm945, %v850, 0
  %v1082 = vsel %vm945, %v851, 0
  %v1085 = vsel %vm945, %v852, 0
  %v1088 = vsel %vm945, %v853, 0
  %v1091 = vsel %vm945, %v854, 0
  %v1094 = vsel %vm945, %v855, 0
  %v1097 = vsel %vm945, %v856, 0
  %v1100 = vsel %vm945, %v857, 0
  %v1103 = vsel %vm945, %v858, 0
  %v1106 = vsel %vm945, %v859, 0
  %v1109 = vsel %vm945, %v860, 0
  %v1112 = vsel %vm945, %v861, 0
  %v1115 = vsel %vm945, %v862, 0
  %v1118 = vsel %vm945, %v863, 0
  %v1121 = vsel %vm945, %v864, 0
  %v1124 = vsel %vm945, %v865, 0
  %v1127 = vsel %vm945, %v866, 0
  %v1130 = vsel %vm945, %v867, 0
  %v1133 = vsel %vm945, %v868, 0
  %v1136 = vsel %vm945, %v869, 0
  %v1139 = vsel %vm945, %v870, 0
  %v1142 = vsel %vm945, %v871, 0
  %v1145 = vsel %vm945, %v872, 0
  %v1148 = vsel %vm945, %v873, 0
  %v1151 = vsel %vm945, %v874, 0
  %v1154 = vsel %vm945, %v875, 0
  %v1157 = vsel %vm945, %v876, 0
  %v1160 = vsel %vm945, %v877, 0
  %v1163 = vsel %vm945, %v878, 0
  %v1166 = vsel %vm945, %v879, 0
  %v1169 = vsel %vm945, %v880, 0
  %v1172 = vsel %vm945, %v881, 0
  %v1175 = vsel %vm945, %v882, 0
  %v1178 = vsel %vm945, %v883, 0
  %v1181 = vsel %vm945, %v884, 0
  %v1184 = vsel %vm945, %v885, 0
  %v1187 = vsel %vm945, %v886, 0
  %v1190 = vsel %vm945, %v887, 0
  %v1193 = vsel %vm945, %v888, 0
  %v1196 = vsel %vm945, %v889, 0
  %v1199 = vsel %vm945, %v890, 0
  %v1202 = vsel %vm945, %v891, 0
  %v1205 = vsel %vm945, %v892, 0
  %v1208 = vsel %vm945, %v893, 0
  %v1211 = vsel %vm945, %v894, 0
  %v1214 = vsel %vm945, %v895, 0
  %v1217 = vsel %vm945, %v896, 0
  %v1220 = vsel %vm945, %v897, 0
  %v1223 = vsel %vm945, %v898, 0
  %v1226 = vsel %vm945, %v899, 0
  %v1229 = vsel %vm945, %v900, 0
  %v1232 = vsel %vm945, %v901, 0
  %v1235 = vsel %vm945, %v902, 0
  %v1238 = vsel %vm945, %v903, 0
  %v1241 = vsel %vm945, %v904, 0
  %v1244 = vsel %vm945, %v905, 0
  %v1247 = vsel %vm945, %v906, 0
  %v1250 = vsel %vm945, %v907, 0
  %v1253 = vsel %vm945, %v908, 0
  %v1256 = vsel %vm945, %v909, 0
  %v1259 = vsel %vm945, %v910, 0
  %v1262 = vsel %vm945, %v911, 0
  %v1265 = vsel %vm945, %v912, 0
  %v1268 = vsel %vm945, %v913, 0
  %v1271 = vsel %vm945, %v914, 0
  %v1274 = vsel %vm945, %v915, 0
  %v1277 = vsel %vm945, %v916, 0
  %v1280 = vsel %vm945, %v917, 0
  %v1283 = vsel %vm945, %v918, 0
  %v1286 = vsel %vm945, %v919, 0
  %v1289 = vsel %vm945, %v920, 0
  %v1292 = vsel %vm945, %v921, 0
  %v1295 = vsel %vm945, %v922, 0
  %v1298 = vsel %vm945, %v923, 0
  %v1301 = vsel %vm945, %v924, 0
  %v1304 = vsel %vm945, %v925, 0
  %v1307 = vsel %vm945, %v926, 0
  %v1310 = vsel %vm945, %v927, 0
  %v1313 = vsel %vm945, %v928, 0
  %v1316 = vsel %vm945, %v929, 0
  %v1319 = vsel %vm945, %v930, 0
  %v1322 = vsel %vm945, %v931, 0
  %v1325 = vsel %vm945, %v932, 0
  %v1328 = vsel %vm945, %v933, 0
  %vm1330 = vcmask 1044480
  %vm1331 = vcmask 1045504
  %v1332 = vsel %vm1330, 4294967295, 65535
  %v1333 = vsel %vm1331, %v1332, 0
  %v1335 = vand.u32 %v943, %v1333
  %1337 = vmatprep.subr.bf16.mxu0 0
  %1338 = vmatpush1.bf16.msra.mxu0 %v942
  %1339 = vmatprep.subr.bf16.mxu0 0
  %1340 = vmatpush1.bf16.msra.mxu0 %v1335
  %1341 = vmatprep.subr.bf16.mxu0 0
  %1342 = vmatpush1.bf16.msra.mxu0 0
  %1343 = vmatprep.subr.bf16.mxu0 0
  %1344 = vmatpush1.bf16.msra.mxu0 0
  %1345 = vmatprep.subr.bf16.mxu0 0
  %1346 = vmatpush1.bf16.msra.mxu0 0
  %1347 = vmatprep.subr.bf16.mxu0 0
  %1348 = vmatpush1.bf16.msra.mxu0 0
  %1349 = vmatprep.subr.bf16.mxu0 0
  %1350 = vmatpush1.bf16.msra.mxu0 0
  %1351 = vmatprep.subr.bf16.mxu0 0
  %1352 = vmatpush1.bf16.msra.mxu0 0
  %1353 = vmatprep.subr.bf16.mxu0 0
  %1354 = vmatpush1.bf16.msra.mxu0 0
  %1355 = vmatprep.subr.bf16.mxu0 0
  %1356 = vmatpush1.bf16.msra.mxu0 0
  %1357 = vmatprep.subr.bf16.mxu0 0
  %1358 = vmatpush1.bf16.msra.mxu0 0
  %1359 = vmatprep.subr.bf16.mxu0 0
  %1360 = vmatpush1.bf16.msra.mxu0 0
  %1361 = vmatprep.subr.bf16.mxu0 0
  %1362 = vmatpush1.bf16.msra.mxu0 0
  %1363 = vmatprep.subr.bf16.mxu0 0
  %1364 = vmatpush1.bf16.msra.mxu0 0
  %1365 = vmatprep.subr.bf16.mxu0 0
  %1366 = vmatpush1.bf16.msra.mxu0 0
  %1367 = vmatprep.subr.bf16.mxu0 0
  %1368 = vmatpush1.bf16.msra.mxu0 0
  %1369 = vmatprep.mubr.bf16.mxu0 0
  %1370 = vmatmul.mubr.bf16.gmra.mrb[0].mxu0 %v947
  %v1371 = vpop.f32.mrb[0].mxu0
  %v1372 = vadd.f32 %v292, %v1371
  %v1373 = vpop.f32.mrb[0].mxu0
  %v1374 = vpop.f32.mrb[0].mxu0
  %v1375 = vadd.f32 %v292, %v1374
  %v1376 = vpop.f32.mrb[0].mxu0
  %1377 = vmatprep.mubr.bf16.mxu0 0
  %1378 = vmatmul.mubr.bf16.gmra.mrb[0].mxu0 %v950
  %v1379 = vpop.f32.mrb[0].mxu0
  %v1380 = vadd.f32 %v292, %v1379
  %v1381 = vpop.f32.mrb[0].mxu0
  %v1382 = vpop.f32.mrb[0].mxu0
  %v1383 = vadd.f32 %v292, %v1382
  %v1384 = vpop.f32.mrb[0].mxu0
  %1385 = vmatprep.mubr.bf16.mxu0 0
  %1386 = vmatmul.mubr.bf16.gmra.mrb[0].mxu0 %v953
  %v1387 = vpop.f32.mrb[0].mxu0
  %v1388 = vadd.f32 %v292, %v1387
  %v1389 = vpop.f32.mrb[0].mxu0
  %v1390 = vpop.f32.mrb[0].mxu0
  %v1391 = vadd.f32 %v292, %v1390
  %v1392 = vpop.f32.mrb[0].mxu0
  %1393 = vmatprep.mubr.bf16.mxu0 0
  %1394 = vmatmul.mubr.bf16.gmra.mrb[0].mxu0 %v956
  %v1395 = vpop.f32.mrb[0].mxu0
  %v1396 = vadd.f32 %v292, %v1395
  %v1397 = vpop.f32.mrb[0].mxu0
  %v1398 = vpop.f32.mrb[0].mxu0
  %v1399 = vadd.f32 %v292, %v1398
  %v1400 = vpop.f32.mrb[0].mxu0
  %1401 = vmatprep.mubr.bf16.mxu0 0
  %1402 = vmatmul.mubr.bf16.gmra.mrb[0].mxu0 %v959
  %v1403 = vpop.f32.mrb[0].mxu0
  %v1404 = vadd.f32 %v292, %v1403
  %v1405 = vpop.f32.mrb[0].mxu0
  %v1406 = vpop.f32.mrb[0].mxu0
  %v1407 = vadd.f32 %v292, %v1406
  %v1408 = vpop.f32.mrb[0].mxu0
  %1409 = vmatprep.mubr.bf16.mxu0 0
  %1410 = vmatmul.mubr.bf16.gmra.mrb[0].mxu0 %v962
  %v1411 = vpop.f32.mrb[0].mxu0
  %v1412 = vadd.f32 %v292, %v1411
  %v1413 = vpop.f32.mrb[0].mxu0
  %v1414 = vpop.f32.mrb[0].mxu0
  %v1415 = vadd.f32 %v292, %v1414
  %v1416 = vpop.f32.mrb[0].mxu0
  %1417 = vmatprep.mubr.bf16.mxu0 0
  %1418 = vmatmul.mubr.bf16.gmra.mrb[0].mxu0 %v965
  %v1419 = vpop.f32.mrb[0].mxu0
  %v1420 = vadd.f32 %v292, %v1419
  %v1421 = vpop.f32.mrb[0].mxu0
  %v1422 = vpop.f32.mrb[0].mxu0
  %v1423 = vadd.f32 %v292, %v1422
  %v1424 = vpop.f32.mrb[0].mxu0
  %1425 = vmatprep.mubr.bf16.mxu0 0
  %1426 = vmatmul.mubr.bf16.gmra.mrb[0].mxu0 %v968
  %v1427 = vpop.f32.mrb[0].mxu0
  %v1428 = vadd.f32 %v292, %v1427
  %v1429 = vpop.f32.mrb[0].mxu0
  %v1430 = vpop.f32.mrb[0].mxu0
  %v1431 = vadd.f32 %v292, %v1430
  %v1432 = vpop.f32.mrb[0].mxu0
  %1433 = vmatprep.mubr.bf16.mxu0 0
  %1434 = vmatmul.mubr.bf16.gmra.mrb[0].mxu0 %v971
  %v1435 = vpop.f32.mrb[0].mxu0
  %v1436 = vadd.f32 %v292, %v1435
  %v1437 = vpop.f32.mrb[0].mxu0
  %v1438 = vpop.f32.mrb[0].mxu0
  %v1439 = vadd.f32 %v292, %v1438
  %v1440 = vpop.f32.mrb[0].mxu0
  %1441 = vmatprep.mubr.bf16.mxu0 0
  %1442 = vmatmul.mubr.bf16.gmra.mrb[0].mxu0 %v974
  %v1443 = vpop.f32.mrb[0].mxu0
  %v1444 = vadd.f32 %v292, %v1443
  %v1445 = vpop.f32.mrb[0].mxu0
  %v1446 = vpop.f32.mrb[0].mxu0
  %v1447 = vadd.f32 %v292, %v1446
  %v1448 = vpop.f32.mrb[0].mxu0
  %1449 = vmatprep.mubr.bf16.mxu0 0
  %1450 = vmatmul.mubr.bf16.gmra.mrb[0].mxu0 %v977
  %v1451 = vpop.f32.mrb[0].mxu0
  %v1452 = vadd.f32 %v292, %v1451
  %v1453 = vpop.f32.mrb[0].mxu0
  %v1454 = vpop.f32.mrb[0].mxu0
  %v1455 = vadd.f32 %v292, %v1454
  %v1456 = vpop.f32.mrb[0].mxu0
  %1457 = vmatprep.mubr.bf16.mxu0 0
  %1458 = vmatmul.mubr.bf16.gmra.mrb[0].mxu0 %v980
  %v1459 = vpop.f32.mrb[0].mxu0
  %v1460 = vadd.f32 %v292, %v1459
  %v1461 = vpop.f32.mrb[0].mxu0
  %v1462 = vpop.f32.mrb[0].mxu0
  %v1463 = vadd.f32 %v292, %v1462
  %v1464 = vpop.f32.mrb[0].mxu0
  %1465 = vmatprep.mubr.bf16.mxu0 0
  %1466 = vmatmul.mubr.bf16.gmra.mrb[0].mxu0 %v983
  %v1467 = vpop.f32.mrb[0].mxu0
  %v1468 = vadd.f32 %v292, %v1467
  %v1469 = vpop.f32.mrb[0].mxu0
  %v1470 = vpop.f32.mrb[0].mxu0
  %v1471 = vadd.f32 %v292, %v1470
  %v1472 = vpop.f32.mrb[0].mxu0
  %1473 = vmatprep.mubr.bf16.mxu0 0
  %1474 = vmatmul.mubr.bf16.gmra.mrb[0].mxu0 %v986
  %v1475 = vpop.f32.mrb[0].mxu0
  %v1476 = vadd.f32 %v292, %v1475
  %v1477 = vpop.f32.mrb[0].mxu0
  %v1478 = vpop.f32.mrb[0].mxu0
  %v1479 = vadd.f32 %v292, %v1478
  %v1480 = vpop.f32.mrb[0].mxu0
  %1481 = vmatprep.mubr.bf16.mxu0 0
  %1482 = vmatmul.mubr.bf16.gmra.mrb[0].mxu0 %v989
  %v1483 = vpop.f32.mrb[0].mxu0
  %v1484 = vadd.f32 %v292, %v1483
  %v1485 = vpop.f32.mrb[0].mxu0
  %v1486 = vpop.f32.mrb[0].mxu0
  %v1487 = vadd.f32 %v292, %v1486
  %v1488 = vpop.f32.mrb[0].mxu0
  %1489 = vmatprep.mubr.bf16.mxu0 0
  %1490 = vmatmul.mubr.bf16.gmra.mrb[0].mxu0 %v992
  %v1491 = vpop.f32.mrb[0].mxu0
  %v1492 = vadd.f32 %v292, %v1491
  %v1493 = vpop.f32.mrb[0].mxu0
  %v1494 = vpop.f32.mrb[0].mxu0
  %v1495 = vadd.f32 %v292, %v1494
  %v1496 = vpop.f32.mrb[0].mxu0
  %1497 = vmatprep.mubr.bf16.mxu0 0
  %1498 = vmatmul.mubr.bf16.gmra.mrb[0].mxu0 %v995
  %v1499 = vpop.f32.mrb[0].mxu0
  %v1500 = vadd.f32 %v292, %v1499
  %v1501 = vpop.f32.mrb[0].mxu0
  %v1502 = vpop.f32.mrb[0].mxu0
  %v1503 = vadd.f32 %v292, %v1502
  %v1504 = vpop.f32.mrb[0].mxu0
  %1505 = vmatprep.mubr.bf16.mxu0 0
  %1506 = vmatmul.mubr.bf16.gmra.mrb[0].mxu0 %v998
  %v1507 = vpop.f32.mrb[0].mxu0
  %v1508 = vadd.f32 %v292, %v1507
  %v1509 = vpop.f32.mrb[0].mxu0
  %v1510 = vpop.f32.mrb[0].mxu0
  %v1511 = vadd.f32 %v292, %v1510
  %v1512 = vpop.f32.mrb[0].mxu0
  %1513 = vmatprep.mubr.bf16.mxu0 0
  %1514 = vmatmul.mubr.bf16.gmra.mrb[0].mxu0 %v1001
  %v1515 = vpop.f32.mrb[0].mxu0
  %v1516 = vadd.f32 %v292, %v1515
  %v1517 = vpop.f32.mrb[0].mxu0
  %v1518 = vpop.f32.mrb[0].mxu0
  %v1519 = vadd.f32 %v292, %v1518
  %v1520 = vpop.f32.mrb[0].mxu0
  %1521 = vmatprep.mubr.bf16.mxu0 0
  %1522 = vmatmul.mubr.bf16.gmra.mrb[0].mxu0 %v1004
  %v1523 = vpop.f32.mrb[0].mxu0
  %v1524 = vadd.f32 %v292, %v1523
  %v1525 = vpop.f32.mrb[0].mxu0
  %v1526 = vpop.f32.mrb[0].mxu0
  %v1527 = vadd.f32 %v292, %v1526
  %v1528 = vpop.f32.mrb[0].mxu0
  %1529 = vmatprep.mubr.bf16.mxu0 0
  %1530 = vmatmul.mubr.bf16.gmra.mrb[0].mxu0 %v1007
  %v1531 = vpop.f32.mrb[0].mxu0
  %v1532 = vadd.f32 %v292, %v1531
  %v1533 = vpop.f32.mrb[0].mxu0
  %v1534 = vpop.f32.mrb[0].mxu0
  %v1535 = vadd.f32 %v292, %v1534
  %v1536 = vpop.f32.mrb[0].mxu0
  %1537 = vmatprep.mubr.bf16.mxu0 0
  %1538 = vmatmul.mubr.bf16.gmra.mrb[0].mxu0 %v1010
  %v1539 = vpop.f32.mrb[0].mxu0
  %v1540 = vadd.f32 %v292, %v1539
  %v1541 = vpop.f32.mrb[0].mxu0
  %v1542 = vpop.f32.mrb[0].mxu0
  %v1543 = vadd.f32 %v292, %v1542
  %v1544 = vpop.f32.mrb[0].mxu0
  %1545 = vmatprep.mubr.bf16.mxu0 0
  %1546 = vmatmul.mubr.bf16.gmra.mrb[0].mxu0 %v1013
  %v1547 = vpop.f32.mrb[0].mxu0
  %v1548 = vadd.f32 %v292, %v1547
  %v1549 = vpop.f32.mrb[0].mxu0
  %v1550 = vpop.f32.mrb[0].mxu0
  %v1551 = vadd.f32 %v292, %v1550
  %v1552 = vpop.f32.mrb[0].mxu0
  %1553 = vmatprep.mubr.bf16.mxu0 0
  %1554 = vmatmul.mubr.bf16.gmra.mrb[0].mxu0 %v1016
  %v1555 = vpop.f32.mrb[0].mxu0
  %v1556 = vadd.f32 %v292, %v1555
  %v1557 = vpop.f32.mrb[0].mxu0
  %v1558 = vpop.f32.mrb[0].mxu0
  %v1559 = vadd.f32 %v292, %v1558
  %v1560 = vpop.f32.mrb[0].mxu0
  %1561 = vmatprep.mubr.bf16.mxu0 0
  %1562 = vmatmul.mubr.bf16.gmra.mrb[0].mxu0 %v1019
  %v1563 = vpop.f32.mrb[0].mxu0
  %v1564 = vadd.f32 %v292, %v1563
  %v1565 = vpop.f32.mrb[0].mxu0
  %v1566 = vpop.f32.mrb[0].mxu0
  %v1567 = vadd.f32 %v292, %v1566
  %v1568 = vpop.f32.mrb[0].mxu0
  %1569 = vmatprep.mubr.bf16.mxu0 0
  %1570 = vmatmul.mubr.bf16.gmra.mrb[0].mxu0 %v1022
  %v1571 = vpop.f32.mrb[0].mxu0
  %v1572 = vadd.f32 %v292, %v1571
  %v1573 = vpop.f32.mrb[0].mxu0
  %v1574 = vpop.f32.mrb[0].mxu0
  %v1575 = vadd.f32 %v292, %v1574
  %v1576 = vpop.f32.mrb[0].mxu0
  %1577 = vmatprep.mubr.bf16.mxu0 0
  %1578 = vmatmul.mubr.bf16.gmra.mrb[0].mxu0 %v1025
  %v1579 = vpop.f32.mrb[0].mxu0
  %v1580 = vadd.f32 %v292, %v1579
  %v1581 = vpop.f32.mrb[0].mxu0
  %v1582 = vpop.f32.mrb[0].mxu0
  %v1583 = vadd.f32 %v292, %v1582
  %v1584 = vpop.f32.mrb[0].mxu0
  %1585 = vmatprep.mubr.bf16.mxu0 0
  %1586 = vmatmul.mubr.bf16.gmra.mrb[0].mxu0 %v1028
  %v1587 = vpop.f32.mrb[0].mxu0
  %v1588 = vadd.f32 %v292, %v1587
  %v1589 = vpop.f32.mrb[0].mxu0
  %v1590 = vpop.f32.mrb[0].mxu0
  %v1591 = vadd.f32 %v292, %v1590
  %v1592 = vpop.f32.mrb[0].mxu0
  %1593 = vmatprep.mubr.bf16.mxu0 0
  %1594 = vmatmul.mubr.bf16.gmra.mrb[0].mxu0 %v1031
  %v1595 = vpop.f32.mrb[0].mxu0
  %v1596 = vadd.f32 %v292, %v1595
  %v1597 = vpop.f32.mrb[0].mxu0
  %v1598 = vpop.f32.mrb[0].mxu0
  %v1599 = vadd.f32 %v292, %v1598
  %v1600 = vpop.f32.mrb[0].mxu0
  %1601 = vmatprep.mubr.bf16.mxu0 0
  %1602 = vmatmul.mubr.bf16.gmra.mrb[0].mxu0 %v1034
  %v1603 = vpop.f32.mrb[0].mxu0
  %v1604 = vadd.f32 %v292, %v1603
  %v1605 = vpop.f32.mrb[0].mxu0
  %v1606 = vpop.f32.mrb[0].mxu0
  %v1607 = vadd.f32 %v292, %v1606
  %v1608 = vpop.f32.mrb[0].mxu0
  %1609 = vmatprep.mubr.bf16.mxu0 0
  %1610 = vmatmul.mubr.bf16.gmra.mrb[0].mxu0 %v1037
  %v1611 = vpop.f32.mrb[0].mxu0
  %v1612 = vadd.f32 %v292, %v1611
  %v1613 = vpop.f32.mrb[0].mxu0
  %v1614 = vpop.f32.mrb[0].mxu0
  %v1615 = vadd.f32 %v292, %v1614
  %v1616 = vpop.f32.mrb[0].mxu0
  %1617 = vmatprep.mubr.bf16.mxu0 0
  %1618 = vmatmul.mubr.bf16.gmra.mrb[0].mxu0 %v1040
  %v1619 = vpop.f32.mrb[0].mxu0
  %v1620 = vadd.f32 %v292, %v1619
  %v1621 = vpop.f32.mrb[0].mxu0
  %v1622 = vpop.f32.mrb[0].mxu0
  %v1623 = vadd.f32 %v292, %v1622
  %v1624 = vpop.f32.mrb[0].mxu0
  %1625 = vmatprep.mubr.bf16.mxu0 0
  %1626 = vmatmul.mubr.bf16.gmra.mrb[0].mxu0 %v1043
  %v1627 = vpop.f32.mrb[0].mxu0
  %v1628 = vadd.f32 %v292, %v1627
  %v1629 = vpop.f32.mrb[0].mxu0
  %v1630 = vpop.f32.mrb[0].mxu0
  %v1631 = vadd.f32 %v292, %v1630
  %v1632 = vpop.f32.mrb[0].mxu0
  %1633 = vmatprep.mubr.bf16.mxu0 0
  %1634 = vmatmul.mubr.bf16.gmra.mrb[0].mxu0 %v1046
  %v1635 = vpop.f32.mrb[0].mxu0
  %v1636 = vadd.f32 %v292, %v1635
  %v1637 = vpop.f32.mrb[0].mxu0
  %v1638 = vpop.f32.mrb[0].mxu0
  %v1639 = vadd.f32 %v292, %v1638
  %v1640 = vpop.f32.mrb[0].mxu0
  %1641 = vmatprep.mubr.bf16.mxu0 0
  %1642 = vmatmul.mubr.bf16.gmra.mrb[0].mxu0 %v1049
  %v1643 = vpop.f32.mrb[0].mxu0
  %v1644 = vadd.f32 %v292, %v1643
  %v1645 = vpop.f32.mrb[0].mxu0
  %v1646 = vpop.f32.mrb[0].mxu0
  %v1647 = vadd.f32 %v292, %v1646
  %v1648 = vpop.f32.mrb[0].mxu0
  %1649 = vmatprep.mubr.bf16.mxu0 0
  %1650 = vmatmul.mubr.bf16.gmra.mrb[0].mxu0 %v1052
  %v1651 = vpop.f32.mrb[0].mxu0
  %v1652 = vadd.f32 %v292, %v1651
  %v1653 = vpop.f32.mrb[0].mxu0
  %v1654 = vpop.f32.mrb[0].mxu0
  %v1655 = vadd.f32 %v292, %v1654
  %v1656 = vpop.f32.mrb[0].mxu0
  %1657 = vmatprep.mubr.bf16.mxu0 0
  %1658 = vmatmul.mubr.bf16.gmra.mrb[0].mxu0 %v1055
  %v1659 = vpop.f32.mrb[0].mxu0
  %v1660 = vadd.f32 %v292, %v1659
  %v1661 = vpop.f32.mrb[0].mxu0
  %v1662 = vpop.f32.mrb[0].mxu0
  %v1663 = vadd.f32 %v292, %v1662
  %v1664 = vpop.f32.mrb[0].mxu0
  %1665 = vmatprep.mubr.bf16.mxu0 0
  %1666 = vmatmul.mubr.bf16.gmra.mrb[0].mxu0 %v1058
  %v1667 = vpop.f32.mrb[0].mxu0
  %v1668 = vadd.f32 %v292, %v1667
  %v1669 = vpop.f32.mrb[0].mxu0
  %v1670 = vpop.f32.mrb[0].mxu0
  %v1671 = vadd.f32 %v292, %v1670
  %v1672 = vpop.f32.mrb[0].mxu0
  %1673 = vmatprep.mubr.bf16.mxu0 0
  %1674 = vmatmul.mubr.bf16.gmra.mrb[0].mxu0 %v1061
  %v1675 = vpop.f32.mrb[0].mxu0
  %v1676 = vadd.f32 %v292, %v1675
  %v1677 = vpop.f32.mrb[0].mxu0
  %v1678 = vpop.f32.mrb[0].mxu0
  %v1679 = vadd.f32 %v292, %v1678
  %v1680 = vpop.f32.mrb[0].mxu0
  %1681 = vmatprep.mubr.bf16.mxu0 0
  %1682 = vmatmul.mubr.bf16.gmra.mrb[0].mxu0 %v1064
  %v1683 = vpop.f32.mrb[0].mxu0
  %v1684 = vadd.f32 %v292, %v1683
  %v1685 = vpop.f32.mrb[0].mxu0
  %v1686 = vpop.f32.mrb[0].mxu0
  %v1687 = vadd.f32 %v292, %v1686
  %v1688 = vpop.f32.mrb[0].mxu0
  %1689 = vmatprep.mubr.bf16.mxu0 0
  %1690 = vmatmul.mubr.bf16.gmra.mrb[0].mxu0 %v1067
  %v1691 = vpop.f32.mrb[0].mxu0
  %v1692 = vadd.f32 %v292, %v1691
  %v1693 = vpop.f32.mrb[0].mxu0
  %v1694 = vpop.f32.mrb[0].mxu0
  %v1695 = vadd.f32 %v292, %v1694
  %v1696 = vpop.f32.mrb[0].mxu0
  %1697 = vmatprep.mubr.bf16.mxu0 0
  %1698 = vmatmul.mubr.bf16.gmra.mrb[0].mxu0 %v1070
  %v1699 = vpop.f32.mrb[0].mxu0
  %v1700 = vadd.f32 %v292, %v1699
  %v1701 = vpop.f32.mrb[0].mxu0
  %v1702 = vpop.f32.mrb[0].mxu0
  %v1703 = vadd.f32 %v292, %v1702
  %v1704 = vpop.f32.mrb[0].mxu0
  %1705 = vmatprep.mubr.bf16.mxu0 0
  %1706 = vmatmul.mubr.bf16.gmra.mrb[0].mxu0 %v1073
  %v1707 = vpop.f32.mrb[0].mxu0
  %v1708 = vadd.f32 %v292, %v1707
  %v1709 = vpop.f32.mrb[0].mxu0
  %v1710 = vpop.f32.mrb[0].mxu0
  %v1711 = vadd.f32 %v292, %v1710
  %v1712 = vpop.f32.mrb[0].mxu0
  %1713 = vmatprep.mubr.bf16.mxu0 0
  %1714 = vmatmul.mubr.bf16.gmra.mrb[0].mxu0 %v1076
  %v1715 = vpop.f32.mrb[0].mxu0
  %v1716 = vadd.f32 %v292, %v1715
  %v1717 = vpop.f32.mrb[0].mxu0
  %v1718 = vpop.f32.mrb[0].mxu0
  %v1719 = vadd.f32 %v292, %v1718
  %v1720 = vpop.f32.mrb[0].mxu0
  %1721 = vmatprep.mubr.bf16.mxu0 0
  %1722 = vmatmul.mubr.bf16.gmra.mrb[0].mxu0 %v1079
  %v1723 = vpop.f32.mrb[0].mxu0
  %v1724 = vadd.f32 %v292, %v1723
  %v1725 = vpop.f32.mrb[0].mxu0
  %v1726 = vpop.f32.mrb[0].mxu0
  %v1727 = vadd.f32 %v292, %v1726
  %v1728 = vpop.f32.mrb[0].mxu0
  %1729 = vmatprep.mubr.bf16.mxu0 0
  %1730 = vmatmul.mubr.bf16.gmra.mrb[0].mxu0 %v1082
  %v1731 = vpop.f32.mrb[0].mxu0
  %v1732 = vadd.f32 %v292, %v1731
  %v1733 = vpop.f32.mrb[0].mxu0
  %v1734 = vpop.f32.mrb[0].mxu0
  %v1735 = vadd.f32 %v292, %v1734
  %v1736 = vpop.f32.mrb[0].mxu0
  %1737 = vmatprep.mubr.bf16.mxu0 0
  %1738 = vmatmul.mubr.bf16.gmra.mrb[0].mxu0 %v1085
  %v1739 = vpop.f32.mrb[0].mxu0
  %v1740 = vadd.f32 %v292, %v1739
  %v1741 = vpop.f32.mrb[0].mxu0
  %v1742 = vpop.f32.mrb[0].mxu0
  %v1743 = vadd.f32 %v292, %v1742
  %v1744 = vpop.f32.mrb[0].mxu0
  %1745 = vmatprep.mubr.bf16.mxu0 0
  %1746 = vmatmul.mubr.bf16.gmra.mrb[0].mxu0 %v1088
  %v1747 = vpop.f32.mrb[0].mxu0
  %v1748 = vadd.f32 %v292, %v1747
  %v1749 = vpop.f32.mrb[0].mxu0
  %v1750 = vpop.f32.mrb[0].mxu0
  %v1751 = vadd.f32 %v292, %v1750
  %v1752 = vpop.f32.mrb[0].mxu0
  %1753 = vmatprep.mubr.bf16.mxu0 0
  %1754 = vmatmul.mubr.bf16.gmra.mrb[0].mxu0 %v1091
  %v1755 = vpop.f32.mrb[0].mxu0
  %v1756 = vadd.f32 %v292, %v1755
  %v1757 = vpop.f32.mrb[0].mxu0
  %v1758 = vpop.f32.mrb[0].mxu0
  %v1759 = vadd.f32 %v292, %v1758
  %v1760 = vpop.f32.mrb[0].mxu0
  %1761 = vmatprep.mubr.bf16.mxu0 0
  %1762 = vmatmul.mubr.bf16.gmra.mrb[0].mxu0 %v1094
  %v1763 = vpop.f32.mrb[0].mxu0
  %v1764 = vadd.f32 %v292, %v1763
  %v1765 = vpop.f32.mrb[0].mxu0
  %v1766 = vpop.f32.mrb[0].mxu0
  %v1767 = vadd.f32 %v292, %v1766
  %v1768 = vpop.f32.mrb[0].mxu0
  %1769 = vmatprep.mubr.bf16.mxu0 0
  %1770 = vmatmul.mubr.bf16.gmra.mrb[0].mxu0 %v1097
  %v1771 = vpop.f32.mrb[0].mxu0
  %v1772 = vadd.f32 %v292, %v1771
  %v1773 = vpop.f32.mrb[0].mxu0
  %v1774 = vpop.f32.mrb[0].mxu0
  %v1775 = vadd.f32 %v292, %v1774
  %v1776 = vpop.f32.mrb[0].mxu0
  %1777 = vmatprep.mubr.bf16.mxu0 0
  %1778 = vmatmul.mubr.bf16.gmra.mrb[0].mxu0 %v1100
  %v1779 = vpop.f32.mrb[0].mxu0
  %v1780 = vadd.f32 %v292, %v1779
  %v1781 = vpop.f32.mrb[0].mxu0
  %v1782 = vpop.f32.mrb[0].mxu0
  %v1783 = vadd.f32 %v292, %v1782
  %v1784 = vpop.f32.mrb[0].mxu0
  %1785 = vmatprep.mubr.bf16.mxu0 0
  %1786 = vmatmul.mubr.bf16.gmra.mrb[0].mxu0 %v1103
  %v1787 = vpop.f32.mrb[0].mxu0
  %v1788 = vadd.f32 %v292, %v1787
  %v1789 = vpop.f32.mrb[0].mxu0
  %v1790 = vpop.f32.mrb[0].mxu0
  %v1791 = vadd.f32 %v292, %v1790
  %v1792 = vpop.f32.mrb[0].mxu0
  %1793 = vmatprep.mubr.bf16.mxu0 0
  %1794 = vmatmul.mubr.bf16.gmra.mrb[0].mxu0 %v1106
  %v1795 = vpop.f32.mrb[0].mxu0
  %v1796 = vadd.f32 %v292, %v1795
  %v1797 = vpop.f32.mrb[0].mxu0
  %v1798 = vpop.f32.mrb[0].mxu0
  %v1799 = vadd.f32 %v292, %v1798
  %v1800 = vpop.f32.mrb[0].mxu0
  %1801 = vmatprep.mubr.bf16.mxu0 0
  %1802 = vmatmul.mubr.bf16.gmra.mrb[0].mxu0 %v1109
  %v1803 = vpop.f32.mrb[0].mxu0
  %v1804 = vadd.f32 %v292, %v1803
  %v1805 = vpop.f32.mrb[0].mxu0
  %v1806 = vpop.f32.mrb[0].mxu0
  %v1807 = vadd.f32 %v292, %v1806
  %v1808 = vpop.f32.mrb[0].mxu0
  %1809 = vmatprep.mubr.bf16.mxu0 0
  %1810 = vmatmul.mubr.bf16.gmra.mrb[0].mxu0 %v1112
  %v1811 = vpop.f32.mrb[0].mxu0
  %v1812 = vadd.f32 %v292, %v1811
  %v1813 = vpop.f32.mrb[0].mxu0
  %v1814 = vpop.f32.mrb[0].mxu0
  %v1815 = vadd.f32 %v292, %v1814
  %v1816 = vpop.f32.mrb[0].mxu0
  %1817 = vmatprep.mubr.bf16.mxu0 0
  %1818 = vmatmul.mubr.bf16.gmra.mrb[0].mxu0 %v1115
  %v1819 = vpop.f32.mrb[0].mxu0
  %v1820 = vadd.f32 %v292, %v1819
  %v1821 = vpop.f32.mrb[0].mxu0
  %v1822 = vpop.f32.mrb[0].mxu0
  %v1823 = vadd.f32 %v292, %v1822
  %v1824 = vpop.f32.mrb[0].mxu0
  %1825 = vmatprep.mubr.bf16.mxu0 0
  %1826 = vmatmul.mubr.bf16.gmra.mrb[0].mxu0 %v1118
  %v1827 = vpop.f32.mrb[0].mxu0
  %v1828 = vadd.f32 %v292, %v1827
  %v1829 = vpop.f32.mrb[0].mxu0
  %v1830 = vpop.f32.mrb[0].mxu0
  %v1831 = vadd.f32 %v292, %v1830
  %v1832 = vpop.f32.mrb[0].mxu0
  %1833 = vmatprep.mubr.bf16.mxu0 0
  %1834 = vmatmul.mubr.bf16.gmra.mrb[0].mxu0 %v1121
  %v1835 = vpop.f32.mrb[0].mxu0
  %v1836 = vadd.f32 %v292, %v1835
  %v1837 = vpop.f32.mrb[0].mxu0
  %v1838 = vpop.f32.mrb[0].mxu0
  %v1839 = vadd.f32 %v292, %v1838
  %v1840 = vpop.f32.mrb[0].mxu0
  %1841 = vmatprep.mubr.bf16.mxu0 0
  %1842 = vmatmul.mubr.bf16.gmra.mrb[0].mxu0 %v1124
  %v1843 = vpop.f32.mrb[0].mxu0
  %v1844 = vadd.f32 %v292, %v1843
  %v1845 = vpop.f32.mrb[0].mxu0
  %v1846 = vpop.f32.mrb[0].mxu0
  %v1847 = vadd.f32 %v292, %v1846
  %v1848 = vpop.f32.mrb[0].mxu0
  %1849 = vmatprep.mubr.bf16.mxu0 0
  %1850 = vmatmul.mubr.bf16.gmra.mrb[0].mxu0 %v1127
  %v1851 = vpop.f32.mrb[0].mxu0
  %v1852 = vadd.f32 %v292, %v1851
  %v1853 = vpop.f32.mrb[0].mxu0
  %v1854 = vpop.f32.mrb[0].mxu0
  %v1855 = vadd.f32 %v292, %v1854
  %v1856 = vpop.f32.mrb[0].mxu0
  %1857 = vmatprep.mubr.bf16.mxu0 0
  %1858 = vmatmul.mubr.bf16.gmra.mrb[0].mxu0 %v1130
  %v1859 = vpop.f32.mrb[0].mxu0
  %v1860 = vadd.f32 %v292, %v1859
  %v1861 = vpop.f32.mrb[0].mxu0
  %v1862 = vpop.f32.mrb[0].mxu0
  %v1863 = vadd.f32 %v292, %v1862
  %v1864 = vpop.f32.mrb[0].mxu0
  %1865 = vmatprep.mubr.bf16.mxu0 0
  %1866 = vmatmul.mubr.bf16.gmra.mrb[0].mxu0 %v1133
  %v1867 = vpop.f32.mrb[0].mxu0
  %v1868 = vadd.f32 %v292, %v1867
  %v1869 = vpop.f32.mrb[0].mxu0
  %v1870 = vpop.f32.mrb[0].mxu0
  %v1871 = vadd.f32 %v292, %v1870
  %v1872 = vpop.f32.mrb[0].mxu0
  %1873 = vmatprep.mubr.bf16.mxu0 0
  %1874 = vmatmul.mubr.bf16.gmra.mrb[0].mxu0 %v1136
  %v1875 = vpop.f32.mrb[0].mxu0
  %v1876 = vadd.f32 %v292, %v1875
  %v1877 = vpop.f32.mrb[0].mxu0
  %v1878 = vpop.f32.mrb[0].mxu0
  %v1879 = vadd.f32 %v292, %v1878
  %v1880 = vpop.f32.mrb[0].mxu0
  %1881 = vmatprep.mubr.bf16.mxu0 0
  %1882 = vmatmul.mubr.bf16.gmra.mrb[0].mxu0 %v1139
  %v1883 = vpop.f32.mrb[0].mxu0
  %v1884 = vadd.f32 %v292, %v1883
  %v1885 = vpop.f32.mrb[0].mxu0
  %v1886 = vpop.f32.mrb[0].mxu0
  %v1887 = vadd.f32 %v292, %v1886
  %v1888 = vpop.f32.mrb[0].mxu0
  %1889 = vmatprep.mubr.bf16.mxu0 0
  %1890 = vmatmul.mubr.bf16.gmra.mrb[0].mxu0 %v1142
  %v1891 = vpop.f32.mrb[0].mxu0
  %v1892 = vadd.f32 %v292, %v1891
  %v1893 = vpop.f32.mrb[0].mxu0
  %v1894 = vpop.f32.mrb[0].mxu0
  %v1895 = vadd.f32 %v292, %v1894
  %v1896 = vpop.f32.mrb[0].mxu0
  %1897 = vmatprep.mubr.bf16.mxu0 0
  %1898 = vmatmul.mubr.bf16.gmra.mrb[0].mxu0 %v1145
  %v1899 = vpop.f32.mrb[0].mxu0
  %v1900 = vadd.f32 %v292, %v1899
  %v1901 = vpop.f32.mrb[0].mxu0
  %v1902 = vpop.f32.mrb[0].mxu0
  %v1903 = vadd.f32 %v292, %v1902
  %v1904 = vpop.f32.mrb[0].mxu0
  %1905 = vmatprep.mubr.bf16.mxu0 0
  %1906 = vmatmul.mubr.bf16.gmra.mrb[0].mxu0 %v1148
  %v1907 = vpop.f32.mrb[0].mxu0
  %v1908 = vadd.f32 %v292, %v1907
  %v1909 = vpop.f32.mrb[0].mxu0
  %v1910 = vpop.f32.mrb[0].mxu0
  %v1911 = vadd.f32 %v292, %v1910
  %v1912 = vpop.f32.mrb[0].mxu0
  %1913 = vmatprep.mubr.bf16.mxu0 0
  %1914 = vmatmul.mubr.bf16.gmra.mrb[0].mxu0 %v1151
  %v1915 = vpop.f32.mrb[0].mxu0
  %v1916 = vadd.f32 %v292, %v1915
  %v1917 = vpop.f32.mrb[0].mxu0
  %v1918 = vpop.f32.mrb[0].mxu0
  %v1919 = vadd.f32 %v292, %v1918
  %v1920 = vpop.f32.mrb[0].mxu0
  %1921 = vmatprep.mubr.bf16.mxu0 0
  %1922 = vmatmul.mubr.bf16.gmra.mrb[0].mxu0 %v1154
  %v1923 = vpop.f32.mrb[0].mxu0
  %v1924 = vadd.f32 %v292, %v1923
  %v1925 = vpop.f32.mrb[0].mxu0
  %v1926 = vpop.f32.mrb[0].mxu0
  %v1927 = vadd.f32 %v292, %v1926
  %v1928 = vpop.f32.mrb[0].mxu0
  %1929 = vmatprep.mubr.bf16.mxu0 0
  %1930 = vmatmul.mubr.bf16.gmra.mrb[0].mxu0 %v1157
  %v1931 = vpop.f32.mrb[0].mxu0
  %v1932 = vadd.f32 %v292, %v1931
  %v1933 = vpop.f32.mrb[0].mxu0
  %v1934 = vpop.f32.mrb[0].mxu0
  %v1935 = vadd.f32 %v292, %v1934
  %v1936 = vpop.f32.mrb[0].mxu0
  %1937 = vmatprep.mubr.bf16.mxu0 0
  %1938 = vmatmul.mubr.bf16.gmra.mrb[0].mxu0 %v1160
  %v1939 = vpop.f32.mrb[0].mxu0
  %v1940 = vadd.f32 %v292, %v1939
  %v1941 = vpop.f32.mrb[0].mxu0
  %v1942 = vpop.f32.mrb[0].mxu0
  %v1943 = vadd.f32 %v292, %v1942
  %v1944 = vpop.f32.mrb[0].mxu0
  %1945 = vmatprep.mubr.bf16.mxu0 0
  %1946 = vmatmul.mubr.bf16.gmra.mrb[0].mxu0 %v1163
  %v1947 = vpop.f32.mrb[0].mxu0
  %v1948 = vadd.f32 %v292, %v1947
  %v1949 = vpop.f32.mrb[0].mxu0
  %v1950 = vpop.f32.mrb[0].mxu0
  %v1951 = vadd.f32 %v292, %v1950
  %v1952 = vpop.f32.mrb[0].mxu0
  %1953 = vmatprep.mubr.bf16.mxu0 0
  %1954 = vmatmul.mubr.bf16.gmra.mrb[0].mxu0 %v1166
  %v1955 = vpop.f32.mrb[0].mxu0
  %v1956 = vadd.f32 %v292, %v1955
  %v1957 = vpop.f32.mrb[0].mxu0
  %v1958 = vpop.f32.mrb[0].mxu0
  %v1959 = vadd.f32 %v292, %v1958
  %v1960 = vpop.f32.mrb[0].mxu0
  %1961 = vmatprep.mubr.bf16.mxu0 0
  %1962 = vmatmul.mubr.bf16.gmra.mrb[0].mxu0 %v1169
  %v1963 = vpop.f32.mrb[0].mxu0
  %v1964 = vadd.f32 %v292, %v1963
  %v1965 = vpop.f32.mrb[0].mxu0
  %v1966 = vpop.f32.mrb[0].mxu0
  %v1967 = vadd.f32 %v292, %v1966
  %v1968 = vpop.f32.mrb[0].mxu0
  %1969 = vmatprep.mubr.bf16.mxu0 0
  %1970 = vmatmul.mubr.bf16.gmra.mrb[0].mxu0 %v1172
  %v1971 = vpop.f32.mrb[0].mxu0
  %v1972 = vadd.f32 %v292, %v1971
  %v1973 = vpop.f32.mrb[0].mxu0
  %v1974 = vpop.f32.mrb[0].mxu0
  %v1975 = vadd.f32 %v292, %v1974
  %v1976 = vpop.f32.mrb[0].mxu0
  %1977 = vmatprep.mubr.bf16.mxu0 0
  %1978 = vmatmul.mubr.bf16.gmra.mrb[0].mxu0 %v1175
  %v1979 = vpop.f32.mrb[0].mxu0
  %v1980 = vadd.f32 %v292, %v1979
  %v1981 = vpop.f32.mrb[0].mxu0
  %v1982 = vpop.f32.mrb[0].mxu0
  %v1983 = vadd.f32 %v292, %v1982
  %v1984 = vpop.f32.mrb[0].mxu0
  %1985 = vmatprep.mubr.bf16.mxu0 0
  %1986 = vmatmul.mubr.bf16.gmra.mrb[0].mxu0 %v1178
  %v1987 = vpop.f32.mrb[0].mxu0
  %v1988 = vadd.f32 %v292, %v1987
  %v1989 = vpop.f32.mrb[0].mxu0
  %v1990 = vpop.f32.mrb[0].mxu0
  %v1991 = vadd.f32 %v292, %v1990
  %v1992 = vpop.f32.mrb[0].mxu0
  %1993 = vmatprep.mubr.bf16.mxu0 0
  %1994 = vmatmul.mubr.bf16.gmra.mrb[0].mxu0 %v1181
  %v1995 = vpop.f32.mrb[0].mxu0
  %v1996 = vadd.f32 %v292, %v1995
  %v1997 = vpop.f32.mrb[0].mxu0
  %v1998 = vpop.f32.mrb[0].mxu0
  %v1999 = vadd.f32 %v292, %v1998
  %v2000 = vpop.f32.mrb[0].mxu0
  %2001 = vmatprep.mubr.bf16.mxu0 0
  %2002 = vmatmul.mubr.bf16.gmra.mrb[0].mxu0 %v1184
  %v2003 = vpop.f32.mrb[0].mxu0
  %v2004 = vadd.f32 %v292, %v2003
  %v2005 = vpop.f32.mrb[0].mxu0
  %v2006 = vpop.f32.mrb[0].mxu0
  %v2007 = vadd.f32 %v292, %v2006
  %v2008 = vpop.f32.mrb[0].mxu0
  %2009 = vmatprep.mubr.bf16.mxu0 0
  %2010 = vmatmul.mubr.bf16.gmra.mrb[0].mxu0 %v1187
  %v2011 = vpop.f32.mrb[0].mxu0
  %v2012 = vadd.f32 %v292, %v2011
  %v2013 = vpop.f32.mrb[0].mxu0
  %v2014 = vpop.f32.mrb[0].mxu0
  %v2015 = vadd.f32 %v292, %v2014
  %v2016 = vpop.f32.mrb[0].mxu0
  %2017 = vmatprep.mubr.bf16.mxu0 0
  %2018 = vmatmul.mubr.bf16.gmra.mrb[0].mxu0 %v1190
  %v2019 = vpop.f32.mrb[0].mxu0
  %v2020 = vadd.f32 %v292, %v2019
  %v2021 = vpop.f32.mrb[0].mxu0
  %v2022 = vpop.f32.mrb[0].mxu0
  %v2023 = vadd.f32 %v292, %v2022
  %v2024 = vpop.f32.mrb[0].mxu0
  %2025 = vmatprep.mubr.bf16.mxu0 0
  %2026 = vmatmul.mubr.bf16.gmra.mrb[0].mxu0 %v1193
  %v2027 = vpop.f32.mrb[0].mxu0
  %v2028 = vadd.f32 %v292, %v2027
  %v2029 = vpop.f32.mrb[0].mxu0
  %v2030 = vpop.f32.mrb[0].mxu0
  %v2031 = vadd.f32 %v292, %v2030
  %v2032 = vpop.f32.mrb[0].mxu0
  %2033 = vmatprep.mubr.bf16.mxu0 0
  %2034 = vmatmul.mubr.bf16.gmra.mrb[0].mxu0 %v1196
  %v2035 = vpop.f32.mrb[0].mxu0
  %v2036 = vadd.f32 %v292, %v2035
  %v2037 = vpop.f32.mrb[0].mxu0
  %v2038 = vpop.f32.mrb[0].mxu0
  %v2039 = vadd.f32 %v292, %v2038
  %v2040 = vpop.f32.mrb[0].mxu0
  %2041 = vmatprep.mubr.bf16.mxu0 0
  %2042 = vmatmul.mubr.bf16.gmra.mrb[0].mxu0 %v1199
  %v2043 = vpop.f32.mrb[0].mxu0
  %v2044 = vadd.f32 %v292, %v2043
  %v2045 = vpop.f32.mrb[0].mxu0
  %v2046 = vpop.f32.mrb[0].mxu0
  %v2047 = vadd.f32 %v292, %v2046
  %v2048 = vpop.f32.mrb[0].mxu0
  %2049 = vmatprep.mubr.bf16.mxu0 0
  %2050 = vmatmul.mubr.bf16.gmra.mrb[0].mxu0 %v1202
  %v2051 = vpop.f32.mrb[0].mxu0
  %v2052 = vadd.f32 %v292, %v2051
  %v2053 = vpop.f32.mrb[0].mxu0
  %v2054 = vpop.f32.mrb[0].mxu0
  %v2055 = vadd.f32 %v292, %v2054
  %v2056 = vpop.f32.mrb[0].mxu0
  %2057 = vmatprep.mubr.bf16.mxu0 0
  %2058 = vmatmul.mubr.bf16.gmra.mrb[0].mxu0 %v1205
  %v2059 = vpop.f32.mrb[0].mxu0
  %v2060 = vadd.f32 %v292, %v2059
  %v2061 = vpop.f32.mrb[0].mxu0
  %v2062 = vpop.f32.mrb[0].mxu0
  %v2063 = vadd.f32 %v292, %v2062
  %v2064 = vpop.f32.mrb[0].mxu0
  %2065 = vmatprep.mubr.bf16.mxu0 0
  %2066 = vmatmul.mubr.bf16.gmra.mrb[0].mxu0 %v1208
  %v2067 = vpop.f32.mrb[0].mxu0
  %v2068 = vadd.f32 %v292, %v2067
  %v2069 = vpop.f32.mrb[0].mxu0
  %v2070 = vpop.f32.mrb[0].mxu0
  %v2071 = vadd.f32 %v292, %v2070
  %v2072 = vpop.f32.mrb[0].mxu0
  %2073 = vmatprep.mubr.bf16.mxu0 0
  %2074 = vmatmul.mubr.bf16.gmra.mrb[0].mxu0 %v1211
  %v2075 = vpop.f32.mrb[0].mxu0
  %v2076 = vadd.f32 %v292, %v2075
  %v2077 = vpop.f32.mrb[0].mxu0
  %v2078 = vpop.f32.mrb[0].mxu0
  %v2079 = vadd.f32 %v292, %v2078
  %v2080 = vpop.f32.mrb[0].mxu0
  %2081 = vmatprep.mubr.bf16.mxu0 0
  %2082 = vmatmul.mubr.bf16.gmra.mrb[0].mxu0 %v1214
  %v2083 = vpop.f32.mrb[0].mxu0
  %v2084 = vadd.f32 %v292, %v2083
  %v2085 = vpop.f32.mrb[0].mxu0
  %v2086 = vpop.f32.mrb[0].mxu0
  %v2087 = vadd.f32 %v292, %v2086
  %v2088 = vpop.f32.mrb[0].mxu0
  %2089 = vmatprep.mubr.bf16.mxu0 0
  %2090 = vmatmul.mubr.bf16.gmra.mrb[0].mxu0 %v1217
  %v2091 = vpop.f32.mrb[0].mxu0
  %v2092 = vadd.f32 %v292, %v2091
  %v2093 = vpop.f32.mrb[0].mxu0
  %v2094 = vpop.f32.mrb[0].mxu0
  %v2095 = vadd.f32 %v292, %v2094
  %v2096 = vpop.f32.mrb[0].mxu0
  %2097 = vmatprep.mubr.bf16.mxu0 0
  %2098 = vmatmul.mubr.bf16.gmra.mrb[0].mxu0 %v1220
  %v2099 = vpop.f32.mrb[0].mxu0
  %v2100 = vadd.f32 %v292, %v2099
  %v2101 = vpop.f32.mrb[0].mxu0
  %v2102 = vpop.f32.mrb[0].mxu0
  %v2103 = vadd.f32 %v292, %v2102
  %v2104 = vpop.f32.mrb[0].mxu0
  %2105 = vmatprep.mubr.bf16.mxu0 0
  %2106 = vmatmul.mubr.bf16.gmra.mrb[0].mxu0 %v1223
  %v2107 = vpop.f32.mrb[0].mxu0
  %v2108 = vadd.f32 %v292, %v2107
  %v2109 = vpop.f32.mrb[0].mxu0
  %v2110 = vpop.f32.mrb[0].mxu0
  %v2111 = vadd.f32 %v292, %v2110
  %v2112 = vpop.f32.mrb[0].mxu0
  %2113 = vmatprep.mubr.bf16.mxu0 0
  %2114 = vmatmul.mubr.bf16.gmra.mrb[0].mxu0 %v1226
  %v2115 = vpop.f32.mrb[0].mxu0
  %v2116 = vadd.f32 %v292, %v2115
  %v2117 = vpop.f32.mrb[0].mxu0
  %v2118 = vpop.f32.mrb[0].mxu0
  %v2119 = vadd.f32 %v292, %v2118
  %v2120 = vpop.f32.mrb[0].mxu0
  %2121 = vmatprep.mubr.bf16.mxu0 0
  %2122 = vmatmul.mubr.bf16.gmra.mrb[0].mxu0 %v1229
  %v2123 = vpop.f32.mrb[0].mxu0
  %v2124 = vadd.f32 %v292, %v2123
  %v2125 = vpop.f32.mrb[0].mxu0
  %v2126 = vpop.f32.mrb[0].mxu0
  %v2127 = vadd.f32 %v292, %v2126
  %v2128 = vpop.f32.mrb[0].mxu0
  %2129 = vmatprep.mubr.bf16.mxu0 0
  %2130 = vmatmul.mubr.bf16.gmra.mrb[0].mxu0 %v1232
  %v2131 = vpop.f32.mrb[0].mxu0
  %v2132 = vadd.f32 %v292, %v2131
  %v2133 = vpop.f32.mrb[0].mxu0
  %v2134 = vpop.f32.mrb[0].mxu0
  %v2135 = vadd.f32 %v292, %v2134
  %v2136 = vpop.f32.mrb[0].mxu0
  %2137 = vmatprep.mubr.bf16.mxu0 0
  %2138 = vmatmul.mubr.bf16.gmra.mrb[0].mxu0 %v1235
  %v2139 = vpop.f32.mrb[0].mxu0
  %v2140 = vadd.f32 %v292, %v2139
  %v2141 = vpop.f32.mrb[0].mxu0
  %v2142 = vpop.f32.mrb[0].mxu0
  %v2143 = vadd.f32 %v292, %v2142
  %v2144 = vpop.f32.mrb[0].mxu0
  %2145 = vmatprep.mubr.bf16.mxu0 0
  %2146 = vmatmul.mubr.bf16.gmra.mrb[0].mxu0 %v1238
  %v2147 = vpop.f32.mrb[0].mxu0
  %v2148 = vadd.f32 %v292, %v2147
  %v2149 = vpop.f32.mrb[0].mxu0
  %v2150 = vpop.f32.mrb[0].mxu0
  %v2151 = vadd.f32 %v292, %v2150
  %v2152 = vpop.f32.mrb[0].mxu0
  %2153 = vmatprep.mubr.bf16.mxu0 0
  %2154 = vmatmul.mubr.bf16.gmra.mrb[0].mxu0 %v1241
  %v2155 = vpop.f32.mrb[0].mxu0
  %v2156 = vadd.f32 %v292, %v2155
  %v2157 = vpop.f32.mrb[0].mxu0
  %v2158 = vpop.f32.mrb[0].mxu0
  %v2159 = vadd.f32 %v292, %v2158
  %v2160 = vpop.f32.mrb[0].mxu0
  %2161 = vmatprep.mubr.bf16.mxu0 0
  %2162 = vmatmul.mubr.bf16.gmra.mrb[0].mxu0 %v1244
  %v2163 = vpop.f32.mrb[0].mxu0
  %v2164 = vadd.f32 %v292, %v2163
  %v2165 = vpop.f32.mrb[0].mxu0
  %v2166 = vpop.f32.mrb[0].mxu0
  %v2167 = vadd.f32 %v292, %v2166
  %v2168 = vpop.f32.mrb[0].mxu0
  %2169 = vmatprep.mubr.bf16.mxu0 0
  %2170 = vmatmul.mubr.bf16.gmra.mrb[0].mxu0 %v1247
  %v2171 = vpop.f32.mrb[0].mxu0
  %v2172 = vadd.f32 %v292, %v2171
  %v2173 = vpop.f32.mrb[0].mxu0
  %v2174 = vpop.f32.mrb[0].mxu0
  %v2175 = vadd.f32 %v292, %v2174
  %v2176 = vpop.f32.mrb[0].mxu0
  %2177 = vmatprep.mubr.bf16.mxu0 0
  %2178 = vmatmul.mubr.bf16.gmra.mrb[0].mxu0 %v1250
  %v2179 = vpop.f32.mrb[0].mxu0
  %v2180 = vadd.f32 %v292, %v2179
  %v2181 = vpop.f32.mrb[0].mxu0
  %v2182 = vpop.f32.mrb[0].mxu0
  %v2183 = vadd.f32 %v292, %v2182
  %v2184 = vpop.f32.mrb[0].mxu0
  %2185 = vmatprep.mubr.bf16.mxu0 0
  %2186 = vmatmul.mubr.bf16.gmra.mrb[0].mxu0 %v1253
  %v2187 = vpop.f32.mrb[0].mxu0
  %v2188 = vadd.f32 %v292, %v2187
  %v2189 = vpop.f32.mrb[0].mxu0
  %v2190 = vpop.f32.mrb[0].mxu0
  %v2191 = vadd.f32 %v292, %v2190
  %v2192 = vpop.f32.mrb[0].mxu0
  %2193 = vmatprep.mubr.bf16.mxu0 0
  %2194 = vmatmul.mubr.bf16.gmra.mrb[0].mxu0 %v1256
  %v2195 = vpop.f32.mrb[0].mxu0
  %v2196 = vadd.f32 %v292, %v2195
  %v2197 = vpop.f32.mrb[0].mxu0
  %v2198 = vpop.f32.mrb[0].mxu0
  %v2199 = vadd.f32 %v292, %v2198
  %v2200 = vpop.f32.mrb[0].mxu0
  %2201 = vmatprep.mubr.bf16.mxu0 0
  %2202 = vmatmul.mubr.bf16.gmra.mrb[0].mxu0 %v1259
  %v2203 = vpop.f32.mrb[0].mxu0
  %v2204 = vadd.f32 %v292, %v2203
  %v2205 = vpop.f32.mrb[0].mxu0
  %v2206 = vpop.f32.mrb[0].mxu0
  %v2207 = vadd.f32 %v292, %v2206
  %v2208 = vpop.f32.mrb[0].mxu0
  %2209 = vmatprep.mubr.bf16.mxu0 0
  %2210 = vmatmul.mubr.bf16.gmra.mrb[0].mxu0 %v1262
  %v2211 = vpop.f32.mrb[0].mxu0
  %v2212 = vadd.f32 %v292, %v2211
  %v2213 = vpop.f32.mrb[0].mxu0
  %v2214 = vpop.f32.mrb[0].mxu0
  %v2215 = vadd.f32 %v292, %v2214
  %v2216 = vpop.f32.mrb[0].mxu0
  %2217 = vmatprep.mubr.bf16.mxu0 0
  %2218 = vmatmul.mubr.bf16.gmra.mrb[0].mxu0 %v1265
  %v2219 = vpop.f32.mrb[0].mxu0
  %v2220 = vadd.f32 %v292, %v2219
  %v2221 = vpop.f32.mrb[0].mxu0
  %v2222 = vpop.f32.mrb[0].mxu0
  %v2223 = vadd.f32 %v292, %v2222
  %v2224 = vpop.f32.mrb[0].mxu0
  %2225 = vmatprep.mubr.bf16.mxu0 0
  %2226 = vmatmul.mubr.bf16.gmra.mrb[0].mxu0 %v1268
  %v2227 = vpop.f32.mrb[0].mxu0
  %v2228 = vadd.f32 %v292, %v2227
  %v2229 = vpop.f32.mrb[0].mxu0
  %v2230 = vpop.f32.mrb[0].mxu0
  %v2231 = vadd.f32 %v292, %v2230
  %v2232 = vpop.f32.mrb[0].mxu0
  %2233 = vmatprep.mubr.bf16.mxu0 0
  %2234 = vmatmul.mubr.bf16.gmra.mrb[0].mxu0 %v1271
  %v2235 = vpop.f32.mrb[0].mxu0
  %v2236 = vadd.f32 %v292, %v2235
  %v2237 = vpop.f32.mrb[0].mxu0
  %v2238 = vpop.f32.mrb[0].mxu0
  %v2239 = vadd.f32 %v292, %v2238
  %v2240 = vpop.f32.mrb[0].mxu0
  %2241 = vmatprep.mubr.bf16.mxu0 0
  %2242 = vmatmul.mubr.bf16.gmra.mrb[0].mxu0 %v1274
  %v2243 = vpop.f32.mrb[0].mxu0
  %v2244 = vadd.f32 %v292, %v2243
  %v2245 = vpop.f32.mrb[0].mxu0
  %v2246 = vpop.f32.mrb[0].mxu0
  %v2247 = vadd.f32 %v292, %v2246
  %v2248 = vpop.f32.mrb[0].mxu0
  %2249 = vmatprep.mubr.bf16.mxu0 0
  %2250 = vmatmul.mubr.bf16.gmra.mrb[0].mxu0 %v1277
  %v2251 = vpop.f32.mrb[0].mxu0
  %v2252 = vadd.f32 %v292, %v2251
  %v2253 = vpop.f32.mrb[0].mxu0
  %v2254 = vpop.f32.mrb[0].mxu0
  %v2255 = vadd.f32 %v292, %v2254
  %v2256 = vpop.f32.mrb[0].mxu0
  %2257 = vmatprep.mubr.bf16.mxu0 0
  %2258 = vmatmul.mubr.bf16.gmra.mrb[0].mxu0 %v1280
  %v2259 = vpop.f32.mrb[0].mxu0
  %v2260 = vadd.f32 %v292, %v2259
  %v2261 = vpop.f32.mrb[0].mxu0
  %v2262 = vpop.f32.mrb[0].mxu0
  %v2263 = vadd.f32 %v292, %v2262
  %v2264 = vpop.f32.mrb[0].mxu0
  %2265 = vmatprep.mubr.bf16.mxu0 0
  %2266 = vmatmul.mubr.bf16.gmra.mrb[0].mxu0 %v1283
  %v2267 = vpop.f32.mrb[0].mxu0
  %v2268 = vadd.f32 %v292, %v2267
  %v2269 = vpop.f32.mrb[0].mxu0
  %v2270 = vpop.f32.mrb[0].mxu0
  %v2271 = vadd.f32 %v292, %v2270
  %v2272 = vpop.f32.mrb[0].mxu0
  %2273 = vmatprep.mubr.bf16.mxu0 0
  %2274 = vmatmul.mubr.bf16.gmra.mrb[0].mxu0 %v1286
  %v2275 = vpop.f32.mrb[0].mxu0
  %v2276 = vadd.f32 %v292, %v2275
  %v2277 = vpop.f32.mrb[0].mxu0
  %v2278 = vpop.f32.mrb[0].mxu0
  %v2279 = vadd.f32 %v292, %v2278
  %v2280 = vpop.f32.mrb[0].mxu0
  %2281 = vmatprep.mubr.bf16.mxu0 0
  %2282 = vmatmul.mubr.bf16.gmra.mrb[0].mxu0 %v1289
  %v2283 = vpop.f32.mrb[0].mxu0
  %v2284 = vadd.f32 %v292, %v2283
  %v2285 = vpop.f32.mrb[0].mxu0
  %v2286 = vpop.f32.mrb[0].mxu0
  %v2287 = vadd.f32 %v292, %v2286
  %v2288 = vpop.f32.mrb[0].mxu0
  %2289 = vmatprep.mubr.bf16.mxu0 0
  %2290 = vmatmul.mubr.bf16.gmra.mrb[0].mxu0 %v1292
  %v2291 = vpop.f32.mrb[0].mxu0
  %v2292 = vadd.f32 %v292, %v2291
  %v2293 = vpop.f32.mrb[0].mxu0
  %v2294 = vpop.f32.mrb[0].mxu0
  %v2295 = vadd.f32 %v292, %v2294
  %v2296 = vpop.f32.mrb[0].mxu0
  %2297 = vmatprep.mubr.bf16.mxu0 0
  %2298 = vmatmul.mubr.bf16.gmra.mrb[0].mxu0 %v1295
  %v2299 = vpop.f32.mrb[0].mxu0
  %v2300 = vadd.f32 %v292, %v2299
  %v2301 = vpop.f32.mrb[0].mxu0
  %v2302 = vpop.f32.mrb[0].mxu0
  %v2303 = vadd.f32 %v292, %v2302
  %v2304 = vpop.f32.mrb[0].mxu0
  %2305 = vmatprep.mubr.bf16.mxu0 0
  %2306 = vmatmul.mubr.bf16.gmra.mrb[0].mxu0 %v1298
  %v2307 = vpop.f32.mrb[0].mxu0
  %v2308 = vadd.f32 %v292, %v2307
  %v2309 = vpop.f32.mrb[0].mxu0
  %v2310 = vpop.f32.mrb[0].mxu0
  %v2311 = vadd.f32 %v292, %v2310
  %v2312 = vpop.f32.mrb[0].mxu0
  %2313 = vmatprep.mubr.bf16.mxu0 0
  %2314 = vmatmul.mubr.bf16.gmra.mrb[0].mxu0 %v1301
  %v2315 = vpop.f32.mrb[0].mxu0
  %v2316 = vadd.f32 %v292, %v2315
  %v2317 = vpop.f32.mrb[0].mxu0
  %v2318 = vpop.f32.mrb[0].mxu0
  %v2319 = vadd.f32 %v292, %v2318
  %v2320 = vpop.f32.mrb[0].mxu0
  %2321 = vmatprep.mubr.bf16.mxu0 0
  %2322 = vmatmul.mubr.bf16.gmra.mrb[0].mxu0 %v1304
  %v2323 = vpop.f32.mrb[0].mxu0
  %v2324 = vadd.f32 %v292, %v2323
  %v2325 = vpop.f32.mrb[0].mxu0
  %v2326 = vpop.f32.mrb[0].mxu0
  %v2327 = vadd.f32 %v292, %v2326
  %v2328 = vpop.f32.mrb[0].mxu0
  %2329 = vmatprep.mubr.bf16.mxu0 0
  %2330 = vmatmul.mubr.bf16.gmra.mrb[0].mxu0 %v1307
  %v2331 = vpop.f32.mrb[0].mxu0
  %v2332 = vadd.f32 %v292, %v2331
  %v2333 = vpop.f32.mrb[0].mxu0
  %v2334 = vpop.f32.mrb[0].mxu0
  %v2335 = vadd.f32 %v292, %v2334
  %v2336 = vpop.f32.mrb[0].mxu0
  %2337 = vmatprep.mubr.bf16.mxu0 0
  %2338 = vmatmul.mubr.bf16.gmra.mrb[0].mxu0 %v1310
  %v2339 = vpop.f32.mrb[0].mxu0
  %v2340 = vadd.f32 %v292, %v2339
  %v2341 = vpop.f32.mrb[0].mxu0
  %v2342 = vpop.f32.mrb[0].mxu0
  %v2343 = vadd.f32 %v292, %v2342
  %v2344 = vpop.f32.mrb[0].mxu0
  %2345 = vmatprep.mubr.bf16.mxu0 0
  %2346 = vmatmul.mubr.bf16.gmra.mrb[0].mxu0 %v1313
  %v2347 = vpop.f32.mrb[0].mxu0
  %v2348 = vadd.f32 %v292, %v2347
  %v2349 = vpop.f32.mrb[0].mxu0
  %v2350 = vpop.f32.mrb[0].mxu0
  %v2351 = vadd.f32 %v292, %v2350
  %v2352 = vpop.f32.mrb[0].mxu0
  %2353 = vmatprep.mubr.bf16.mxu0 0
  %2354 = vmatmul.mubr.bf16.gmra.mrb[0].mxu0 %v1316
  %v2355 = vpop.f32.mrb[0].mxu0
  %v2356 = vadd.f32 %v292, %v2355
  %v2357 = vpop.f32.mrb[0].mxu0
  %v2358 = vpop.f32.mrb[0].mxu0
  %v2359 = vadd.f32 %v292, %v2358
  %v2360 = vpop.f32.mrb[0].mxu0
  %2361 = vmatprep.mubr.bf16.mxu0 0
  %2362 = vmatmul.mubr.bf16.gmra.mrb[0].mxu0 %v1319
  %v2363 = vpop.f32.mrb[0].mxu0
  %v2364 = vadd.f32 %v292, %v2363
  %v2365 = vpop.f32.mrb[0].mxu0
  %v2366 = vpop.f32.mrb[0].mxu0
  %v2367 = vadd.f32 %v292, %v2366
  %v2368 = vpop.f32.mrb[0].mxu0
  %2369 = vmatprep.mubr.bf16.mxu0 0
  %2370 = vmatmul.mubr.bf16.gmra.mrb[0].mxu0 %v1322
  %v2371 = vpop.f32.mrb[0].mxu0
  %v2372 = vadd.f32 %v292, %v2371
  %v2373 = vpop.f32.mrb[0].mxu0
  %v2374 = vpop.f32.mrb[0].mxu0
  %v2375 = vadd.f32 %v292, %v2374
  %v2376 = vpop.f32.mrb[0].mxu0
  %2377 = vmatprep.mubr.bf16.mxu0 0
  %2378 = vmatmul.mubr.bf16.gmra.mrb[0].mxu0 %v1325
  %v2379 = vpop.f32.mrb[0].mxu0
  %v2380 = vadd.f32 %v292, %v2379
  %v2381 = vpop.f32.mrb[0].mxu0
  %v2382 = vpop.f32.mrb[0].mxu0
  %v2383 = vadd.f32 %v292, %v2382
  %v2384 = vpop.f32.mrb[0].mxu0
  %2385 = vmatprep.mubr.bf16.mxu0 0
  %2386 = vmatmul.mubr.bf16.gmra.mrb[0].mxu0 %v1328
  %v2387 = vpop.f32.mrb[0].mxu0
  %v2388 = vadd.f32 %v292, %v2387
  %v2389 = vpop.f32.mrb[0].mxu0
  %v2390 = vpop.f32.mrb[0].mxu0
  %v2391 = vadd.f32 %v292, %v2390
  %v2392 = vpop.f32.mrb[0].mxu0
  %2393 = vdwg.mxu0
  %v2394 = vmax.f32 %v1372, 0.0
  %v2395 = vmax.f32 %v1375, 0.0
  %v2396 = vmax.f32 %v1380, 0.0
  %v2397 = vmax.f32 %v1383, 0.0
  %v2398 = vmax.f32 %v1388, 0.0
  %v2399 = vmax.f32 %v1391, 0.0
  %v2400 = vmax.f32 %v1396, 0.0
  %v2401 = vmax.f32 %v1399, 0.0
  %v2402 = vmax.f32 %v1404, 0.0
  %v2403 = vmax.f32 %v1407, 0.0
  %v2404 = vmax.f32 %v1412, 0.0
  %v2405 = vmax.f32 %v1415, 0.0
  %v2406 = vmax.f32 %v1420, 0.0
  %v2407 = vmax.f32 %v1423, 0.0
  %v2408 = vmax.f32 %v1428, 0.0
  %v2409 = vmax.f32 %v1431, 0.0
  %v2410 = vmax.f32 %v1436, 0.0
  %v2411 = vmax.f32 %v1439, 0.0
  %v2412 = vmax.f32 %v1444, 0.0
  %v2413 = vmax.f32 %v1447, 0.0
  %v2414 = vmax.f32 %v1452, 0.0
  %v2415 = vmax.f32 %v1455, 0.0
  %v2416 = vmax.f32 %v1460, 0.0
  %v2417 = vmax.f32 %v1463, 0.0
  %v2418 = vmax.f32 %v1468, 0.0
  %v2419 = vmax.f32 %v1471, 0.0
  %v2420 = vmax.f32 %v1476, 0.0
  %v2421 = vmax.f32 %v1479, 0.0
  %v2422 = vmax.f32 %v1484, 0.0
  %v2423 = vmax.f32 %v1487, 0.0
  %v2424 = vmax.f32 %v1492, 0.0
  %v2425 = vmax.f32 %v1495, 0.0
  %v2426 = vmax.f32 %v1500, 0.0
  %v2427 = vmax.f32 %v1503, 0.0
  %v2428 = vmax.f32 %v1508, 0.0
  %v2429 = vmax.f32 %v1511, 0.0
  %v2430 = vmax.f32 %v1516, 0.0
  %v2431 = vmax.f32 %v1519, 0.0
  %v2432 = vmax.f32 %v1524, 0.0
  %v2433 = vmax.f32 %v1527, 0.0
  %v2434 = vmax.f32 %v1532, 0.0
  %v2435 = vmax.f32 %v1535, 0.0
  %v2436 = vmax.f32 %v1540, 0.0
  %v2437 = vmax.f32 %v1543, 0.0
  %v2438 = vmax.f32 %v1548, 0.0
  %v2439 = vmax.f32 %v1551, 0.0
  %v2440 = vmax.f32 %v1556, 0.0
  %v2441 = vmax.f32 %v1559, 0.0
  %v2442 = vmax.f32 %v1564, 0.0
  %v2443 = vmax.f32 %v1567, 0.0
  %v2444 = vmax.f32 %v1572, 0.0
  %v2445 = vmax.f32 %v1575, 0.0
  %v2446 = vmax.f32 %v1580, 0.0
  %v2447 = vmax.f32 %v1583, 0.0
  %v2448 = vmax.f32 %v1588, 0.0
  %v2449 = vmax.f32 %v1591, 0.0
  %v2450 = vmax.f32 %v1596, 0.0
  %v2451 = vmax.f32 %v1599, 0.0
  %v2452 = vmax.f32 %v1604, 0.0
  %v2453 = vmax.f32 %v1607, 0.0
  %v2454 = vmax.f32 %v1612, 0.0
  %v2455 = vmax.f32 %v1615, 0.0
  %v2456 = vmax.f32 %v1620, 0.0
  %v2457 = vmax.f32 %v1623, 0.0
  %v2458 = vmax.f32 %v1628, 0.0
  %v2459 = vmax.f32 %v1631, 0.0
  %v2460 = vmax.f32 %v1636, 0.0
  %v2461 = vmax.f32 %v1639, 0.0
  %v2462 = vmax.f32 %v1644, 0.0
  %v2463 = vmax.f32 %v1647, 0.0
  %v2464 = vmax.f32 %v1652, 0.0
  %v2465 = vmax.f32 %v1655, 0.0
  %v2466 = vmax.f32 %v1660, 0.0
  %v2467 = vmax.f32 %v1663, 0.0
  %v2468 = vmax.f32 %v1668, 0.0
  %v2469 = vmax.f32 %v1671, 0.0
  %v2470 = vmax.f32 %v1676, 0.0
  %v2471 = vmax.f32 %v1679, 0.0
  %v2472 = vmax.f32 %v1684, 0.0
  %v2473 = vmax.f32 %v1687, 0.0
  %v2474 = vmax.f32 %v1692, 0.0
  %v2475 = vmax.f32 %v1695, 0.0
  %v2476 = vmax.f32 %v1700, 0.0
  %v2477 = vmax.f32 %v1703, 0.0
  %v2478 = vmax.f32 %v1708, 0.0
  %v2479 = vmax.f32 %v1711, 0.0
  %v2480 = vmax.f32 %v1716, 0.0
  %v2481 = vmax.f32 %v1719, 0.0
  %v2482 = vmax.f32 %v1724, 0.0
  %v2483 = vmax.f32 %v1727, 0.0
  %v2484 = vmax.f32 %v1732, 0.0
  %v2485 = vmax.f32 %v1735, 0.0
  %v2486 = vmax.f32 %v1740, 0.0
  %v2487 = vmax.f32 %v1743, 0.0
  %v2488 = vmax.f32 %v1748, 0.0
  %v2489 = vmax.f32 %v1751, 0.0
  %v2490 = vmax.f32 %v1756, 0.0
  %v2491 = vmax.f32 %v1759, 0.0
  %v2492 = vmax.f32 %v1764, 0.0
  %v2493 = vmax.f32 %v1767, 0.0
  %v2494 = vmax.f32 %v1772, 0.0
  %v2495 = vmax.f32 %v1775, 0.0
  %v2496 = vmax.f32 %v1780, 0.0
  %v2497 = vmax.f32 %v1783, 0.0
  %v2498 = vmax.f32 %v1788, 0.0
  %v2499 = vmax.f32 %v1791, 0.0
  %v2500 = vmax.f32 %v1796, 0.0
  %v2501 = vmax.f32 %v1799, 0.0
  %v2502 = vmax.f32 %v1804, 0.0
  %v2503 = vmax.f32 %v1807, 0.0
  %v2504 = vmax.f32 %v1812, 0.0
  %v2505 = vmax.f32 %v1815, 0.0
  %v2506 = vmax.f32 %v1820, 0.0
  %v2507 = vmax.f32 %v1823, 0.0
  %v2508 = vmax.f32 %v1828, 0.0
  %v2509 = vmax.f32 %v1831, 0.0
  %v2510 = vmax.f32 %v1836, 0.0
  %v2511 = vmax.f32 %v1839, 0.0
  %v2512 = vmax.f32 %v1844, 0.0
  %v2513 = vmax.f32 %v1847, 0.0
  %v2514 = vmax.f32 %v1852, 0.0
  %v2515 = vmax.f32 %v1855, 0.0
  %v2516 = vmax.f32 %v1860, 0.0
  %v2517 = vmax.f32 %v1863, 0.0
  %v2518 = vmax.f32 %v1868, 0.0
  %v2519 = vmax.f32 %v1871, 0.0
  %v2520 = vmax.f32 %v1876, 0.0
  %v2521 = vmax.f32 %v1879, 0.0
  %v2522 = vmax.f32 %v1884, 0.0
  %v2523 = vmax.f32 %v1887, 0.0
  %v2524 = vmax.f32 %v1892, 0.0
  %v2525 = vmax.f32 %v1895, 0.0
  %v2526 = vmax.f32 %v1900, 0.0
  %v2527 = vmax.f32 %v1903, 0.0
  %v2528 = vmax.f32 %v1908, 0.0
  %v2529 = vmax.f32 %v1911, 0.0
  %v2530 = vmax.f32 %v1916, 0.0
  %v2531 = vmax.f32 %v1919, 0.0
  %v2532 = vmax.f32 %v1924, 0.0
  %v2533 = vmax.f32 %v1927, 0.0
  %v2534 = vmax.f32 %v1932, 0.0
  %v2535 = vmax.f32 %v1935, 0.0
  %v2536 = vmax.f32 %v1940, 0.0
  %v2537 = vmax.f32 %v1943, 0.0
  %v2538 = vmax.f32 %v1948, 0.0
  %v2539 = vmax.f32 %v1951, 0.0
  %v2540 = vmax.f32 %v1956, 0.0
  %v2541 = vmax.f32 %v1959, 0.0
  %v2542 = vmax.f32 %v1964, 0.0
  %v2543 = vmax.f32 %v1967, 0.0
  %v2544 = vmax.f32 %v1972, 0.0
  %v2545 = vmax.f32 %v1975, 0.0
  %v2546 = vmax.f32 %v1980, 0.0
  %v2547 = vmax.f32 %v1983, 0.0
  %v2548 = vmax.f32 %v1988, 0.0
  %v2549 = vmax.f32 %v1991, 0.0
  %v2550 = vmax.f32 %v1996, 0.0
  %v2551 = vmax.f32 %v1999, 0.0
  %v2552 = vmax.f32 %v2004, 0.0
  %v2553 = vmax.f32 %v2007, 0.0
  %v2554 = vmax.f32 %v2012, 0.0
  %v2555 = vmax.f32 %v2015, 0.0
  %v2556 = vmax.f32 %v2020, 0.0
  %v2557 = vmax.f32 %v2023, 0.0
  %v2558 = vmax.f32 %v2028, 0.0
  %v2559 = vmax.f32 %v2031, 0.0
  %v2560 = vmax.f32 %v2036, 0.0
  %v2561 = vmax.f32 %v2039, 0.0
  %v2562 = vmax.f32 %v2044, 0.0
  %v2563 = vmax.f32 %v2047, 0.0
  %v2564 = vmax.f32 %v2052, 0.0
  %v2565 = vmax.f32 %v2055, 0.0
  %v2566 = vmax.f32 %v2060, 0.0
  %v2567 = vmax.f32 %v2063, 0.0
  %v2568 = vmax.f32 %v2068, 0.0
  %v2569 = vmax.f32 %v2071, 0.0
  %v2570 = vmax.f32 %v2076, 0.0
  %v2571 = vmax.f32 %v2079, 0.0
  %v2572 = vmax.f32 %v2084, 0.0
  %v2573 = vmax.f32 %v2087, 0.0
  %v2574 = vmax.f32 %v2092, 0.0
  %v2575 = vmax.f32 %v2095, 0.0
  %v2576 = vmax.f32 %v2100, 0.0
  %v2577 = vmax.f32 %v2103, 0.0
  %v2578 = vmax.f32 %v2108, 0.0
  %v2579 = vmax.f32 %v2111, 0.0
  %v2580 = vmax.f32 %v2116, 0.0
  %v2581 = vmax.f32 %v2119, 0.0
  %v2582 = vmax.f32 %v2124, 0.0
  %v2583 = vmax.f32 %v2127, 0.0
  %v2584 = vmax.f32 %v2132, 0.0
  %v2585 = vmax.f32 %v2135, 0.0
  %v2586 = vmax.f32 %v2140, 0.0
  %v2587 = vmax.f32 %v2143, 0.0
  %v2588 = vmax.f32 %v2148, 0.0
  %v2589 = vmax.f32 %v2151, 0.0
  %v2590 = vmax.f32 %v2156, 0.0
  %v2591 = vmax.f32 %v2159, 0.0
  %v2592 = vmax.f32 %v2164, 0.0
  %v2593 = vmax.f32 %v2167, 0.0
  %v2594 = vmax.f32 %v2172, 0.0
  %v2595 = vmax.f32 %v2175, 0.0
  %v2596 = vmax.f32 %v2180, 0.0
  %v2597 = vmax.f32 %v2183, 0.0
  %v2598 = vmax.f32 %v2188, 0.0
  %v2599 = vmax.f32 %v2191, 0.0
  %v2600 = vmax.f32 %v2196, 0.0
  %v2601 = vmax.f32 %v2199, 0.0
  %v2602 = vmax.f32 %v2204, 0.0
  %v2603 = vmax.f32 %v2207, 0.0
  %v2604 = vmax.f32 %v2212, 0.0
  %v2605 = vmax.f32 %v2215, 0.0
  %v2606 = vmax.f32 %v2220, 0.0
  %v2607 = vmax.f32 %v2223, 0.0
  %v2608 = vmax.f32 %v2228, 0.0
  %v2609 = vmax.f32 %v2231, 0.0
  %v2610 = vmax.f32 %v2236, 0.0
  %v2611 = vmax.f32 %v2239, 0.0
  %v2612 = vmax.f32 %v2244, 0.0
  %v2613 = vmax.f32 %v2247, 0.0
  %v2614 = vmax.f32 %v2252, 0.0
  %v2615 = vmax.f32 %v2255, 0.0
  %v2616 = vmax.f32 %v2260, 0.0
  %v2617 = vmax.f32 %v2263, 0.0
  %v2618 = vmax.f32 %v2268, 0.0
  %v2619 = vmax.f32 %v2271, 0.0
  %v2620 = vmax.f32 %v2276, 0.0
  %v2621 = vmax.f32 %v2279, 0.0
  %v2622 = vmax.f32 %v2284, 0.0
  %v2623 = vmax.f32 %v2287, 0.0
  %v2624 = vmax.f32 %v2292, 0.0
  %v2625 = vmax.f32 %v2295, 0.0
  %v2626 = vmax.f32 %v2300, 0.0
  %v2627 = vmax.f32 %v2303, 0.0
  %v2628 = vmax.f32 %v2308, 0.0
  %v2629 = vmax.f32 %v2311, 0.0
  %v2630 = vmax.f32 %v2316, 0.0
  %v2631 = vmax.f32 %v2319, 0.0
  %v2632 = vmax.f32 %v2324, 0.0
  %v2633 = vmax.f32 %v2327, 0.0
  %v2634 = vmax.f32 %v2332, 0.0
  %v2635 = vmax.f32 %v2335, 0.0
  %v2636 = vmax.f32 %v2340, 0.0
  %v2637 = vmax.f32 %v2343, 0.0
  %v2638 = vmax.f32 %v2348, 0.0
  %v2639 = vmax.f32 %v2351, 0.0
  %v2640 = vmax.f32 %v2356, 0.0
  %v2641 = vmax.f32 %v2359, 0.0
  %v2642 = vmax.f32 %v2364, 0.0
  %v2643 = vmax.f32 %v2367, 0.0
  %v2644 = vmax.f32 %v2372, 0.0
  %v2645 = vmax.f32 %v2375, 0.0
  %v2646 = vmax.f32 %v2380, 0.0
  %v2647 = vmax.f32 %v2383, 0.0
  %v2648 = vmax.f32 %v2388, 0.0
  %v2649 = vmax.f32 %v2391, 0.0
  %v2650 = vmax.f32 %v2394, %v2398
  %v2651 = vmax.f32 %v2395, %v2399
  %v2652 = vmax.f32 %v2396, %v2400
  %v2653 = vmax.f32 %v2397, %v2401
  %v2654 = vmax.f32 %v2402, %v2406
  %v2655 = vmax.f32 %v2403, %v2407
  %v2656 = vmax.f32 %v2404, %v2408
  %v2657 = vmax.f32 %v2405, %v2409
  %v2658 = vmax.f32 %v2410, %v2414
  %v2659 = vmax.f32 %v2411, %v2415
  %v2660 = vmax.f32 %v2412, %v2416
  %v2661 = vmax.f32 %v2413, %v2417
  %v2662 = vmax.f32 %v2418, %v2422
  %v2663 = vmax.f32 %v2419, %v2423
  %v2664 = vmax.f32 %v2420, %v2424
  %v2665 = vmax.f32 %v2421, %v2425
  %v2666 = vmax.f32 %v2426, %v2430
  %v2667 = vmax.f32 %v2427, %v2431
  %v2668 = vmax.f32 %v2428, %v2432
  %v2669 = vmax.f32 %v2429, %v2433
  %v2670 = vmax.f32 %v2434, %v2438
  %v2671 = vmax.f32 %v2435, %v2439
  %v2672 = vmax.f32 %v2436, %v2440
  %v2673 = vmax.f32 %v2437, %v2441
  %v2674 = vmax.f32 %v2442, %v2446
  %v2675 = vmax.f32 %v2443, %v2447
  %v2676 = vmax.f32 %v2444, %v2448
  %v2677 = vmax.f32 %v2445, %v2449
  %v2678 = vmax.f32 %v2450, %v2454
  %v2679 = vmax.f32 %v2451, %v2455
  %v2680 = vmax.f32 %v2452, %v2456
  %v2681 = vmax.f32 %v2453, %v2457
  %v2682 = vmax.f32 %v2458, %v2462
  %v2683 = vmax.f32 %v2459, %v2463
  %v2684 = vmax.f32 %v2460, %v2464
  %v2685 = vmax.f32 %v2461, %v2465
  %v2686 = vmax.f32 %v2466, %v2470
  %v2687 = vmax.f32 %v2467, %v2471
  %v2688 = vmax.f32 %v2468, %v2472
  %v2689 = vmax.f32 %v2469, %v2473
  %v2690 = vmax.f32 %v2474, %v2478
  %v2691 = vmax.f32 %v2475, %v2479
  %v2692 = vmax.f32 %v2476, %v2480
  %v2693 = vmax.f32 %v2477, %v2481
  %v2694 = vmax.f32 %v2482, %v2486
  %v2695 = vmax.f32 %v2483, %v2487
  %v2696 = vmax.f32 %v2484, %v2488
  %v2697 = vmax.f32 %v2485, %v2489
  %v2698 = vmax.f32 %v2490, %v2494
  %v2699 = vmax.f32 %v2491, %v2495
  %v2700 = vmax.f32 %v2492, %v2496
  %v2701 = vmax.f32 %v2493, %v2497
  %v2702 = vmax.f32 %v2498, %v2502
  %v2703 = vmax.f32 %v2499, %v2503
  %v2704 = vmax.f32 %v2500, %v2504
  %v2705 = vmax.f32 %v2501, %v2505
  %v2706 = vmax.f32 %v2506, %v2510
  %v2707 = vmax.f32 %v2507, %v2511
  %v2708 = vmax.f32 %v2508, %v2512
  %v2709 = vmax.f32 %v2509, %v2513
  %v2710 = vmax.f32 %v2514, %v2518
  %v2711 = vmax.f32 %v2515, %v2519
  %v2712 = vmax.f32 %v2516, %v2520
  %v2713 = vmax.f32 %v2517, %v2521
  %v2714 = vmax.f32 %v2522, %v2526
  %v2715 = vmax.f32 %v2523, %v2527
  %v2716 = vmax.f32 %v2524, %v2528
  %v2717 = vmax.f32 %v2525, %v2529
  %v2718 = vmax.f32 %v2530, %v2534
  %v2719 = vmax.f32 %v2531, %v2535
  %v2720 = vmax.f32 %v2532, %v2536
  %v2721 = vmax.f32 %v2533, %v2537
  %v2722 = vmax.f32 %v2538, %v2542
  %v2723 = vmax.f32 %v2539, %v2543
  %v2724 = vmax.f32 %v2540, %v2544
  %v2725 = vmax.f32 %v2541, %v2545
  %v2726 = vmax.f32 %v2546, %v2550
  %v2727 = vmax.f32 %v2547, %v2551
  %v2728 = vmax.f32 %v2548, %v2552
  %v2729 = vmax.f32 %v2549, %v2553
  %v2730 = vmax.f32 %v2554, %v2558
  %v2731 = vmax.f32 %v2555, %v2559
  %v2732 = vmax.f32 %v2556, %v2560
  %v2733 = vmax.f32 %v2557, %v2561
  %v2734 = vmax.f32 %v2562, %v2566
  %v2735 = vmax.f32 %v2563, %v2567
  %v2736 = vmax.f32 %v2564, %v2568
  %v2737 = vmax.f32 %v2565, %v2569
  %v2738 = vmax.f32 %v2570, %v2574
  %v2739 = vmax.f32 %v2571, %v2575
  %v2740 = vmax.f32 %v2572, %v2576
  %v2741 = vmax.f32 %v2573, %v2577
  %v2742 = vmax.f32 %v2578, %v2582
  %v2743 = vmax.f32 %v2579, %v2583
  %v2744 = vmax.f32 %v2580, %v2584
  %v2745 = vmax.f32 %v2581, %v2585
  %v2746 = vmax.f32 %v2586, %v2590
  %v2747 = vmax.f32 %v2587, %v2591
  %v2748 = vmax.f32 %v2588, %v2592
  %v2749 = vmax.f32 %v2589, %v2593
  %v2750 = vmax.f32 %v2594, %v2598
  %v2751 = vmax.f32 %v2595, %v2599
  %v2752 = vmax.f32 %v2596, %v2600
  %v2753 = vmax.f32 %v2597, %v2601
  %v2754 = vmax.f32 %v2602, %v2606
  %v2755 = vmax.f32 %v2603, %v2607
  %v2756 = vmax.f32 %v2604, %v2608
  %v2757 = vmax.f32 %v2605, %v2609
  %v2758 = vmax.f32 %v2610, %v2614
  %v2759 = vmax.f32 %v2611, %v2615
  %v2760 = vmax.f32 %v2612, %v2616
  %v2761 = vmax.f32 %v2613, %v2617
  %v2762 = vmax.f32 %v2618, %v2622
  %v2763 = vmax.f32 %v2619, %v2623
  %v2764 = vmax.f32 %v2620, %v2624
  %v2765 = vmax.f32 %v2621, %v2625
  %v2766 = vmax.f32 %v2626, %v2630
  %v2767 = vmax.f32 %v2627, %v2631
  %v2768 = vmax.f32 %v2628, %v2632
  %v2769 = vmax.f32 %v2629, %v2633
  %v2770 = vmax.f32 %v2634, %v2638
  %v2771 = vmax.f32 %v2635, %v2639
  %v2772 = vmax.f32 %v2636, %v2640
  %v2773 = vmax.f32 %v2637, %v2641
  %v2774 = vmax.f32 %v2642, %v2646
  %v2775 = vmax.f32 %v2643, %v2647
  %v2776 = vmax.f32 %v2644, %v2648
  %v2777 = vmax.f32 %v2645, %v2649
  %vm2778 = vcmask 64512
  %2779 = vst.msk [vmem:[#allocation2] sm:$0xff] %vm2778, %v2650
  %2780 = vst.msk [vmem:[#allocation2 + $0x8] sm:$0xff] %vm2778, %v2651
  %2781 = vst.msk [vmem:[#allocation2 + $0x10] sm:$0xff] %vm2778, %v2652
  %2782 = vst.msk [vmem:[#allocation2 + $0x18] sm:$0xff] %vm2778, %v2653
  %2783 = vst.msk [vmem:[#allocation2 + $0x20] sm:$0xff] %vm2778, %v2654
  %2784 = vst.msk [vmem:[#allocation2 + $0x28] sm:$0xff] %vm2778, %v2655
  %2785 = vst.msk [vmem:[#allocation2 + $0x30] sm:$0xff] %vm2778, %v2656
  %2786 = vst.msk [vmem:[#allocation2 + $0x38] sm:$0xff] %vm2778, %v2657
  %2787 = vst.msk [vmem:[#allocation2 + $0x40] sm:$0xff] %vm2778, %v2658
  %2788 = vst.msk [vmem:[#allocation2 + $0x48] sm:$0xff] %vm2778, %v2659
  %2789 = vst.msk [vmem:[#allocation2 + $0x50] sm:$0xff] %vm2778, %v2660
  %2790 = vst.msk [vmem:[#allocation2 + $0x58] sm:$0xff] %vm2778, %v2661
  %2791 = vst.msk [vmem:[#allocation2 + $0x60] sm:$0xff] %vm2778, %v2662
  %2792 = vst.msk [vmem:[#allocation2 + $0x68] sm:$0xff] %vm2778, %v2663
  %2793 = vst.msk [vmem:[#allocation2 + $0x70] sm:$0xff] %vm2778, %v2664
  %2794 = vst.msk [vmem:[#allocation2 + $0x78] sm:$0xff] %vm2778, %v2665
  %2795 = vst.msk [vmem:[#allocation2 + $0x80] sm:$0xff] %vm2778, %v2666
  %2796 = vst.msk [vmem:[#allocation2 + $0x88] sm:$0xff] %vm2778, %v2667
  %2797 = vst.msk [vmem:[#allocation2 + $0x90] sm:$0xff] %vm2778, %v2668
  %2798 = vst.msk [vmem:[#allocation2 + $0x98] sm:$0xff] %vm2778, %v2669
  %2799 = vst.msk [vmem:[#allocation2 + $0xa0] sm:$0xff] %vm2778, %v2670
  %2800 = vst.msk [vmem:[#allocation2 + $0xa8] sm:$0xff] %vm2778, %v2671
  %2801 = vst.msk [vmem:[#allocation2 + $0xb0] sm:$0xff] %vm2778, %v2672
  %2802 = vst.msk [vmem:[#allocation2 + $0xb8] sm:$0xff] %vm2778, %v2673
  %2803 = vst.msk [vmem:[#allocation2 + $0xc0] sm:$0xff] %vm2778, %v2674
  %2804 = vst.msk [vmem:[#allocation2 + $0xc8] sm:$0xff] %vm2778, %v2675
  %2805 = vst.msk [vmem:[#allocation2 + $0xd0] sm:$0xff] %vm2778, %v2676
  %2806 = vst.msk [vmem:[#allocation2 + $0xd8] sm:$0xff] %vm2778, %v2677
  %2807 = vst.msk [vmem:[#allocation2 + $0xe0] sm:$0xff] %vm2778, %v2678
  %2808 = vst.msk [vmem:[#allocation2 + $0xe8] sm:$0xff] %vm2778, %v2679
  %2809 = vst.msk [vmem:[#allocation2 + $0xf0] sm:$0xff] %vm2778, %v2680
  %2810 = vst.msk [vmem:[#allocation2 + $0xf8] sm:$0xff] %vm2778, %v2681
  %2811 = vst.msk [vmem:[#allocation2 + $0x100] sm:$0xff] %vm2778, %v2682
  %2812 = vst.msk [vmem:[#allocation2 + $0x108] sm:$0xff] %vm2778, %v2683
  %2813 = vst.msk [vmem:[#allocation2 + $0x110] sm:$0xff] %vm2778, %v2684
  %2814 = vst.msk [vmem:[#allocation2 + $0x118] sm:$0xff] %vm2778, %v2685
  %2815 = vst.msk [vmem:[#allocation2 + $0x120] sm:$0xff] %vm2778, %v2686
  %2816 = vst.msk [vmem:[#allocation2 + $0x128] sm:$0xff] %vm2778, %v2687
  %2817 = vst.msk [vmem:[#allocation2 + $0x130] sm:$0xff] %vm2778, %v2688
  %2818 = vst.msk [vmem:[#allocation2 + $0x138] sm:$0xff] %vm2778, %v2689
  %2819 = vst.msk [vmem:[#allocation2 + $0x140] sm:$0xff] %vm2778, %v2690
  %2820 = vst.msk [vmem:[#allocation2 + $0x148] sm:$0xff] %vm2778, %v2691
  %2821 = vst.msk [vmem:[#allocation2 + $0x150] sm:$0xff] %vm2778, %v2692
  %2822 = vst.msk [vmem:[#allocation2 + $0x158] sm:$0xff] %vm2778, %v2693
  %2823 = vst.msk [vmem:[#allocation2 + $0x160] sm:$0xff] %vm2778, %v2694
  %2824 = vst.msk [vmem:[#allocation2 + $0x168] sm:$0xff] %vm2778, %v2695
  %2825 = vst.msk [vmem:[#allocation2 + $0x170] sm:$0xff] %vm2778, %v2696
  %2826 = vst.msk [vmem:[#allocation2 + $0x178] sm:$0xff] %vm2778, %v2697
  %2827 = vst.msk [vmem:[#allocation2 + $0x180] sm:$0xff] %vm2778, %v2698
  %2828 = vst.msk [vmem:[#allocation2 + $0x188] sm:$0xff] %vm2778, %v2699
  %2829 = vst.msk [vmem:[#allocation2 + $0x190] sm:$0xff] %vm2778, %v2700
  %2830 = vst.msk [vmem:[#allocation2 + $0x198] sm:$0xff] %vm2778, %v2701
  %2831 = vst.msk [vmem:[#allocation2 + $0x1a0] sm:$0xff] %vm2778, %v2702
  %2832 = vst.msk [vmem:[#allocation2 + $0x1a8] sm:$0xff] %vm2778, %v2703
  %2833 = vst.msk [vmem:[#allocation2 + $0x1b0] sm:$0xff] %vm2778, %v2704
  %2834 = vst.msk [vmem:[#allocation2 + $0x1b8] sm:$0xff] %vm2778, %v2705
  %2835 = vst.msk [vmem:[#allocation2 + $0x1c0] sm:$0xff] %vm2778, %v2706
  %2836 = vst.msk [vmem:[#allocation2 + $0x1c8] sm:$0xff] %vm2778, %v2707
  %2837 = vst.msk [vmem:[#allocation2 + $0x1d0] sm:$0xff] %vm2778, %v2708
  %2838 = vst.msk [vmem:[#allocation2 + $0x1d8] sm:$0xff] %vm2778, %v2709
  %2839 = vst.msk [vmem:[#allocation2 + $0x1e0] sm:$0xff] %vm2778, %v2710
  %2840 = vst.msk [vmem:[#allocation2 + $0x1e8] sm:$0xff] %vm2778, %v2711
  %2841 = vst.msk [vmem:[#allocation2 + $0x1f0] sm:$0xff] %vm2778, %v2712
  %2842 = vst.msk [vmem:[#allocation2 + $0x1f8] sm:$0xff] %vm2778, %v2713
  %2843 = vst.msk [vmem:[#allocation2 + $0x200] sm:$0xff] %vm2778, %v2714
  %2844 = vst.msk [vmem:[#allocation2 + $0x208] sm:$0xff] %vm2778, %v2715
  %2845 = vst.msk [vmem:[#allocation2 + $0x210] sm:$0xff] %vm2778, %v2716
  %2846 = vst.msk [vmem:[#allocation2 + $0x218] sm:$0xff] %vm2778, %v2717
  %2847 = vst.msk [vmem:[#allocation2 + $0x220] sm:$0xff] %vm2778, %v2718
  %2848 = vst.msk [vmem:[#allocation2 + $0x228] sm:$0xff] %vm2778, %v2719
  %2849 = vst.msk [vmem:[#allocation2 + $0x230] sm:$0xff] %vm2778, %v2720
  %2850 = vst.msk [vmem:[#allocation2 + $0x238] sm:$0xff] %vm2778, %v2721
  %2851 = vst.msk [vmem:[#allocation2 + $0x240] sm:$0xff] %vm2778, %v2722
  %2852 = vst.msk [vmem:[#allocation2 + $0x248] sm:$0xff] %vm2778, %v2723
  %2853 = vst.msk [vmem:[#allocation2 + $0x250] sm:$0xff] %vm2778, %v2724
  %2854 = vst.msk [vmem:[#allocation2 + $0x258] sm:$0xff] %vm2778, %v2725
  %2855 = vst.msk [vmem:[#allocation2 + $0x260] sm:$0xff] %vm2778, %v2726
  %2856 = vst.msk [vmem:[#allocation2 + $0x268] sm:$0xff] %vm2778, %v2727
  %2857 = vst.msk [vmem:[#allocation2 + $0x270] sm:$0xff] %vm2778, %v2728
  %2858 = vst.msk [vmem:[#allocation2 + $0x278] sm:$0xff] %vm2778, %v2729
  %2859 = vst.msk [vmem:[#allocation2 + $0x280] sm:$0xff] %vm2778, %v2730
  %2860 = vst.msk [vmem:[#allocation2 + $0x288] sm:$0xff] %vm2778, %v2731
  %2861 = vst.msk [vmem:[#allocation2 + $0x290] sm:$0xff] %vm2778, %v2732
  %2862 = vst.msk [vmem:[#allocation2 + $0x298] sm:$0xff] %vm2778, %v2733
  %2863 = vst.msk [vmem:[#allocation2 + $0x2a0] sm:$0xff] %vm2778, %v2734
  %2864 = vst.msk [vmem:[#allocation2 + $0x2a8] sm:$0xff] %vm2778, %v2735
  %2865 = vst.msk [vmem:[#allocation2 + $0x2b0] sm:$0xff] %vm2778, %v2736
  %2866 = vst.msk [vmem:[#allocation2 + $0x2b8] sm:$0xff] %vm2778, %v2737
  %2867 = vst.msk [vmem:[#allocation2 + $0x2c0] sm:$0xff] %vm2778, %v2738
  %2868 = vst.msk [vmem:[#allocation2 + $0x2c8] sm:$0xff] %vm2778, %v2739
  %2869 = vst.msk [vmem:[#allocation2 + $0x2d0] sm:$0xff] %vm2778, %v2740
  %2870 = vst.msk [vmem:[#allocation2 + $0x2d8] sm:$0xff] %vm2778, %v2741
  %2871 = vst.msk [vmem:[#allocation2 + $0x2e0] sm:$0xff] %vm2778, %v2742
  %2872 = vst.msk [vmem:[#allocation2 + $0x2e8] sm:$0xff] %vm2778, %v2743
  %2873 = vst.msk [vmem:[#allocation2 + $0x2f0] sm:$0xff] %vm2778, %v2744
  %2874 = vst.msk [vmem:[#allocation2 + $0x2f8] sm:$0xff] %vm2778, %v2745
  %2875 = vst.msk [vmem:[#allocation2 + $0x300] sm:$0xff] %vm2778, %v2746
  %2876 = vst.msk [vmem:[#allocation2 + $0x308] sm:$0xff] %vm2778, %v2747
  %2877 = vst.msk [vmem:[#allocation2 + $0x310] sm:$0xff] %vm2778, %v2748
  %2878 = vst.msk [vmem:[#allocation2 + $0x318] sm:$0xff] %vm2778, %v2749
  %2879 = vst.msk [vmem:[#allocation2 + $0x320] sm:$0xff] %vm2778, %v2750
  %2880 = vst.msk [vmem:[#allocation2 + $0x328] sm:$0xff] %vm2778, %v2751
  %2881 = vst.msk [vmem:[#allocation2 + $0x330] sm:$0xff] %vm2778, %v2752
  %2882 = vst.msk [vmem:[#allocation2 + $0x338] sm:$0xff] %vm2778, %v2753
  %2883 = vst.msk [vmem:[#allocation2 + $0x340] sm:$0xff] %vm2778, %v2754
  %2884 = vst.msk [vmem:[#allocation2 + $0x348] sm:$0xff] %vm2778, %v2755
  %2885 = vst.msk [vmem:[#allocation2 + $0x350] sm:$0xff] %vm2778, %v2756
  %2886 = vst.msk [vmem:[#allocation2 + $0x358] sm:$0xff] %vm2778, %v2757
  %2887 = vst.msk [vmem:[#allocation2 + $0x360] sm:$0xff] %vm2778, %v2758
  %2888 = vst.msk [vmem:[#allocation2 + $0x368] sm:$0xff] %vm2778, %v2759
  %2889 = vst.msk [vmem:[#allocation2 + $0x370] sm:$0xff] %vm2778, %v2760
  %2890 = vst.msk [vmem:[#allocation2 + $0x378] sm:$0xff] %vm2778, %v2761
  %2891 = vst.msk [vmem:[#allocation2 + $0x380] sm:$0xff] %vm2778, %v2762
  %2892 = vst.msk [vmem:[#allocation2 + $0x388] sm:$0xff] %vm2778, %v2763
  %2893 = vst.msk [vmem:[#allocation2 + $0x390] sm:$0xff] %vm2778, %v2764
  %2894 = vst.msk [vmem:[#allocation2 + $0x398] sm:$0xff] %vm2778, %v2765
  %2895 = vst.msk [vmem:[#allocation2 + $0x3a0] sm:$0xff] %vm2778, %v2766
  %2896 = vst.msk [vmem:[#allocation2 + $0x3a8] sm:$0xff] %vm2778, %v2767
  %2897 = vst.msk [vmem:[#allocation2 + $0x3b0] sm:$0xff] %vm2778, %v2768
  %2898 = vst.msk [vmem:[#allocation2 + $0x3b8] sm:$0xff] %vm2778, %v2769
  %2899 = vst.msk [vmem:[#allocation2 + $0x3c0] sm:$0xff] %vm2778, %v2770
  %2900 = vst.msk [vmem:[#allocation2 + $0x3c8] sm:$0xff] %vm2778, %v2771
  %2901 = vst.msk [vmem:[#allocation2 + $0x3d0] sm:$0xff] %vm2778, %v2772
  %2902 = vst.msk [vmem:[#allocation2 + $0x3d8] sm:$0xff] %vm2778, %v2773
  %2903 = vst.msk [vmem:[#allocation2 + $0x3e0] sm:$0xff] %vm2778, %v2774
  %2904 = vst.msk [vmem:[#allocation2 + $0x3e8] sm:$0xff] %vm2778, %v2775
  %2905 = vst.msk [vmem:[#allocation2 + $0x3f0] sm:$0xff] %vm2778, %v2776
  %2906 = vst.msk [vmem:[#allocation2 + $0x3f8] sm:$0xff] %vm2778, %v2777
  %v2907 = vld [vmem:[#allocation2] ss:$2 sm:$0xff]
  %s2908 = scalar_lea.vmem [#allocation2], 16
  %v2909 = vld [vmem:[%s2908] ss:$2 sm:$0xff]
  %s2910 = scalar_lea.vmem [#allocation2], 32
  %v2911 = vld [vmem:[%s2910] ss:$2 sm:$0xff]
  %s2912 = scalar_lea.vmem [#allocation2], 48
  %v2913 = vld [vmem:[%s2912] ss:$2 sm:$0xff]
  %s2914 = scalar_lea.vmem [#allocation2], 64
  %v2915 = vld [vmem:[%s2914] ss:$2 sm:$0xff]
  %s2916 = scalar_lea.vmem [#allocation2], 80
  %v2917 = vld [vmem:[%s2916] ss:$2 sm:$0xff]
  %s2918 = scalar_lea.vmem [#allocation2], 96
  %v2919 = vld [vmem:[%s2918] ss:$2 sm:$0xff]
  %s2920 = scalar_lea.vmem [#allocation2], 112
  %v2921 = vld [vmem:[%s2920] ss:$2 sm:$0xff]
  %s2922 = scalar_lea.vmem [#allocation2], 128
  %v2923 = vld [vmem:[%s2922] ss:$2 sm:$0xff]
  %s2924 = scalar_lea.vmem [#allocation2], 144
  %v2925 = vld [vmem:[%s2924] ss:$2 sm:$0xff]
  %s2926 = scalar_lea.vmem [#allocation2], 160
  %v2927 = vld [vmem:[%s2926] ss:$2 sm:$0xff]
  %s2928 = scalar_lea.vmem [#allocation2], 176
  %v2929 = vld [vmem:[%s2928] ss:$2 sm:$0xff]
  %s2930 = scalar_lea.vmem [#allocation2], 192
  %v2931 = vld [vmem:[%s2930] ss:$2 sm:$0xff]
  %s2932 = scalar_lea.vmem [#allocation2], 208
  %v2933 = vld [vmem:[%s2932] ss:$2 sm:$0xff]
  %s2934 = scalar_lea.vmem [#allocation2], 224
  %v2935 = vld [vmem:[%s2934] ss:$2 sm:$0xff]
  %s2936 = scalar_lea.vmem [#allocation2], 240
  %v2937 = vld [vmem:[%s2936] ss:$2 sm:$0xff]
  %s2938 = scalar_lea.vmem [#allocation2], 256
  %v2939 = vld [vmem:[%s2938] ss:$2 sm:$0xff]
  %s2940 = scalar_lea.vmem [#allocation2], 272
  %v2941 = vld [vmem:[%s2940] ss:$2 sm:$0xff]
  %s2942 = scalar_lea.vmem [#allocation2], 288
  %v2943 = vld [vmem:[%s2942] ss:$2 sm:$0xff]
  %s2944 = scalar_lea.vmem [#allocation2], 304
  %v2945 = vld [vmem:[%s2944] ss:$2 sm:$0xff]
  %s2946 = scalar_lea.vmem [#allocation2], 320
  %v2947 = vld [vmem:[%s2946] ss:$2 sm:$0xff]
  %s2948 = scalar_lea.vmem [#allocation2], 336
  %v2949 = vld [vmem:[%s2948] ss:$2 sm:$0xff]
  %s2950 = scalar_lea.vmem [#allocation2], 352
  %v2951 = vld [vmem:[%s2950] ss:$2 sm:$0xff]
  %s2952 = scalar_lea.vmem [#allocation2], 368
  %v2953 = vld [vmem:[%s2952] ss:$2 sm:$0xff]
  %s2954 = scalar_lea.vmem [#allocation2], 384
  %v2955 = vld [vmem:[%s2954] ss:$2 sm:$0xff]
  %s2956 = scalar_lea.vmem [#allocation2], 400
  %v2957 = vld [vmem:[%s2956] ss:$2 sm:$0xff]
  %s2958 = scalar_lea.vmem [#allocation2], 416
  %v2959 = vld [vmem:[%s2958] ss:$2 sm:$0xff]
  %s2960 = scalar_lea.vmem [#allocation2], 432
  %v2961 = vld [vmem:[%s2960] ss:$2 sm:$0xff]
  %s2962 = scalar_lea.vmem [#allocation2], 448
  %v2963 = vld [vmem:[%s2962] ss:$2 sm:$0xff]
  %s2964 = scalar_lea.vmem [#allocation2], 464
  %v2965 = vld [vmem:[%s2964] ss:$2 sm:$0xff]
  %s2966 = scalar_lea.vmem [#allocation2], 480
  %v2967 = vld [vmem:[%s2966] ss:$2 sm:$0xff]
  %s2968 = scalar_lea.vmem [#allocation2], 496
  %v2969 = vld [vmem:[%s2968] ss:$2 sm:$0xff]
  %s2970 = scalar_lea.vmem [#allocation2], 512
  %v2971 = vld [vmem:[%s2970] ss:$2 sm:$0xff]
  %s2972 = scalar_lea.vmem [#allocation2], 528
  %v2973 = vld [vmem:[%s2972] ss:$2 sm:$0xff]
  %s2974 = scalar_lea.vmem [#allocation2], 544
  %v2975 = vld [vmem:[%s2974] ss:$2 sm:$0xff]
  %s2976 = scalar_lea.vmem [#allocation2], 560
  %v2977 = vld [vmem:[%s2976] ss:$2 sm:$0xff]
  %s2978 = scalar_lea.vmem [#allocation2], 576
  %v2979 = vld [vmem:[%s2978] ss:$2 sm:$0xff]
  %s2980 = scalar_lea.vmem [#allocation2], 592
  %v2981 = vld [vmem:[%s2980] ss:$2 sm:$0xff]
  %s2982 = scalar_lea.vmem [#allocation2], 608
  %v2983 = vld [vmem:[%s2982] ss:$2 sm:$0xff]
  %s2984 = scalar_lea.vmem [#allocation2], 624
  %v2985 = vld [vmem:[%s2984] ss:$2 sm:$0xff]
  %s2986 = scalar_lea.vmem [#allocation2], 640
  %v2987 = vld [vmem:[%s2986] ss:$2 sm:$0xff]
  %s2988 = scalar_lea.vmem [#allocation2], 656
  %v2989 = vld [vmem:[%s2988] ss:$2 sm:$0xff]
  %s2990 = scalar_lea.vmem [#allocation2], 672
  %v2991 = vld [vmem:[%s2990] ss:$2 sm:$0xff]
  %s2992 = scalar_lea.vmem [#allocation2], 688
  %v2993 = vld [vmem:[%s2992] ss:$2 sm:$0xff]
  %s2994 = scalar_lea.vmem [#allocation2], 704
  %v2995 = vld [vmem:[%s2994] ss:$2 sm:$0xff]
  %s2996 = scalar_lea.vmem [#allocation2], 720
  %v2997 = vld [vmem:[%s2996] ss:$2 sm:$0xff]
  %s2998 = scalar_lea.vmem [#allocation2], 736
  %v2999 = vld [vmem:[%s2998] ss:$2 sm:$0xff]
  %s3000 = scalar_lea.vmem [#allocation2], 752
  %v3001 = vld [vmem:[%s3000] ss:$2 sm:$0xff]
  %s3002 = scalar_lea.vmem [#allocation2], 768
  %v3003 = vld [vmem:[%s3002] ss:$2 sm:$0xff]
  %s3004 = scalar_lea.vmem [#allocation2], 784
  %v3005 = vld [vmem:[%s3004] ss:$2 sm:$0xff]
  %s3006 = scalar_lea.vmem [#allocation2], 800
  %v3007 = vld [vmem:[%s3006] ss:$2 sm:$0xff]
  %s3008 = scalar_lea.vmem [#allocation2], 816
  %v3009 = vld [vmem:[%s3008] ss:$2 sm:$0xff]
  %s3010 = scalar_lea.vmem [#allocation2], 832
  %v3011 = vld [vmem:[%s3010] ss:$2 sm:$0xff]
  %s3012 = scalar_lea.vmem [#allocation2], 848
  %v3013 = vld [vmem:[%s3012] ss:$2 sm:$0xff]
  %s3014 = scalar_lea.vmem [#allocation2], 864
  %v3015 = vld [vmem:[%s3014] ss:$2 sm:$0xff]
  %s3016 = scalar_lea.vmem [#allocation2], 880
  %v3017 = vld [vmem:[%s3016] ss:$2 sm:$0xff]
  %s3018 = scalar_lea.vmem [#allocation2], 896
  %v3019 = vld [vmem:[%s3018] ss:$2 sm:$0xff]
  %s3020 = scalar_lea.vmem [#allocation2], 912
  %v3021 = vld [vmem:[%s3020] ss:$2 sm:$0xff]
  %s3022 = scalar_lea.vmem [#allocation2], 928
  %v3023 = vld [vmem:[%s3022] ss:$2 sm:$0xff]
  %s3024 = scalar_lea.vmem [#allocation2], 944
  %v3025 = vld [vmem:[%s3024] ss:$2 sm:$0xff]
  %s3026 = scalar_lea.vmem [#allocation2], 960
  %v3027 = vld [vmem:[%s3026] ss:$2 sm:$0xff]
  %s3028 = scalar_lea.vmem [#allocation2], 976
  %v3029 = vld [vmem:[%s3028] ss:$2 sm:$0xff]
  %s3030 = scalar_lea.vmem [#allocation2], 992
  %v3031 = vld [vmem:[%s3030] ss:$2 sm:$0xff]
  %s3032 = scalar_lea.vmem [#allocation2], 1008
  %v3033 = vld [vmem:[%s3032] ss:$2 sm:$0xff]
  %s3034 = scalar_lea.vmem [#allocation2], 1
  %v3035 = vld [vmem:[%s3034] ss:$2 sm:$0xff]
  %s3036 = scalar_lea.vmem [#allocation2], 17
  %v3037 = vld [vmem:[%s3036] ss:$2 sm:$0xff]
  %s3038 = scalar_lea.vmem [#allocation2], 33
  %v3039 = vld [vmem:[%s3038] ss:$2 sm:$0xff]
  %s3040 = scalar_lea.vmem [#allocation2], 49
  %v3041 = vld [vmem:[%s3040] ss:$2 sm:$0xff]
  %s3042 = scalar_lea.vmem [#allocation2], 65
  %v3043 = vld [vmem:[%s3042] ss:$2 sm:$0xff]
  %s3044 = scalar_lea.vmem [#allocation2], 81
  %v3045 = vld [vmem:[%s3044] ss:$2 sm:$0xff]
  %s3046 = scalar_lea.vmem [#allocation2], 97
  %v3047 = vld [vmem:[%s3046] ss:$2 sm:$0xff]
  %s3048 = scalar_lea.vmem [#allocation2], 113
  %v3049 = vld [vmem:[%s3048] ss:$2 sm:$0xff]
  %s3050 = scalar_lea.vmem [#allocation2], 129
  %v3051 = vld [vmem:[%s3050] ss:$2 sm:$0xff]
  %s3052 = scalar_lea.vmem [#allocation2], 145
  %v3053 = vld [vmem:[%s3052] ss:$2 sm:$0xff]
  %s3054 = scalar_lea.vmem [#allocation2], 161
  %v3055 = vld [vmem:[%s3054] ss:$2 sm:$0xff]
  %s3056 = scalar_lea.vmem [#allocation2], 177
  %v3057 = vld [vmem:[%s3056] ss:$2 sm:$0xff]
  %s3058 = scalar_lea.vmem [#allocation2], 193
  %v3059 = vld [vmem:[%s3058] ss:$2 sm:$0xff]
  %s3060 = scalar_lea.vmem [#allocation2], 209
  %v3061 = vld [vmem:[%s3060] ss:$2 sm:$0xff]
  %s3062 = scalar_lea.vmem [#allocation2], 225
  %v3063 = vld [vmem:[%s3062] ss:$2 sm:$0xff]
  %s3064 = scalar_lea.vmem [#allocation2], 241
  %v3065 = vld [vmem:[%s3064] ss:$2 sm:$0xff]
  %s3066 = scalar_lea.vmem [#allocation2], 257
  %v3067 = vld [vmem:[%s3066] ss:$2 sm:$0xff]
  %s3068 = scalar_lea.vmem [#allocation2], 273
  %v3069 = vld [vmem:[%s3068] ss:$2 sm:$0xff]
  %s3070 = scalar_lea.vmem [#allocation2], 289
  %v3071 = vld [vmem:[%s3070] ss:$2 sm:$0xff]
  %s3072 = scalar_lea.vmem [#allocation2], 305
  %v3073 = vld [vmem:[%s3072] ss:$2 sm:$0xff]
  %s3074 = scalar_lea.vmem [#allocation2], 321
  %v3075 = vld [vmem:[%s3074] ss:$2 sm:$0xff]
  %s3076 = scalar_lea.vmem [#allocation2], 337
  %v3077 = vld [vmem:[%s3076] ss:$2 sm:$0xff]
  %s3078 = scalar_lea.vmem [#allocation2], 353
  %v3079 = vld [vmem:[%s3078] ss:$2 sm:$0xff]
  %s3080 = scalar_lea.vmem [#allocation2], 369
  %v3081 = vld [vmem:[%s3080] ss:$2 sm:$0xff]
  %s3082 = scalar_lea.vmem [#allocation2], 385
  %v3083 = vld [vmem:[%s3082] ss:$2 sm:$0xff]
  %s3084 = scalar_lea.vmem [#allocation2], 401
  %v3085 = vld [vmem:[%s3084] ss:$2 sm:$0xff]
  %s3086 = scalar_lea.vmem [#allocation2], 417
  %v3087 = vld [vmem:[%s3086] ss:$2 sm:$0xff]
  %s3088 = scalar_lea.vmem [#allocation2], 433
  %v3089 = vld [vmem:[%s3088] ss:$2 sm:$0xff]
  %s3090 = scalar_lea.vmem [#allocation2], 449
  %v3091 = vld [vmem:[%s3090] ss:$2 sm:$0xff]
  %s3092 = scalar_lea.vmem [#allocation2], 465
  %v3093 = vld [vmem:[%s3092] ss:$2 sm:$0xff]
  %s3094 = scalar_lea.vmem [#allocation2], 481
  %v3095 = vld [vmem:[%s3094] ss:$2 sm:$0xff]
  %s3096 = scalar_lea.vmem [#allocation2], 497
  %v3097 = vld [vmem:[%s3096] ss:$2 sm:$0xff]
  %s3098 = scalar_lea.vmem [#allocation2], 513
  %v3099 = vld [vmem:[%s3098] ss:$2 sm:$0xff]
  %s3100 = scalar_lea.vmem [#allocation2], 529
  %v3101 = vld [vmem:[%s3100] ss:$2 sm:$0xff]
  %s3102 = scalar_lea.vmem [#allocation2], 545
  %v3103 = vld [vmem:[%s3102] ss:$2 sm:$0xff]
  %s3104 = scalar_lea.vmem [#allocation2], 561
  %v3105 = vld [vmem:[%s3104] ss:$2 sm:$0xff]
  %s3106 = scalar_lea.vmem [#allocation2], 577
  %v3107 = vld [vmem:[%s3106] ss:$2 sm:$0xff]
  %s3108 = scalar_lea.vmem [#allocation2], 593
  %v3109 = vld [vmem:[%s3108] ss:$2 sm:$0xff]
  %s3110 = scalar_lea.vmem [#allocation2], 609
  %v3111 = vld [vmem:[%s3110] ss:$2 sm:$0xff]
  %s3112 = scalar_lea.vmem [#allocation2], 625
  %v3113 = vld [vmem:[%s3112] ss:$2 sm:$0xff]
  %s3114 = scalar_lea.vmem [#allocation2], 641
  %v3115 = vld [vmem:[%s3114] ss:$2 sm:$0xff]
  %s3116 = scalar_lea.vmem [#allocation2], 657
  %v3117 = vld [vmem:[%s3116] ss:$2 sm:$0xff]
  %s3118 = scalar_lea.vmem [#allocation2], 673
  %v3119 = vld [vmem:[%s3118] ss:$2 sm:$0xff]
  %s3120 = scalar_lea.vmem [#allocation2], 689
  %v3121 = vld [vmem:[%s3120] ss:$2 sm:$0xff]
  %s3122 = scalar_lea.vmem [#allocation2], 705
  %v3123 = vld [vmem:[%s3122] ss:$2 sm:$0xff]
  %s3124 = scalar_lea.vmem [#allocation2], 721
  %v3125 = vld [vmem:[%s3124] ss:$2 sm:$0xff]
  %s3126 = scalar_lea.vmem [#allocation2], 737
  %v3127 = vld [vmem:[%s3126] ss:$2 sm:$0xff]
  %s3128 = scalar_lea.vmem [#allocation2], 753
  %v3129 = vld [vmem:[%s3128] ss:$2 sm:$0xff]
  %s3130 = scalar_lea.vmem [#allocation2], 769
  %v3131 = vld [vmem:[%s3130] ss:$2 sm:$0xff]
  %s3132 = scalar_lea.vmem [#allocation2], 785
  %v3133 = vld [vmem:[%s3132] ss:$2 sm:$0xff]
  %s3134 = scalar_lea.vmem [#allocation2], 801
  %v3135 = vld [vmem:[%s3134] ss:$2 sm:$0xff]
  %s3136 = scalar_lea.vmem [#allocation2], 817
  %v3137 = vld [vmem:[%s3136] ss:$2 sm:$0xff]
  %s3138 = scalar_lea.vmem [#allocation2], 833
  %v3139 = vld [vmem:[%s3138] ss:$2 sm:$0xff]
  %s3140 = scalar_lea.vmem [#allocation2], 849
  %v3141 = vld [vmem:[%s3140] ss:$2 sm:$0xff]
  %s3142 = scalar_lea.vmem [#allocation2], 865
  %v3143 = vld [vmem:[%s3142] ss:$2 sm:$0xff]
  %s3144 = scalar_lea.vmem [#allocation2], 881
  %v3145 = vld [vmem:[%s3144] ss:$2 sm:$0xff]
  %s3146 = scalar_lea.vmem [#allocation2], 897
  %v3147 = vld [vmem:[%s3146] ss:$2 sm:$0xff]
  %s3148 = scalar_lea.vmem [#allocation2], 913
  %v3149 = vld [vmem:[%s3148] ss:$2 sm:$0xff]
  %s3150 = scalar_lea.vmem [#allocation2], 929
  %v3151 = vld [vmem:[%s3150] ss:$2 sm:$0xff]
  %s3152 = scalar_lea.vmem [#allocation2], 945
  %v3153 = vld [vmem:[%s3152] ss:$2 sm:$0xff]
  %s3154 = scalar_lea.vmem [#allocation2], 961
  %v3155 = vld [vmem:[%s3154] ss:$2 sm:$0xff]
  %s3156 = scalar_lea.vmem [#allocation2], 977
  %v3157 = vld [vmem:[%s3156] ss:$2 sm:$0xff]
  %s3158 = scalar_lea.vmem [#allocation2], 993
  %v3159 = vld [vmem:[%s3158] ss:$2 sm:$0xff]
  %s3160 = scalar_lea.vmem [#allocation2], 1009
  %v3161 = vld [vmem:[%s3160] ss:$2 sm:$0xff]
  %v3162 = vmax.f32 %v2907, %v3035
  %v3163 = vmax.f32 %v2909, %v3037
  %v3164 = vmax.f32 %v2911, %v3039
  %v3165 = vmax.f32 %v2913, %v3041
  %v3166 = vmax.f32 %v2915, %v3043
  %v3167 = vmax.f32 %v2917, %v3045
  %v3168 = vmax.f32 %v2919, %v3047
  %v3169 = vmax.f32 %v2921, %v3049
  %v3170 = vmax.f32 %v2923, %v3051
  %v3171 = vmax.f32 %v2925, %v3053
  %v3172 = vmax.f32 %v2927, %v3055
  %v3173 = vmax.f32 %v2929, %v3057
  %v3174 = vmax.f32 %v2931, %v3059
  %v3175 = vmax.f32 %v2933, %v3061
  %v3176 = vmax.f32 %v2935, %v3063
  %v3177 = vmax.f32 %v2937, %v3065
  %v3178 = vmax.f32 %v2939, %v3067
  %v3179 = vmax.f32 %v2941, %v3069
  %v3180 = vmax.f32 %v2943, %v3071
  %v3181 = vmax.f32 %v2945, %v3073
  %v3182 = vmax.f32 %v2947, %v3075
  %v3183 = vmax.f32 %v2949, %v3077
  %v3184 = vmax.f32 %v2951, %v3079
  %v3185 = vmax.f32 %v2953, %v3081
  %v3186 = vmax.f32 %v2955, %v3083
  %v3187 = vmax.f32 %v2957, %v3085
  %v3188 = vmax.f32 %v2959, %v3087
  %v3189 = vmax.f32 %v2961, %v3089
  %v3190 = vmax.f32 %v2963, %v3091
  %v3191 = vmax.f32 %v2965, %v3093
  %v3192 = vmax.f32 %v2967, %v3095
  %v3193 = vmax.f32 %v2969, %v3097
  %v3194 = vmax.f32 %v2971, %v3099
  %v3195 = vmax.f32 %v2973, %v3101
  %v3196 = vmax.f32 %v2975, %v3103
  %v3197 = vmax.f32 %v2977, %v3105
  %v3198 = vmax.f32 %v2979, %v3107
  %v3199 = vmax.f32 %v2981, %v3109
  %v3200 = vmax.f32 %v2983, %v3111
  %v3201 = vmax.f32 %v2985, %v3113
  %v3202 = vmax.f32 %v2987, %v3115
  %v3203 = vmax.f32 %v2989, %v3117
  %v3204 = vmax.f32 %v2991, %v3119
  %v3205 = vmax.f32 %v2993, %v3121
  %v3206 = vmax.f32 %v2995, %v3123
  %v3207 = vmax.f32 %v2997, %v3125
  %v3208 = vmax.f32 %v2999, %v3127
  %v3209 = vmax.f32 %v3001, %v3129
  %v3210 = vmax.f32 %v3003, %v3131
  %v3211 = vmax.f32 %v3005, %v3133
  %v3212 = vmax.f32 %v3007, %v3135
  %v3213 = vmax.f32 %v3009, %v3137
  %v3214 = vmax.f32 %v3011, %v3139
  %v3215 = vmax.f32 %v3013, %v3141
  %v3216 = vmax.f32 %v3015, %v3143
  %v3217 = vmax.f32 %v3017, %v3145
  %v3218 = vmax.f32 %v3019, %v3147
  %v3219 = vmax.f32 %v3021, %v3149
  %v3220 = vmax.f32 %v3023, %v3151
  %v3221 = vmax.f32 %v3025, %v3153
  %v3222 = vmax.f32 %v3027, %v3155
  %v3223 = vmax.f32 %v3029, %v3157
  %v3224 = vmax.f32 %v3031, %v3159
  %v3225 = vmax.f32 %v3033, %v3161
  %3226 = vst.msk [vmem:[#allocation3] sm:$0xff] %vm2778, 0.0
  %3227 = vst.msk [vmem:[#allocation3 + $0x8] sm:$0xff] %vm2778, 0.0
  %vm3228 = vcmask 58368
  %3229 = vst.msk [vmem:[#allocation3 + $0x10] sm:$0x3] %vm3228, 0.0
  %3230 = vst.msk [vmem:[#allocation3 + $0x1b0] sm:$0xff] %vm2778, 0.0
  %3231 = vst.msk [vmem:[#allocation3 + $0x1b8] sm:$0xff] %vm2778, 0.0
  %3232 = vst.msk [vmem:[#allocation3 + $0x1c0] sm:$0x3] %vm3228, 0.0
  %s3233 = scalar_lea.vmem [#allocation3], 408
  %3234 = vst.msk [vmem:[%s3233] sm:$0xff] %vm2778, 0.0
  %3235 = vst.msk [vmem:[%s3233 + $0x8] sm:$0xff] %vm2778, 0.0
  %3236 = vst.msk [vmem:[%s3233 + $0x10] sm:$0x3] %vm3228, 0.0
  %3237 = vst.msk [vmem:[%s3233 + $0x1b0] sm:$0xff] %vm2778, 0.0
  %3238 = vst.msk [vmem:[%s3233 + $0x1b8] sm:$0xff] %vm2778, 0.0
  %3239 = vst.msk [vmem:[%s3233 + $0x1c0] sm:$0x3] %vm3228, 0.0
  %vm3240 = vcmask 57344
  %3241 = vst.msk [vmem:[#allocation3] sm:$0x1] %vm3240, 0.0
  %3242 = vst.msk [vmem:[#allocation3 + $0x18] sm:$0x1] %vm3240, 0.0
  %3243 = vst.msk [vmem:[#allocation3 + $0x30] sm:$0x1] %vm3240, 0.0
  %3244 = vst.msk [vmem:[#allocation3 + $0x48] sm:$0x1] %vm3240, 0.0
  %3245 = vst.msk [vmem:[#allocation3 + $0x60] sm:$0x1] %vm3240, 0.0
  %3246 = vst.msk [vmem:[#allocation3 + $0x78] sm:$0x1] %vm3240, 0.0
  %3247 = vst.msk [vmem:[#allocation3 + $0x90] sm:$0x1] %vm3240, 0.0
  %3248 = vst.msk [vmem:[#allocation3 + $0xa8] sm:$0x1] %vm3240, 0.0
  %3249 = vst.msk [vmem:[#allocation3 + $0xc0] sm:$0x1] %vm3240, 0.0
  %3250 = vst.msk [vmem:[#allocation3 + $0xd8] sm:$0x1] %vm3240, 0.0
  %3251 = vst.msk [vmem:[#allocation3 + $0xf0] sm:$0x1] %vm3240, 0.0
  %3252 = vst.msk [vmem:[#allocation3 + $0x108] sm:$0x1] %vm3240, 0.0
  %3253 = vst.msk [vmem:[#allocation3 + $0x120] sm:$0x1] %vm3240, 0.0
  %3254 = vst.msk [vmem:[#allocation3 + $0x138] sm:$0x1] %vm3240, 0.0
  %3255 = vst.msk [vmem:[#allocation3 + $0x150] sm:$0x1] %vm3240, 0.0
  %3256 = vst.msk [vmem:[#allocation3 + $0x168] sm:$0x1] %vm3240, 0.0
  %3257 = vst.msk [vmem:[#allocation3 + $0x180] sm:$0x1] %vm3240, 0.0
  %3258 = vst.msk [vmem:[#allocation3 + $0x198] sm:$0x1] %vm3240, 0.0
  %3259 = vst.msk [vmem:[#allocation3 + $0x1b0] sm:$0x1] %vm3240, 0.0
  %3260 = vst.msk [vmem:[#allocation3 + $0x1c8] sm:$0x1] %vm3240, 0.0
  %3261 = vst.msk [vmem:[#allocation3 + $0x1e0] sm:$0x1] %vm3240, 0.0
  %3262 = vst.msk [vmem:[#allocation3 + $0x1f8] sm:$0x1] %vm3240, 0.0
  %3263 = vst.msk [vmem:[#allocation3 + $0x210] sm:$0x1] %vm3240, 0.0
  %3264 = vst.msk [vmem:[#allocation3 + $0x228] sm:$0x1] %vm3240, 0.0
  %3265 = vst.msk [vmem:[#allocation3 + $0x240] sm:$0x1] %vm3240, 0.0
  %3266 = vst.msk [vmem:[#allocation3 + $0x258] sm:$0x1] %vm3240, 0.0
  %3267 = vst.msk [vmem:[#allocation3 + $0x270] sm:$0x1] %vm3240, 0.0
  %3268 = vst.msk [vmem:[#allocation3 + $0x288] sm:$0x1] %vm3240, 0.0
  %3269 = vst.msk [vmem:[#allocation3 + $0x2a0] sm:$0x1] %vm3240, 0.0
  %3270 = vst.msk [vmem:[#allocation3 + $0x2b8] sm:$0x1] %vm3240, 0.0
  %3271 = vst.msk [vmem:[#allocation3 + $0x2d0] sm:$0x1] %vm3240, 0.0
  %3272 = vst.msk [vmem:[#allocation3 + $0x2e8] sm:$0x1] %vm3240, 0.0
  %3273 = vst.msk [vmem:[#allocation3 + $0x300] sm:$0x1] %vm3240, 0.0
  %3274 = vst.msk [vmem:[#allocation3 + $0x318] sm:$0x1] %vm3240, 0.0
  %3275 = vst.msk [vmem:[#allocation3 + $0x330] sm:$0x1] %vm3240, 0.0
  %3276 = vst.msk [vmem:[#allocation3 + $0x348] sm:$0x1] %vm3240, 0.0
  %3277 = vst.msk [vmem:[#allocation3 + $0x11] sm:$0x1] %vm3240, 0.0
  %3278 = vst.msk [vmem:[#allocation3 + $0x29] sm:$0x1] %vm3240, 0.0
  %3279 = vst.msk [vmem:[#allocation3 + $0x41] sm:$0x1] %vm3240, 0.0
  %3280 = vst.msk [vmem:[#allocation3 + $0x59] sm:$0x1] %vm3240, 0.0
  %3281 = vst.msk [vmem:[#allocation3 + $0x71] sm:$0x1] %vm3240, 0.0
  %3282 = vst.msk [vmem:[#allocation3 + $0x89] sm:$0x1] %vm3240, 0.0
  %3283 = vst.msk [vmem:[#allocation3 + $0xa1] sm:$0x1] %vm3240, 0.0
  %3284 = vst.msk [vmem:[#allocation3 + $0xb9] sm:$0x1] %vm3240, 0.0
  %3285 = vst.msk [vmem:[#allocation3 + $0xd1] sm:$0x1] %vm3240, 0.0
  %3286 = vst.msk [vmem:[#allocation3 + $0xe9] sm:$0x1] %vm3240, 0.0
  %3287 = vst.msk [vmem:[#allocation3 + $0x101] sm:$0x1] %vm3240, 0.0
  %3288 = vst.msk [vmem:[#allocation3 + $0x119] sm:$0x1] %vm3240, 0.0
  %3289 = vst.msk [vmem:[#allocation3 + $0x131] sm:$0x1] %vm3240, 0.0
  %3290 = vst.msk [vmem:[#allocation3 + $0x149] sm:$0x1] %vm3240, 0.0
  %3291 = vst.msk [vmem:[#allocation3 + $0x161] sm:$0x1] %vm3240, 0.0
  %3292 = vst.msk [vmem:[#allocation3 + $0x179] sm:$0x1] %vm3240, 0.0
  %3293 = vst.msk [vmem:[#allocation3 + $0x191] sm:$0x1] %vm3240, 0.0
  %3294 = vst.msk [vmem:[#allocation3 + $0x1a9] sm:$0x1] %vm3240, 0.0
  %3295 = vst.msk [vmem:[#allocation3 + $0x1c1] sm:$0x1] %vm3240, 0.0
  %3296 = vst.msk [vmem:[#allocation3 + $0x1d9] sm:$0x1] %vm3240, 0.0
  %3297 = vst.msk [vmem:[#allocation3 + $0x1f1] sm:$0x1] %vm3240, 0.0
  %3298 = vst.msk [vmem:[#allocation3 + $0x209] sm:$0x1] %vm3240, 0.0
  %3299 = vst.msk [vmem:[#allocation3 + $0x221] sm:$0x1] %vm3240, 0.0
  %3300 = vst.msk [vmem:[#allocation3 + $0x239] sm:$0x1] %vm3240, 0.0
  %3301 = vst.msk [vmem:[#allocation3 + $0x251] sm:$0x1] %vm3240, 0.0
  %3302 = vst.msk [vmem:[#allocation3 + $0x269] sm:$0x1] %vm3240, 0.0
  %3303 = vst.msk [vmem:[#allocation3 + $0x281] sm:$0x1] %vm3240, 0.0
  %3304 = vst.msk [vmem:[#allocation3 + $0x299] sm:$0x1] %vm3240, 0.0
  %3305 = vst.msk [vmem:[#allocation3 + $0x2b1] sm:$0x1] %vm3240, 0.0
  %3306 = vst.msk [vmem:[#allocation3 + $0x2c9] sm:$0x1] %vm3240, 0.0
  %3307 = vst.msk [vmem:[#allocation3 + $0x2e1] sm:$0x1] %vm3240, 0.0
  %3308 = vst.msk [vmem:[#allocation3 + $0x2f9] sm:$0x1] %vm3240, 0.0
  %3309 = vst.msk [vmem:[#allocation3 + $0x311] sm:$0x1] %vm3240, 0.0
  %3310 = vst.msk [vmem:[#allocation3 + $0x329] sm:$0x1] %vm3240, 0.0
  %3311 = vst.msk [vmem:[#allocation3 + $0x341] sm:$0x1] %vm3240, 0.0
  %3312 = vst.msk [vmem:[#allocation3 + $0x359] sm:$0x1] %vm3240, 0.0
  %s3313 = scalar_lea.vmem [#allocation3], 24
  %3314 = vst.msk [vmem:[%s3313 + $0x1] sm:$0xff] %vm2778, %v3162
  %3315 = vst.msk [vmem:[%s3313 + $0x9] sm:$0xff] %vm2778, %v3163
  %3316 = vst.msk [vmem:[%s3313 + $0x19] sm:$0xff] %vm2778, %v3164
  %3317 = vst.msk [vmem:[%s3313 + $0x21] sm:$0xff] %vm2778, %v3165
  %3318 = vst.msk [vmem:[%s3313 + $0x31] sm:$0xff] %vm2778, %v3166
  %3319 = vst.msk [vmem:[%s3313 + $0x39] sm:$0xff] %vm2778, %v3167
  %3320 = vst.msk [vmem:[%s3313 + $0x49] sm:$0xff] %vm2778, %v3168
  %3321 = vst.msk [vmem:[%s3313 + $0x51] sm:$0xff] %vm2778, %v3169
  %3322 = vst.msk [vmem:[%s3313 + $0x61] sm:$0xff] %vm2778, %v3170
  %3323 = vst.msk [vmem:[%s3313 + $0x69] sm:$0xff] %vm2778, %v3171
  %3324 = vst.msk [vmem:[%s3313 + $0x79] sm:$0xff] %vm2778, %v3172
  %3325 = vst.msk [vmem:[%s3313 + $0x81] sm:$0xff] %vm2778, %v3173
  %3326 = vst.msk [vmem:[%s3313 + $0x91] sm:$0xff] %vm2778, %v3174
  %3327 = vst.msk [vmem:[%s3313 + $0x99] sm:$0xff] %vm2778, %v3175
  %3328 = vst.msk [vmem:[%s3313 + $0xa9] sm:$0xff] %vm2778, %v3176
  %3329 = vst.msk [vmem:[%s3313 + $0xb1] sm:$0xff] %vm2778, %v3177
  %3330 = vst.msk [vmem:[%s3313 + $0xc1] sm:$0xff] %vm2778, %v3178
  %3331 = vst.msk [vmem:[%s3313 + $0xc9] sm:$0xff] %vm2778, %v3179
  %3332 = vst.msk [vmem:[%s3313 + $0xd9] sm:$0xff] %vm2778, %v3180
  %3333 = vst.msk [vmem:[%s3313 + $0xe1] sm:$0xff] %vm2778, %v3181
  %3334 = vst.msk [vmem:[%s3313 + $0xf1] sm:$0xff] %vm2778, %v3182
  %3335 = vst.msk [vmem:[%s3313 + $0xf9] sm:$0xff] %vm2778, %v3183
  %3336 = vst.msk [vmem:[%s3313 + $0x109] sm:$0xff] %vm2778, %v3184
  %3337 = vst.msk [vmem:[%s3313 + $0x111] sm:$0xff] %vm2778, %v3185
  %3338 = vst.msk [vmem:[%s3313 + $0x121] sm:$0xff] %vm2778, %v3186
  %3339 = vst.msk [vmem:[%s3313 + $0x129] sm:$0xff] %vm2778, %v3187
  %3340 = vst.msk [vmem:[%s3313 + $0x139] sm:$0xff] %vm2778, %v3188
  %3341 = vst.msk [vmem:[%s3313 + $0x141] sm:$0xff] %vm2778, %v3189
  %3342 = vst.msk [vmem:[%s3313 + $0x151] sm:$0xff] %vm2778, %v3190
  %3343 = vst.msk [vmem:[%s3313 + $0x159] sm:$0xff] %vm2778, %v3191
  %3344 = vst.msk [vmem:[%s3313 + $0x169] sm:$0xff] %vm2778, %v3192
  %3345 = vst.msk [vmem:[%s3313 + $0x171] sm:$0xff] %vm2778, %v3193
  %3346 = vst.msk [vmem:[%s3313 + $0x1b1] sm:$0xff] %vm2778, %v3194
  %3347 = vst.msk [vmem:[%s3313 + $0x1b9] sm:$0xff] %vm2778, %v3195
  %3348 = vst.msk [vmem:[%s3313 + $0x1c9] sm:$0xff] %vm2778, %v3196
  %3349 = vst.msk [vmem:[%s3313 + $0x1d1] sm:$0xff] %vm2778, %v3197
  %3350 = vst.msk [vmem:[%s3313 + $0x1e1] sm:$0xff] %vm2778, %v3198
  %3351 = vst.msk [vmem:[%s3313 + $0x1e9] sm:$0xff] %vm2778, %v3199
  %3352 = vst.msk [vmem:[%s3313 + $0x1f9] sm:$0xff] %vm2778, %v3200
  %3353 = vst.msk [vmem:[%s3313 + $0x201] sm:$0xff] %vm2778, %v3201
  %3354 = vst.msk [vmem:[%s3313 + $0x211] sm:$0xff] %vm2778, %v3202
  %3355 = vst.msk [vmem:[%s3313 + $0x219] sm:$0xff] %vm2778, %v3203
  %3356 = vst.msk [vmem:[%s3313 + $0x229] sm:$0xff] %vm2778, %v3204
  %3357 = vst.msk [vmem:[%s3313 + $0x231] sm:$0xff] %vm2778, %v3205
  %3358 = vst.msk [vmem:[%s3313 + $0x241] sm:$0xff] %vm2778, %v3206
  %3359 = vst.msk [vmem:[%s3313 + $0x249] sm:$0xff] %vm2778, %v3207
  %3360 = vst.msk [vmem:[%s3313 + $0x259] sm:$0xff] %vm2778, %v3208
  %3361 = vst.msk [vmem:[%s3313 + $0x261] sm:$0xff] %vm2778, %v3209
  %3362 = vst.msk [vmem:[%s3313 + $0x271] sm:$0xff] %vm2778, %v3210
  %3363 = vst.msk [vmem:[%s3313 + $0x279] sm:$0xff] %vm2778, %v3211
  %3364 = vst.msk [vmem:[%s3313 + $0x289] sm:$0xff] %vm2778, %v3212
  %3365 = vst.msk [vmem:[%s3313 + $0x291] sm:$0xff] %vm2778, %v3213
  %3366 = vst.msk [vmem:[%s3313 + $0x2a1] sm:$0xff] %vm2778, %v3214
  %3367 = vst.msk [vmem:[%s3313 + $0x2a9] sm:$0xff] %vm2778, %v3215
  %3368 = vst.msk [vmem:[%s3313 + $0x2b9] sm:$0xff] %vm2778, %v3216
  %3369 = vst.msk [vmem:[%s3313 + $0x2c1] sm:$0xff] %vm2778, %v3217
  %3370 = vst.msk [vmem:[%s3313 + $0x2d1] sm:$0xff] %vm2778, %v3218
  %3371 = vst.msk [vmem:[%s3313 + $0x2d9] sm:$0xff] %vm2778, %v3219
  %3372 = vst.msk [vmem:[%s3313 + $0x2e9] sm:$0xff] %vm2778, %v3220
  %3373 = vst.msk [vmem:[%s3313 + $0x2f1] sm:$0xff] %vm2778, %v3221
  %3374 = vst.msk [vmem:[%s3313 + $0x301] sm:$0xff] %vm2778, %v3222
  %3375 = vst.msk [vmem:[%s3313 + $0x309] sm:$0xff] %vm2778, %v3223
  %3376 = vst.msk [vmem:[%s3313 + $0x319] sm:$0xff] %vm2778, %v3224
  %3377 = vst.msk [vmem:[%s3313 + $0x321] sm:$0xff] %vm2778, %v3225
  %v3378 = vld [vmem:[#allocation3] sm:$0xff]
  %v3379 = vld [vmem:[#allocation3 + $0x8] sm:$0xff]
  %v3380 = vld [vmem:[#allocation3 + $0x18] sm:$0xff]
  %v3381 = vld [vmem:[#allocation3 + $0x20] sm:$0xff]
  %v3382 = vld [vmem:[#allocation3 + $0x30] sm:$0xff]
  %v3383 = vld [vmem:[#allocation3 + $0x38] sm:$0xff]
  %v3384 = vld [vmem:[#allocation3 + $0x48] sm:$0xff]
  %v3385 = vld [vmem:[#allocation3 + $0x50] sm:$0xff]
  %v3386 = vld [vmem:[#allocation3 + $0x60] sm:$0xff]
  %v3387 = vld [vmem:[#allocation3 + $0x68] sm:$0xff]
  %v3388 = vld [vmem:[#allocation3 + $0x78] sm:$0xff]
  %v3389 = vld [vmem:[#allocation3 + $0x80] sm:$0xff]
  %v3390 = vld [vmem:[#allocation3 + $0x90] sm:$0xff]
  %v3391 = vld [vmem:[#allocation3 + $0x98] sm:$0xff]
  %v3392 = vld [vmem:[#allocation3 + $0xa8] sm:$0xff]
  %v3393 = vld [vmem:[#allocation3 + $0xb0] sm:$0xff]
  %v3394 = vld [vmem:[#allocation3 + $0xc0] sm:$0xff]
  %v3395 = vld [vmem:[#allocation3 + $0xc8] sm:$0xff]
  %v3396 = vld [vmem:[#allocation3 + $0xd8] sm:$0xff]
  %v3397 = vld [vmem:[#allocation3 + $0xe0] sm:$0xff]
  %v3398 = vld [vmem:[#allocation3 + $0xf0] sm:$0xff]
  %v3399 = vld [vmem:[#allocation3 + $0xf8] sm:$0xff]
  %v3400 = vld [vmem:[#allocation3 + $0x108] sm:$0xff]
  %v3401 = vld [vmem:[#allocation3 + $0x110] sm:$0xff]
  %v3402 = vld [vmem:[#allocation3 + $0x120] sm:$0xff]
  %v3403 = vld [vmem:[#allocation3 + $0x128] sm:$0xff]
  %v3404 = vld [vmem:[#allocation3 + $0x138] sm:$0xff]
  %v3405 = vld [vmem:[#allocation3 + $0x140] sm:$0xff]
  %v3406 = vld [vmem:[#allocation3 + $0x150] sm:$0xff]
  %v3407 = vld [vmem:[#allocation3 + $0x158] sm:$0xff]
  %v3408 = vld [vmem:[#allocation3 + $0x168] sm:$0xff]
  %v3409 = vld [vmem:[#allocation3 + $0x170] sm:$0xff]
  %v3410 = vld [vmem:[#allocation3 + $0x1b0] sm:$0xff]
  %v3411 = vld [vmem:[#allocation3 + $0x1b8] sm:$0xff]
  %v3412 = vld [vmem:[#allocation3 + $0x1c8] sm:$0xff]
  %v3413 = vld [vmem:[#allocation3 + $0x1d0] sm:$0xff]
  %v3414 = vld [vmem:[#allocation3 + $0x1e0] sm:$0xff]
  %v3415 = vld [vmem:[#allocation3 + $0x1e8] sm:$0xff]
  %v3416 = vld [vmem:[#allocation3 + $0x1f8] sm:$0xff]
  %v3417 = vld [vmem:[#allocation3 + $0x200] sm:$0xff]
  %v3418 = vld [vmem:[#allocation3 + $0x210] sm:$0xff]
  %v3419 = vld [vmem:[#allocation3 + $0x218] sm:$0xff]
  %v3420 = vld [vmem:[#allocation3 + $0x228] sm:$0xff]
  %v3421 = vld [vmem:[#allocation3 + $0x230] sm:$0xff]
  %v3422 = vld [vmem:[#allocation3 + $0x240] sm:$0xff]
  %v3423 = vld [vmem:[#allocation3 + $0x248] sm:$0xff]
  %v3424 = vld [vmem:[#allocation3 + $0x258] sm:$0xff]
  %v3425 = vld [vmem:[#allocation3 + $0x260] sm:$0xff]
  %v3426 = vld [vmem:[#allocation3 + $0x270] sm:$0xff]
  %v3427 = vld [vmem:[#allocation3 + $0x278] sm:$0xff]
  %v3428 = vld [vmem:[#allocation3 + $0x288] sm:$0xff]
  %v3429 = vld [vmem:[#allocation3 + $0x290] sm:$0xff]
  %v3430 = vld [vmem:[#allocation3 + $0x2a0] sm:$0xff]
  %v3431 = vld [vmem:[#allocation3 + $0x2a8] sm:$0xff]
  %v3432 = vld [vmem:[#allocation3 + $0x2b8] sm:$0xff]
  %v3433 = vld [vmem:[#allocation3 + $0x2c0] sm:$0xff]
  %v3434 = vld [vmem:[#allocation3 + $0x2d0] sm:$0xff]
  %v3435 = vld [vmem:[#allocation3 + $0x2d8] sm:$0xff]
  %v3436 = vld [vmem:[#allocation3 + $0x2e8] sm:$0xff]
  %v3437 = vld [vmem:[#allocation3 + $0x2f0] sm:$0xff]
  %v3438 = vld [vmem:[#allocation3 + $0x300] sm:$0xff]
  %v3439 = vld [vmem:[#allocation3 + $0x308] sm:$0xff]
  %v3440 = vld [vmem:[#allocation3 + $0x318] sm:$0xff]
  %v3441 = vld [vmem:[#allocation3 + $0x320] sm:$0xff]
  %v3442 = vpack.c.bf16 %v3379, %v3378
  %v3443 = vpack.c.bf16 %v3381, %v3380
  %v3444 = vpack.c.bf16 %v3383, %v3382
  %v3445 = vpack.c.bf16 %v3385, %v3384
  %v3446 = vpack.c.bf16 %v3387, %v3386
  %v3447 = vpack.c.bf16 %v3389, %v3388
  %v3448 = vpack.c.bf16 %v3391, %v3390
  %v3449 = vpack.c.bf16 %v3393, %v3392
  %v3450 = vpack.c.bf16 %v3395, %v3394
  %v3451 = vpack.c.bf16 %v3397, %v3396
  %v3452 = vpack.c.bf16 %v3399, %v3398
  %v3453 = vpack.c.bf16 %v3401, %v3400
  %v3454 = vpack.c.bf16 %v3403, %v3402
  %v3455 = vpack.c.bf16 %v3405, %v3404
  %v3456 = vpack.c.bf16 %v3407, %v3406
  %v3457 = vpack.c.bf16 %v3409, %v3408
  %v3458 = vpack.c.bf16 %v3411, %v3410
  %v3459 = vpack.c.bf16 %v3413, %v3412
  %v3460 = vpack.c.bf16 %v3415, %v3414
  %v3461 = vpack.c.bf16 %v3417, %v3416
  %v3462 = vpack.c.bf16 %v3419, %v3418
  %v3463 = vpack.c.bf16 %v3421, %v3420
  %v3464 = vpack.c.bf16 %v3423, %v3422
  %v3465 = vpack.c.bf16 %v3425, %v3424
  %v3466 = vpack.c.bf16 %v3427, %v3426
  %v3467 = vpack.c.bf16 %v3429, %v3428
  %v3468 = vpack.c.bf16 %v3431, %v3430
  %v3469 = vpack.c.bf16 %v3433, %v3432
  %v3470 = vpack.c.bf16 %v3435, %v3434
  %v3471 = vpack.c.bf16 %v3437, %v3436
  %v3472 = vpack.c.bf16 %v3439, %v3438
  %v3473 = vpack.c.bf16 %v3441, %v3440
  %3474 = vst.msk [vmem:[#allocation4] sm:$0xff] %vm2778, %v3442
  %3475 = vst.msk [vmem:[#allocation4 + $0x8] sm:$0xff] %vm2778, %v3443
  %3476 = vst.msk [vmem:[#allocation4 + $0x10] sm:$0xff] %vm2778, %v3444
  %3477 = vst.msk [vmem:[#allocation4 + $0x18] sm:$0xff] %vm2778, %v3445
  %3478 = vst.msk [vmem:[#allocation4 + $0x20] sm:$0xff] %vm2778, %v3446
  %3479 = vst.msk [vmem:[#allocation4 + $0x28] sm:$0xff] %vm2778, %v3447
  %3480 = vst.msk [vmem:[#allocation4 + $0x30] sm:$0xff] %vm2778, %v3448
  %3481 = vst.msk [vmem:[#allocation4 + $0x38] sm:$0xff] %vm2778, %v3449
  %3482 = vst.msk [vmem:[#allocation4 + $0x40] sm:$0xff] %vm2778, %v3450
  %3483 = vst.msk [vmem:[#allocation4 + $0x48] sm:$0xff] %vm2778, %v3451
  %3484 = vst.msk [vmem:[#allocation4 + $0x50] sm:$0xff] %vm2778, %v3452
  %3485 = vst.msk [vmem:[#allocation4 + $0x58] sm:$0xff] %vm2778, %v3453
  %3486 = vst.msk [vmem:[#allocation4 + $0x60] sm:$0xff] %vm2778, %v3454
  %3487 = vst.msk [vmem:[#allocation4 + $0x68] sm:$0xff] %vm2778, %v3455
  %3488 = vst.msk [vmem:[#allocation4 + $0x70] sm:$0xff] %vm2778, %v3456
  %3489 = vst.msk [vmem:[#allocation4 + $0x78] sm:$0xff] %vm2778, %v3457
  %3490 = vst.msk [vmem:[#allocation4 + $0x80] sm:$0xff] %vm2778, %v3458
  %3491 = vst.msk [vmem:[#allocation4 + $0x88] sm:$0xff] %vm2778, %v3459
  %3492 = vst.msk [vmem:[#allocation4 + $0x90] sm:$0xff] %vm2778, %v3460
  %3493 = vst.msk [vmem:[#allocation4 + $0x98] sm:$0xff] %vm2778, %v3461
  %3494 = vst.msk [vmem:[#allocation4 + $0xa0] sm:$0xff] %vm2778, %v3462
  %3495 = vst.msk [vmem:[#allocation4 + $0xa8] sm:$0xff] %vm2778, %v3463
  %3496 = vst.msk [vmem:[#allocation4 + $0xb0] sm:$0xff] %vm2778, %v3464
  %3497 = vst.msk [vmem:[#allocation4 + $0xb8] sm:$0xff] %vm2778, %v3465
  %3498 = vst.msk [vmem:[#allocation4 + $0xc0] sm:$0xff] %vm2778, %v3466
  %3499 = vst.msk [vmem:[#allocation4 + $0xc8] sm:$0xff] %vm2778, %v3467
  %3500 = vst.msk [vmem:[#allocation4 + $0xd0] sm:$0xff] %vm2778, %v3468
  %3501 = vst.msk [vmem:[#allocation4 + $0xd8] sm:$0xff] %vm2778, %v3469
  %3502 = vst.msk [vmem:[#allocation4 + $0xe0] sm:$0xff] %vm2778, %v3470
  %3503 = vst.msk [vmem:[#allocation4 + $0xe8] sm:$0xff] %vm2778, %v3471
  %3504 = vst.msk [vmem:[#allocation4 + $0xf0] sm:$0xff] %vm2778, %v3472
  %3505 = vst.msk [vmem:[#allocation4 + $0xf8] sm:$0xff] %vm2778, %v3473
  %v3506 = vld [vmem:[#allocation3 + $0x1] sm:$0xff]
  %v3507 = vld [vmem:[#allocation3 + $0x9] sm:$0xff]
  %v3508 = vld [vmem:[#allocation3 + $0x19] sm:$0xff]
  %v3509 = vld [vmem:[#allocation3 + $0x21] sm:$0xff]
  %v3510 = vld [vmem:[#allocation3 + $0x31] sm:$0xff]
  %v3511 = vld [vmem:[#allocation3 + $0x39] sm:$0xff]
  %v3512 = vld [vmem:[#allocation3 + $0x49] sm:$0xff]
  %v3513 = vld [vmem:[#allocation3 + $0x51] sm:$0xff]
  %v3514 = vld [vmem:[#allocation3 + $0x61] sm:$0xff]
  %v3515 = vld [vmem:[#allocation3 + $0x69] sm:$0xff]
  %v3516 = vld [vmem:[#allocation3 + $0x79] sm:$0xff]
  %v3517 = vld [vmem:[#allocation3 + $0x81] sm:$0xff]
  %v3518 = vld [vmem:[#allocation3 + $0x91] sm:$0xff]
  %v3519 = vld [vmem:[#allocation3 + $0x99] sm:$0xff]
  %v3520 = vld [vmem:[#allocation3 + $0xa9] sm:$0xff]
  %v3521 = vld [vmem:[#allocation3 + $0xb1] sm:$0xff]
  %v3522 = vld [vmem:[#allocation3 + $0xc1] sm:$0xff]
  %v3523 = vld [vmem:[#allocation3 + $0xc9] sm:$0xff]
  %v3524 = vld [vmem:[#allocation3 + $0xd9] sm:$0xff]
  %v3525 = vld [vmem:[#allocation3 + $0xe1] sm:$0xff]
  %v3526 = vld [vmem:[#allocation3 + $0xf1] sm:$0xff]
  %v3527 = vld [vmem:[#allocation3 + $0xf9] sm:$0xff]
  %v3528 = vld [vmem:[#allocation3 + $0x109] sm:$0xff]
  %v3529 = vld [vmem:[#allocation3 + $0x111] sm:$0xff]
  %v3530 = vld [vmem:[#allocation3 + $0x121] sm:$0xff]
  %v3531 = vld [vmem:[#allocation3 + $0x129] sm:$0xff]
  %v3532 = vld [vmem:[#allocation3 + $0x139] sm:$0xff]
  %v3533 = vld [vmem:[#allocation3 + $0x141] sm:$0xff]
  %v3534 = vld [vmem:[#allocation3 + $0x151] sm:$0xff]
  %v3535 = vld [vmem:[#allocation3 + $0x159] sm:$0xff]
  %v3536 = vld [vmem:[#allocation3 + $0x169] sm:$0xff]
  %v3537 = vld [vmem:[#allocation3 + $0x171] sm:$0xff]
  %v3538 = vld [vmem:[#allocation3 + $0x1b1] sm:$0xff]
  %v3539 = vld [vmem:[#allocation3 + $0x1b9] sm:$0xff]
  %v3540 = vld [vmem:[#allocation3 + $0x1c9] sm:$0xff]
  %v3541 = vld [vmem:[#allocation3 + $0x1d1] sm:$0xff]
  %v3542 = vld [vmem:[#allocation3 + $0x1e1] sm:$0xff]
  %v3543 = vld [vmem:[#allocation3 + $0x1e9] sm:$0xff]
  %v3544 = vld [vmem:[#allocation3 + $0x1f9] sm:$0xff]
  %v3545 = vld [vmem:[#allocation3 + $0x201] sm:$0xff]
  %v3546 = vld [vmem:[#allocation3 + $0x211] sm:$0xff]
  %v3547 = vld [vmem:[#allocation3 + $0x219] sm:$0xff]
  %v3548 = vld [vmem:[#allocation3 + $0x229] sm:$0xff]
  %v3549 = vld [vmem:[#allocation3 + $0x231] sm:$0xff]
  %v3550 = vld [vmem:[#allocation3 + $0x241] sm:$0xff]
  %v3551 = vld [vmem:[#allocation3 + $0x249] sm:$0xff]
  %v3552 = vld [vmem:[#allocation3 + $0x259] sm:$0xff]
  %v3553 = vld [vmem:[#allocation3 + $0x261] sm:$0xff]
  %v3554 = vld [vmem:[#allocation3 + $0x271] sm:$0xff]
  %v3555 = vld [vmem:[#allocation3 + $0x279] sm:$0xff]
  %v3556 = vld [vmem:[#allocation3 + $0x289] sm:$0xff]
  %v3557 = vld [vmem:[#allocation3 + $0x291] sm:$0xff]
  %v3558 = vld [vmem:[#allocation3 + $0x2a1] sm:$0xff]
  %v3559 = vld [vmem:[#allocation3 + $0x2a9] sm:$0xff]
  %v3560 = vld [vmem:[#allocation3 + $0x2b9] sm:$0xff]
  %v3561 = vld [vmem:[#allocation3 + $0x2c1] sm:$0xff]
  %v3562 = vld [vmem:[#allocation3 + $0x2d1] sm:$0xff]
  %v3563 = vld [vmem:[#allocation3 + $0x2d9] sm:$0xff]
  %v3564 = vld [vmem:[#allocation3 + $0x2e9] sm:$0xff]
  %v3565 = vld [vmem:[#allocation3 + $0x2f1] sm:$0xff]
  %v3566 = vld [vmem:[#allocation3 + $0x301] sm:$0xff]
  %v3567 = vld [vmem:[#allocation3 + $0x309] sm:$0xff]
  %v3568 = vld [vmem:[#allocation3 + $0x319] sm:$0xff]
  %v3569 = vld [vmem:[#allocation3 + $0x321] sm:$0xff]
  %v3570 = vpack.c.bf16 %v3507, %v3506
  %v3571 = vpack.c.bf16 %v3509, %v3508
  %v3572 = vpack.c.bf16 %v3511, %v3510
  %v3573 = vpack.c.bf16 %v3513, %v3512
  %v3574 = vpack.c.bf16 %v3515, %v3514
  %v3575 = vpack.c.bf16 %v3517, %v3516
  %v3576 = vpack.c.bf16 %v3519, %v3518
  %v3577 = vpack.c.bf16 %v3521, %v3520
  %v3578 = vpack.c.bf16 %v3523, %v3522
  %v3579 = vpack.c.bf16 %v3525, %v3524
  %v3580 = vpack.c.bf16 %v3527, %v3526
  %v3581 = vpack.c.bf16 %v3529, %v3528
  %v3582 = vpack.c.bf16 %v3531, %v3530
  %v3583 = vpack.c.bf16 %v3533, %v3532
  %v3584 = vpack.c.bf16 %v3535, %v3534
  %v3585 = vpack.c.bf16 %v3537, %v3536
  %v3586 = vpack.c.bf16 %v3539, %v3538
  %v3587 = vpack.c.bf16 %v3541, %v3540
  %v3588 = vpack.c.bf16 %v3543, %v3542
  %v3589 = vpack.c.bf16 %v3545, %v3544
  %v3590 = vpack.c.bf16 %v3547, %v3546
  %v3591 = vpack.c.bf16 %v3549, %v3548
  %v3592 = vpack.c.bf16 %v3551, %v3550
  %v3593 = vpack.c.bf16 %v3553, %v3552
  %v3594 = vpack.c.bf16 %v3555, %v3554
  %v3595 = vpack.c.bf16 %v3557, %v3556
  %v3596 = vpack.c.bf16 %v3559, %v3558
  %v3597 = vpack.c.bf16 %v3561, %v3560
  %v3598 = vpack.c.bf16 %v3563, %v3562
  %v3599 = vpack.c.bf16 %v3565, %v3564
  %v3600 = vpack.c.bf16 %v3567, %v3566
  %v3601 = vpack.c.bf16 %v3569, %v3568
  %3634 = vrot.lane.b32.xlu0 %v3570, 8
  %v3635 = vpop.permute.xlu0 %3634
  %3636 = vrot.lane.b32.xlu0 %v3571, 8
  %v3637 = vpop.permute.xlu0 %3636
  %3638 = vrot.lane.b32.xlu0 %v3572, 8
  %v3639 = vpop.permute.xlu0 %3638
  %3640 = vrot.lane.b32.xlu0 %v3573, 8
  %v3641 = vpop.permute.xlu0 %3640
  %3642 = vrot.lane.b32.xlu0 %v3574, 8
  %v3643 = vpop.permute.xlu0 %3642
  %3644 = vrot.lane.b32.xlu0 %v3575, 8
  %v3645 = vpop.permute.xlu0 %3644
  %3646 = vrot.lane.b32.xlu0 %v3576, 8
  %v3647 = vpop.permute.xlu0 %3646
  %3648 = vrot.lane.b32.xlu0 %v3577, 8
  %v3649 = vpop.permute.xlu0 %3648
  %3650 = vrot.lane.b32.xlu0 %v3578, 8
  %v3651 = vpop.permute.xlu0 %3650
  %3652 = vrot.lane.b32.xlu0 %v3579, 8
  %v3653 = vpop.permute.xlu0 %3652
  %3654 = vrot.lane.b32.xlu0 %v3580, 8
  %v3655 = vpop.permute.xlu0 %3654
  %3656 = vrot.lane.b32.xlu0 %v3581, 8
  %v3657 = vpop.permute.xlu0 %3656
  %3658 = vrot.lane.b32.xlu0 %v3582, 8
  %v3659 = vpop.permute.xlu0 %3658
  %3660 = vrot.lane.b32.xlu0 %v3583, 8
  %v3661 = vpop.permute.xlu0 %3660
  %3662 = vrot.lane.b32.xlu0 %v3584, 8
  %v3663 = vpop.permute.xlu0 %3662
  %3664 = vrot.lane.b32.xlu0 %v3585, 8
  %v3665 = vpop.permute.xlu0 %3664
  %3666 = vrot.lane.b32.xlu0 %v3586, 8
  %v3667 = vpop.permute.xlu0 %3666
  %3668 = vrot.lane.b32.xlu0 %v3587, 8
  %v3669 = vpop.permute.xlu0 %3668
  %3670 = vrot.lane.b32.xlu0 %v3588, 8
  %v3671 = vpop.permute.xlu0 %3670
  %3672 = vrot.lane.b32.xlu0 %v3589, 8
  %v3673 = vpop.permute.xlu0 %3672
  %3674 = vrot.lane.b32.xlu0 %v3590, 8
  %v3675 = vpop.permute.xlu0 %3674
  %3676 = vrot.lane.b32.xlu0 %v3591, 8
  %v3677 = vpop.permute.xlu0 %3676
  %3678 = vrot.lane.b32.xlu0 %v3592, 8
  %v3679 = vpop.permute.xlu0 %3678
  %3680 = vrot.lane.b32.xlu0 %v3593, 8
  %v3681 = vpop.permute.xlu0 %3680
  %3682 = vrot.lane.b32.xlu0 %v3594, 8
  %v3683 = vpop.permute.xlu0 %3682
  %3684 = vrot.lane.b32.xlu0 %v3595, 8
  %v3685 = vpop.permute.xlu0 %3684
  %3686 = vrot.lane.b32.xlu0 %v3596, 8
  %v3687 = vpop.permute.xlu0 %3686
  %3688 = vrot.lane.b32.xlu0 %v3597, 8
  %v3689 = vpop.permute.xlu0 %3688
  %3690 = vrot.lane.b32.xlu0 %v3598, 8
  %v3691 = vpop.permute.xlu0 %3690
  %3692 = vrot.lane.b32.xlu0 %v3599, 8
  %v3693 = vpop.permute.xlu0 %3692
  %3694 = vrot.lane.b32.xlu0 %v3600, 8
  %v3695 = vpop.permute.xlu0 %3694
  %3696 = vrot.lane.b32.xlu0 %v3601, 8
  %v3697 = vpop.permute.xlu0 %3696
  %vm3730 = vcmask 130112
  %3731 = vst.msk [vmem:[#allocation4] sm:$0xff] %vm3730, %v3635
  %3732 = vst.msk [vmem:[#allocation4 + $0x8] sm:$0xff] %vm3730, %v3637
  %3733 = vst.msk [vmem:[#allocation4 + $0x10] sm:$0xff] %vm3730, %v3639
  %3734 = vst.msk [vmem:[#allocation4 + $0x18] sm:$0xff] %vm3730, %v3641
  %3735 = vst.msk [vmem:[#allocation4 + $0x20] sm:$0xff] %vm3730, %v3643
  %3736 = vst.msk [vmem:[#allocation4 + $0x28] sm:$0xff] %vm3730, %v3645
  %3737 = vst.msk [vmem:[#allocation4 + $0x30] sm:$0xff] %vm3730, %v3647
  %3738 = vst.msk [vmem:[#allocation4 + $0x38] sm:$0xff] %vm3730, %v3649
  %3739 = vst.msk [vmem:[#allocation4 + $0x40] sm:$0xff] %vm3730, %v3651
  %3740 = vst.msk [vmem:[#allocation4 + $0x48] sm:$0xff] %vm3730, %v3653
  %3741 = vst.msk [vmem:[#allocation4 + $0x50] sm:$0xff] %vm3730, %v3655
  %3742 = vst.msk [vmem:[#allocation4 + $0x58] sm:$0xff] %vm3730, %v3657
  %3743 = vst.msk [vmem:[#allocation4 + $0x60] sm:$0xff] %vm3730, %v3659
  %3744 = vst.msk [vmem:[#allocation4 + $0x68] sm:$0xff] %vm3730, %v3661
  %3745 = vst.msk [vmem:[#allocation4 + $0x70] sm:$0xff] %vm3730, %v3663
  %3746 = vst.msk [vmem:[#allocation4 + $0x78] sm:$0xff] %vm3730, %v3665
  %3747 = vst.msk [vmem:[#allocation4 + $0x80] sm:$0xff] %vm3730, %v3667
  %3748 = vst.msk [vmem:[#allocation4 + $0x88] sm:$0xff] %vm3730, %v3669
  %3749 = vst.msk [vmem:[#allocation4 + $0x90] sm:$0xff] %vm3730, %v3671
  %3750 = vst.msk [vmem:[#allocation4 + $0x98] sm:$0xff] %vm3730, %v3673
  %3751 = vst.msk [vmem:[#allocation4 + $0xa0] sm:$0xff] %vm3730, %v3675
  %3752 = vst.msk [vmem:[#allocation4 + $0xa8] sm:$0xff] %vm3730, %v3677
  %3753 = vst.msk [vmem:[#allocation4 + $0xb0] sm:$0xff] %vm3730, %v3679
  %3754 = vst.msk [vmem:[#allocation4 + $0xb8] sm:$0xff] %vm3730, %v3681
  %3755 = vst.msk [vmem:[#allocation4 + $0xc0] sm:$0xff] %vm3730, %v3683
  %3756 = vst.msk [vmem:[#allocation4 + $0xc8] sm:$0xff] %vm3730, %v3685
  %3757 = vst.msk [vmem:[#allocation4 + $0xd0] sm:$0xff] %vm3730, %v3687
  %3758 = vst.msk [vmem:[#allocation4 + $0xd8] sm:$0xff] %vm3730, %v3689
  %3759 = vst.msk [vmem:[#allocation4 + $0xe0] sm:$0xff] %vm3730, %v3691
  %3760 = vst.msk [vmem:[#allocation4 + $0xe8] sm:$0xff] %vm3730, %v3693
  %3761 = vst.msk [vmem:[#allocation4 + $0xf0] sm:$0xff] %vm3730, %v3695
  %3762 = vst.msk [vmem:[#allocation4 + $0xf8] sm:$0xff] %vm3730, %v3697
  %v3763 = vld [vmem:[#allocation3 + $0x2] sm:$0xff]
  %v3764 = vld [vmem:[#allocation3 + $0xa] sm:$0xff]
  %v3765 = vld [vmem:[#allocation3 + $0x1a] sm:$0xff]
  %v3766 = vld [vmem:[#allocation3 + $0x22] sm:$0xff]
  %v3767 = vld [vmem:[#allocation3 + $0x32] sm:$0xff]
  %v3768 = vld [vmem:[#allocation3 + $0x3a] sm:$0xff]
  %v3769 = vld [vmem:[#allocation3 + $0x4a] sm:$0xff]
  %v3770 = vld [vmem:[#allocation3 + $0x52] sm:$0xff]
  %v3771 = vld [vmem:[#allocation3 + $0x62] sm:$0xff]
  %v3772 = vld [vmem:[#allocation3 + $0x6a] sm:$0xff]
  %v3773 = vld [vmem:[#allocation3 + $0x7a] sm:$0xff]
  %v3774 = vld [vmem:[#allocation3 + $0x82] sm:$0xff]
  %v3775 = vld [vmem:[#allocation3 + $0x92] sm:$0xff]
  %v3776 = vld [vmem:[#allocation3 + $0x9a] sm:$0xff]
  %v3777 = vld [vmem:[#allocation3 + $0xaa] sm:$0xff]
  %v3778 = vld [vmem:[#allocation3 + $0xb2] sm:$0xff]
  %v3779 = vld [vmem:[#allocation3 + $0xc2] sm:$0xff]
  %v3780 = vld [vmem:[#allocation3 + $0xca] sm:$0xff]
  %v3781 = vld [vmem:[#allocation3 + $0xda] sm:$0xff]
  %v3782 = vld [vmem:[#allocation3 + $0xe2] sm:$0xff]
  %v3783 = vld [vmem:[#allocation3 + $0xf2] sm:$0xff]
  %v3784 = vld [vmem:[#allocation3 + $0xfa] sm:$0xff]
  %v3785 = vld [vmem:[#allocation3 + $0x10a] sm:$0xff]
  %v3786 = vld [vmem:[#allocation3 + $0x112] sm:$0xff]
  %v3787 = vld [vmem:[#allocation3 + $0x122] sm:$0xff]
  %v3788 = vld [vmem:[#allocation3 + $0x12a] sm:$0xff]
  %v3789 = vld [vmem:[#allocation3 + $0x13a] sm:$0xff]
  %v3790 = vld [vmem:[#allocation3 + $0x142] sm:$0xff]
  %v3791 = vld [vmem:[#allocation3 + $0x152] sm:$0xff]
  %v3792 = vld [vmem:[#allocation3 + $0x15a] sm:$0xff]
  %v3793 = vld [vmem:[#allocation3 + $0x16a] sm:$0xff]
  %v3794 = vld [vmem:[#allocation3 + $0x172] sm:$0xff]
  %v3795 = vld [vmem:[#allocation3 + $0x1b2] sm:$0xff]
  %v3796 = vld [vmem:[#allocation3 + $0x1ba] sm:$0xff]
  %v3797 = vld [vmem:[#allocation3 + $0x1ca] sm:$0xff]
  %v3798 = vld [vmem:[#allocation3 + $0x1d2] sm:$0xff]
  %v3799 = vld [vmem:[#allocation3 + $0x1e2] sm:$0xff]
  %v3800 = vld [vmem:[#allocation3 + $0x1ea] sm:$0xff]
  %v3801 = vld [vmem:[#allocation3 + $0x1fa] sm:$0xff]
  %v3802 = vld [vmem:[#allocation3 + $0x202] sm:$0xff]
  %v3803 = vld [vmem:[#allocation3 + $0x212] sm:$0xff]
  %v3804 = vld [vmem:[#allocation3 + $0x21a] sm:$0xff]
  %v3805 = vld [vmem:[#allocation3 + $0x22a] sm:$0xff]
  %v3806 = vld [vmem:[#allocation3 + $0x232] sm:$0xff]
  %v3807 = vld [vmem:[#allocation3 + $0x242] sm:$0xff]
  %v3808 = vld [vmem:[#allocation3 + $0x24a] sm:$0xff]
  %v3809 = vld [vmem:[#allocation3 + $0x25a] sm:$0xff]
  %v3810 = vld [vmem:[#allocation3 + $0x262] sm:$0xff]
  %v3811 = vld [vmem:[#allocation3 + $0x272] sm:$0xff]
  %v3812 = vld [vmem:[#allocation3 + $0x27a] sm:$0xff]
  %v3813 = vld [vmem:[#allocation3 + $0x28a] sm:$0xff]
  %v3814 = vld [vmem:[#allocation3 + $0x292] sm:$0xff]
  %v3815 = vld [vmem:[#allocation3 + $0x2a2] sm:$0xff]
  %v3816 = vld [vmem:[#allocation3 + $0x2aa] sm:$0xff]
  %v3817 = vld [vmem:[#allocation3 + $0x2ba] sm:$0xff]
  %v3818 = vld [vmem:[#allocation3 + $0x2c2] sm:$0xff]
  %v3819 = vld [vmem:[#allocation3 + $0x2d2] sm:$0xff]
  %v3820 = vld [vmem:[#allocation3 + $0x2da] sm:$0xff]
  %v3821 = vld [vmem:[#allocation3 + $0x2ea] sm:$0xff]
  %v3822 = vld [vmem:[#allocation3 + $0x2f2] sm:$0xff]
  %v3823 = vld [vmem:[#allocation3 + $0x302] sm:$0xff]
  %v3824 = vld [vmem:[#allocation3 + $0x30a] sm:$0xff]
  %v3825 = vld [vmem:[#allocation3 + $0x31a] sm:$0xff]
  %v3826 = vld [vmem:[#allocation3 + $0x322] sm:$0xff]
  %v3827 = vpack.c.bf16 %v3764, %v3763
  %v3828 = vpack.c.bf16 %v3766, %v3765
  %v3829 = vpack.c.bf16 %v3768, %v3767
  %v3830 = vpack.c.bf16 %v3770, %v3769
  %v3831 = vpack.c.bf16 %v3772, %v3771
  %v3832 = vpack.c.bf16 %v3774, %v3773
  %v3833 = vpack.c.bf16 %v3776, %v3775
  %v3834 = vpack.c.bf16 %v3778, %v3777
  %v3835 = vpack.c.bf16 %v3780, %v3779
  %v3836 = vpack.c.bf16 %v3782, %v3781
  %v3837 = vpack.c.bf16 %v3784, %v3783
  %v3838 = vpack.c.bf16 %v3786, %v3785
  %v3839 = vpack.c.bf16 %v3788, %v3787
  %v3840 = vpack.c.bf16 %v3790, %v3789
  %v3841 = vpack.c.bf16 %v3792, %v3791
  %v3842 = vpack.c.bf16 %v3794, %v3793
  %v3843 = vpack.c.bf16 %v3796, %v3795
  %v3844 = vpack.c.bf16 %v3798, %v3797
  %v3845 = vpack.c.bf16 %v3800, %v3799
  %v3846 = vpack.c.bf16 %v3802, %v3801
  %v3847 = vpack.c.bf16 %v3804, %v3803
  %v3848 = vpack.c.bf16 %v3806, %v3805
  %v3849 = vpack.c.bf16 %v3808, %v3807
  %v3850 = vpack.c.bf16 %v3810, %v3809
  %v3851 = vpack.c.bf16 %v3812, %v3811
  %v3852 = vpack.c.bf16 %v3814, %v3813
  %v3853 = vpack.c.bf16 %v3816, %v3815
  %v3854 = vpack.c.bf16 %v3818, %v3817
  %v3855 = vpack.c.bf16 %v3820, %v3819
  %v3856 = vpack.c.bf16 %v3822, %v3821
  %v3857 = vpack.c.bf16 %v3824, %v3823
  %v3858 = vpack.c.bf16 %v3826, %v3825
  %3891 = vrot.lane.b32.xlu0 %v3827, 16
  %v3892 = vpop.permute.xlu0 %3891
  %3893 = vrot.lane.b32.xlu0 %v3828, 16
  %v3894 = vpop.permute.xlu0 %3893
  %3895 = vrot.lane.b32.xlu0 %v3829, 16
  %v3896 = vpop.permute.xlu0 %3895
  %3897 = vrot.lane.b32.xlu0 %v3830, 16
  %v3898 = vpop.permute.xlu0 %3897
  %3899 = vrot.lane.b32.xlu0 %v3831, 16
  %v3900 = vpop.permute.xlu0 %3899
  %3901 = vrot.lane.b32.xlu0 %v3832, 16
  %v3902 = vpop.permute.xlu0 %3901
  %3903 = vrot.lane.b32.xlu0 %v3833, 16
  %v3904 = vpop.permute.xlu0 %3903
  %3905 = vrot.lane.b32.xlu0 %v3834, 16
  %v3906 = vpop.permute.xlu0 %3905
  %3907 = vrot.lane.b32.xlu0 %v3835, 16
  %v3908 = vpop.permute.xlu0 %3907
  %3909 = vrot.lane.b32.xlu0 %v3836, 16
  %v3910 = vpop.permute.xlu0 %3909
  %3911 = vrot.lane.b32.xlu0 %v3837, 16
  %v3912 = vpop.permute.xlu0 %3911
  %3913 = vrot.lane.b32.xlu0 %v3838, 16
  %v3914 = vpop.permute.xlu0 %3913
  %3915 = vrot.lane.b32.xlu0 %v3839, 16
  %v3916 = vpop.permute.xlu0 %3915
  %3917 = vrot.lane.b32.xlu0 %v3840, 16
  %v3918 = vpop.permute.xlu0 %3917
  %3919 = vrot.lane.b32.xlu0 %v3841, 16
  %v3920 = vpop.permute.xlu0 %3919
  %3921 = vrot.lane.b32.xlu0 %v3842, 16
  %v3922 = vpop.permute.xlu0 %3921
  %3923 = vrot.lane.b32.xlu0 %v3843, 16
  %v3924 = vpop.permute.xlu0 %3923
  %3925 = vrot.lane.b32.xlu0 %v3844, 16
  %v3926 = vpop.permute.xlu0 %3925
  %3927 = vrot.lane.b32.xlu0 %v3845, 16
  %v3928 = vpop.permute.xlu0 %3927
  %3929 = vrot.lane.b32.xlu0 %v3846, 16
  %v3930 = vpop.permute.xlu0 %3929
  %3931 = vrot.lane.b32.xlu0 %v3847, 16
  %v3932 = vpop.permute.xlu0 %3931
  %3933 = vrot.lane.b32.xlu0 %v3848, 16
  %v3934 = vpop.permute.xlu0 %3933
  %3935 = vrot.lane.b32.xlu0 %v3849, 16
  %v3936 = vpop.permute.xlu0 %3935
  %3937 = vrot.lane.b32.xlu0 %v3850, 16
  %v3938 = vpop.permute.xlu0 %3937
  %3939 = vrot.lane.b32.xlu0 %v3851, 16
  %v3940 = vpop.permute.xlu0 %3939
  %3941 = vrot.lane.b32.xlu0 %v3852, 16
  %v3942 = vpop.permute.xlu0 %3941
  %3943 = vrot.lane.b32.xlu0 %v3853, 16
  %v3944 = vpop.permute.xlu0 %3943
  %3945 = vrot.lane.b32.xlu0 %v3854, 16
  %v3946 = vpop.permute.xlu0 %3945
  %3947 = vrot.lane.b32.xlu0 %v3855, 16
  %v3948 = vpop.permute.xlu0 %3947
  %3949 = vrot.lane.b32.xlu0 %v3856, 16
  %v3950 = vpop.permute.xlu0 %3949
  %3951 = vrot.lane.b32.xlu0 %v3857, 16
  %v3952 = vpop.permute.xlu0 %3951
  %3953 = vrot.lane.b32.xlu0 %v3858, 16
  %v3954 = vpop.permute.xlu0 %3953
  %vm3987 = vcmask 195712
  %3988 = vst.msk [vmem:[#allocation4] sm:$0xff] %vm3987, %v3892
  %3989 = vst.msk [vmem:[#allocation4 + $0x8] sm:$0xff] %vm3987, %v3894
  %3990 = vst.msk [vmem:[#allocation4 + $0x10] sm:$0xff] %vm3987, %v3896
  %3991 = vst.msk [vmem:[#allocation4 + $0x18] sm:$0xff] %vm3987, %v3898
  %3992 = vst.msk [vmem:[#allocation4 + $0x20] sm:$0xff] %vm3987, %v3900
  %3993 = vst.msk [vmem:[#allocation4 + $0x28] sm:$0xff] %vm3987, %v3902
  %3994 = vst.msk [vmem:[#allocation4 + $0x30] sm:$0xff] %vm3987, %v3904
  %3995 = vst.msk [vmem:[#allocation4 + $0x38] sm:$0xff] %vm3987, %v3906
  %3996 = vst.msk [vmem:[#allocation4 + $0x40] sm:$0xff] %vm3987, %v3908
  %3997 = vst.msk [vmem:[#allocation4 + $0x48] sm:$0xff] %vm3987, %v3910
  %3998 = vst.msk [vmem:[#allocation4 + $0x50] sm:$0xff] %vm3987, %v3912
  %3999 = vst.msk [vmem:[#allocation4 + $0x58] sm:$0xff] %vm3987, %v3914
  %4000 = vst.msk [vmem:[#allocation4 + $0x60] sm:$0xff] %vm3987, %v3916
  %4001 = vst.msk [vmem:[#allocation4 + $0x68] sm:$0xff] %vm3987, %v3918
  %4002 = vst.msk [vmem:[#allocation4 + $0x70] sm:$0xff] %vm3987, %v3920
  %4003 = vst.msk [vmem:[#allocation4 + $0x78] sm:$0xff] %vm3987, %v3922
  %4004 = vst.msk [vmem:[#allocation4 + $0x80] sm:$0xff] %vm3987, %v3924
  %4005 = vst.msk [vmem:[#allocation4 + $0x88] sm:$0xff] %vm3987, %v3926
  %4006 = vst.msk [vmem:[#allocation4 + $0x90] sm:$0xff] %vm3987, %v3928
  %4007 = vst.msk [vmem:[#allocation4 + $0x98] sm:$0xff] %vm3987, %v3930
  %4008 = vst.msk [vmem:[#allocation4 + $0xa0] sm:$0xff] %vm3987, %v3932
  %4009 = vst.msk [vmem:[#allocation4 + $0xa8] sm:$0xff] %vm3987, %v3934
  %4010 = vst.msk [vmem:[#allocation4 + $0xb0] sm:$0xff] %vm3987, %v3936
  %4011 = vst.msk [vmem:[#allocation4 + $0xb8] sm:$0xff] %vm3987, %v3938
  %4012 = vst.msk [vmem:[#allocation4 + $0xc0] sm:$0xff] %vm3987, %v3940
  %4013 = vst.msk [vmem:[#allocation4 + $0xc8] sm:$0xff] %vm3987, %v3942
  %4014 = vst.msk [vmem:[#allocation4 + $0xd0] sm:$0xff] %vm3987, %v3944
  %4015 = vst.msk [vmem:[#allocation4 + $0xd8] sm:$0xff] %vm3987, %v3946
  %4016 = vst.msk [vmem:[#allocation4 + $0xe0] sm:$0xff] %vm3987, %v3948
  %4017 = vst.msk [vmem:[#allocation4 + $0xe8] sm:$0xff] %vm3987, %v3950
  %4018 = vst.msk [vmem:[#allocation4 + $0xf0] sm:$0xff] %vm3987, %v3952
  %4019 = vst.msk [vmem:[#allocation4 + $0xf8] sm:$0xff] %vm3987, %v3954
  %v4020 = vld [vmem:[%s3313] sm:$0xff]
  %v4021 = vld [vmem:[%s3313 + $0x8] sm:$0xff]
  %v4022 = vld [vmem:[%s3313 + $0x18] sm:$0xff]
  %v4023 = vld [vmem:[%s3313 + $0x20] sm:$0xff]
  %v4024 = vld [vmem:[%s3313 + $0x30] sm:$0xff]
  %v4025 = vld [vmem:[%s3313 + $0x38] sm:$0xff]
  %v4026 = vld [vmem:[%s3313 + $0x48] sm:$0xff]
  %v4027 = vld [vmem:[%s3313 + $0x50] sm:$0xff]
  %v4028 = vld [vmem:[%s3313 + $0x60] sm:$0xff]
  %v4029 = vld [vmem:[%s3313 + $0x68] sm:$0xff]
  %v4030 = vld [vmem:[%s3313 + $0x78] sm:$0xff]
  %v4031 = vld [vmem:[%s3313 + $0x80] sm:$0xff]
  %v4032 = vld [vmem:[%s3313 + $0x90] sm:$0xff]
  %v4033 = vld [vmem:[%s3313 + $0x98] sm:$0xff]
  %v4034 = vld [vmem:[%s3313 + $0xa8] sm:$0xff]
  %v4035 = vld [vmem:[%s3313 + $0xb0] sm:$0xff]
  %v4036 = vld [vmem:[%s3313 + $0xc0] sm:$0xff]
  %v4037 = vld [vmem:[%s3313 + $0xc8] sm:$0xff]
  %v4038 = vld [vmem:[%s3313 + $0xd8] sm:$0xff]
  %v4039 = vld [vmem:[%s3313 + $0xe0] sm:$0xff]
  %v4040 = vld [vmem:[%s3313 + $0xf0] sm:$0xff]
  %v4041 = vld [vmem:[%s3313 + $0xf8] sm:$0xff]
  %v4042 = vld [vmem:[%s3313 + $0x108] sm:$0xff]
  %v4043 = vld [vmem:[%s3313 + $0x110] sm:$0xff]
  %v4044 = vld [vmem:[%s3313 + $0x120] sm:$0xff]
  %v4045 = vld [vmem:[%s3313 + $0x128] sm:$0xff]
  %v4046 = vld [vmem:[%s3313 + $0x138] sm:$0xff]
  %v4047 = vld [vmem:[%s3313 + $0x140] sm:$0xff]
  %v4048 = vld [vmem:[%s3313 + $0x150] sm:$0xff]
  %v4049 = vld [vmem:[%s3313 + $0x158] sm:$0xff]
  %v4050 = vld [vmem:[%s3313 + $0x168] sm:$0xff]
  %v4051 = vld [vmem:[%s3313 + $0x170] sm:$0xff]
  %v4052 = vld [vmem:[%s3313 + $0x1b0] sm:$0xff]
  %v4053 = vld [vmem:[%s3313 + $0x1b8] sm:$0xff]
  %v4054 = vld [vmem:[%s3313 + $0x1c8] sm:$0xff]
  %v4055 = vld [vmem:[%s3313 + $0x1d0] sm:$0xff]
  %v4056 = vld [vmem:[%s3313 + $0x1e0] sm:$0xff]
  %v4057 = vld [vmem:[%s3313 + $0x1e8] sm:$0xff]
  %v4058 = vld [vmem:[%s3313 + $0x1f8] sm:$0xff]
  %v4059 = vld [vmem:[%s3313 + $0x200] sm:$0xff]
  %v4060 = vld [vmem:[%s3313 + $0x210] sm:$0xff]
  %v4061 = vld [vmem:[%s3313 + $0x218] sm:$0xff]
  %v4062 = vld [vmem:[%s3313 + $0x228] sm:$0xff]
  %v4063 = vld [vmem:[%s3313 + $0x230] sm:$0xff]
  %v4064 = vld [vmem:[%s3313 + $0x240] sm:$0xff]
  %v4065 = vld [vmem:[%s3313 + $0x248] sm:$0xff]
  %v4066 = vld [vmem:[%s3313 + $0x258] sm:$0xff]
  %v4067 = vld [vmem:[%s3313 + $0x260] sm:$0xff]
  %v4068 = vld [vmem:[%s3313 + $0x270] sm:$0xff]
  %v4069 = vld [vmem:[%s3313 + $0x278] sm:$0xff]
  %v4070 = vld [vmem:[%s3313 + $0x288] sm:$0xff]
  %v4071 = vld [vmem:[%s3313 + $0x290] sm:$0xff]
  %v4072 = vld [vmem:[%s3313 + $0x2a0] sm:$0xff]
  %v4073 = vld [vmem:[%s3313 + $0x2a8] sm:$0xff]
  %v4074 = vld [vmem:[%s3313 + $0x2b8] sm:$0xff]
  %v4075 = vld [vmem:[%s3313 + $0x2c0] sm:$0xff]
  %v4076 = vld [vmem:[%s3313 + $0x2d0] sm:$0xff]
  %v4077 = vld [vmem:[%s3313 + $0x2d8] sm:$0xff]
  %v4078 = vld [vmem:[%s3313 + $0x2e8] sm:$0xff]
  %v4079 = vld [vmem:[%s3313 + $0x2f0] sm:$0xff]
  %v4080 = vld [vmem:[%s3313 + $0x300] sm:$0xff]
  %v4081 = vld [vmem:[%s3313 + $0x308] sm:$0xff]
  %v4082 = vld [vmem:[%s3313 + $0x318] sm:$0xff]
  %v4083 = vld [vmem:[%s3313 + $0x320] sm:$0xff]
  %v4084 = vpack.c.bf16 %v4021, %v4020
  %v4085 = vpack.c.bf16 %v4023, %v4022
  %v4086 = vpack.c.bf16 %v4025, %v4024
  %v4087 = vpack.c.bf16 %v4027, %v4026
  %v4088 = vpack.c.bf16 %v4029, %v4028
  %v4089 = vpack.c.bf16 %v4031, %v4030
  %v4090 = vpack.c.bf16 %v4033, %v4032
  %v4091 = vpack.c.bf16 %v4035, %v4034
  %v4092 = vpack.c.bf16 %v4037, %v4036
  %v4093 = vpack.c.bf16 %v4039, %v4038
  %v4094 = vpack.c.bf16 %v4041, %v4040
  %v4095 = vpack.c.bf16 %v4043, %v4042
  %v4096 = vpack.c.bf16 %v4045, %v4044
  %v4097 = vpack.c.bf16 %v4047, %v4046
  %v4098 = vpack.c.bf16 %v4049, %v4048
  %v4099 = vpack.c.bf16 %v4051, %v4050
  %v4100 = vpack.c.bf16 %v4053, %v4052
  %v4101 = vpack.c.bf16 %v4055, %v4054
  %v4102 = vpack.c.bf16 %v4057, %v4056
  %v4103 = vpack.c.bf16 %v4059, %v4058
  %v4104 = vpack.c.bf16 %v4061, %v4060
  %v4105 = vpack.c.bf16 %v4063, %v4062
  %v4106 = vpack.c.bf16 %v4065, %v4064
  %v4107 = vpack.c.bf16 %v4067, %v4066
  %v4108 = vpack.c.bf16 %v4069, %v4068
  %v4109 = vpack.c.bf16 %v4071, %v4070
  %v4110 = vpack.c.bf16 %v4073, %v4072
  %v4111 = vpack.c.bf16 %v4075, %v4074
  %v4112 = vpack.c.bf16 %v4077, %v4076
  %v4113 = vpack.c.bf16 %v4079, %v4078
  %v4114 = vpack.c.bf16 %v4081, %v4080
  %v4115 = vpack.c.bf16 %v4083, %v4082
  %4148 = vrot.lane.b32.xlu0 %v4084, 24
  %v4149 = vpop.permute.xlu0 %4148
  %4150 = vrot.lane.b32.xlu0 %v4085, 24
  %v4151 = vpop.permute.xlu0 %4150
  %4152 = vrot.lane.b32.xlu0 %v4086, 24
  %v4153 = vpop.permute.xlu0 %4152
  %4154 = vrot.lane.b32.xlu0 %v4087, 24
  %v4155 = vpop.permute.xlu0 %4154
  %4156 = vrot.lane.b32.xlu0 %v4088, 24
  %v4157 = vpop.permute.xlu0 %4156
  %4158 = vrot.lane.b32.xlu0 %v4089, 24
  %v4159 = vpop.permute.xlu0 %4158
  %4160 = vrot.lane.b32.xlu0 %v4090, 24
  %v4161 = vpop.permute.xlu0 %4160
  %4162 = vrot.lane.b32.xlu0 %v4091, 24
  %v4163 = vpop.permute.xlu0 %4162
  %4164 = vrot.lane.b32.xlu0 %v4092, 24
  %v4165 = vpop.permute.xlu0 %4164
  %4166 = vrot.lane.b32.xlu0 %v4093, 24
  %v4167 = vpop.permute.xlu0 %4166
  %4168 = vrot.lane.b32.xlu0 %v4094, 24
  %v4169 = vpop.permute.xlu0 %4168
  %4170 = vrot.lane.b32.xlu0 %v4095, 24
  %v4171 = vpop.permute.xlu0 %4170
  %4172 = vrot.lane.b32.xlu0 %v4096, 24
  %v4173 = vpop.permute.xlu0 %4172
  %4174 = vrot.lane.b32.xlu0 %v4097, 24
  %v4175 = vpop.permute.xlu0 %4174
  %4176 = vrot.lane.b32.xlu0 %v4098, 24
  %v4177 = vpop.permute.xlu0 %4176
  %4178 = vrot.lane.b32.xlu0 %v4099, 24
  %v4179 = vpop.permute.xlu0 %4178
  %4180 = vrot.lane.b32.xlu0 %v4100, 24
  %v4181 = vpop.permute.xlu0 %4180
  %4182 = vrot.lane.b32.xlu0 %v4101, 24
  %v4183 = vpop.permute.xlu0 %4182
  %4184 = vrot.lane.b32.xlu0 %v4102, 24
  %v4185 = vpop.permute.xlu0 %4184
  %4186 = vrot.lane.b32.xlu0 %v4103, 24
  %v4187 = vpop.permute.xlu0 %4186
  %4188 = vrot.lane.b32.xlu0 %v4104, 24
  %v4189 = vpop.permute.xlu0 %4188
  %4190 = vrot.lane.b32.xlu0 %v4105, 24
  %v4191 = vpop.permute.xlu0 %4190
  %4192 = vrot.lane.b32.xlu0 %v4106, 24
  %v4193 = vpop.permute.xlu0 %4192
  %4194 = vrot.lane.b32.xlu0 %v4107, 24
  %v4195 = vpop.permute.xlu0 %4194
  %4196 = vrot.lane.b32.xlu0 %v4108, 24
  %v4197 = vpop.permute.xlu0 %4196
  %4198 = vrot.lane.b32.xlu0 %v4109, 24
  %v4199 = vpop.permute.xlu0 %4198
  %4200 = vrot.lane.b32.xlu0 %v4110, 24
  %v4201 = vpop.permute.xlu0 %4200
  %4202 = vrot.lane.b32.xlu0 %v4111, 24
  %v4203 = vpop.permute.xlu0 %4202
  %4204 = vrot.lane.b32.xlu0 %v4112, 24
  %v4205 = vpop.permute.xlu0 %4204
  %4206 = vrot.lane.b32.xlu0 %v4113, 24
  %v4207 = vpop.permute.xlu0 %4206
  %4208 = vrot.lane.b32.xlu0 %v4114, 24
  %v4209 = vpop.permute.xlu0 %4208
  %4210 = vrot.lane.b32.xlu0 %v4115, 24
  %v4211 = vpop.permute.xlu0 %4210
  %vm4244 = vcmask 261312
  %4245 = vst.msk [vmem:[#allocation4] sm:$0xff] %vm4244, %v4149
  %4246 = vst.msk [vmem:[#allocation4 + $0x8] sm:$0xff] %vm4244, %v4151
  %4247 = vst.msk [vmem:[#allocation4 + $0x10] sm:$0xff] %vm4244, %v4153
  %4248 = vst.msk [vmem:[#allocation4 + $0x18] sm:$0xff] %vm4244, %v4155
  %4249 = vst.msk [vmem:[#allocation4 + $0x20] sm:$0xff] %vm4244, %v4157
  %4250 = vst.msk [vmem:[#allocation4 + $0x28] sm:$0xff] %vm4244, %v4159
  %4251 = vst.msk [vmem:[#allocation4 + $0x30] sm:$0xff] %vm4244, %v4161
  %4252 = vst.msk [vmem:[#allocation4 + $0x38] sm:$0xff] %vm4244, %v4163
  %4253 = vst.msk [vmem:[#allocation4 + $0x40] sm:$0xff] %vm4244, %v4165
  %4254 = vst.msk [vmem:[#allocation4 + $0x48] sm:$0xff] %vm4244, %v4167
  %4255 = vst.msk [vmem:[#allocation4 + $0x50] sm:$0xff] %vm4244, %v4169
  %4256 = vst.msk [vmem:[#allocation4 + $0x58] sm:$0xff] %vm4244, %v4171
  %4257 = vst.msk [vmem:[#allocation4 + $0x60] sm:$0xff] %vm4244, %v4173
  %4258 = vst.msk [vmem:[#allocation4 + $0x68] sm:$0xff] %vm4244, %v4175
  %4259 = vst.msk [vmem:[#allocation4 + $0x70] sm:$0xff] %vm4244, %v4177
  %4260 = vst.msk [vmem:[#allocation4 + $0x78] sm:$0xff] %vm4244, %v4179
  %4261 = vst.msk [vmem:[#allocation4 + $0x80] sm:$0xff] %vm4244, %v4181
  %4262 = vst.msk [vmem:[#allocation4 + $0x88] sm:$0xff] %vm4244, %v4183
  %4263 = vst.msk [vmem:[#allocation4 + $0x90] sm:$0xff] %vm4244, %v4185
  %4264 = vst.msk [vmem:[#allocation4 + $0x98] sm:$0xff] %vm4244, %v4187
  %4265 = vst.msk [vmem:[#allocation4 + $0xa0] sm:$0xff] %vm4244, %v4189
  %4266 = vst.msk [vmem:[#allocation4 + $0xa8] sm:$0xff] %vm4244, %v4191
  %4267 = vst.msk [vmem:[#allocation4 + $0xb0] sm:$0xff] %vm4244, %v4193
  %4268 = vst.msk [vmem:[#allocation4 + $0xb8] sm:$0xff] %vm4244, %v4195
  %4269 = vst.msk [vmem:[#allocation4 + $0xc0] sm:$0xff] %vm4244, %v4197
  %4270 = vst.msk [vmem:[#allocation4 + $0xc8] sm:$0xff] %vm4244, %v4199
  %4271 = vst.msk [vmem:[#allocation4 + $0xd0] sm:$0xff] %vm4244, %v4201
  %4272 = vst.msk [vmem:[#allocation4 + $0xd8] sm:$0xff] %vm4244, %v4203
  %4273 = vst.msk [vmem:[#allocation4 + $0xe0] sm:$0xff] %vm4244, %v4205
  %4274 = vst.msk [vmem:[#allocation4 + $0xe8] sm:$0xff] %vm4244, %v4207
  %4275 = vst.msk [vmem:[#allocation4 + $0xf0] sm:$0xff] %vm4244, %v4209
  %4276 = vst.msk [vmem:[#allocation4 + $0xf8] sm:$0xff] %vm4244, %v4211
  %v4277 = vld [vmem:[%s3313 + $0x1] sm:$0xff]
  %v4278 = vld [vmem:[%s3313 + $0x9] sm:$0xff]
  %v4279 = vld [vmem:[%s3313 + $0x19] sm:$0xff]
  %v4280 = vld [vmem:[%s3313 + $0x21] sm:$0xff]
  %v4281 = vld [vmem:[%s3313 + $0x31] sm:$0xff]
  %v4282 = vld [vmem:[%s3313 + $0x39] sm:$0xff]
  %v4283 = vld [vmem:[%s3313 + $0x49] sm:$0xff]
  %v4284 = vld [vmem:[%s3313 + $0x51] sm:$0xff]
  %v4285 = vld [vmem:[%s3313 + $0x61] sm:$0xff]
  %v4286 = vld [vmem:[%s3313 + $0x69] sm:$0xff]
  %v4287 = vld [vmem:[%s3313 + $0x79] sm:$0xff]
  %v4288 = vld [vmem:[%s3313 + $0x81] sm:$0xff]
  %v4289 = vld [vmem:[%s3313 + $0x91] sm:$0xff]
  %v4290 = vld [vmem:[%s3313 + $0x99] sm:$0xff]
  %v4291 = vld [vmem:[%s3313 + $0xa9] sm:$0xff]
  %v4292 = vld [vmem:[%s3313 + $0xb1] sm:$0xff]
  %v4293 = vld [vmem:[%s3313 + $0xc1] sm:$0xff]
  %v4294 = vld [vmem:[%s3313 + $0xc9] sm:$0xff]
  %v4295 = vld [vmem:[%s3313 + $0xd9] sm:$0xff]
  %v4296 = vld [vmem:[%s3313 + $0xe1] sm:$0xff]
  %v4297 = vld [vmem:[%s3313 + $0xf1] sm:$0xff]
  %v4298 = vld [vmem:[%s3313 + $0xf9] sm:$0xff]
  %v4299 = vld [vmem:[%s3313 + $0x109] sm:$0xff]
  %v4300 = vld [vmem:[%s3313 + $0x111] sm:$0xff]
  %v4301 = vld [vmem:[%s3313 + $0x121] sm:$0xff]
  %v4302 = vld [vmem:[%s3313 + $0x129] sm:$0xff]
  %v4303 = vld [vmem:[%s3313 + $0x139] sm:$0xff]
  %v4304 = vld [vmem:[%s3313 + $0x141] sm:$0xff]
  %v4305 = vld [vmem:[%s3313 + $0x151] sm:$0xff]
  %v4306 = vld [vmem:[%s3313 + $0x159] sm:$0xff]
  %v4307 = vld [vmem:[%s3313 + $0x169] sm:$0xff]
  %v4308 = vld [vmem:[%s3313 + $0x171] sm:$0xff]
  %v4309 = vld [vmem:[%s3313 + $0x1b1] sm:$0xff]
  %v4310 = vld [vmem:[%s3313 + $0x1b9] sm:$0xff]
  %v4311 = vld [vmem:[%s3313 + $0x1c9] sm:$0xff]
  %v4312 = vld [vmem:[%s3313 + $0x1d1] sm:$0xff]
  %v4313 = vld [vmem:[%s3313 + $0x1e1] sm:$0xff]
  %v4314 = vld [vmem:[%s3313 + $0x1e9] sm:$0xff]
  %v4315 = vld [vmem:[%s3313 + $0x1f9] sm:$0xff]
  %v4316 = vld [vmem:[%s3313 + $0x201] sm:$0xff]
  %v4317 = vld [vmem:[%s3313 + $0x211] sm:$0xff]
  %v4318 = vld [vmem:[%s3313 + $0x219] sm:$0xff]
  %v4319 = vld [vmem:[%s3313 + $0x229] sm:$0xff]
  %v4320 = vld [vmem:[%s3313 + $0x231] sm:$0xff]
  %v4321 = vld [vmem:[%s3313 + $0x241] sm:$0xff]
  %v4322 = vld [vmem:[%s3313 + $0x249] sm:$0xff]
  %v4323 = vld [vmem:[%s3313 + $0x259] sm:$0xff]
  %v4324 = vld [vmem:[%s3313 + $0x261] sm:$0xff]
  %v4325 = vld [vmem:[%s3313 + $0x271] sm:$0xff]
  %v4326 = vld [vmem:[%s3313 + $0x279] sm:$0xff]
  %v4327 = vld [vmem:[%s3313 + $0x289] sm:$0xff]
  %v4328 = vld [vmem:[%s3313 + $0x291] sm:$0xff]
  %v4329 = vld [vmem:[%s3313 + $0x2a1] sm:$0xff]
  %v4330 = vld [vmem:[%s3313 + $0x2a9] sm:$0xff]
  %v4331 = vld [vmem:[%s3313 + $0x2b9] sm:$0xff]
  %v4332 = vld [vmem:[%s3313 + $0x2c1] sm:$0xff]
  %v4333 = vld [vmem:[%s3313 + $0x2d1] sm:$0xff]
  %v4334 = vld [vmem:[%s3313 + $0x2d9] sm:$0xff]
  %v4335 = vld [vmem:[%s3313 + $0x2e9] sm:$0xff]
  %v4336 = vld [vmem:[%s3313 + $0x2f1] sm:$0xff]
  %v4337 = vld [vmem:[%s3313 + $0x301] sm:$0xff]
  %v4338 = vld [vmem:[%s3313 + $0x309] sm:$0xff]
  %v4339 = vld [vmem:[%s3313 + $0x319] sm:$0xff]
  %v4340 = vld [vmem:[%s3313 + $0x321] sm:$0xff]
  %v4341 = vpack.c.bf16 %v4278, %v4277
  %v4342 = vpack.c.bf16 %v4280, %v4279
  %v4343 = vpack.c.bf16 %v4282, %v4281
  %v4344 = vpack.c.bf16 %v4284, %v4283
  %v4345 = vpack.c.bf16 %v4286, %v4285
  %v4346 = vpack.c.bf16 %v4288, %v4287
  %v4347 = vpack.c.bf16 %v4290, %v4289
  %v4348 = vpack.c.bf16 %v4292, %v4291
  %v4349 = vpack.c.bf16 %v4294, %v4293
  %v4350 = vpack.c.bf16 %v4296, %v4295
  %v4351 = vpack.c.bf16 %v4298, %v4297
  %v4352 = vpack.c.bf16 %v4300, %v4299
  %v4353 = vpack.c.bf16 %v4302, %v4301
  %v4354 = vpack.c.bf16 %v4304, %v4303
  %v4355 = vpack.c.bf16 %v4306, %v4305
  %v4356 = vpack.c.bf16 %v4308, %v4307
  %v4357 = vpack.c.bf16 %v4310, %v4309
  %v4358 = vpack.c.bf16 %v4312, %v4311
  %v4359 = vpack.c.bf16 %v4314, %v4313
  %v4360 = vpack.c.bf16 %v4316, %v4315
  %v4361 = vpack.c.bf16 %v4318, %v4317
  %v4362 = vpack.c.bf16 %v4320, %v4319
  %v4363 = vpack.c.bf16 %v4322, %v4321
  %v4364 = vpack.c.bf16 %v4324, %v4323
  %v4365 = vpack.c.bf16 %v4326, %v4325
  %v4366 = vpack.c.bf16 %v4328, %v4327
  %v4367 = vpack.c.bf16 %v4330, %v4329
  %v4368 = vpack.c.bf16 %v4332, %v4331
  %v4369 = vpack.c.bf16 %v4334, %v4333
  %v4370 = vpack.c.bf16 %v4336, %v4335
  %v4371 = vpack.c.bf16 %v4338, %v4337
  %v4372 = vpack.c.bf16 %v4340, %v4339
  %4405 = vrot.lane.b32.xlu0 %v4341, 32
  %v4406 = vpop.permute.xlu0 %4405
  %4407 = vrot.lane.b32.xlu0 %v4342, 32
  %v4408 = vpop.permute.xlu0 %4407
  %4409 = vrot.lane.b32.xlu0 %v4343, 32
  %v4410 = vpop.permute.xlu0 %4409
  %4411 = vrot.lane.b32.xlu0 %v4344, 32
  %v4412 = vpop.permute.xlu0 %4411
  %4413 = vrot.lane.b32.xlu0 %v4345, 32
  %v4414 = vpop.permute.xlu0 %4413
  %4415 = vrot.lane.b32.xlu0 %v4346, 32
  %v4416 = vpop.permute.xlu0 %4415
  %4417 = vrot.lane.b32.xlu0 %v4347, 32
  %v4418 = vpop.permute.xlu0 %4417
  %4419 = vrot.lane.b32.xlu0 %v4348, 32
  %v4420 = vpop.permute.xlu0 %4419
  %4421 = vrot.lane.b32.xlu0 %v4349, 32
  %v4422 = vpop.permute.xlu0 %4421
  %4423 = vrot.lane.b32.xlu0 %v4350, 32
  %v4424 = vpop.permute.xlu0 %4423
  %4425 = vrot.lane.b32.xlu0 %v4351, 32
  %v4426 = vpop.permute.xlu0 %4425
  %4427 = vrot.lane.b32.xlu0 %v4352, 32
  %v4428 = vpop.permute.xlu0 %4427
  %4429 = vrot.lane.b32.xlu0 %v4353, 32
  %v4430 = vpop.permute.xlu0 %4429
  %4431 = vrot.lane.b32.xlu0 %v4354, 32
  %v4432 = vpop.permute.xlu0 %4431
  %4433 = vrot.lane.b32.xlu0 %v4355, 32
  %v4434 = vpop.permute.xlu0 %4433
  %4435 = vrot.lane.b32.xlu0 %v4356, 32
  %v4436 = vpop.permute.xlu0 %4435
  %4437 = vrot.lane.b32.xlu0 %v4357, 32
  %v4438 = vpop.permute.xlu0 %4437
  %4439 = vrot.lane.b32.xlu0 %v4358, 32
  %v4440 = vpop.permute.xlu0 %4439
  %4441 = vrot.lane.b32.xlu0 %v4359, 32
  %v4442 = vpop.permute.xlu0 %4441
  %4443 = vrot.lane.b32.xlu0 %v4360, 32
  %v4444 = vpop.permute.xlu0 %4443
  %4445 = vrot.lane.b32.xlu0 %v4361, 32
  %v4446 = vpop.permute.xlu0 %4445
  %4447 = vrot.lane.b32.xlu0 %v4362, 32
  %v4448 = vpop.permute.xlu0 %4447
  %4449 = vrot.lane.b32.xlu0 %v4363, 32
  %v4450 = vpop.permute.xlu0 %4449
  %4451 = vrot.lane.b32.xlu0 %v4364, 32
  %v4452 = vpop.permute.xlu0 %4451
  %4453 = vrot.lane.b32.xlu0 %v4365, 32
  %v4454 = vpop.permute.xlu0 %4453
  %4455 = vrot.lane.b32.xlu0 %v4366, 32
  %v4456 = vpop.permute.xlu0 %4455
  %4457 = vrot.lane.b32.xlu0 %v4367, 32
  %v4458 = vpop.permute.xlu0 %4457
  %4459 = vrot.lane.b32.xlu0 %v4368, 32
  %v4460 = vpop.permute.xlu0 %4459
  %4461 = vrot.lane.b32.xlu0 %v4369, 32
  %v4462 = vpop.permute.xlu0 %4461
  %4463 = vrot.lane.b32.xlu0 %v4370, 32
  %v4464 = vpop.permute.xlu0 %4463
  %4465 = vrot.lane.b32.xlu0 %v4371, 32
  %v4466 = vpop.permute.xlu0 %4465
  %4467 = vrot.lane.b32.xlu0 %v4372, 32
  %v4468 = vpop.permute.xlu0 %4467
  %vm4501 = vcmask 326912
  %4502 = vst.msk [vmem:[#allocation4] sm:$0xff] %vm4501, %v4406
  %4503 = vst.msk [vmem:[#allocation4 + $0x8] sm:$0xff] %vm4501, %v4408
  %4504 = vst.msk [vmem:[#allocation4 + $0x10] sm:$0xff] %vm4501, %v4410
  %4505 = vst.msk [vmem:[#allocation4 + $0x18] sm:$0xff] %vm4501, %v4412
  %4506 = vst.msk [vmem:[#allocation4 + $0x20] sm:$0xff] %vm4501, %v4414
  %4507 = vst.msk [vmem:[#allocation4 + $0x28] sm:$0xff] %vm4501, %v4416
  %4508 = vst.msk [vmem:[#allocation4 + $0x30] sm:$0xff] %vm4501, %v4418
  %4509 = vst.msk [vmem:[#allocation4 + $0x38] sm:$0xff] %vm4501, %v4420
  %4510 = vst.msk [vmem:[#allocation4 + $0x40] sm:$0xff] %vm4501, %v4422
  %4511 = vst.msk [vmem:[#allocation4 + $0x48] sm:$0xff] %vm4501, %v4424
  %4512 = vst.msk [vmem:[#allocation4 + $0x50] sm:$0xff] %vm4501, %v4426
  %4513 = vst.msk [vmem:[#allocation4 + $0x58] sm:$0xff] %vm4501, %v4428
  %4514 = vst.msk [vmem:[#allocation4 + $0x60] sm:$0xff] %vm4501, %v4430
  %4515 = vst.msk [vmem:[#allocation4 + $0x68] sm:$0xff] %vm4501, %v4432
  %4516 = vst.msk [vmem:[#allocation4 + $0x70] sm:$0xff] %vm4501, %v4434
  %4517 = vst.msk [vmem:[#allocation4 + $0x78] sm:$0xff] %vm4501, %v4436
  %4518 = vst.msk [vmem:[#allocation4 + $0x80] sm:$0xff] %vm4501, %v4438
  %4519 = vst.msk [vmem:[#allocation4 + $0x88] sm:$0xff] %vm4501, %v4440
  %4520 = vst.msk [vmem:[#allocation4 + $0x90] sm:$0xff] %vm4501, %v4442
  %4521 = vst.msk [vmem:[#allocation4 + $0x98] sm:$0xff] %vm4501, %v4444
  %4522 = vst.msk [vmem:[#allocation4 + $0xa0] sm:$0xff] %vm4501, %v4446
  %4523 = vst.msk [vmem:[#allocation4 + $0xa8] sm:$0xff] %vm4501, %v4448
  %4524 = vst.msk [vmem:[#allocation4 + $0xb0] sm:$0xff] %vm4501, %v4450
  %4525 = vst.msk [vmem:[#allocation4 + $0xb8] sm:$0xff] %vm4501, %v4452
  %4526 = vst.msk [vmem:[#allocation4 + $0xc0] sm:$0xff] %vm4501, %v4454
  %4527 = vst.msk [vmem:[#allocation4 + $0xc8] sm:$0xff] %vm4501, %v4456
  %4528 = vst.msk [vmem:[#allocation4 + $0xd0] sm:$0xff] %vm4501, %v4458
  %4529 = vst.msk [vmem:[#allocation4 + $0xd8] sm:$0xff] %vm4501, %v4460
  %4530 = vst.msk [vmem:[#allocation4 + $0xe0] sm:$0xff] %vm4501, %v4462
  %4531 = vst.msk [vmem:[#allocation4 + $0xe8] sm:$0xff] %vm4501, %v4464
  %4532 = vst.msk [vmem:[#allocation4 + $0xf0] sm:$0xff] %vm4501, %v4466
  %4533 = vst.msk [vmem:[#allocation4 + $0xf8] sm:$0xff] %vm4501, %v4468
  %v4534 = vld [vmem:[%s3313 + $0x2] sm:$0xff]
  %v4535 = vld [vmem:[%s3313 + $0xa] sm:$0xff]
  %v4536 = vld [vmem:[%s3313 + $0x1a] sm:$0xff]
  %v4537 = vld [vmem:[%s3313 + $0x22] sm:$0xff]
  %v4538 = vld [vmem:[%s3313 + $0x32] sm:$0xff]
  %v4539 = vld [vmem:[%s3313 + $0x3a] sm:$0xff]
  %v4540 = vld [vmem:[%s3313 + $0x4a] sm:$0xff]
  %v4541 = vld [vmem:[%s3313 + $0x52] sm:$0xff]
  %v4542 = vld [vmem:[%s3313 + $0x62] sm:$0xff]
  %v4543 = vld [vmem:[%s3313 + $0x6a] sm:$0xff]
  %v4544 = vld [vmem:[%s3313 + $0x7a] sm:$0xff]
  %v4545 = vld [vmem:[%s3313 + $0x82] sm:$0xff]
  %v4546 = vld [vmem:[%s3313 + $0x92] sm:$0xff]
  %v4547 = vld [vmem:[%s3313 + $0x9a] sm:$0xff]
  %v4548 = vld [vmem:[%s3313 + $0xaa] sm:$0xff]
  %v4549 = vld [vmem:[%s3313 + $0xb2] sm:$0xff]
  %v4550 = vld [vmem:[%s3313 + $0xc2] sm:$0xff]
  %v4551 = vld [vmem:[%s3313 + $0xca] sm:$0xff]
  %v4552 = vld [vmem:[%s3313 + $0xda] sm:$0xff]
  %v4553 = vld [vmem:[%s3313 + $0xe2] sm:$0xff]
  %v4554 = vld [vmem:[%s3313 + $0xf2] sm:$0xff]
  %v4555 = vld [vmem:[%s3313 + $0xfa] sm:$0xff]
  %v4556 = vld [vmem:[%s3313 + $0x10a] sm:$0xff]
  %v4557 = vld [vmem:[%s3313 + $0x112] sm:$0xff]
  %v4558 = vld [vmem:[%s3313 + $0x122] sm:$0xff]
  %v4559 = vld [vmem:[%s3313 + $0x12a] sm:$0xff]
  %v4560 = vld [vmem:[%s3313 + $0x13a] sm:$0xff]
  %v4561 = vld [vmem:[%s3313 + $0x142] sm:$0xff]
  %v4562 = vld [vmem:[%s3313 + $0x152] sm:$0xff]
  %v4563 = vld [vmem:[%s3313 + $0x15a] sm:$0xff]
  %v4564 = vld [vmem:[%s3313 + $0x16a] sm:$0xff]
  %v4565 = vld [vmem:[%s3313 + $0x172] sm:$0xff]
  %v4566 = vld [vmem:[%s3313 + $0x1b2] sm:$0xff]
  %v4567 = vld [vmem:[%s3313 + $0x1ba] sm:$0xff]
  %v4568 = vld [vmem:[%s3313 + $0x1ca] sm:$0xff]
  %v4569 = vld [vmem:[%s3313 + $0x1d2] sm:$0xff]
  %v4570 = vld [vmem:[%s3313 + $0x1e2] sm:$0xff]
  %v4571 = vld [vmem:[%s3313 + $0x1ea] sm:$0xff]
  %v4572 = vld [vmem:[%s3313 + $0x1fa] sm:$0xff]
  %v4573 = vld [vmem:[%s3313 + $0x202] sm:$0xff]
  %v4574 = vld [vmem:[%s3313 + $0x212] sm:$0xff]
  %v4575 = vld [vmem:[%s3313 + $0x21a] sm:$0xff]
  %v4576 = vld [vmem:[%s3313 + $0x22a] sm:$0xff]
  %v4577 = vld [vmem:[%s3313 + $0x232] sm:$0xff]
  %v4578 = vld [vmem:[%s3313 + $0x242] sm:$0xff]
  %v4579 = vld [vmem:[%s3313 + $0x24a] sm:$0xff]
  %v4580 = vld [vmem:[%s3313 + $0x25a] sm:$0xff]
  %v4581 = vld [vmem:[%s3313 + $0x262] sm:$0xff]
  %v4582 = vld [vmem:[%s3313 + $0x272] sm:$0xff]
  %v4583 = vld [vmem:[%s3313 + $0x27a] sm:$0xff]
  %v4584 = vld [vmem:[%s3313 + $0x28a] sm:$0xff]
  %v4585 = vld [vmem:[%s3313 + $0x292] sm:$0xff]
  %v4586 = vld [vmem:[%s3313 + $0x2a2] sm:$0xff]
  %v4587 = vld [vmem:[%s3313 + $0x2aa] sm:$0xff]
  %v4588 = vld [vmem:[%s3313 + $0x2ba] sm:$0xff]
  %v4589 = vld [vmem:[%s3313 + $0x2c2] sm:$0xff]
  %v4590 = vld [vmem:[%s3313 + $0x2d2] sm:$0xff]
  %v4591 = vld [vmem:[%s3313 + $0x2da] sm:$0xff]
  %v4592 = vld [vmem:[%s3313 + $0x2ea] sm:$0xff]
  %v4593 = vld [vmem:[%s3313 + $0x2f2] sm:$0xff]
  %v4594 = vld [vmem:[%s3313 + $0x302] sm:$0xff]
  %v4595 = vld [vmem:[%s3313 + $0x30a] sm:$0xff]
  %v4596 = vld [vmem:[%s3313 + $0x31a] sm:$0xff]
  %v4597 = vld [vmem:[%s3313 + $0x322] sm:$0xff]
  %v4598 = vpack.c.bf16 %v4535, %v4534
  %v4599 = vpack.c.bf16 %v4537, %v4536
  %v4600 = vpack.c.bf16 %v4539, %v4538
  %v4601 = vpack.c.bf16 %v4541, %v4540
  %v4602 = vpack.c.bf16 %v4543, %v4542
  %v4603 = vpack.c.bf16 %v4545, %v4544
  %v4604 = vpack.c.bf16 %v4547, %v4546
  %v4605 = vpack.c.bf16 %v4549, %v4548
  %v4606 = vpack.c.bf16 %v4551, %v4550
  %v4607 = vpack.c.bf16 %v4553, %v4552
  %v4608 = vpack.c.bf16 %v4555, %v4554
  %v4609 = vpack.c.bf16 %v4557, %v4556
  %v4610 = vpack.c.bf16 %v4559, %v4558
  %v4611 = vpack.c.bf16 %v4561, %v4560
  %v4612 = vpack.c.bf16 %v4563, %v4562
  %v4613 = vpack.c.bf16 %v4565, %v4564
  %v4614 = vpack.c.bf16 %v4567, %v4566
  %v4615 = vpack.c.bf16 %v4569, %v4568
  %v4616 = vpack.c.bf16 %v4571, %v4570
  %v4617 = vpack.c.bf16 %v4573, %v4572
  %v4618 = vpack.c.bf16 %v4575, %v4574
  %v4619 = vpack.c.bf16 %v4577, %v4576
  %v4620 = vpack.c.bf16 %v4579, %v4578
  %v4621 = vpack.c.bf16 %v4581, %v4580
  %v4622 = vpack.c.bf16 %v4583, %v4582
  %v4623 = vpack.c.bf16 %v4585, %v4584
  %v4624 = vpack.c.bf16 %v4587, %v4586
  %v4625 = vpack.c.bf16 %v4589, %v4588
  %v4626 = vpack.c.bf16 %v4591, %v4590
  %v4627 = vpack.c.bf16 %v4593, %v4592
  %v4628 = vpack.c.bf16 %v4595, %v4594
  %v4629 = vpack.c.bf16 %v4597, %v4596
  %4662 = vrot.lane.b32.xlu0 %v4598, 40
  %v4663 = vpop.permute.xlu0 %4662
  %4664 = vrot.lane.b32.xlu0 %v4599, 40
  %v4665 = vpop.permute.xlu0 %4664
  %4666 = vrot.lane.b32.xlu0 %v4600, 40
  %v4667 = vpop.permute.xlu0 %4666
  %4668 = vrot.lane.b32.xlu0 %v4601, 40
  %v4669 = vpop.permute.xlu0 %4668
  %4670 = vrot.lane.b32.xlu0 %v4602, 40
  %v4671 = vpop.permute.xlu0 %4670
  %4672 = vrot.lane.b32.xlu0 %v4603, 40
  %v4673 = vpop.permute.xlu0 %4672
  %4674 = vrot.lane.b32.xlu0 %v4604, 40
  %v4675 = vpop.permute.xlu0 %4674
  %4676 = vrot.lane.b32.xlu0 %v4605, 40
  %v4677 = vpop.permute.xlu0 %4676
  %4678 = vrot.lane.b32.xlu0 %v4606, 40
  %v4679 = vpop.permute.xlu0 %4678
  %4680 = vrot.lane.b32.xlu0 %v4607, 40
  %v4681 = vpop.permute.xlu0 %4680
  %4682 = vrot.lane.b32.xlu0 %v4608, 40
  %v4683 = vpop.permute.xlu0 %4682
  %4684 = vrot.lane.b32.xlu0 %v4609, 40
  %v4685 = vpop.permute.xlu0 %4684
  %4686 = vrot.lane.b32.xlu0 %v4610, 40
  %v4687 = vpop.permute.xlu0 %4686
  %4688 = vrot.lane.b32.xlu0 %v4611, 40
  %v4689 = vpop.permute.xlu0 %4688
  %4690 = vrot.lane.b32.xlu0 %v4612, 40
  %v4691 = vpop.permute.xlu0 %4690
  %4692 = vrot.lane.b32.xlu0 %v4613, 40
  %v4693 = vpop.permute.xlu0 %4692
  %4694 = vrot.lane.b32.xlu0 %v4614, 40
  %v4695 = vpop.permute.xlu0 %4694
  %4696 = vrot.lane.b32.xlu0 %v4615, 40
  %v4697 = vpop.permute.xlu0 %4696
  %4698 = vrot.lane.b32.xlu0 %v4616, 40
  %v4699 = vpop.permute.xlu0 %4698
  %4700 = vrot.lane.b32.xlu0 %v4617, 40
  %v4701 = vpop.permute.xlu0 %4700
  %4702 = vrot.lane.b32.xlu0 %v4618, 40
  %v4703 = vpop.permute.xlu0 %4702
  %4704 = vrot.lane.b32.xlu0 %v4619, 40
  %v4705 = vpop.permute.xlu0 %4704
  %4706 = vrot.lane.b32.xlu0 %v4620, 40
  %v4707 = vpop.permute.xlu0 %4706
  %4708 = vrot.lane.b32.xlu0 %v4621, 40
  %v4709 = vpop.permute.xlu0 %4708
  %4710 = vrot.lane.b32.xlu0 %v4622, 40
  %v4711 = vpop.permute.xlu0 %4710
  %4712 = vrot.lane.b32.xlu0 %v4623, 40
  %v4713 = vpop.permute.xlu0 %4712
  %4714 = vrot.lane.b32.xlu0 %v4624, 40
  %v4715 = vpop.permute.xlu0 %4714
  %4716 = vrot.lane.b32.xlu0 %v4625, 40
  %v4717 = vpop.permute.xlu0 %4716
  %4718 = vrot.lane.b32.xlu0 %v4626, 40
  %v4719 = vpop.permute.xlu0 %4718
  %4720 = vrot.lane.b32.xlu0 %v4627, 40
  %v4721 = vpop.permute.xlu0 %4720
  %4722 = vrot.lane.b32.xlu0 %v4628, 40
  %v4723 = vpop.permute.xlu0 %4722
  %4724 = vrot.lane.b32.xlu0 %v4629, 40
  %v4725 = vpop.permute.xlu0 %4724
  %vm4758 = vcmask 392512
  %4759 = vst.msk [vmem:[#allocation4] sm:$0xff] %vm4758, %v4663
  %4760 = vst.msk [vmem:[#allocation4 + $0x8] sm:$0xff] %vm4758, %v4665
  %4761 = vst.msk [vmem:[#allocation4 + $0x10] sm:$0xff] %vm4758, %v4667
  %4762 = vst.msk [vmem:[#allocation4 + $0x18] sm:$0xff] %vm4758, %v4669
  %4763 = vst.msk [vmem:[#allocation4 + $0x20] sm:$0xff] %vm4758, %v4671
  %4764 = vst.msk [vmem:[#allocation4 + $0x28] sm:$0xff] %vm4758, %v4673
  %4765 = vst.msk [vmem:[#allocation4 + $0x30] sm:$0xff] %vm4758, %v4675
  %4766 = vst.msk [vmem:[#allocation4 + $0x38] sm:$0xff] %vm4758, %v4677
  %4767 = vst.msk [vmem:[#allocation4 + $0x40] sm:$0xff] %vm4758, %v4679
  %4768 = vst.msk [vmem:[#allocation4 + $0x48] sm:$0xff] %vm4758, %v4681
  %4769 = vst.msk [vmem:[#allocation4 + $0x50] sm:$0xff] %vm4758, %v4683
  %4770 = vst.msk [vmem:[#allocation4 + $0x58] sm:$0xff] %vm4758, %v4685
  %4771 = vst.msk [vmem:[#allocation4 + $0x60] sm:$0xff] %vm4758, %v4687
  %4772 = vst.msk [vmem:[#allocation4 + $0x68] sm:$0xff] %vm4758, %v4689
  %4773 = vst.msk [vmem:[#allocation4 + $0x70] sm:$0xff] %vm4758, %v4691
  %4774 = vst.msk [vmem:[#allocation4 + $0x78] sm:$0xff] %vm4758, %v4693
  %4775 = vst.msk [vmem:[#allocation4 + $0x80] sm:$0xff] %vm4758, %v4695
  %4776 = vst.msk [vmem:[#allocation4 + $0x88] sm:$0xff] %vm4758, %v4697
  %4777 = vst.msk [vmem:[#allocation4 + $0x90] sm:$0xff] %vm4758, %v4699
  %4778 = vst.msk [vmem:[#allocation4 + $0x98] sm:$0xff] %vm4758, %v4701
  %4779 = vst.msk [vmem:[#allocation4 + $0xa0] sm:$0xff] %vm4758, %v4703
  %4780 = vst.msk [vmem:[#allocation4 + $0xa8] sm:$0xff] %vm4758, %v4705
  %4781 = vst.msk [vmem:[#allocation4 + $0xb0] sm:$0xff] %vm4758, %v4707
  %4782 = vst.msk [vmem:[#allocation4 + $0xb8] sm:$0xff] %vm4758, %v4709
  %4783 = vst.msk [vmem:[#allocation4 + $0xc0] sm:$0xff] %vm4758, %v4711
  %4784 = vst.msk [vmem:[#allocation4 + $0xc8] sm:$0xff] %vm4758, %v4713
  %4785 = vst.msk [vmem:[#allocation4 + $0xd0] sm:$0xff] %vm4758, %v4715
  %4786 = vst.msk [vmem:[#allocation4 + $0xd8] sm:$0xff] %vm4758, %v4717
  %4787 = vst.msk [vmem:[#allocation4 + $0xe0] sm:$0xff] %vm4758, %v4719
  %4788 = vst.msk [vmem:[#allocation4 + $0xe8] sm:$0xff] %vm4758, %v4721
  %4789 = vst.msk [vmem:[#allocation4 + $0xf0] sm:$0xff] %vm4758, %v4723
  %4790 = vst.msk [vmem:[#allocation4 + $0xf8] sm:$0xff] %vm4758, %v4725
  %s4791 = scalar_lea.vmem [#allocation3], 48
  %v4792 = vld [vmem:[%s4791] sm:$0xff]
  %v4793 = vld [vmem:[%s4791 + $0x8] sm:$0xff]
  %v4794 = vld [vmem:[%s4791 + $0x18] sm:$0xff]
  %v4795 = vld [vmem:[%s4791 + $0x20] sm:$0xff]
  %v4796 = vld [vmem:[%s4791 + $0x30] sm:$0xff]
  %v4797 = vld [vmem:[%s4791 + $0x38] sm:$0xff]
  %v4798 = vld [vmem:[%s4791 + $0x48] sm:$0xff]
  %v4799 = vld [vmem:[%s4791 + $0x50] sm:$0xff]
  %v4800 = vld [vmem:[%s4791 + $0x60] sm:$0xff]
  %v4801 = vld [vmem:[%s4791 + $0x68] sm:$0xff]
  %v4802 = vld [vmem:[%s4791 + $0x78] sm:$0xff]
  %v4803 = vld [vmem:[%s4791 + $0x80] sm:$0xff]
  %v4804 = vld [vmem:[%s4791 + $0x90] sm:$0xff]
  %v4805 = vld [vmem:[%s4791 + $0x98] sm:$0xff]
  %v4806 = vld [vmem:[%s4791 + $0xa8] sm:$0xff]
  %v4807 = vld [vmem:[%s4791 + $0xb0] sm:$0xff]
  %v4808 = vld [vmem:[%s4791 + $0xc0] sm:$0xff]
  %v4809 = vld [vmem:[%s4791 + $0xc8] sm:$0xff]
  %v4810 = vld [vmem:[%s4791 + $0xd8] sm:$0xff]
  %v4811 = vld [vmem:[%s4791 + $0xe0] sm:$0xff]
  %v4812 = vld [vmem:[%s4791 + $0xf0] sm:$0xff]
  %v4813 = vld [vmem:[%s4791 + $0xf8] sm:$0xff]
  %v4814 = vld [vmem:[%s4791 + $0x108] sm:$0xff]
  %v4815 = vld [vmem:[%s4791 + $0x110] sm:$0xff]
  %v4816 = vld [vmem:[%s4791 + $0x120] sm:$0xff]
  %v4817 = vld [vmem:[%s4791 + $0x128] sm:$0xff]
  %v4818 = vld [vmem:[%s4791 + $0x138] sm:$0xff]
  %v4819 = vld [vmem:[%s4791 + $0x140] sm:$0xff]
  %v4820 = vld [vmem:[%s4791 + $0x150] sm:$0xff]
  %v4821 = vld [vmem:[%s4791 + $0x158] sm:$0xff]
  %v4822 = vld [vmem:[%s4791 + $0x168] sm:$0xff]
  %v4823 = vld [vmem:[%s4791 + $0x170] sm:$0xff]
  %v4824 = vld [vmem:[%s4791 + $0x1b0] sm:$0xff]
  %v4825 = vld [vmem:[%s4791 + $0x1b8] sm:$0xff]
  %v4826 = vld [vmem:[%s4791 + $0x1c8] sm:$0xff]
  %v4827 = vld [vmem:[%s4791 + $0x1d0] sm:$0xff]
  %v4828 = vld [vmem:[%s4791 + $0x1e0] sm:$0xff]
  %v4829 = vld [vmem:[%s4791 + $0x1e8] sm:$0xff]
  %v4830 = vld [vmem:[%s4791 + $0x1f8] sm:$0xff]
  %v4831 = vld [vmem:[%s4791 + $0x200] sm:$0xff]
  %v4832 = vld [vmem:[%s4791 + $0x210] sm:$0xff]
  %v4833 = vld [vmem:[%s4791 + $0x218] sm:$0xff]
  %v4834 = vld [vmem:[%s4791 + $0x228] sm:$0xff]
  %v4835 = vld [vmem:[%s4791 + $0x230] sm:$0xff]
  %v4836 = vld [vmem:[%s4791 + $0x240] sm:$0xff]
  %v4837 = vld [vmem:[%s4791 + $0x248] sm:$0xff]
  %v4838 = vld [vmem:[%s4791 + $0x258] sm:$0xff]
  %v4839 = vld [vmem:[%s4791 + $0x260] sm:$0xff]
  %v4840 = vld [vmem:[%s4791 + $0x270] sm:$0xff]
  %v4841 = vld [vmem:[%s4791 + $0x278] sm:$0xff]
  %v4842 = vld [vmem:[%s4791 + $0x288] sm:$0xff]
  %v4843 = vld [vmem:[%s4791 + $0x290] sm:$0xff]
  %v4844 = vld [vmem:[%s4791 + $0x2a0] sm:$0xff]
  %v4845 = vld [vmem:[%s4791 + $0x2a8] sm:$0xff]
  %v4846 = vld [vmem:[%s4791 + $0x2b8] sm:$0xff]
  %v4847 = vld [vmem:[%s4791 + $0x2c0] sm:$0xff]
  %v4848 = vld [vmem:[%s4791 + $0x2d0] sm:$0xff]
  %v4849 = vld [vmem:[%s4791 + $0x2d8] sm:$0xff]
  %v4850 = vld [vmem:[%s4791 + $0x2e8] sm:$0xff]
  %v4851 = vld [vmem:[%s4791 + $0x2f0] sm:$0xff]
  %v4852 = vld [vmem:[%s4791 + $0x300] sm:$0xff]
  %v4853 = vld [vmem:[%s4791 + $0x308] sm:$0xff]
  %v4854 = vld [vmem:[%s4791 + $0x318] sm:$0xff]
  %v4855 = vld [vmem:[%s4791 + $0x320] sm:$0xff]
  %v4856 = vpack.c.bf16 %v4793, %v4792
  %v4857 = vpack.c.bf16 %v4795, %v4794
  %v4858 = vpack.c.bf16 %v4797, %v4796
  %v4859 = vpack.c.bf16 %v4799, %v4798
  %v4860 = vpack.c.bf16 %v4801, %v4800
  %v4861 = vpack.c.bf16 %v4803, %v4802
  %v4862 = vpack.c.bf16 %v4805, %v4804
  %v4863 = vpack.c.bf16 %v4807, %v4806
  %v4864 = vpack.c.bf16 %v4809, %v4808
  %v4865 = vpack.c.bf16 %v4811, %v4810
  %v4866 = vpack.c.bf16 %v4813, %v4812
  %v4867 = vpack.c.bf16 %v4815, %v4814
  %v4868 = vpack.c.bf16 %v4817, %v4816
  %v4869 = vpack.c.bf16 %v4819, %v4818
  %v4870 = vpack.c.bf16 %v4821, %v4820
  %v4871 = vpack.c.bf16 %v4823, %v4822
  %v4872 = vpack.c.bf16 %v4825, %v4824
  %v4873 = vpack.c.bf16 %v4827, %v4826
  %v4874 = vpack.c.bf16 %v4829, %v4828
  %v4875 = vpack.c.bf16 %v4831, %v4830
  %v4876 = vpack.c.bf16 %v4833, %v4832
  %v4877 = vpack.c.bf16 %v4835, %v4834
  %v4878 = vpack.c.bf16 %v4837, %v4836
  %v4879 = vpack.c.bf16 %v4839, %v4838
  %v4880 = vpack.c.bf16 %v4841, %v4840
  %v4881 = vpack.c.bf16 %v4843, %v4842
  %v4882 = vpack.c.bf16 %v4845, %v4844
  %v4883 = vpack.c.bf16 %v4847, %v4846
  %v4884 = vpack.c.bf16 %v4849, %v4848
  %v4885 = vpack.c.bf16 %v4851, %v4850
  %v4886 = vpack.c.bf16 %v4853, %v4852
  %v4887 = vpack.c.bf16 %v4855, %v4854
  %4920 = vrot.lane.b32.xlu0 %v4856, 48
  %v4921 = vpop.permute.xlu0 %4920
  %4922 = vrot.lane.b32.xlu0 %v4857, 48
  %v4923 = vpop.permute.xlu0 %4922
  %4924 = vrot.lane.b32.xlu0 %v4858, 48
  %v4925 = vpop.permute.xlu0 %4924
  %4926 = vrot.lane.b32.xlu0 %v4859, 48
  %v4927 = vpop.permute.xlu0 %4926
  %4928 = vrot.lane.b32.xlu0 %v4860, 48
  %v4929 = vpop.permute.xlu0 %4928
  %4930 = vrot.lane.b32.xlu0 %v4861, 48
  %v4931 = vpop.permute.xlu0 %4930
  %4932 = vrot.lane.b32.xlu0 %v4862, 48
  %v4933 = vpop.permute.xlu0 %4932
  %4934 = vrot.lane.b32.xlu0 %v4863, 48
  %v4935 = vpop.permute.xlu0 %4934
  %4936 = vrot.lane.b32.xlu0 %v4864, 48
  %v4937 = vpop.permute.xlu0 %4936
  %4938 = vrot.lane.b32.xlu0 %v4865, 48
  %v4939 = vpop.permute.xlu0 %4938
  %4940 = vrot.lane.b32.xlu0 %v4866, 48
  %v4941 = vpop.permute.xlu0 %4940
  %4942 = vrot.lane.b32.xlu0 %v4867, 48
  %v4943 = vpop.permute.xlu0 %4942
  %4944 = vrot.lane.b32.xlu0 %v4868, 48
  %v4945 = vpop.permute.xlu0 %4944
  %4946 = vrot.lane.b32.xlu0 %v4869, 48
  %v4947 = vpop.permute.xlu0 %4946
  %4948 = vrot.lane.b32.xlu0 %v4870, 48
  %v4949 = vpop.permute.xlu0 %4948
  %4950 = vrot.lane.b32.xlu0 %v4871, 48
  %v4951 = vpop.permute.xlu0 %4950
  %4952 = vrot.lane.b32.xlu0 %v4872, 48
  %v4953 = vpop.permute.xlu0 %4952
  %4954 = vrot.lane.b32.xlu0 %v4873, 48
  %v4955 = vpop.permute.xlu0 %4954
  %4956 = vrot.lane.b32.xlu0 %v4874, 48
  %v4957 = vpop.permute.xlu0 %4956
  %4958 = vrot.lane.b32.xlu0 %v4875, 48
  %v4959 = vpop.permute.xlu0 %4958
  %4960 = vrot.lane.b32.xlu0 %v4876, 48
  %v4961 = vpop.permute.xlu0 %4960
  %4962 = vrot.lane.b32.xlu0 %v4877, 48
  %v4963 = vpop.permute.xlu0 %4962
  %4964 = vrot.lane.b32.xlu0 %v4878, 48
  %v4965 = vpop.permute.xlu0 %4964
  %4966 = vrot.lane.b32.xlu0 %v4879, 48
  %v4967 = vpop.permute.xlu0 %4966
  %4968 = vrot.lane.b32.xlu0 %v4880, 48
  %v4969 = vpop.permute.xlu0 %4968
  %4970 = vrot.lane.b32.xlu0 %v4881, 48
  %v4971 = vpop.permute.xlu0 %4970
  %4972 = vrot.lane.b32.xlu0 %v4882, 48
  %v4973 = vpop.permute.xlu0 %4972
  %4974 = vrot.lane.b32.xlu0 %v4883, 48
  %v4975 = vpop.permute.xlu0 %4974
  %4976 = vrot.lane.b32.xlu0 %v4884, 48
  %v4977 = vpop.permute.xlu0 %4976
  %4978 = vrot.lane.b32.xlu0 %v4885, 48
  %v4979 = vpop.permute.xlu0 %4978
  %4980 = vrot.lane.b32.xlu0 %v4886, 48
  %v4981 = vpop.permute.xlu0 %4980
  %4982 = vrot.lane.b32.xlu0 %v4887, 48
  %v4983 = vpop.permute.xlu0 %4982
  %vm5016 = vcmask 458112
  %5017 = vst.msk [vmem:[#allocation4] sm:$0xff] %vm5016, %v4921
  %5018 = vst.msk [vmem:[#allocation4 + $0x8] sm:$0xff] %vm5016, %v4923
  %5019 = vst.msk [vmem:[#allocation4 + $0x10] sm:$0xff] %vm5016, %v4925
  %5020 = vst.msk [vmem:[#allocation4 + $0x18] sm:$0xff] %vm5016, %v4927
  %5021 = vst.msk [vmem:[#allocation4 + $0x20] sm:$0xff] %vm5016, %v4929
  %5022 = vst.msk [vmem:[#allocation4 + $0x28] sm:$0xff] %vm5016, %v4931
  %5023 = vst.msk [vmem:[#allocation4 + $0x30] sm:$0xff] %vm5016, %v4933
  %5024 = vst.msk [vmem:[#allocation4 + $0x38] sm:$0xff] %vm5016, %v4935
  %5025 = vst.msk [vmem:[#allocation4 + $0x40] sm:$0xff] %vm5016, %v4937
  %5026 = vst.msk [vmem:[#allocation4 + $0x48] sm:$0xff] %vm5016, %v4939
  %5027 = vst.msk [vmem:[#allocation4 + $0x50] sm:$0xff] %vm5016, %v4941
  %5028 = vst.msk [vmem:[#allocation4 + $0x58] sm:$0xff] %vm5016, %v4943
  %5029 = vst.msk [vmem:[#allocation4 + $0x60] sm:$0xff] %vm5016, %v4945
  %5030 = vst.msk [vmem:[#allocation4 + $0x68] sm:$0xff] %vm5016, %v4947
  %5031 = vst.msk [vmem:[#allocation4 + $0x70] sm:$0xff] %vm5016, %v4949
  %5032 = vst.msk [vmem:[#allocation4 + $0x78] sm:$0xff] %vm5016, %v4951
  %5033 = vst.msk [vmem:[#allocation4 + $0x80] sm:$0xff] %vm5016, %v4953
  %5034 = vst.msk [vmem:[#allocation4 + $0x88] sm:$0xff] %vm5016, %v4955
  %5035 = vst.msk [vmem:[#allocation4 + $0x90] sm:$0xff] %vm5016, %v4957
  %5036 = vst.msk [vmem:[#allocation4 + $0x98] sm:$0xff] %vm5016, %v4959
  %5037 = vst.msk [vmem:[#allocation4 + $0xa0] sm:$0xff] %vm5016, %v4961
  %5038 = vst.msk [vmem:[#allocation4 + $0xa8] sm:$0xff] %vm5016, %v4963
  %5039 = vst.msk [vmem:[#allocation4 + $0xb0] sm:$0xff] %vm5016, %v4965
  %5040 = vst.msk [vmem:[#allocation4 + $0xb8] sm:$0xff] %vm5016, %v4967
  %5041 = vst.msk [vmem:[#allocation4 + $0xc0] sm:$0xff] %vm5016, %v4969
  %5042 = vst.msk [vmem:[#allocation4 + $0xc8] sm:$0xff] %vm5016, %v4971
  %5043 = vst.msk [vmem:[#allocation4 + $0xd0] sm:$0xff] %vm5016, %v4973
  %5044 = vst.msk [vmem:[#allocation4 + $0xd8] sm:$0xff] %vm5016, %v4975
  %5045 = vst.msk [vmem:[#allocation4 + $0xe0] sm:$0xff] %vm5016, %v4977
  %5046 = vst.msk [vmem:[#allocation4 + $0xe8] sm:$0xff] %vm5016, %v4979
  %5047 = vst.msk [vmem:[#allocation4 + $0xf0] sm:$0xff] %vm5016, %v4981
  %5048 = vst.msk [vmem:[#allocation4 + $0xf8] sm:$0xff] %vm5016, %v4983
  %v5049 = vld [vmem:[%s4791 + $0x1] sm:$0xff]
  %v5050 = vld [vmem:[%s4791 + $0x9] sm:$0xff]
  %v5051 = vld [vmem:[%s4791 + $0x19] sm:$0xff]
  %v5052 = vld [vmem:[%s4791 + $0x21] sm:$0xff]
  %v5053 = vld [vmem:[%s4791 + $0x31] sm:$0xff]
  %v5054 = vld [vmem:[%s4791 + $0x39] sm:$0xff]
  %v5055 = vld [vmem:[%s4791 + $0x49] sm:$0xff]
  %v5056 = vld [vmem:[%s4791 + $0x51] sm:$0xff]
  %v5057 = vld [vmem:[%s4791 + $0x61] sm:$0xff]
  %v5058 = vld [vmem:[%s4791 + $0x69] sm:$0xff]
  %v5059 = vld [vmem:[%s4791 + $0x79] sm:$0xff]
  %v5060 = vld [vmem:[%s4791 + $0x81] sm:$0xff]
  %v5061 = vld [vmem:[%s4791 + $0x91] sm:$0xff]
  %v5062 = vld [vmem:[%s4791 + $0x99] sm:$0xff]
  %v5063 = vld [vmem:[%s4791 + $0xa9] sm:$0xff]
  %v5064 = vld [vmem:[%s4791 + $0xb1] sm:$0xff]
  %v5065 = vld [vmem:[%s4791 + $0xc1] sm:$0xff]
  %v5066 = vld [vmem:[%s4791 + $0xc9] sm:$0xff]
  %v5067 = vld [vmem:[%s4791 + $0xd9] sm:$0xff]
  %v5068 = vld [vmem:[%s4791 + $0xe1] sm:$0xff]
  %v5069 = vld [vmem:[%s4791 + $0xf1] sm:$0xff]
  %v5070 = vld [vmem:[%s4791 + $0xf9] sm:$0xff]
  %v5071 = vld [vmem:[%s4791 + $0x109] sm:$0xff]
  %v5072 = vld [vmem:[%s4791 + $0x111] sm:$0xff]
  %v5073 = vld [vmem:[%s4791 + $0x121] sm:$0xff]
  %v5074 = vld [vmem:[%s4791 + $0x129] sm:$0xff]
  %v5075 = vld [vmem:[%s4791 + $0x139] sm:$0xff]
  %v5076 = vld [vmem:[%s4791 + $0x141] sm:$0xff]
  %v5077 = vld [vmem:[%s4791 + $0x151] sm:$0xff]
  %v5078 = vld [vmem:[%s4791 + $0x159] sm:$0xff]
  %v5079 = vld [vmem:[%s4791 + $0x169] sm:$0xff]
  %v5080 = vld [vmem:[%s4791 + $0x171] sm:$0xff]
  %v5081 = vld [vmem:[%s4791 + $0x1b1] sm:$0xff]
  %v5082 = vld [vmem:[%s4791 + $0x1b9] sm:$0xff]
  %v5083 = vld [vmem:[%s4791 + $0x1c9] sm:$0xff]
  %v5084 = vld [vmem:[%s4791 + $0x1d1] sm:$0xff]
  %v5085 = vld [vmem:[%s4791 + $0x1e1] sm:$0xff]
  %v5086 = vld [vmem:[%s4791 + $0x1e9] sm:$0xff]
  %v5087 = vld [vmem:[%s4791 + $0x1f9] sm:$0xff]
  %v5088 = vld [vmem:[%s4791 + $0x201] sm:$0xff]
  %v5089 = vld [vmem:[%s4791 + $0x211] sm:$0xff]
  %v5090 = vld [vmem:[%s4791 + $0x219] sm:$0xff]
  %v5091 = vld [vmem:[%s4791 + $0x229] sm:$0xff]
  %v5092 = vld [vmem:[%s4791 + $0x231] sm:$0xff]
  %v5093 = vld [vmem:[%s4791 + $0x241] sm:$0xff]
  %v5094 = vld [vmem:[%s4791 + $0x249] sm:$0xff]
  %v5095 = vld [vmem:[%s4791 + $0x259] sm:$0xff]
  %v5096 = vld [vmem:[%s4791 + $0x261] sm:$0xff]
  %v5097 = vld [vmem:[%s4791 + $0x271] sm:$0xff]
  %v5098 = vld [vmem:[%s4791 + $0x279] sm:$0xff]
  %v5099 = vld [vmem:[%s4791 + $0x289] sm:$0xff]
  %v5100 = vld [vmem:[%s4791 + $0x291] sm:$0xff]
  %v5101 = vld [vmem:[%s4791 + $0x2a1] sm:$0xff]
  %v5102 = vld [vmem:[%s4791 + $0x2a9] sm:$0xff]
  %v5103 = vld [vmem:[%s4791 + $0x2b9] sm:$0xff]
  %v5104 = vld [vmem:[%s4791 + $0x2c1] sm:$0xff]
  %v5105 = vld [vmem:[%s4791 + $0x2d1] sm:$0xff]
  %v5106 = vld [vmem:[%s4791 + $0x2d9] sm:$0xff]
  %v5107 = vld [vmem:[%s4791 + $0x2e9] sm:$0xff]
  %v5108 = vld [vmem:[%s4791 + $0x2f1] sm:$0xff]
  %v5109 = vld [vmem:[%s4791 + $0x301] sm:$0xff]
  %v5110 = vld [vmem:[%s4791 + $0x309] sm:$0xff]
  %v5111 = vld [vmem:[%s4791 + $0x319] sm:$0xff]
  %v5112 = vld [vmem:[%s4791 + $0x321] sm:$0xff]
  %v5113 = vpack.c.bf16 %v5050, %v5049
  %v5114 = vpack.c.bf16 %v5052, %v5051
  %v5115 = vpack.c.bf16 %v5054, %v5053
  %v5116 = vpack.c.bf16 %v5056, %v5055
  %v5117 = vpack.c.bf16 %v5058, %v5057
  %v5118 = vpack.c.bf16 %v5060, %v5059
  %v5119 = vpack.c.bf16 %v5062, %v5061
  %v5120 = vpack.c.bf16 %v5064, %v5063
  %v5121 = vpack.c.bf16 %v5066, %v5065
  %v5122 = vpack.c.bf16 %v5068, %v5067
  %v5123 = vpack.c.bf16 %v5070, %v5069
  %v5124 = vpack.c.bf16 %v5072, %v5071
  %v5125 = vpack.c.bf16 %v5074, %v5073
  %v5126 = vpack.c.bf16 %v5076, %v5075
  %v5127 = vpack.c.bf16 %v5078, %v5077
  %v5128 = vpack.c.bf16 %v5080, %v5079
  %v5129 = vpack.c.bf16 %v5082, %v5081
  %v5130 = vpack.c.bf16 %v5084, %v5083
  %v5131 = vpack.c.bf16 %v5086, %v5085
  %v5132 = vpack.c.bf16 %v5088, %v5087
  %v5133 = vpack.c.bf16 %v5090, %v5089
  %v5134 = vpack.c.bf16 %v5092, %v5091
  %v5135 = vpack.c.bf16 %v5094, %v5093
  %v5136 = vpack.c.bf16 %v5096, %v5095
  %v5137 = vpack.c.bf16 %v5098, %v5097
  %v5138 = vpack.c.bf16 %v5100, %v5099
  %v5139 = vpack.c.bf16 %v5102, %v5101
  %v5140 = vpack.c.bf16 %v5104, %v5103
  %v5141 = vpack.c.bf16 %v5106, %v5105
  %v5142 = vpack.c.bf16 %v5108, %v5107
  %v5143 = vpack.c.bf16 %v5110, %v5109
  %v5144 = vpack.c.bf16 %v5112, %v5111
  %5177 = vrot.lane.b32.xlu0 %v5113, 56
  %v5178 = vpop.permute.xlu0 %5177
  %5179 = vrot.lane.b32.xlu0 %v5114, 56
  %v5180 = vpop.permute.xlu0 %5179
  %5181 = vrot.lane.b32.xlu0 %v5115, 56
  %v5182 = vpop.permute.xlu0 %5181
  %5183 = vrot.lane.b32.xlu0 %v5116, 56
  %v5184 = vpop.permute.xlu0 %5183
  %5185 = vrot.lane.b32.xlu0 %v5117, 56
  %v5186 = vpop.permute.xlu0 %5185
  %5187 = vrot.lane.b32.xlu0 %v5118, 56
  %v5188 = vpop.permute.xlu0 %5187
  %5189 = vrot.lane.b32.xlu0 %v5119, 56
  %v5190 = vpop.permute.xlu0 %5189
  %5191 = vrot.lane.b32.xlu0 %v5120, 56
  %v5192 = vpop.permute.xlu0 %5191
  %5193 = vrot.lane.b32.xlu0 %v5121, 56
  %v5194 = vpop.permute.xlu0 %5193
  %5195 = vrot.lane.b32.xlu0 %v5122, 56
  %v5196 = vpop.permute.xlu0 %5195
  %5197 = vrot.lane.b32.xlu0 %v5123, 56
  %v5198 = vpop.permute.xlu0 %5197
  %5199 = vrot.lane.b32.xlu0 %v5124, 56
  %v5200 = vpop.permute.xlu0 %5199
  %5201 = vrot.lane.b32.xlu0 %v5125, 56
  %v5202 = vpop.permute.xlu0 %5201
  %5203 = vrot.lane.b32.xlu0 %v5126, 56
  %v5204 = vpop.permute.xlu0 %5203
  %5205 = vrot.lane.b32.xlu0 %v5127, 56
  %v5206 = vpop.permute.xlu0 %5205
  %5207 = vrot.lane.b32.xlu0 %v5128, 56
  %v5208 = vpop.permute.xlu0 %5207
  %5209 = vrot.lane.b32.xlu0 %v5129, 56
  %v5210 = vpop.permute.xlu0 %5209
  %5211 = vrot.lane.b32.xlu0 %v5130, 56
  %v5212 = vpop.permute.xlu0 %5211
  %5213 = vrot.lane.b32.xlu0 %v5131, 56
  %v5214 = vpop.permute.xlu0 %5213
  %5215 = vrot.lane.b32.xlu0 %v5132, 56
  %v5216 = vpop.permute.xlu0 %5215
  %5217 = vrot.lane.b32.xlu0 %v5133, 56
  %v5218 = vpop.permute.xlu0 %5217
  %5219 = vrot.lane.b32.xlu0 %v5134, 56
  %v5220 = vpop.permute.xlu0 %5219
  %5221 = vrot.lane.b32.xlu0 %v5135, 56
  %v5222 = vpop.permute.xlu0 %5221
  %5223 = vrot.lane.b32.xlu0 %v5136, 56
  %v5224 = vpop.permute.xlu0 %5223
  %5225 = vrot.lane.b32.xlu0 %v5137, 56
  %v5226 = vpop.permute.xlu0 %5225
  %5227 = vrot.lane.b32.xlu0 %v5138, 56
  %v5228 = vpop.permute.xlu0 %5227
  %5229 = vrot.lane.b32.xlu0 %v5139, 56
  %v5230 = vpop.permute.xlu0 %5229
  %5231 = vrot.lane.b32.xlu0 %v5140, 56
  %v5232 = vpop.permute.xlu0 %5231
  %5233 = vrot.lane.b32.xlu0 %v5141, 56
  %v5234 = vpop.permute.xlu0 %5233
  %5235 = vrot.lane.b32.xlu0 %v5142, 56
  %v5236 = vpop.permute.xlu0 %5235
  %5237 = vrot.lane.b32.xlu0 %v5143, 56
  %v5238 = vpop.permute.xlu0 %5237
  %5239 = vrot.lane.b32.xlu0 %v5144, 56
  %v5240 = vpop.permute.xlu0 %5239
  %vm5273 = vcmask 523712
  %5274 = vst.msk [vmem:[#allocation4] sm:$0xff] %vm5273, %v5178
  %5275 = vst.msk [vmem:[#allocation4 + $0x8] sm:$0xff] %vm5273, %v5180
  %5276 = vst.msk [vmem:[#allocation4 + $0x10] sm:$0xff] %vm5273, %v5182
  %5277 = vst.msk [vmem:[#allocation4 + $0x18] sm:$0xff] %vm5273, %v5184
  %5278 = vst.msk [vmem:[#allocation4 + $0x20] sm:$0xff] %vm5273, %v5186
  %5279 = vst.msk [vmem:[#allocation4 + $0x28] sm:$0xff] %vm5273, %v5188
  %5280 = vst.msk [vmem:[#allocation4 + $0x30] sm:$0xff] %vm5273, %v5190
  %5281 = vst.msk [vmem:[#allocation4 + $0x38] sm:$0xff] %vm5273, %v5192
  %5282 = vst.msk [vmem:[#allocation4 + $0x40] sm:$0xff] %vm5273, %v5194
  %5283 = vst.msk [vmem:[#allocation4 + $0x48] sm:$0xff] %vm5273, %v5196
  %5284 = vst.msk [vmem:[#allocation4 + $0x50] sm:$0xff] %vm5273, %v5198
  %5285 = vst.msk [vmem:[#allocation4 + $0x58] sm:$0xff] %vm5273, %v5200
  %5286 = vst.msk [vmem:[#allocation4 + $0x60] sm:$0xff] %vm5273, %v5202
  %5287 = vst.msk [vmem:[#allocation4 + $0x68] sm:$0xff] %vm5273, %v5204
  %5288 = vst.msk [vmem:[#allocation4 + $0x70] sm:$0xff] %vm5273, %v5206
  %5289 = vst.msk [vmem:[#allocation4 + $0x78] sm:$0xff] %vm5273, %v5208
  %5290 = vst.msk [vmem:[#allocation4 + $0x80] sm:$0xff] %vm5273, %v5210
  %5291 = vst.msk [vmem:[#allocation4 + $0x88] sm:$0xff] %vm5273, %v5212
  %5292 = vst.msk [vmem:[#allocation4 + $0x90] sm:$0xff] %vm5273, %v5214
  %5293 = vst.msk [vmem:[#allocation4 + $0x98] sm:$0xff] %vm5273, %v5216
  %5294 = vst.msk [vmem:[#allocation4 + $0xa0] sm:$0xff] %vm5273, %v5218
  %5295 = vst.msk [vmem:[#allocation4 + $0xa8] sm:$0xff] %vm5273, %v5220
  %5296 = vst.msk [vmem:[#allocation4 + $0xb0] sm:$0xff] %vm5273, %v5222
  %5297 = vst.msk [vmem:[#allocation4 + $0xb8] sm:$0xff] %vm5273, %v5224
  %5298 = vst.msk [vmem:[#allocation4 + $0xc0] sm:$0xff] %vm5273, %v5226
  %5299 = vst.msk [vmem:[#allocation4 + $0xc8] sm:$0xff] %vm5273, %v5228
  %5300 = vst.msk [vmem:[#allocation4 + $0xd0] sm:$0xff] %vm5273, %v5230
  %5301 = vst.msk [vmem:[#allocation4 + $0xd8] sm:$0xff] %vm5273, %v5232
  %5302 = vst.msk [vmem:[#allocation4 + $0xe0] sm:$0xff] %vm5273, %v5234
  %5303 = vst.msk [vmem:[#allocation4 + $0xe8] sm:$0xff] %vm5273, %v5236
  %5304 = vst.msk [vmem:[#allocation4 + $0xf0] sm:$0xff] %vm5273, %v5238
  %5305 = vst.msk [vmem:[#allocation4 + $0xf8] sm:$0xff] %vm5273, %v5240
  %v5306 = vld [vmem:[%s4791 + $0x2] sm:$0xff]
  %v5307 = vld [vmem:[%s4791 + $0xa] sm:$0xff]
  %v5308 = vld [vmem:[%s4791 + $0x1a] sm:$0xff]
  %v5309 = vld [vmem:[%s4791 + $0x22] sm:$0xff]
  %v5310 = vld [vmem:[%s4791 + $0x32] sm:$0xff]
  %v5311 = vld [vmem:[%s4791 + $0x3a] sm:$0xff]
  %v5312 = vld [vmem:[%s4791 + $0x4a] sm:$0xff]
  %v5313 = vld [vmem:[%s4791 + $0x52] sm:$0xff]
  %v5314 = vld [vmem:[%s4791 + $0x62] sm:$0xff]
  %v5315 = vld [vmem:[%s4791 + $0x6a] sm:$0xff]
  %v5316 = vld [vmem:[%s4791 + $0x7a] sm:$0xff]
  %v5317 = vld [vmem:[%s4791 + $0x82] sm:$0xff]
  %v5318 = vld [vmem:[%s4791 + $0x92] sm:$0xff]
  %v5319 = vld [vmem:[%s4791 + $0x9a] sm:$0xff]
  %v5320 = vld [vmem:[%s4791 + $0xaa] sm:$0xff]
  %v5321 = vld [vmem:[%s4791 + $0xb2] sm:$0xff]
  %v5322 = vld [vmem:[%s4791 + $0xc2] sm:$0xff]
  %v5323 = vld [vmem:[%s4791 + $0xca] sm:$0xff]
  %v5324 = vld [vmem:[%s4791 + $0xda] sm:$0xff]
  %v5325 = vld [vmem:[%s4791 + $0xe2] sm:$0xff]
  %v5326 = vld [vmem:[%s4791 + $0xf2] sm:$0xff]
  %v5327 = vld [vmem:[%s4791 + $0xfa] sm:$0xff]
  %v5328 = vld [vmem:[%s4791 + $0x10a] sm:$0xff]
  %v5329 = vld [vmem:[%s4791 + $0x112] sm:$0xff]
  %v5330 = vld [vmem:[%s4791 + $0x122] sm:$0xff]
  %v5331 = vld [vmem:[%s4791 + $0x12a] sm:$0xff]
  %v5332 = vld [vmem:[%s4791 + $0x13a] sm:$0xff]
  %v5333 = vld [vmem:[%s4791 + $0x142] sm:$0xff]
  %v5334 = vld [vmem:[%s4791 + $0x152] sm:$0xff]
  %v5335 = vld [vmem:[%s4791 + $0x15a] sm:$0xff]
  %v5336 = vld [vmem:[%s4791 + $0x16a] sm:$0xff]
  %v5337 = vld [vmem:[%s4791 + $0x172] sm:$0xff]
  %v5338 = vld [vmem:[%s4791 + $0x1b2] sm:$0xff]
  %v5339 = vld [vmem:[%s4791 + $0x1ba] sm:$0xff]
  %v5340 = vld [vmem:[%s4791 + $0x1ca] sm:$0xff]
  %v5341 = vld [vmem:[%s4791 + $0x1d2] sm:$0xff]
  %v5342 = vld [vmem:[%s4791 + $0x1e2] sm:$0xff]
  %v5343 = vld [vmem:[%s4791 + $0x1ea] sm:$0xff]
  %v5344 = vld [vmem:[%s4791 + $0x1fa] sm:$0xff]
  %v5345 = vld [vmem:[%s4791 + $0x202] sm:$0xff]
  %v5346 = vld [vmem:[%s4791 + $0x212] sm:$0xff]
  %v5347 = vld [vmem:[%s4791 + $0x21a] sm:$0xff]
  %v5348 = vld [vmem:[%s4791 + $0x22a] sm:$0xff]
  %v5349 = vld [vmem:[%s4791 + $0x232] sm:$0xff]
  %v5350 = vld [vmem:[%s4791 + $0x242] sm:$0xff]
  %v5351 = vld [vmem:[%s4791 + $0x24a] sm:$0xff]
  %v5352 = vld [vmem:[%s4791 + $0x25a] sm:$0xff]
  %v5353 = vld [vmem:[%s4791 + $0x262] sm:$0xff]
  %v5354 = vld [vmem:[%s4791 + $0x272] sm:$0xff]
  %v5355 = vld [vmem:[%s4791 + $0x27a] sm:$0xff]
  %v5356 = vld [vmem:[%s4791 + $0x28a] sm:$0xff]
  %v5357 = vld [vmem:[%s4791 + $0x292] sm:$0xff]
  %v5358 = vld [vmem:[%s4791 + $0x2a2] sm:$0xff]
  %v5359 = vld [vmem:[%s4791 + $0x2aa] sm:$0xff]
  %v5360 = vld [vmem:[%s4791 + $0x2ba] sm:$0xff]
  %v5361 = vld [vmem:[%s4791 + $0x2c2] sm:$0xff]
  %v5362 = vld [vmem:[%s4791 + $0x2d2] sm:$0xff]
  %v5363 = vld [vmem:[%s4791 + $0x2da] sm:$0xff]
  %v5364 = vld [vmem:[%s4791 + $0x2ea] sm:$0xff]
  %v5365 = vld [vmem:[%s4791 + $0x2f2] sm:$0xff]
  %v5366 = vld [vmem:[%s4791 + $0x302] sm:$0xff]
  %v5367 = vld [vmem:[%s4791 + $0x30a] sm:$0xff]
  %v5368 = vld [vmem:[%s4791 + $0x31a] sm:$0xff]
  %v5369 = vld [vmem:[%s4791 + $0x322] sm:$0xff]
  %v5370 = vpack.c.bf16 %v5307, %v5306
  %v5371 = vpack.c.bf16 %v5309, %v5308
  %v5372 = vpack.c.bf16 %v5311, %v5310
  %v5373 = vpack.c.bf16 %v5313, %v5312
  %v5374 = vpack.c.bf16 %v5315, %v5314
  %v5375 = vpack.c.bf16 %v5317, %v5316
  %v5376 = vpack.c.bf16 %v5319, %v5318
  %v5377 = vpack.c.bf16 %v5321, %v5320
  %v5378 = vpack.c.bf16 %v5323, %v5322
  %v5379 = vpack.c.bf16 %v5325, %v5324
  %v5380 = vpack.c.bf16 %v5327, %v5326
  %v5381 = vpack.c.bf16 %v5329, %v5328
  %v5382 = vpack.c.bf16 %v5331, %v5330
  %v5383 = vpack.c.bf16 %v5333, %v5332
  %v5384 = vpack.c.bf16 %v5335, %v5334
  %v5385 = vpack.c.bf16 %v5337, %v5336
  %v5386 = vpack.c.bf16 %v5339, %v5338
  %v5387 = vpack.c.bf16 %v5341, %v5340
  %v5388 = vpack.c.bf16 %v5343, %v5342
  %v5389 = vpack.c.bf16 %v5345, %v5344
  %v5390 = vpack.c.bf16 %v5347, %v5346
  %v5391 = vpack.c.bf16 %v5349, %v5348
  %v5392 = vpack.c.bf16 %v5351, %v5350
  %v5393 = vpack.c.bf16 %v5353, %v5352
  %v5394 = vpack.c.bf16 %v5355, %v5354
  %v5395 = vpack.c.bf16 %v5357, %v5356
  %v5396 = vpack.c.bf16 %v5359, %v5358
  %v5397 = vpack.c.bf16 %v5361, %v5360
  %v5398 = vpack.c.bf16 %v5363, %v5362
  %v5399 = vpack.c.bf16 %v5365, %v5364
  %v5400 = vpack.c.bf16 %v5367, %v5366
  %v5401 = vpack.c.bf16 %v5369, %v5368
  %5434 = vrot.lane.b32.xlu0 %v5370, 64
  %v5435 = vpop.permute.xlu0 %5434
  %5436 = vrot.lane.b32.xlu0 %v5371, 64
  %v5437 = vpop.permute.xlu0 %5436
  %5438 = vrot.lane.b32.xlu0 %v5372, 64
  %v5439 = vpop.permute.xlu0 %5438
  %5440 = vrot.lane.b32.xlu0 %v5373, 64
  %v5441 = vpop.permute.xlu0 %5440
  %5442 = vrot.lane.b32.xlu0 %v5374, 64
  %v5443 = vpop.permute.xlu0 %5442
  %5444 = vrot.lane.b32.xlu0 %v5375, 64
  %v5445 = vpop.permute.xlu0 %5444
  %5446 = vrot.lane.b32.xlu0 %v5376, 64
  %v5447 = vpop.permute.xlu0 %5446
  %5448 = vrot.lane.b32.xlu0 %v5377, 64
  %v5449 = vpop.permute.xlu0 %5448
  %5450 = vrot.lane.b32.xlu0 %v5378, 64
  %v5451 = vpop.permute.xlu0 %5450
  %5452 = vrot.lane.b32.xlu0 %v5379, 64
  %v5453 = vpop.permute.xlu0 %5452
  %5454 = vrot.lane.b32.xlu0 %v5380, 64
  %v5455 = vpop.permute.xlu0 %5454
  %5456 = vrot.lane.b32.xlu0 %v5381, 64
  %v5457 = vpop.permute.xlu0 %5456
  %5458 = vrot.lane.b32.xlu0 %v5382, 64
  %v5459 = vpop.permute.xlu0 %5458
  %5460 = vrot.lane.b32.xlu0 %v5383, 64
  %v5461 = vpop.permute.xlu0 %5460
  %5462 = vrot.lane.b32.xlu0 %v5384, 64
  %v5463 = vpop.permute.xlu0 %5462
  %5464 = vrot.lane.b32.xlu0 %v5385, 64
  %v5465 = vpop.permute.xlu0 %5464
  %5466 = vrot.lane.b32.xlu0 %v5386, 64
  %v5467 = vpop.permute.xlu0 %5466
  %5468 = vrot.lane.b32.xlu0 %v5387, 64
  %v5469 = vpop.permute.xlu0 %5468
  %5470 = vrot.lane.b32.xlu0 %v5388, 64
  %v5471 = vpop.permute.xlu0 %5470
  %5472 = vrot.lane.b32.xlu0 %v5389, 64
  %v5473 = vpop.permute.xlu0 %5472
  %5474 = vrot.lane.b32.xlu0 %v5390, 64
  %v5475 = vpop.permute.xlu0 %5474
  %5476 = vrot.lane.b32.xlu0 %v5391, 64
  %v5477 = vpop.permute.xlu0 %5476
  %5478 = vrot.lane.b32.xlu0 %v5392, 64
  %v5479 = vpop.permute.xlu0 %5478
  %5480 = vrot.lane.b32.xlu0 %v5393, 64
  %v5481 = vpop.permute.xlu0 %5480
  %5482 = vrot.lane.b32.xlu0 %v5394, 64
  %v5483 = vpop.permute.xlu0 %5482
  %5484 = vrot.lane.b32.xlu0 %v5395, 64
  %v5485 = vpop.permute.xlu0 %5484
  %5486 = vrot.lane.b32.xlu0 %v5396, 64
  %v5487 = vpop.permute.xlu0 %5486
  %5488 = vrot.lane.b32.xlu0 %v5397, 64
  %v5489 = vpop.permute.xlu0 %5488
  %5490 = vrot.lane.b32.xlu0 %v5398, 64
  %v5491 = vpop.permute.xlu0 %5490
  %5492 = vrot.lane.b32.xlu0 %v5399, 64
  %v5493 = vpop.permute.xlu0 %5492
  %5494 = vrot.lane.b32.xlu0 %v5400, 64
  %v5495 = vpop.permute.xlu0 %5494
  %5496 = vrot.lane.b32.xlu0 %v5401, 64
  %v5497 = vpop.permute.xlu0 %5496
  %vm5530 = vcmask 589312
  %5531 = vst.msk [vmem:[#allocation4] sm:$0xff] %vm5530, %v5435
  %5532 = vst.msk [vmem:[#allocation4 + $0x8] sm:$0xff] %vm5530, %v5437
  %5533 = vst.msk [vmem:[#allocation4 + $0x10] sm:$0xff] %vm5530, %v5439
  %5534 = vst.msk [vmem:[#allocation4 + $0x18] sm:$0xff] %vm5530, %v5441
  %5535 = vst.msk [vmem:[#allocation4 + $0x20] sm:$0xff] %vm5530, %v5443
  %5536 = vst.msk [vmem:[#allocation4 + $0x28] sm:$0xff] %vm5530, %v5445
  %5537 = vst.msk [vmem:[#allocation4 + $0x30] sm:$0xff] %vm5530, %v5447
  %5538 = vst.msk [vmem:[#allocation4 + $0x38] sm:$0xff] %vm5530, %v5449
  %5539 = vst.msk [vmem:[#allocation4 + $0x40] sm:$0xff] %vm5530, %v5451
  %5540 = vst.msk [vmem:[#allocation4 + $0x48] sm:$0xff] %vm5530, %v5453
  %5541 = vst.msk [vmem:[#allocation4 + $0x50] sm:$0xff] %vm5530, %v5455
  %5542 = vst.msk [vmem:[#allocation4 + $0x58] sm:$0xff] %vm5530, %v5457
  %5543 = vst.msk [vmem:[#allocation4 + $0x60] sm:$0xff] %vm5530, %v5459
  %5544 = vst.msk [vmem:[#allocation4 + $0x68] sm:$0xff] %vm5530, %v5461
  %5545 = vst.msk [vmem:[#allocation4 + $0x70] sm:$0xff] %vm5530, %v5463
  %5546 = vst.msk [vmem:[#allocation4 + $0x78] sm:$0xff] %vm5530, %v5465
  %5547 = vst.msk [vmem:[#allocation4 + $0x80] sm:$0xff] %vm5530, %v5467
  %5548 = vst.msk [vmem:[#allocation4 + $0x88] sm:$0xff] %vm5530, %v5469
  %5549 = vst.msk [vmem:[#allocation4 + $0x90] sm:$0xff] %vm5530, %v5471
  %5550 = vst.msk [vmem:[#allocation4 + $0x98] sm:$0xff] %vm5530, %v5473
  %5551 = vst.msk [vmem:[#allocation4 + $0xa0] sm:$0xff] %vm5530, %v5475
  %5552 = vst.msk [vmem:[#allocation4 + $0xa8] sm:$0xff] %vm5530, %v5477
  %5553 = vst.msk [vmem:[#allocation4 + $0xb0] sm:$0xff] %vm5530, %v5479
  %5554 = vst.msk [vmem:[#allocation4 + $0xb8] sm:$0xff] %vm5530, %v5481
  %5555 = vst.msk [vmem:[#allocation4 + $0xc0] sm:$0xff] %vm5530, %v5483
  %5556 = vst.msk [vmem:[#allocation4 + $0xc8] sm:$0xff] %vm5530, %v5485
  %5557 = vst.msk [vmem:[#allocation4 + $0xd0] sm:$0xff] %vm5530, %v5487
  %5558 = vst.msk [vmem:[#allocation4 + $0xd8] sm:$0xff] %vm5530, %v5489
  %5559 = vst.msk [vmem:[#allocation4 + $0xe0] sm:$0xff] %vm5530, %v5491
  %5560 = vst.msk [vmem:[#allocation4 + $0xe8] sm:$0xff] %vm5530, %v5493
  %5561 = vst.msk [vmem:[#allocation4 + $0xf0] sm:$0xff] %vm5530, %v5495
  %5562 = vst.msk [vmem:[#allocation4 + $0xf8] sm:$0xff] %vm5530, %v5497
  %v5563 = vld [vmem:[#allocation4] sm:$0xff]
  %v5564 = vld [vmem:[#allocation4 + $0x8] sm:$0xff]
  %v5565 = vld [vmem:[#allocation4 + $0x10] sm:$0xff]
  %v5566 = vld [vmem:[#allocation4 + $0x18] sm:$0xff]
  %v5567 = vld [vmem:[#allocation4 + $0x20] sm:$0xff]
  %v5568 = vld [vmem:[#allocation4 + $0x28] sm:$0xff]
  %v5569 = vld [vmem:[#allocation4 + $0x30] sm:$0xff]
  %v5570 = vld [vmem:[#allocation4 + $0x38] sm:$0xff]
  %v5571 = vld [vmem:[#allocation4 + $0x40] sm:$0xff]
  %v5572 = vld [vmem:[#allocation4 + $0x48] sm:$0xff]
  %v5573 = vld [vmem:[#allocation4 + $0x50] sm:$0xff]
  %v5574 = vld [vmem:[#allocation4 + $0x58] sm:$0xff]
  %v5575 = vld [vmem:[#allocation4 + $0x60] sm:$0xff]
  %v5576 = vld [vmem:[#allocation4 + $0x68] sm:$0xff]
  %v5577 = vld [vmem:[#allocation4 + $0x70] sm:$0xff]
  %v5578 = vld [vmem:[#allocation4 + $0x78] sm:$0xff]
  %v5579 = vld [vmem:[#allocation4 + $0x80] sm:$0xff]
  %v5580 = vld [vmem:[#allocation4 + $0x88] sm:$0xff]
  %v5581 = vld [vmem:[#allocation4 + $0x90] sm:$0xff]
  %v5582 = vld [vmem:[#allocation4 + $0x98] sm:$0xff]
  %v5583 = vld [vmem:[#allocation4 + $0xa0] sm:$0xff]
  %v5584 = vld [vmem:[#allocation4 + $0xa8] sm:$0xff]
  %v5585 = vld [vmem:[#allocation4 + $0xb0] sm:$0xff]
  %v5586 = vld [vmem:[#allocation4 + $0xb8] sm:$0xff]
  %v5587 = vld [vmem:[#allocation4 + $0xc0] sm:$0xff]
  %v5588 = vld [vmem:[#allocation4 + $0xc8] sm:$0xff]
  %v5589 = vld [vmem:[#allocation4 + $0xd0] sm:$0xff]
  %v5590 = vld [vmem:[#allocation4 + $0xd8] sm:$0xff]
  %v5591 = vld [vmem:[#allocation4 + $0xe0] sm:$0xff]
  %v5592 = vld [vmem:[#allocation4 + $0xe8] sm:$0xff]
  %v5593 = vld [vmem:[#allocation4 + $0xf0] sm:$0xff]
  %v5594 = vld [vmem:[#allocation4 + $0xf8] sm:$0xff]
  %v5595 = vld [vmem:[%s3] sm:$0xf]
  %v5596 = vld [vmem:[%s3 + $0x4] sm:$0xf]
  %v5597 = vld [vmem:[%s3 + $0x8] sm:$0xf]
  %v5598 = vld [vmem:[%s3 + $0xc] sm:$0xf]
  %v5599 = vld [vmem:[%s3 + $0x10] sm:$0xf]
  %v5600 = vld [vmem:[%s3 + $0x14] sm:$0xf]
  %v5601 = vld [vmem:[%s3 + $0x18] sm:$0xf]
  %v5602 = vld [vmem:[%s3 + $0x1c] sm:$0xf]
  %v5603 = vld [vmem:[%s3 + $0x20] sm:$0xf]
  %v5604 = vld [vmem:[%s4] sm:$0x1]
  %v5606 = vlaneseq
  %v5607 = vshrl.u32 %v5606, 7
  %v5608 = vsub.s32 0, %v5607
  %v5609 = vrot.slane %v5604, %v5608
  %v5620 = vunpack.c.l.b16 %v5595
  %v5621 = vunpack.c.l.b16 %v5596
  %v5622 = vunpack.c.l.b16 %v5597
  %v5623 = vunpack.c.l.b16 %v5598
  %v5624 = vunpack.c.l.b16 %v5599
  %v5625 = vunpack.c.l.b16 %v5600
  %v5626 = vunpack.c.l.b16 %v5601
  %v5627 = vunpack.c.l.b16 %v5602
  %v5628 = vunpack.c.l.b16 %v5603
  %v5629 = vpack.c.b16 %v5621, %v5620
  %v5630 = vpack.c.b16 %v5623, %v5622
  %v5631 = vpack.c.b16 %v5625, %v5624
  %v5632 = vpack.c.b16 %v5627, %v5626
  %v5633 = vpack.c.b16 %v5628, %v5628
  %vm5638 = vcmask 588800
  %v5640 = vsel %vm5638, %v5563, 0
  %v5643 = vsel %vm5638, %v5564, 0
  %v5646 = vsel %vm5638, %v5565, 0
  %v5649 = vsel %vm5638, %v5566, 0
  %v5652 = vsel %vm5638, %v5567, 0
  %v5655 = vsel %vm5638, %v5568, 0
  %v5658 = vsel %vm5638, %v5569, 0
  %v5661 = vsel %vm5638, %v5570, 0
  %v5664 = vsel %vm5638, %v5571, 0
  %v5667 = vsel %vm5638, %v5572, 0
  %v5670 = vsel %vm5638, %v5573, 0
  %v5673 = vsel %vm5638, %v5574, 0
  %v5676 = vsel %vm5638, %v5575, 0
  %v5679 = vsel %vm5638, %v5576, 0
  %v5682 = vsel %vm5638, %v5577, 0
  %v5685 = vsel %vm5638, %v5578, 0
  %v5688 = vsel %vm5638, %v5579, 0
  %v5691 = vsel %vm5638, %v5580, 0
  %v5694 = vsel %vm5638, %v5581, 0
  %v5697 = vsel %vm5638, %v5582, 0
  %v5700 = vsel %vm5638, %v5583, 0
  %v5703 = vsel %vm5638, %v5584, 0
  %v5706 = vsel %vm5638, %v5585, 0
  %v5709 = vsel %vm5638, %v5586, 0
  %v5712 = vsel %vm5638, %v5587, 0
  %v5715 = vsel %vm5638, %v5588, 0
  %v5718 = vsel %vm5638, %v5589, 0
  %v5721 = vsel %vm5638, %v5590, 0
  %v5724 = vsel %vm5638, %v5591, 0
  %v5727 = vsel %vm5638, %v5592, 0
  %v5730 = vsel %vm5638, %v5593, 0
  %v5733 = vsel %vm5638, %v5594, 0
  %vm5735 = vcmask 1043456
  %v5737 = vsel %vm5735, %v5633, 0
  %5739 = vmatprep.subr.bf16.mxu0 0
  %5740 = vmatpush1.bf16.msra.mxu0 %v5629
  %5741 = vmatprep.subr.bf16.mxu0 0
  %5742 = vmatpush1.bf16.msra.mxu0 %v5630
  %5743 = vmatprep.subr.bf16.mxu0 0
  %5744 = vmatpush1.bf16.msra.mxu0 %v5631
  %5745 = vmatprep.subr.bf16.mxu0 0
  %5746 = vmatpush1.bf16.msra.mxu0 %v5632
  %5747 = vmatprep.subr.bf16.mxu0 0
  %5748 = vmatpush1.bf16.msra.mxu0 %v5737
  %5749 = vmatprep.subr.bf16.mxu0 0
  %5750 = vmatpush1.bf16.msra.mxu0 0
  %5751 = vmatprep.subr.bf16.mxu0 0
  %5752 = vmatpush1.bf16.msra.mxu0 0
  %5753 = vmatprep.subr.bf16.mxu0 0
  %5754 = vmatpush1.bf16.msra.mxu0 0
  %5755 = vmatprep.subr.bf16.mxu0 0
  %5756 = vmatpush1.bf16.msra.mxu0 0
  %5757 = vmatprep.subr.bf16.mxu0 0
  %5758 = vmatpush1.bf16.msra.mxu0 0
  %5759 = vmatprep.subr.bf16.mxu0 0
  %5760 = vmatpush1.bf16.msra.mxu0 0
  %5761 = vmatprep.subr.bf16.mxu0 0
  %5762 = vmatpush1.bf16.msra.mxu0 0
  %5763 = vmatprep.subr.bf16.mxu0 0
  %5764 = vmatpush1.bf16.msra.mxu0 0
  %5765 = vmatprep.subr.bf16.mxu0 0
  %5766 = vmatpush1.bf16.msra.mxu0 0
  %5767 = vmatprep.subr.bf16.mxu0 0
  %5768 = vmatpush1.bf16.msra.mxu0 0
  %5769 = vmatprep.subr.bf16.mxu0 0
  %5770 = vmatpush1.bf16.msra.mxu0 0
  %5771 = vmatprep.mubr.bf16.mxu0 0
  %5772 = vmatmul.mubr.bf16.gmra.mrb[0].mxu0 %v5640
  %v5773 = vpop.f32.mrb[0].mxu0
  %v5774 = vadd.f32 %v5609, %v5773
  %v5775 = vpop.f32.mrb[0].mxu0
  %v5776 = vpop.f32.mrb[0].mxu0
  %v5777 = vadd.f32 %v5609, %v5776
  %v5778 = vpop.f32.mrb[0].mxu0
  %5779 = vmatprep.mubr.bf16.mxu0 0
  %5780 = vmatmul.mubr.bf16.gmra.mrb[0].mxu0 %v5643
  %v5781 = vpop.f32.mrb[0].mxu0
  %v5782 = vadd.f32 %v5609, %v5781
  %v5783 = vpop.f32.mrb[0].mxu0
  %v5784 = vpop.f32.mrb[0].mxu0
  %v5785 = vadd.f32 %v5609, %v5784
  %v5786 = vpop.f32.mrb[0].mxu0
  %5787 = vmatprep.mubr.bf16.mxu0 0
  %5788 = vmatmul.mubr.bf16.gmra.mrb[0].mxu0 %v5646
  %v5789 = vpop.f32.mrb[0].mxu0
  %v5790 = vadd.f32 %v5609, %v5789
  %v5791 = vpop.f32.mrb[0].mxu0
  %v5792 = vpop.f32.mrb[0].mxu0
  %v5793 = vadd.f32 %v5609, %v5792
  %v5794 = vpop.f32.mrb[0].mxu0
  %5795 = vmatprep.mubr.bf16.mxu0 0
  %5796 = vmatmul.mubr.bf16.gmra.mrb[0].mxu0 %v5649
  %v5797 = vpop.f32.mrb[0].mxu0
  %v5798 = vadd.f32 %v5609, %v5797
  %v5799 = vpop.f32.mrb[0].mxu0
  %v5800 = vpop.f32.mrb[0].mxu0
  %v5801 = vadd.f32 %v5609, %v5800
  %v5802 = vpop.f32.mrb[0].mxu0
  %5803 = vmatprep.mubr.bf16.mxu0 0
  %5804 = vmatmul.mubr.bf16.gmra.mrb[0].mxu0 %v5652
  %v5805 = vpop.f32.mrb[0].mxu0
  %v5806 = vadd.f32 %v5609, %v5805
  %v5807 = vpop.f32.mrb[0].mxu0
  %v5808 = vpop.f32.mrb[0].mxu0
  %v5809 = vadd.f32 %v5609, %v5808
  %v5810 = vpop.f32.mrb[0].mxu0
  %5811 = vmatprep.mubr.bf16.mxu0 0
  %5812 = vmatmul.mubr.bf16.gmra.mrb[0].mxu0 %v5655
  %v5813 = vpop.f32.mrb[0].mxu0
  %v5814 = vadd.f32 %v5609, %v5813
  %v5815 = vpop.f32.mrb[0].mxu0
  %v5816 = vpop.f32.mrb[0].mxu0
  %v5817 = vadd.f32 %v5609, %v5816
  %v5818 = vpop.f32.mrb[0].mxu0
  %5819 = vmatprep.mubr.bf16.mxu0 0
  %5820 = vmatmul.mubr.bf16.gmra.mrb[0].mxu0 %v5658
  %v5821 = vpop.f32.mrb[0].mxu0
  %v5822 = vadd.f32 %v5609, %v5821
  %v5823 = vpop.f32.mrb[0].mxu0
  %v5824 = vpop.f32.mrb[0].mxu0
  %v5825 = vadd.f32 %v5609, %v5824
  %v5826 = vpop.f32.mrb[0].mxu0
  %5827 = vmatprep.mubr.bf16.mxu0 0
  %5828 = vmatmul.mubr.bf16.gmra.mrb[0].mxu0 %v5661
  %v5829 = vpop.f32.mrb[0].mxu0
  %v5830 = vadd.f32 %v5609, %v5829
  %v5831 = vpop.f32.mrb[0].mxu0
  %v5832 = vpop.f32.mrb[0].mxu0
  %v5833 = vadd.f32 %v5609, %v5832
  %v5834 = vpop.f32.mrb[0].mxu0
  %5835 = vmatprep.mubr.bf16.mxu0 0
  %5836 = vmatmul.mubr.bf16.gmra.mrb[0].mxu0 %v5664
  %v5837 = vpop.f32.mrb[0].mxu0
  %v5838 = vadd.f32 %v5609, %v5837
  %v5839 = vpop.f32.mrb[0].mxu0
  %v5840 = vpop.f32.mrb[0].mxu0
  %v5841 = vadd.f32 %v5609, %v5840
  %v5842 = vpop.f32.mrb[0].mxu0
  %5843 = vmatprep.mubr.bf16.mxu0 0
  %5844 = vmatmul.mubr.bf16.gmra.mrb[0].mxu0 %v5667
  %v5845 = vpop.f32.mrb[0].mxu0
  %v5846 = vadd.f32 %v5609, %v5845
  %v5847 = vpop.f32.mrb[0].mxu0
  %v5848 = vpop.f32.mrb[0].mxu0
  %v5849 = vadd.f32 %v5609, %v5848
  %v5850 = vpop.f32.mrb[0].mxu0
  %5851 = vmatprep.mubr.bf16.mxu0 0
  %5852 = vmatmul.mubr.bf16.gmra.mrb[0].mxu0 %v5670
  %v5853 = vpop.f32.mrb[0].mxu0
  %v5854 = vadd.f32 %v5609, %v5853
  %v5855 = vpop.f32.mrb[0].mxu0
  %v5856 = vpop.f32.mrb[0].mxu0
  %v5857 = vadd.f32 %v5609, %v5856
  %v5858 = vpop.f32.mrb[0].mxu0
  %5859 = vmatprep.mubr.bf16.mxu0 0
  %5860 = vmatmul.mubr.bf16.gmra.mrb[0].mxu0 %v5673
  %v5861 = vpop.f32.mrb[0].mxu0
  %v5862 = vadd.f32 %v5609, %v5861
  %v5863 = vpop.f32.mrb[0].mxu0
  %v5864 = vpop.f32.mrb[0].mxu0
  %v5865 = vadd.f32 %v5609, %v5864
  %v5866 = vpop.f32.mrb[0].mxu0
  %5867 = vmatprep.mubr.bf16.mxu0 0
  %5868 = vmatmul.mubr.bf16.gmra.mrb[0].mxu0 %v5676
  %v5869 = vpop.f32.mrb[0].mxu0
  %v5870 = vadd.f32 %v5609, %v5869
  %v5871 = vpop.f32.mrb[0].mxu0
  %v5872 = vpop.f32.mrb[0].mxu0
  %v5873 = vadd.f32 %v5609, %v5872
  %v5874 = vpop.f32.mrb[0].mxu0
  %5875 = vmatprep.mubr.bf16.mxu0 0
  %5876 = vmatmul.mubr.bf16.gmra.mrb[0].mxu0 %v5679
  %v5877 = vpop.f32.mrb[0].mxu0
  %v5878 = vadd.f32 %v5609, %v5877
  %v5879 = vpop.f32.mrb[0].mxu0
  %v5880 = vpop.f32.mrb[0].mxu0
  %v5881 = vadd.f32 %v5609, %v5880
  %v5882 = vpop.f32.mrb[0].mxu0
  %5883 = vmatprep.mubr.bf16.mxu0 0
  %5884 = vmatmul.mubr.bf16.gmra.mrb[0].mxu0 %v5682
  %v5885 = vpop.f32.mrb[0].mxu0
  %v5886 = vadd.f32 %v5609, %v5885
  %v5887 = vpop.f32.mrb[0].mxu0
  %v5888 = vpop.f32.mrb[0].mxu0
  %v5889 = vadd.f32 %v5609, %v5888
  %v5890 = vpop.f32.mrb[0].mxu0
  %5891 = vmatprep.mubr.bf16.mxu0 0
  %5892 = vmatmul.mubr.bf16.gmra.mrb[0].mxu0 %v5685
  %v5893 = vpop.f32.mrb[0].mxu0
  %v5894 = vadd.f32 %v5609, %v5893
  %v5895 = vpop.f32.mrb[0].mxu0
  %v5896 = vpop.f32.mrb[0].mxu0
  %v5897 = vadd.f32 %v5609, %v5896
  %v5898 = vpop.f32.mrb[0].mxu0
  %5899 = vmatprep.mubr.bf16.mxu0 0
  %5900 = vmatmul.mubr.bf16.gmra.mrb[0].mxu0 %v5688
  %v5901 = vpop.f32.mrb[0].mxu0
  %v5902 = vadd.f32 %v5609, %v5901
  %v5903 = vpop.f32.mrb[0].mxu0
  %v5904 = vpop.f32.mrb[0].mxu0
  %v5905 = vadd.f32 %v5609, %v5904
  %v5906 = vpop.f32.mrb[0].mxu0
  %5907 = vmatprep.mubr.bf16.mxu0 0
  %5908 = vmatmul.mubr.bf16.gmra.mrb[0].mxu0 %v5691
  %v5909 = vpop.f32.mrb[0].mxu0
  %v5910 = vadd.f32 %v5609, %v5909
  %v5911 = vpop.f32.mrb[0].mxu0
  %v5912 = vpop.f32.mrb[0].mxu0
  %v5913 = vadd.f32 %v5609, %v5912
  %v5914 = vpop.f32.mrb[0].mxu0
  %5915 = vmatprep.mubr.bf16.mxu0 0
  %5916 = vmatmul.mubr.bf16.gmra.mrb[0].mxu0 %v5694
  %v5917 = vpop.f32.mrb[0].mxu0
  %v5918 = vadd.f32 %v5609, %v5917
  %v5919 = vpop.f32.mrb[0].mxu0
  %v5920 = vpop.f32.mrb[0].mxu0
  %v5921 = vadd.f32 %v5609, %v5920
  %v5922 = vpop.f32.mrb[0].mxu0
  %5923 = vmatprep.mubr.bf16.mxu0 0
  %5924 = vmatmul.mubr.bf16.gmra.mrb[0].mxu0 %v5697
  %v5925 = vpop.f32.mrb[0].mxu0
  %v5926 = vadd.f32 %v5609, %v5925
  %v5927 = vpop.f32.mrb[0].mxu0
  %v5928 = vpop.f32.mrb[0].mxu0
  %v5929 = vadd.f32 %v5609, %v5928
  %v5930 = vpop.f32.mrb[0].mxu0
  %5931 = vmatprep.mubr.bf16.mxu0 0
  %5932 = vmatmul.mubr.bf16.gmra.mrb[0].mxu0 %v5700
  %v5933 = vpop.f32.mrb[0].mxu0
  %v5934 = vadd.f32 %v5609, %v5933
  %v5935 = vpop.f32.mrb[0].mxu0
  %v5936 = vpop.f32.mrb[0].mxu0
  %v5937 = vadd.f32 %v5609, %v5936
  %v5938 = vpop.f32.mrb[0].mxu0
  %5939 = vmatprep.mubr.bf16.mxu0 0
  %5940 = vmatmul.mubr.bf16.gmra.mrb[0].mxu0 %v5703
  %v5941 = vpop.f32.mrb[0].mxu0
  %v5942 = vadd.f32 %v5609, %v5941
  %v5943 = vpop.f32.mrb[0].mxu0
  %v5944 = vpop.f32.mrb[0].mxu0
  %v5945 = vadd.f32 %v5609, %v5944
  %v5946 = vpop.f32.mrb[0].mxu0
  %5947 = vmatprep.mubr.bf16.mxu0 0
  %5948 = vmatmul.mubr.bf16.gmra.mrb[0].mxu0 %v5706
  %v5949 = vpop.f32.mrb[0].mxu0
  %v5950 = vadd.f32 %v5609, %v5949
  %v5951 = vpop.f32.mrb[0].mxu0
  %v5952 = vpop.f32.mrb[0].mxu0
  %v5953 = vadd.f32 %v5609, %v5952
  %v5954 = vpop.f32.mrb[0].mxu0
  %5955 = vmatprep.mubr.bf16.mxu0 0
  %5956 = vmatmul.mubr.bf16.gmra.mrb[0].mxu0 %v5709
  %v5957 = vpop.f32.mrb[0].mxu0
  %v5958 = vadd.f32 %v5609, %v5957
  %v5959 = vpop.f32.mrb[0].mxu0
  %v5960 = vpop.f32.mrb[0].mxu0
  %v5961 = vadd.f32 %v5609, %v5960
  %v5962 = vpop.f32.mrb[0].mxu0
  %5963 = vmatprep.mubr.bf16.mxu0 0
  %5964 = vmatmul.mubr.bf16.gmra.mrb[0].mxu0 %v5712
  %v5965 = vpop.f32.mrb[0].mxu0
  %v5966 = vadd.f32 %v5609, %v5965
  %v5967 = vpop.f32.mrb[0].mxu0
  %v5968 = vpop.f32.mrb[0].mxu0
  %v5969 = vadd.f32 %v5609, %v5968
  %v5970 = vpop.f32.mrb[0].mxu0
  %5971 = vmatprep.mubr.bf16.mxu0 0
  %5972 = vmatmul.mubr.bf16.gmra.mrb[0].mxu0 %v5715
  %v5973 = vpop.f32.mrb[0].mxu0
  %v5974 = vadd.f32 %v5609, %v5973
  %v5975 = vpop.f32.mrb[0].mxu0
  %v5976 = vpop.f32.mrb[0].mxu0
  %v5977 = vadd.f32 %v5609, %v5976
  %v5978 = vpop.f32.mrb[0].mxu0
  %5979 = vmatprep.mubr.bf16.mxu0 0
  %5980 = vmatmul.mubr.bf16.gmra.mrb[0].mxu0 %v5718
  %v5981 = vpop.f32.mrb[0].mxu0
  %v5982 = vadd.f32 %v5609, %v5981
  %v5983 = vpop.f32.mrb[0].mxu0
  %v5984 = vpop.f32.mrb[0].mxu0
  %v5985 = vadd.f32 %v5609, %v5984
  %v5986 = vpop.f32.mrb[0].mxu0
  %5987 = vmatprep.mubr.bf16.mxu0 0
  %5988 = vmatmul.mubr.bf16.gmra.mrb[0].mxu0 %v5721
  %v5989 = vpop.f32.mrb[0].mxu0
  %v5990 = vadd.f32 %v5609, %v5989
  %v5991 = vpop.f32.mrb[0].mxu0
  %v5992 = vpop.f32.mrb[0].mxu0
  %v5993 = vadd.f32 %v5609, %v5992
  %v5994 = vpop.f32.mrb[0].mxu0
  %5995 = vmatprep.mubr.bf16.mxu0 0
  %5996 = vmatmul.mubr.bf16.gmra.mrb[0].mxu0 %v5724
  %v5997 = vpop.f32.mrb[0].mxu0
  %v5998 = vadd.f32 %v5609, %v5997
  %v5999 = vpop.f32.mrb[0].mxu0
  %v6000 = vpop.f32.mrb[0].mxu0
  %v6001 = vadd.f32 %v5609, %v6000
  %v6002 = vpop.f32.mrb[0].mxu0
  %6003 = vmatprep.mubr.bf16.mxu0 0
  %6004 = vmatmul.mubr.bf16.gmra.mrb[0].mxu0 %v5727
  %v6005 = vpop.f32.mrb[0].mxu0
  %v6006 = vadd.f32 %v5609, %v6005
  %v6007 = vpop.f32.mrb[0].mxu0
  %v6008 = vpop.f32.mrb[0].mxu0
  %v6009 = vadd.f32 %v5609, %v6008
  %v6010 = vpop.f32.mrb[0].mxu0
  %6011 = vmatprep.mubr.bf16.mxu0 0
  %6012 = vmatmul.mubr.bf16.gmra.mrb[0].mxu0 %v5730
  %v6013 = vpop.f32.mrb[0].mxu0
  %v6014 = vadd.f32 %v5609, %v6013
  %v6015 = vpop.f32.mrb[0].mxu0
  %v6016 = vpop.f32.mrb[0].mxu0
  %v6017 = vadd.f32 %v5609, %v6016
  %v6018 = vpop.f32.mrb[0].mxu0
  %6019 = vmatprep.mubr.bf16.mxu0 0
  %6020 = vmatmul.mubr.bf16.gmra.mrb[0].mxu0 %v5733
  %v6021 = vpop.f32.mrb[0].mxu0
  %v6022 = vadd.f32 %v5609, %v6021
  %v6023 = vpop.f32.mrb[0].mxu0
  %v6024 = vpop.f32.mrb[0].mxu0
  %v6025 = vadd.f32 %v5609, %v6024
  %v6026 = vpop.f32.mrb[0].mxu0
  %6027 = vdwg.mxu0
  %v6028 = vmax.f32 %v5774, 0.0
  %v6029 = vmax.f32 %v5777, 0.0
  %v6030 = vmax.f32 %v5782, 0.0
  %v6031 = vmax.f32 %v5785, 0.0
  %v6032 = vmax.f32 %v5790, 0.0
  %v6033 = vmax.f32 %v5793, 0.0
  %v6034 = vmax.f32 %v5798, 0.0
  %v6035 = vmax.f32 %v5801, 0.0
  %v6036 = vmax.f32 %v5806, 0.0
  %v6037 = vmax.f32 %v5809, 0.0
  %v6038 = vmax.f32 %v5814, 0.0
  %v6039 = vmax.f32 %v5817, 0.0
  %v6040 = vmax.f32 %v5822, 0.0
  %v6041 = vmax.f32 %v5825, 0.0
  %v6042 = vmax.f32 %v5830, 0.0
  %v6043 = vmax.f32 %v5833, 0.0
  %v6044 = vmax.f32 %v5838, 0.0
  %v6045 = vmax.f32 %v5841, 0.0
  %v6046 = vmax.f32 %v5846, 0.0
  %v6047 = vmax.f32 %v5849, 0.0
  %v6048 = vmax.f32 %v5854, 0.0
  %v6049 = vmax.f32 %v5857, 0.0
  %v6050 = vmax.f32 %v5862, 0.0
  %v6051 = vmax.f32 %v5865, 0.0
  %v6052 = vmax.f32 %v5870, 0.0
  %v6053 = vmax.f32 %v5873, 0.0
  %v6054 = vmax.f32 %v5878, 0.0
  %v6055 = vmax.f32 %v5881, 0.0
  %v6056 = vmax.f32 %v5886, 0.0
  %v6057 = vmax.f32 %v5889, 0.0
  %v6058 = vmax.f32 %v5894, 0.0
  %v6059 = vmax.f32 %v5897, 0.0
  %v6060 = vmax.f32 %v5902, 0.0
  %v6061 = vmax.f32 %v5905, 0.0
  %v6062 = vmax.f32 %v5910, 0.0
  %v6063 = vmax.f32 %v5913, 0.0
  %v6064 = vmax.f32 %v5918, 0.0
  %v6065 = vmax.f32 %v5921, 0.0
  %v6066 = vmax.f32 %v5926, 0.0
  %v6067 = vmax.f32 %v5929, 0.0
  %v6068 = vmax.f32 %v5934, 0.0
  %v6069 = vmax.f32 %v5937, 0.0
  %v6070 = vmax.f32 %v5942, 0.0
  %v6071 = vmax.f32 %v5945, 0.0
  %v6072 = vmax.f32 %v5950, 0.0
  %v6073 = vmax.f32 %v5953, 0.0
  %v6074 = vmax.f32 %v5958, 0.0
  %v6075 = vmax.f32 %v5961, 0.0
  %v6076 = vmax.f32 %v5966, 0.0
  %v6077 = vmax.f32 %v5969, 0.0
  %v6078 = vmax.f32 %v5974, 0.0
  %v6079 = vmax.f32 %v5977, 0.0
  %v6080 = vmax.f32 %v5982, 0.0
  %v6081 = vmax.f32 %v5985, 0.0
  %v6082 = vmax.f32 %v5990, 0.0
  %v6083 = vmax.f32 %v5993, 0.0
  %v6084 = vmax.f32 %v5998, 0.0
  %v6085 = vmax.f32 %v6001, 0.0
  %v6086 = vmax.f32 %v6006, 0.0
  %v6087 = vmax.f32 %v6009, 0.0
  %v6088 = vmax.f32 %v6014, 0.0
  %v6089 = vmax.f32 %v6017, 0.0
  %v6090 = vmax.f32 %v6022, 0.0
  %v6091 = vmax.f32 %v6025, 0.0
  %v6092 = vmax.f32 %v6028, %v6030
  %v6093 = vmax.f32 %v6029, %v6031
  %v6094 = vmax.f32 %v6032, %v6034
  %v6095 = vmax.f32 %v6033, %v6035
  %v6096 = vmax.f32 %v6036, %v6038
  %v6097 = vmax.f32 %v6037, %v6039
  %v6098 = vmax.f32 %v6040, %v6042
  %v6099 = vmax.f32 %v6041, %v6043
  %v6100 = vmax.f32 %v6044, %v6046
  %v6101 = vmax.f32 %v6045, %v6047
  %v6102 = vmax.f32 %v6048, %v6050
  %v6103 = vmax.f32 %v6049, %v6051
  %v6104 = vmax.f32 %v6052, %v6054
  %v6105 = vmax.f32 %v6053, %v6055
  %v6106 = vmax.f32 %v6056, %v6058
  %v6107 = vmax.f32 %v6057, %v6059
  %v6108 = vmax.f32 %v6060, %v6062
  %v6109 = vmax.f32 %v6061, %v6063
  %v6110 = vmax.f32 %v6064, %v6066
  %v6111 = vmax.f32 %v6065, %v6067
  %v6112 = vmax.f32 %v6068, %v6070
  %v6113 = vmax.f32 %v6069, %v6071
  %v6114 = vmax.f32 %v6072, %v6074
  %v6115 = vmax.f32 %v6073, %v6075
  %v6116 = vmax.f32 %v6076, %v6078
  %v6117 = vmax.f32 %v6077, %v6079
  %v6118 = vmax.f32 %v6080, %v6082
  %v6119 = vmax.f32 %v6081, %v6083
  %v6120 = vmax.f32 %v6084, %v6086
  %v6121 = vmax.f32 %v6085, %v6087
  %v6122 = vmax.f32 %v6088, %v6090
  %v6123 = vmax.f32 %v6089, %v6091
  %vm6124 = vcmask 130048
  %6125 = vst.msk [vmem:[#allocation5] sm:$0xff] %vm6124, %v6092
  %6126 = vst.msk [vmem:[#allocation5 + $0x8] sm:$0xff] %vm6124, %v6093
  %6127 = vst.msk [vmem:[#allocation5 + $0x10] sm:$0xff] %vm6124, %v6094
  %6128 = vst.msk [vmem:[#allocation5 + $0x18] sm:$0xff] %vm6124, %v6095
  %6129 = vst.msk [vmem:[#allocation5 + $0x20] sm:$0xff] %vm6124, %v6096
  %6130 = vst.msk [vmem:[#allocation5 + $0x28] sm:$0xff] %vm6124, %v6097
  %6131 = vst.msk [vmem:[#allocation5 + $0x30] sm:$0xff] %vm6124, %v6098
  %6132 = vst.msk [vmem:[#allocation5 + $0x38] sm:$0xff] %vm6124, %v6099
  %6133 = vst.msk [vmem:[#allocation5 + $0x40] sm:$0xff] %vm6124, %v6100
  %6134 = vst.msk [vmem:[#allocation5 + $0x48] sm:$0xff] %vm6124, %v6101
  %6135 = vst.msk [vmem:[#allocation5 + $0x50] sm:$0xff] %vm6124, %v6102
  %6136 = vst.msk [vmem:[#allocation5 + $0x58] sm:$0xff] %vm6124, %v6103
  %6137 = vst.msk [vmem:[#allocation5 + $0x60] sm:$0xff] %vm6124, %v6104
  %6138 = vst.msk [vmem:[#allocation5 + $0x68] sm:$0xff] %vm6124, %v6105
  %6139 = vst.msk [vmem:[#allocation5 + $0x70] sm:$0xff] %vm6124, %v6106
  %6140 = vst.msk [vmem:[#allocation5 + $0x78] sm:$0xff] %vm6124, %v6107
  %6141 = vst.msk [vmem:[#allocation5 + $0x80] sm:$0xff] %vm6124, %v6108
  %6142 = vst.msk [vmem:[#allocation5 + $0x88] sm:$0xff] %vm6124, %v6109
  %6143 = vst.msk [vmem:[#allocation5 + $0x90] sm:$0xff] %vm6124, %v6110
  %6144 = vst.msk [vmem:[#allocation5 + $0x98] sm:$0xff] %vm6124, %v6111
  %6145 = vst.msk [vmem:[#allocation5 + $0xa0] sm:$0xff] %vm6124, %v6112
  %6146 = vst.msk [vmem:[#allocation5 + $0xa8] sm:$0xff] %vm6124, %v6113
  %6147 = vst.msk [vmem:[#allocation5 + $0xb0] sm:$0xff] %vm6124, %v6114
  %6148 = vst.msk [vmem:[#allocation5 + $0xb8] sm:$0xff] %vm6124, %v6115
  %6149 = vst.msk [vmem:[#allocation5 + $0xc0] sm:$0xff] %vm6124, %v6116
  %6150 = vst.msk [vmem:[#allocation5 + $0xc8] sm:$0xff] %vm6124, %v6117
  %6151 = vst.msk [vmem:[#allocation5 + $0xd0] sm:$0xff] %vm6124, %v6118
  %6152 = vst.msk [vmem:[#allocation5 + $0xd8] sm:$0xff] %vm6124, %v6119
  %6153 = vst.msk [vmem:[#allocation5 + $0xe0] sm:$0xff] %vm6124, %v6120
  %6154 = vst.msk [vmem:[#allocation5 + $0xe8] sm:$0xff] %vm6124, %v6121
  %6155 = vst.msk [vmem:[#allocation5 + $0xf0] sm:$0xff] %vm6124, %v6122
  %6156 = vst.msk [vmem:[#allocation5 + $0xf8] sm:$0xff] %vm6124, %v6123
  %v6157 = vld [vmem:[#allocation5] ss:$2 sm:$0xff]
  %s6158 = scalar_lea.vmem [#allocation5], 16
  %v6159 = vld [vmem:[%s6158] ss:$2 sm:$0xff]
  %s6160 = scalar_lea.vmem [#allocation5], 32
  %v6161 = vld [vmem:[%s6160] ss:$2 sm:$0xff]
  %s6162 = scalar_lea.vmem [#allocation5], 48
  %v6163 = vld [vmem:[%s6162] ss:$2 sm:$0xff]
  %s6164 = scalar_lea.vmem [#allocation5], 64
  %v6165 = vld [vmem:[%s6164] ss:$2 sm:$0xff]
  %s6166 = scalar_lea.vmem [#allocation5], 80
  %v6167 = vld [vmem:[%s6166] ss:$2 sm:$0xff]
  %s6168 = scalar_lea.vmem [#allocation5], 96
  %v6169 = vld [vmem:[%s6168] ss:$2 sm:$0xff]
  %s6170 = scalar_lea.vmem [#allocation5], 112
  %v6171 = vld [vmem:[%s6170] ss:$2 sm:$0xff]
  %s6172 = scalar_lea.vmem [#allocation5], 128
  %v6173 = vld [vmem:[%s6172] ss:$2 sm:$0xff]
  %s6174 = scalar_lea.vmem [#allocation5], 144
  %v6175 = vld [vmem:[%s6174] ss:$2 sm:$0xff]
  %s6176 = scalar_lea.vmem [#allocation5], 160
  %v6177 = vld [vmem:[%s6176] ss:$2 sm:$0xff]
  %s6178 = scalar_lea.vmem [#allocation5], 176
  %v6179 = vld [vmem:[%s6178] ss:$2 sm:$0xff]
  %s6180 = scalar_lea.vmem [#allocation5], 192
  %v6181 = vld [vmem:[%s6180] ss:$2 sm:$0xff]
  %s6182 = scalar_lea.vmem [#allocation5], 208
  %v6183 = vld [vmem:[%s6182] ss:$2 sm:$0xff]
  %s6184 = scalar_lea.vmem [#allocation5], 224
  %v6185 = vld [vmem:[%s6184] ss:$2 sm:$0xff]
  %s6186 = scalar_lea.vmem [#allocation5], 240
  %v6187 = vld [vmem:[%s6186] ss:$2 sm:$0xff]
  %s6188 = scalar_lea.vmem [#allocation5], 1
  %v6189 = vld [vmem:[%s6188] ss:$2 sm:$0xff]
  %s6190 = scalar_lea.vmem [#allocation5], 17
  %v6191 = vld [vmem:[%s6190] ss:$2 sm:$0xff]
  %s6192 = scalar_lea.vmem [#allocation5], 33
  %v6193 = vld [vmem:[%s6192] ss:$2 sm:$0xff]
  %s6194 = scalar_lea.vmem [#allocation5], 49
  %v6195 = vld [vmem:[%s6194] ss:$2 sm:$0xff]
  %s6196 = scalar_lea.vmem [#allocation5], 65
  %v6197 = vld [vmem:[%s6196] ss:$2 sm:$0xff]
  %s6198 = scalar_lea.vmem [#allocation5], 81
  %v6199 = vld [vmem:[%s6198] ss:$2 sm:$0xff]
  %s6200 = scalar_lea.vmem [#allocation5], 97
  %v6201 = vld [vmem:[%s6200] ss:$2 sm:$0xff]
  %s6202 = scalar_lea.vmem [#allocation5], 113
  %v6203 = vld [vmem:[%s6202] ss:$2 sm:$0xff]
  %s6204 = scalar_lea.vmem [#allocation5], 129
  %v6205 = vld [vmem:[%s6204] ss:$2 sm:$0xff]
  %s6206 = scalar_lea.vmem [#allocation5], 145
  %v6207 = vld [vmem:[%s6206] ss:$2 sm:$0xff]
  %s6208 = scalar_lea.vmem [#allocation5], 161
  %v6209 = vld [vmem:[%s6208] ss:$2 sm:$0xff]
  %s6210 = scalar_lea.vmem [#allocation5], 177
  %v6211 = vld [vmem:[%s6210] ss:$2 sm:$0xff]
  %s6212 = scalar_lea.vmem [#allocation5], 193
  %v6213 = vld [vmem:[%s6212] ss:$2 sm:$0xff]
  %s6214 = scalar_lea.vmem [#allocation5], 209
  %v6215 = vld [vmem:[%s6214] ss:$2 sm:$0xff]
  %s6216 = scalar_lea.vmem [#allocation5], 225
  %v6217 = vld [vmem:[%s6216] ss:$2 sm:$0xff]
  %s6218 = scalar_lea.vmem [#allocation5], 241
  %v6219 = vld [vmem:[%s6218] ss:$2 sm:$0xff]
  %v6220 = vmax.f32 %v6157, %v6189
  %v6221 = vmax.f32 %v6159, %v6191
  %v6222 = vmax.f32 %v6161, %v6193
  %v6223 = vmax.f32 %v6163, %v6195
  %v6224 = vmax.f32 %v6165, %v6197
  %v6225 = vmax.f32 %v6167, %v6199
  %v6226 = vmax.f32 %v6169, %v6201
  %v6227 = vmax.f32 %v6171, %v6203
  %v6228 = vmax.f32 %v6173, %v6205
  %v6229 = vmax.f32 %v6175, %v6207
  %v6230 = vmax.f32 %v6177, %v6209
  %v6231 = vmax.f32 %v6179, %v6211
  %v6232 = vmax.f32 %v6181, %v6213
  %v6233 = vmax.f32 %v6183, %v6215
  %v6234 = vmax.f32 %v6185, %v6217
  %v6235 = vmax.f32 %v6187, %v6219
  %6236 = vst.msk [vmem:[#allocation6] sm:$0xff] %vm6124, 0.0
  %vm6237 = vcmask 123904
  %6238 = vst.msk [vmem:[#allocation6 + $0x8] sm:$0x3] %vm6237, 0.0
  %6239 = vst.msk [vmem:[#allocation6 + $0xa0] sm:$0xff] %vm6124, 0.0
  %6240 = vst.msk [vmem:[#allocation6 + $0xa8] sm:$0x3] %vm6237, 0.0
  %s6241 = scalar_lea.vmem [#allocation6], 144
  %6242 = vst.msk [vmem:[%s6241] sm:$0xff] %vm6124, 0.0
  %6243 = vst.msk [vmem:[%s6241 + $0x8] sm:$0x3] %vm6237, 0.0
  %6244 = vst.msk [vmem:[%s6241 + $0xa0] sm:$0xff] %vm6124, 0.0
  %6245 = vst.msk [vmem:[%s6241 + $0xa8] sm:$0x3] %vm6237, 0.0
  %vm6246 = vcmask 122880
  %6247 = vst.msk [vmem:[#allocation6] sm:$0x1] %vm6246, 0.0
  %6248 = vst.msk [vmem:[#allocation6 + $0x10] sm:$0x1] %vm6246, 0.0
  %6249 = vst.msk [vmem:[#allocation6 + $0x20] sm:$0x1] %vm6246, 0.0
  %6250 = vst.msk [vmem:[#allocation6 + $0x30] sm:$0x1] %vm6246, 0.0
  %6251 = vst.msk [vmem:[#allocation6 + $0x40] sm:$0x1] %vm6246, 0.0
  %6252 = vst.msk [vmem:[#allocation6 + $0x50] sm:$0x1] %vm6246, 0.0
  %6253 = vst.msk [vmem:[#allocation6 + $0x60] sm:$0x1] %vm6246, 0.0
  %6254 = vst.msk [vmem:[#allocation6 + $0x70] sm:$0x1] %vm6246, 0.0
  %6255 = vst.msk [vmem:[#allocation6 + $0x80] sm:$0x1] %vm6246, 0.0
  %6256 = vst.msk [vmem:[#allocation6 + $0x90] sm:$0x1] %vm6246, 0.0
  %6257 = vst.msk [vmem:[#allocation6 + $0xa0] sm:$0x1] %vm6246, 0.0
  %6258 = vst.msk [vmem:[#allocation6 + $0xb0] sm:$0x1] %vm6246, 0.0
  %6259 = vst.msk [vmem:[#allocation6 + $0xc0] sm:$0x1] %vm6246, 0.0
  %6260 = vst.msk [vmem:[#allocation6 + $0xd0] sm:$0x1] %vm6246, 0.0
  %6261 = vst.msk [vmem:[#allocation6 + $0xe0] sm:$0x1] %vm6246, 0.0
  %6262 = vst.msk [vmem:[#allocation6 + $0xf0] sm:$0x1] %vm6246, 0.0
  %6263 = vst.msk [vmem:[#allocation6 + $0x100] sm:$0x1] %vm6246, 0.0
  %6264 = vst.msk [vmem:[#allocation6 + $0x110] sm:$0x1] %vm6246, 0.0
  %6265 = vst.msk [vmem:[#allocation6 + $0x120] sm:$0x1] %vm6246, 0.0
  %6266 = vst.msk [vmem:[#allocation6 + $0x130] sm:$0x1] %vm6246, 0.0
  %6267 = vst.msk [vmem:[#allocation6 + $0x9] sm:$0x1] %vm6246, 0.0
  %6268 = vst.msk [vmem:[#allocation6 + $0x19] sm:$0x1] %vm6246, 0.0
  %6269 = vst.msk [vmem:[#allocation6 + $0x29] sm:$0x1] %vm6246, 0.0
  %6270 = vst.msk [vmem:[#allocation6 + $0x39] sm:$0x1] %vm6246, 0.0
  %6271 = vst.msk [vmem:[#allocation6 + $0x49] sm:$0x1] %vm6246, 0.0
  %6272 = vst.msk [vmem:[#allocation6 + $0x59] sm:$0x1] %vm6246, 0.0
  %6273 = vst.msk [vmem:[#allocation6 + $0x69] sm:$0x1] %vm6246, 0.0
  %6274 = vst.msk [vmem:[#allocation6 + $0x79] sm:$0x1] %vm6246, 0.0
  %6275 = vst.msk [vmem:[#allocation6 + $0x89] sm:$0x1] %vm6246, 0.0
  %6276 = vst.msk [vmem:[#allocation6 + $0x99] sm:$0x1] %vm6246, 0.0
  %6277 = vst.msk [vmem:[#allocation6 + $0xa9] sm:$0x1] %vm6246, 0.0
  %6278 = vst.msk [vmem:[#allocation6 + $0xb9] sm:$0x1] %vm6246, 0.0
  %6279 = vst.msk [vmem:[#allocation6 + $0xc9] sm:$0x1] %vm6246, 0.0
  %6280 = vst.msk [vmem:[#allocation6 + $0xd9] sm:$0x1] %vm6246, 0.0
  %6281 = vst.msk [vmem:[#allocation6 + $0xe9] sm:$0x1] %vm6246, 0.0
  %6282 = vst.msk [vmem:[#allocation6 + $0xf9] sm:$0x1] %vm6246, 0.0
  %6283 = vst.msk [vmem:[#allocation6 + $0x109] sm:$0x1] %vm6246, 0.0
  %6284 = vst.msk [vmem:[#allocation6 + $0x119] sm:$0x1] %vm6246, 0.0
  %6285 = vst.msk [vmem:[#allocation6 + $0x129] sm:$0x1] %vm6246, 0.0
  %6286 = vst.msk [vmem:[#allocation6 + $0x139] sm:$0x1] %vm6246, 0.0
  %s6287 = scalar_lea.vmem [#allocation6], 16
  %6288 = vst.msk [vmem:[%s6287 + $0x1] sm:$0xff] %vm6124, %v6220
  %6289 = vst.msk [vmem:[%s6287 + $0x11] sm:$0xff] %vm6124, %v6221
  %6290 = vst.msk [vmem:[%s6287 + $0x21] sm:$0xff] %vm6124, %v6222
  %6291 = vst.msk [vmem:[%s6287 + $0x31] sm:$0xff] %vm6124, %v6223
  %6292 = vst.msk [vmem:[%s6287 + $0x41] sm:$0xff] %vm6124, %v6224
  %6293 = vst.msk [vmem:[%s6287 + $0x51] sm:$0xff] %vm6124, %v6225
  %6294 = vst.msk [vmem:[%s6287 + $0x61] sm:$0xff] %vm6124, %v6226
  %6295 = vst.msk [vmem:[%s6287 + $0x71] sm:$0xff] %vm6124, %v6227
  %6296 = vst.msk [vmem:[%s6287 + $0xa1] sm:$0xff] %vm6124, %v6228
  %6297 = vst.msk [vmem:[%s6287 + $0xb1] sm:$0xff] %vm6124, %v6229
  %6298 = vst.msk [vmem:[%s6287 + $0xc1] sm:$0xff] %vm6124, %v6230
  %6299 = vst.msk [vmem:[%s6287 + $0xd1] sm:$0xff] %vm6124, %v6231
  %6300 = vst.msk [vmem:[%s6287 + $0xe1] sm:$0xff] %vm6124, %v6232
  %6301 = vst.msk [vmem:[%s6287 + $0xf1] sm:$0xff] %vm6124, %v6233
  %6302 = vst.msk [vmem:[%s6287 + $0x101] sm:$0xff] %vm6124, %v6234
  %6303 = vst.msk [vmem:[%s6287 + $0x111] sm:$0xff] %vm6124, %v6235
  %v6304 = vld [vmem:[#allocation6] sm:$0xff]
  %v6305 = vld [vmem:[#allocation6 + $0x10] sm:$0xff]
  %v6306 = vld [vmem:[#allocation6 + $0x20] sm:$0xff]
  %v6307 = vld [vmem:[#allocation6 + $0x30] sm:$0xff]
  %v6308 = vld [vmem:[#allocation6 + $0x40] sm:$0xff]
  %v6309 = vld [vmem:[#allocation6 + $0x50] sm:$0xff]
  %v6310 = vld [vmem:[#allocation6 + $0x60] sm:$0xff]
  %v6311 = vld [vmem:[#allocation6 + $0x70] sm:$0xff]
  %v6312 = vld [vmem:[#allocation6 + $0xa0] sm:$0xff]
  %v6313 = vld [vmem:[#allocation6 + $0xb0] sm:$0xff]
  %v6314 = vld [vmem:[#allocation6 + $0xc0] sm:$0xff]
  %v6315 = vld [vmem:[#allocation6 + $0xd0] sm:$0xff]
  %v6316 = vld [vmem:[#allocation6 + $0xe0] sm:$0xff]
  %v6317 = vld [vmem:[#allocation6 + $0xf0] sm:$0xff]
  %v6318 = vld [vmem:[#allocation6 + $0x100] sm:$0xff]
  %v6319 = vld [vmem:[#allocation6 + $0x110] sm:$0xff]
  %v6320 = vpack.c.bf16 %v6305, %v6304
  %v6321 = vpack.c.bf16 %v6307, %v6306
  %v6322 = vpack.c.bf16 %v6309, %v6308
  %v6323 = vpack.c.bf16 %v6311, %v6310
  %v6324 = vpack.c.bf16 %v6313, %v6312
  %v6325 = vpack.c.bf16 %v6315, %v6314
  %v6326 = vpack.c.bf16 %v6317, %v6316
  %v6327 = vpack.c.bf16 %v6319, %v6318
  %6328 = vst.msk [vmem:[#allocation7] sm:$0xff] %vm6124, %v6320
  %6329 = vst.msk [vmem:[#allocation7 + $0x10] sm:$0xff] %vm6124, %v6321
  %6330 = vst.msk [vmem:[#allocation7 + $0x20] sm:$0xff] %vm6124, %v6322
  %6331 = vst.msk [vmem:[#allocation7 + $0x30] sm:$0xff] %vm6124, %v6323
  %6332 = vst.msk [vmem:[#allocation7 + $0x40] sm:$0xff] %vm6124, %v6324
  %6333 = vst.msk [vmem:[#allocation7 + $0x50] sm:$0xff] %vm6124, %v6325
  %6334 = vst.msk [vmem:[#allocation7 + $0x60] sm:$0xff] %vm6124, %v6326
  %6335 = vst.msk [vmem:[#allocation7 + $0x70] sm:$0xff] %vm6124, %v6327
  %v6336 = vld [vmem:[#allocation6 + $0x1] sm:$0xff]
  %v6337 = vld [vmem:[#allocation6 + $0x11] sm:$0xff]
  %v6338 = vld [vmem:[#allocation6 + $0x21] sm:$0xff]
  %v6339 = vld [vmem:[#allocation6 + $0x31] sm:$0xff]
  %v6340 = vld [vmem:[#allocation6 + $0x41] sm:$0xff]
  %v6341 = vld [vmem:[#allocation6 + $0x51] sm:$0xff]
  %v6342 = vld [vmem:[#allocation6 + $0x61] sm:$0xff]
  %v6343 = vld [vmem:[#allocation6 + $0x71] sm:$0xff]
  %v6344 = vld [vmem:[#allocation6 + $0xa1] sm:$0xff]
  %v6345 = vld [vmem:[#allocation6 + $0xb1] sm:$0xff]
  %v6346 = vld [vmem:[#allocation6 + $0xc1] sm:$0xff]
  %v6347 = vld [vmem:[#allocation6 + $0xd1] sm:$0xff]
  %v6348 = vld [vmem:[#allocation6 + $0xe1] sm:$0xff]
  %v6349 = vld [vmem:[#allocation6 + $0xf1] sm:$0xff]
  %v6350 = vld [vmem:[#allocation6 + $0x101] sm:$0xff]
  %v6351 = vld [vmem:[#allocation6 + $0x111] sm:$0xff]
  %v6352 = vpack.c.bf16 %v6337, %v6336
  %v6353 = vpack.c.bf16 %v6339, %v6338
  %v6354 = vpack.c.bf16 %v6341, %v6340
  %v6355 = vpack.c.bf16 %v6343, %v6342
  %v6356 = vpack.c.bf16 %v6345, %v6344
  %v6357 = vpack.c.bf16 %v6347, %v6346
  %v6358 = vpack.c.bf16 %v6349, %v6348
  %v6359 = vpack.c.bf16 %v6351, %v6350
  %6368 = vrot.lane.b32.xlu0 %v6352, 16
  %v6369 = vpop.permute.xlu0 %6368
  %6370 = vrot.lane.b32.xlu0 %v6353, 16
  %v6371 = vpop.permute.xlu0 %6370
  %6372 = vrot.lane.b32.xlu0 %v6354, 16
  %v6373 = vpop.permute.xlu0 %6372
  %6374 = vrot.lane.b32.xlu0 %v6355, 16
  %v6375 = vpop.permute.xlu0 %6374
  %6376 = vrot.lane.b32.xlu0 %v6356, 16
  %v6377 = vpop.permute.xlu0 %6376
  %6378 = vrot.lane.b32.xlu0 %v6357, 16
  %v6379 = vpop.permute.xlu0 %6378
  %6380 = vrot.lane.b32.xlu0 %v6358, 16
  %v6381 = vpop.permute.xlu0 %6380
  %6382 = vrot.lane.b32.xlu0 %v6359, 16
  %v6383 = vpop.permute.xlu0 %6382
  %vm6392 = vcmask 261248
  %6393 = vst.msk [vmem:[#allocation7] sm:$0xff] %vm6392, %v6369
  %6394 = vst.msk [vmem:[#allocation7 + $0x10] sm:$0xff] %vm6392, %v6371
  %6395 = vst.msk [vmem:[#allocation7 + $0x20] sm:$0xff] %vm6392, %v6373
  %6396 = vst.msk [vmem:[#allocation7 + $0x30] sm:$0xff] %vm6392, %v6375
  %6397 = vst.msk [vmem:[#allocation7 + $0x40] sm:$0xff] %vm6392, %v6377
  %6398 = vst.msk [vmem:[#allocation7 + $0x50] sm:$0xff] %vm6392, %v6379
  %6399 = vst.msk [vmem:[#allocation7 + $0x60] sm:$0xff] %vm6392, %v6381
  %6400 = vst.msk [vmem:[#allocation7 + $0x70] sm:$0xff] %vm6392, %v6383
  %v6401 = vld [vmem:[#allocation6 + $0x2] sm:$0xff]
  %v6402 = vld [vmem:[#allocation6 + $0x12] sm:$0xff]
  %v6403 = vld [vmem:[#allocation6 + $0x22] sm:$0xff]
  %v6404 = vld [vmem:[#allocation6 + $0x32] sm:$0xff]
  %v6405 = vld [vmem:[#allocation6 + $0x42] sm:$0xff]
  %v6406 = vld [vmem:[#allocation6 + $0x52] sm:$0xff]
  %v6407 = vld [vmem:[#allocation6 + $0x62] sm:$0xff]
  %v6408 = vld [vmem:[#allocation6 + $0x72] sm:$0xff]
  %v6409 = vld [vmem:[#allocation6 + $0xa2] sm:$0xff]
  %v6410 = vld [vmem:[#allocation6 + $0xb2] sm:$0xff]
  %v6411 = vld [vmem:[#allocation6 + $0xc2] sm:$0xff]
  %v6412 = vld [vmem:[#allocation6 + $0xd2] sm:$0xff]
  %v6413 = vld [vmem:[#allocation6 + $0xe2] sm:$0xff]
  %v6414 = vld [vmem:[#allocation6 + $0xf2] sm:$0xff]
  %v6415 = vld [vmem:[#allocation6 + $0x102] sm:$0xff]
  %v6416 = vld [vmem:[#allocation6 + $0x112] sm:$0xff]
  %v6417 = vpack.c.bf16 %v6402, %v6401
  %v6418 = vpack.c.bf16 %v6404, %v6403
  %v6419 = vpack.c.bf16 %v6406, %v6405
  %v6420 = vpack.c.bf16 %v6408, %v6407
  %v6421 = vpack.c.bf16 %v6410, %v6409
  %v6422 = vpack.c.bf16 %v6412, %v6411
  %v6423 = vpack.c.bf16 %v6414, %v6413
  %v6424 = vpack.c.bf16 %v6416, %v6415
  %6433 = vrot.lane.b32.xlu0 %v6417, 32
  %v6434 = vpop.permute.xlu0 %6433
  %6435 = vrot.lane.b32.xlu0 %v6418, 32
  %v6436 = vpop.permute.xlu0 %6435
  %6437 = vrot.lane.b32.xlu0 %v6419, 32
  %v6438 = vpop.permute.xlu0 %6437
  %6439 = vrot.lane.b32.xlu0 %v6420, 32
  %v6440 = vpop.permute.xlu0 %6439
  %6441 = vrot.lane.b32.xlu0 %v6421, 32
  %v6442 = vpop.permute.xlu0 %6441
  %6443 = vrot.lane.b32.xlu0 %v6422, 32
  %v6444 = vpop.permute.xlu0 %6443
  %6445 = vrot.lane.b32.xlu0 %v6423, 32
  %v6446 = vpop.permute.xlu0 %6445
  %6447 = vrot.lane.b32.xlu0 %v6424, 32
  %v6448 = vpop.permute.xlu0 %6447
  %vm6457 = vcmask 392448
  %6458 = vst.msk [vmem:[#allocation7] sm:$0xff] %vm6457, %v6434
  %6459 = vst.msk [vmem:[#allocation7 + $0x10] sm:$0xff] %vm6457, %v6436
  %6460 = vst.msk [vmem:[#allocation7 + $0x20] sm:$0xff] %vm6457, %v6438
  %6461 = vst.msk [vmem:[#allocation7 + $0x30] sm:$0xff] %vm6457, %v6440
  %6462 = vst.msk [vmem:[#allocation7 + $0x40] sm:$0xff] %vm6457, %v6442
  %6463 = vst.msk [vmem:[#allocation7 + $0x50] sm:$0xff] %vm6457, %v6444
  %6464 = vst.msk [vmem:[#allocation7 + $0x60] sm:$0xff] %vm6457, %v6446
  %6465 = vst.msk [vmem:[#allocation7 + $0x70] sm:$0xff] %vm6457, %v6448
  %v6466 = vld [vmem:[%s6287] sm:$0xff]
  %v6467 = vld [vmem:[%s6287 + $0x10] sm:$0xff]
  %v6468 = vld [vmem:[%s6287 + $0x20] sm:$0xff]
  %v6469 = vld [vmem:[%s6287 + $0x30] sm:$0xff]
  %v6470 = vld [vmem:[%s6287 + $0x40] sm:$0xff]
  %v6471 = vld [vmem:[%s6287 + $0x50] sm:$0xff]
  %v6472 = vld [vmem:[%s6287 + $0x60] sm:$0xff]
  %v6473 = vld [vmem:[%s6287 + $0x70] sm:$0xff]
  %v6474 = vld [vmem:[%s6287 + $0xa0] sm:$0xff]
  %v6475 = vld [vmem:[%s6287 + $0xb0] sm:$0xff]
  %v6476 = vld [vmem:[%s6287 + $0xc0] sm:$0xff]
  %v6477 = vld [vmem:[%s6287 + $0xd0] sm:$0xff]
  %v6478 = vld [vmem:[%s6287 + $0xe0] sm:$0xff]
  %v6479 = vld [vmem:[%s6287 + $0xf0] sm:$0xff]
  %v6480 = vld [vmem:[%s6287 + $0x100] sm:$0xff]
  %v6481 = vld [vmem:[%s6287 + $0x110] sm:$0xff]
  %v6482 = vpack.c.bf16 %v6467, %v6466
  %v6483 = vpack.c.bf16 %v6469, %v6468
  %v6484 = vpack.c.bf16 %v6471, %v6470
  %v6485 = vpack.c.bf16 %v6473, %v6472
  %v6486 = vpack.c.bf16 %v6475, %v6474
  %v6487 = vpack.c.bf16 %v6477, %v6476
  %v6488 = vpack.c.bf16 %v6479, %v6478
  %v6489 = vpack.c.bf16 %v6481, %v6480
  %6498 = vrot.lane.b32.xlu0 %v6482, 48
  %v6499 = vpop.permute.xlu0 %6498
  %6500 = vrot.lane.b32.xlu0 %v6483, 48
  %v6501 = vpop.permute.xlu0 %6500
  %6502 = vrot.lane.b32.xlu0 %v6484, 48
  %v6503 = vpop.permute.xlu0 %6502
  %6504 = vrot.lane.b32.xlu0 %v6485, 48
  %v6505 = vpop.permute.xlu0 %6504
  %6506 = vrot.lane.b32.xlu0 %v6486, 48
  %v6507 = vpop.permute.xlu0 %6506
  %6508 = vrot.lane.b32.xlu0 %v6487, 48
  %v6509 = vpop.permute.xlu0 %6508
  %6510 = vrot.lane.b32.xlu0 %v6488, 48
  %v6511 = vpop.permute.xlu0 %6510
  %6512 = vrot.lane.b32.xlu0 %v6489, 48
  %v6513 = vpop.permute.xlu0 %6512
  %vm6522 = vcmask 523648
  %6523 = vst.msk [vmem:[#allocation7] sm:$0xff] %vm6522, %v6499
  %6524 = vst.msk [vmem:[#allocation7 + $0x10] sm:$0xff] %vm6522, %v6501
  %6525 = vst.msk [vmem:[#allocation7 + $0x20] sm:$0xff] %vm6522, %v6503
  %6526 = vst.msk [vmem:[#allocation7 + $0x30] sm:$0xff] %vm6522, %v6505
  %6527 = vst.msk [vmem:[#allocation7 + $0x40] sm:$0xff] %vm6522, %v6507
  %6528 = vst.msk [vmem:[#allocation7 + $0x50] sm:$0xff] %vm6522, %v6509
  %6529 = vst.msk [vmem:[#allocation7 + $0x60] sm:$0xff] %vm6522, %v6511
  %6530 = vst.msk [vmem:[#allocation7 + $0x70] sm:$0xff] %vm6522, %v6513
  %v6531 = vld [vmem:[%s6287 + $0x1] sm:$0xff]
  %v6532 = vld [vmem:[%s6287 + $0x11] sm:$0xff]
  %v6533 = vld [vmem:[%s6287 + $0x21] sm:$0xff]
  %v6534 = vld [vmem:[%s6287 + $0x31] sm:$0xff]
  %v6535 = vld [vmem:[%s6287 + $0x41] sm:$0xff]
  %v6536 = vld [vmem:[%s6287 + $0x51] sm:$0xff]
  %v6537 = vld [vmem:[%s6287 + $0x61] sm:$0xff]
  %v6538 = vld [vmem:[%s6287 + $0x71] sm:$0xff]
  %v6539 = vld [vmem:[%s6287 + $0xa1] sm:$0xff]
  %v6540 = vld [vmem:[%s6287 + $0xb1] sm:$0xff]
  %v6541 = vld [vmem:[%s6287 + $0xc1] sm:$0xff]
  %v6542 = vld [vmem:[%s6287 + $0xd1] sm:$0xff]
  %v6543 = vld [vmem:[%s6287 + $0xe1] sm:$0xff]
  %v6544 = vld [vmem:[%s6287 + $0xf1] sm:$0xff]
  %v6545 = vld [vmem:[%s6287 + $0x101] sm:$0xff]
  %v6546 = vld [vmem:[%s6287 + $0x111] sm:$0xff]
  %v6547 = vpack.c.bf16 %v6532, %v6531
  %v6548 = vpack.c.bf16 %v6534, %v6533
  %v6549 = vpack.c.bf16 %v6536, %v6535
  %v6550 = vpack.c.bf16 %v6538, %v6537
  %v6551 = vpack.c.bf16 %v6540, %v6539
  %v6552 = vpack.c.bf16 %v6542, %v6541
  %v6553 = vpack.c.bf16 %v6544, %v6543
  %v6554 = vpack.c.bf16 %v6546, %v6545
  %6563 = vrot.lane.b32.xlu0 %v6547, 64
  %v6564 = vpop.permute.xlu0 %6563
  %6565 = vrot.lane.b32.xlu0 %v6548, 64
  %v6566 = vpop.permute.xlu0 %6565
  %6567 = vrot.lane.b32.xlu0 %v6549, 64
  %v6568 = vpop.permute.xlu0 %6567
  %6569 = vrot.lane.b32.xlu0 %v6550, 64
  %v6570 = vpop.permute.xlu0 %6569
  %6571 = vrot.lane.b32.xlu0 %v6551, 64
  %v6572 = vpop.permute.xlu0 %6571
  %6573 = vrot.lane.b32.xlu0 %v6552, 64
  %v6574 = vpop.permute.xlu0 %6573
  %6575 = vrot.lane.b32.xlu0 %v6553, 64
  %v6576 = vpop.permute.xlu0 %6575
  %6577 = vrot.lane.b32.xlu0 %v6554, 64
  %v6578 = vpop.permute.xlu0 %6577
  %vm6587 = vcmask 654848
  %6588 = vst.msk [vmem:[#allocation7] sm:$0xff] %vm6587, %v6564
  %6589 = vst.msk [vmem:[#allocation7 + $0x10] sm:$0xff] %vm6587, %v6566
  %6590 = vst.msk [vmem:[#allocation7 + $0x20] sm:$0xff] %vm6587, %v6568
  %6591 = vst.msk [vmem:[#allocation7 + $0x30] sm:$0xff] %vm6587, %v6570
  %6592 = vst.msk [vmem:[#allocation7 + $0x40] sm:$0xff] %vm6587, %v6572
  %6593 = vst.msk [vmem:[#allocation7 + $0x50] sm:$0xff] %vm6587, %v6574
  %6594 = vst.msk [vmem:[#allocation7 + $0x60] sm:$0xff] %vm6587, %v6576
  %6595 = vst.msk [vmem:[#allocation7 + $0x70] sm:$0xff] %vm6587, %v6578
  %v6596 = vld [vmem:[%s6287 + $0x2] sm:$0xff]
  %v6597 = vld [vmem:[%s6287 + $0x12] sm:$0xff]
  %v6598 = vld [vmem:[%s6287 + $0x22] sm:$0xff]
  %v6599 = vld [vmem:[%s6287 + $0x32] sm:$0xff]
  %v6600 = vld [vmem:[%s6287 + $0x42] sm:$0xff]
  %v6601 = vld [vmem:[%s6287 + $0x52] sm:$0xff]
  %v6602 = vld [vmem:[%s6287 + $0x62] sm:$0xff]
  %v6603 = vld [vmem:[%s6287 + $0x72] sm:$0xff]
  %v6604 = vld [vmem:[%s6287 + $0xa2] sm:$0xff]
  %v6605 = vld [vmem:[%s6287 + $0xb2] sm:$0xff]
  %v6606 = vld [vmem:[%s6287 + $0xc2] sm:$0xff]
  %v6607 = vld [vmem:[%s6287 + $0xd2] sm:$0xff]
  %v6608 = vld [vmem:[%s6287 + $0xe2] sm:$0xff]
  %v6609 = vld [vmem:[%s6287 + $0xf2] sm:$0xff]
  %v6610 = vld [vmem:[%s6287 + $0x102] sm:$0xff]
  %v6611 = vld [vmem:[%s6287 + $0x112] sm:$0xff]
  %v6612 = vpack.c.bf16 %v6597, %v6596
  %v6613 = vpack.c.bf16 %v6599, %v6598
  %v6614 = vpack.c.bf16 %v6601, %v6600
  %v6615 = vpack.c.bf16 %v6603, %v6602
  %v6616 = vpack.c.bf16 %v6605, %v6604
  %v6617 = vpack.c.bf16 %v6607, %v6606
  %v6618 = vpack.c.bf16 %v6609, %v6608
  %v6619 = vpack.c.bf16 %v6611, %v6610
  %6628 = vrot.lane.b32.xlu0 %v6612, 80
  %v6629 = vpop.permute.xlu0 %6628
  %6630 = vrot.lane.b32.xlu0 %v6613, 80
  %v6631 = vpop.permute.xlu0 %6630
  %6632 = vrot.lane.b32.xlu0 %v6614, 80
  %v6633 = vpop.permute.xlu0 %6632
  %6634 = vrot.lane.b32.xlu0 %v6615, 80
  %v6635 = vpop.permute.xlu0 %6634
  %6636 = vrot.lane.b32.xlu0 %v6616, 80
  %v6637 = vpop.permute.xlu0 %6636
  %6638 = vrot.lane.b32.xlu0 %v6617, 80
  %v6639 = vpop.permute.xlu0 %6638
  %6640 = vrot.lane.b32.xlu0 %v6618, 80
  %v6641 = vpop.permute.xlu0 %6640
  %6642 = vrot.lane.b32.xlu0 %v6619, 80
  %v6643 = vpop.permute.xlu0 %6642
  %vm6652 = vcmask 786048
  %6653 = vst.msk [vmem:[#allocation7] sm:$0xff] %vm6652, %v6629
  %6654 = vst.msk [vmem:[#allocation7 + $0x10] sm:$0xff] %vm6652, %v6631
  %6655 = vst.msk [vmem:[#allocation7 + $0x20] sm:$0xff] %vm6652, %v6633
  %6656 = vst.msk [vmem:[#allocation7 + $0x30] sm:$0xff] %vm6652, %v6635
  %6657 = vst.msk [vmem:[#allocation7 + $0x40] sm:$0xff] %vm6652, %v6637
  %6658 = vst.msk [vmem:[#allocation7 + $0x50] sm:$0xff] %vm6652, %v6639
  %6659 = vst.msk [vmem:[#allocation7 + $0x60] sm:$0xff] %vm6652, %v6641
  %6660 = vst.msk [vmem:[#allocation7 + $0x70] sm:$0xff] %vm6652, %v6643
  %s6661 = scalar_lea.vmem [#allocation6], 32
  %v6662 = vld [vmem:[%s6661] sm:$0xff]
  %v6663 = vld [vmem:[%s6661 + $0x10] sm:$0xff]
  %v6664 = vld [vmem:[%s6661 + $0x20] sm:$0xff]
  %v6665 = vld [vmem:[%s6661 + $0x30] sm:$0xff]
  %v6666 = vld [vmem:[%s6661 + $0x40] sm:$0xff]
  %v6667 = vld [vmem:[%s6661 + $0x50] sm:$0xff]
  %v6668 = vld [vmem:[%s6661 + $0x60] sm:$0xff]
  %v6669 = vld [vmem:[%s6661 + $0x70] sm:$0xff]
  %v6670 = vld [vmem:[%s6661 + $0xa0] sm:$0xff]
  %v6671 = vld [vmem:[%s6661 + $0xb0] sm:$0xff]
  %v6672 = vld [vmem:[%s6661 + $0xc0] sm:$0xff]
  %v6673 = vld [vmem:[%s6661 + $0xd0] sm:$0xff]
  %v6674 = vld [vmem:[%s6661 + $0xe0] sm:$0xff]
  %v6675 = vld [vmem:[%s6661 + $0xf0] sm:$0xff]
  %v6676 = vld [vmem:[%s6661 + $0x100] sm:$0xff]
  %v6677 = vld [vmem:[%s6661 + $0x110] sm:$0xff]
  %v6678 = vpack.c.bf16 %v6663, %v6662
  %v6679 = vpack.c.bf16 %v6665, %v6664
  %v6680 = vpack.c.bf16 %v6667, %v6666
  %v6681 = vpack.c.bf16 %v6669, %v6668
  %v6682 = vpack.c.bf16 %v6671, %v6670
  %v6683 = vpack.c.bf16 %v6673, %v6672
  %v6684 = vpack.c.bf16 %v6675, %v6674
  %v6685 = vpack.c.bf16 %v6677, %v6676
  %6694 = vrot.lane.b32.xlu0 %v6678, 96
  %v6695 = vpop.permute.xlu0 %6694
  %6696 = vrot.lane.b32.xlu0 %v6679, 96
  %v6697 = vpop.permute.xlu0 %6696
  %6698 = vrot.lane.b32.xlu0 %v6680, 96
  %v6699 = vpop.permute.xlu0 %6698
  %6700 = vrot.lane.b32.xlu0 %v6681, 96
  %v6701 = vpop.permute.xlu0 %6700
  %6702 = vrot.lane.b32.xlu0 %v6682, 96
  %v6703 = vpop.permute.xlu0 %6702
  %6704 = vrot.lane.b32.xlu0 %v6683, 96
  %v6705 = vpop.permute.xlu0 %6704
  %6706 = vrot.lane.b32.xlu0 %v6684, 96
  %v6707 = vpop.permute.xlu0 %6706
  %6708 = vrot.lane.b32.xlu0 %v6685, 96
  %v6709 = vpop.permute.xlu0 %6708
  %vm6718 = vcmask 917248
  %6719 = vst.msk [vmem:[#allocation7] sm:$0xff] %vm6718, %v6695
  %6720 = vst.msk [vmem:[#allocation7 + $0x10] sm:$0xff] %vm6718, %v6697
  %6721 = vst.msk [vmem:[#allocation7 + $0x20] sm:$0xff] %vm6718, %v6699
  %6722 = vst.msk [vmem:[#allocation7 + $0x30] sm:$0xff] %vm6718, %v6701
  %6723 = vst.msk [vmem:[#allocation7 + $0x40] sm:$0xff] %vm6718, %v6703
  %6724 = vst.msk [vmem:[#allocation7 + $0x50] sm:$0xff] %vm6718, %v6705
  %6725 = vst.msk [vmem:[#allocation7 + $0x60] sm:$0xff] %vm6718, %v6707
  %6726 = vst.msk [vmem:[#allocation7 + $0x70] sm:$0xff] %vm6718, %v6709
  %v6727 = vld [vmem:[%s6661 + $0x1] sm:$0xff]
  %v6728 = vld [vmem:[%s6661 + $0x11] sm:$0xff]
  %v6729 = vld [vmem:[%s6661 + $0x21] sm:$0xff]
  %v6730 = vld [vmem:[%s6661 + $0x31] sm:$0xff]
  %v6731 = vld [vmem:[%s6661 + $0x41] sm:$0xff]
  %v6732 = vld [vmem:[%s6661 + $0x51] sm:$0xff]
  %v6733 = vld [vmem:[%s6661 + $0x61] sm:$0xff]
  %v6734 = vld [vmem:[%s6661 + $0x71] sm:$0xff]
  %v6735 = vld [vmem:[%s6661 + $0xa1] sm:$0xff]
  %v6736 = vld [vmem:[%s6661 + $0xb1] sm:$0xff]
  %v6737 = vld [vmem:[%s6661 + $0xc1] sm:$0xff]
  %v6738 = vld [vmem:[%s6661 + $0xd1] sm:$0xff]
  %v6739 = vld [vmem:[%s6661 + $0xe1] sm:$0xff]
  %v6740 = vld [vmem:[%s6661 + $0xf1] sm:$0xff]
  %v6741 = vld [vmem:[%s6661 + $0x101] sm:$0xff]
  %v6742 = vld [vmem:[%s6661 + $0x111] sm:$0xff]
  %v6743 = vpack.c.bf16 %v6728, %v6727
  %v6744 = vpack.c.bf16 %v6730, %v6729
  %v6745 = vpack.c.bf16 %v6732, %v6731
  %v6746 = vpack.c.bf16 %v6734, %v6733
  %v6747 = vpack.c.bf16 %v6736, %v6735
  %v6748 = vpack.c.bf16 %v6738, %v6737
  %v6749 = vpack.c.bf16 %v6740, %v6739
  %v6750 = vpack.c.bf16 %v6742, %v6741
  %6759 = vrot.lane.b32.xlu0 %v6743, 112
  %v6760 = vpop.permute.xlu0 %6759
  %6761 = vrot.lane.b32.xlu0 %v6744, 112
  %v6762 = vpop.permute.xlu0 %6761
  %6763 = vrot.lane.b32.xlu0 %v6745, 112
  %v6764 = vpop.permute.xlu0 %6763
  %6765 = vrot.lane.b32.xlu0 %v6746, 112
  %v6766 = vpop.permute.xlu0 %6765
  %6767 = vrot.lane.b32.xlu0 %v6747, 112
  %v6768 = vpop.permute.xlu0 %6767
  %6769 = vrot.lane.b32.xlu0 %v6748, 112
  %v6770 = vpop.permute.xlu0 %6769
  %6771 = vrot.lane.b32.xlu0 %v6749, 112
  %v6772 = vpop.permute.xlu0 %6771
  %6773 = vrot.lane.b32.xlu0 %v6750, 112
  %v6774 = vpop.permute.xlu0 %6773
  %vm6783 = vcmask 1048448
  %6784 = vst.msk [vmem:[#allocation7] sm:$0xff] %vm6783, %v6760
  %6785 = vst.msk [vmem:[#allocation7 + $0x10] sm:$0xff] %vm6783, %v6762
  %6786 = vst.msk [vmem:[#allocation7 + $0x20] sm:$0xff] %vm6783, %v6764
  %6787 = vst.msk [vmem:[#allocation7 + $0x30] sm:$0xff] %vm6783, %v6766
  %6788 = vst.msk [vmem:[#allocation7 + $0x40] sm:$0xff] %vm6783, %v6768
  %6789 = vst.msk [vmem:[#allocation7 + $0x50] sm:$0xff] %vm6783, %v6770
  %6790 = vst.msk [vmem:[#allocation7 + $0x60] sm:$0xff] %vm6783, %v6772
  %6791 = vst.msk [vmem:[#allocation7 + $0x70] sm:$0xff] %vm6783, %v6774
  %v6792 = vld [vmem:[%s6661 + $0x2] sm:$0xff]
  %v6793 = vld [vmem:[%s6661 + $0x12] sm:$0xff]
  %v6794 = vld [vmem:[%s6661 + $0x22] sm:$0xff]
  %v6795 = vld [vmem:[%s6661 + $0x32] sm:$0xff]
  %v6796 = vld [vmem:[%s6661 + $0x42] sm:$0xff]
  %v6797 = vld [vmem:[%s6661 + $0x52] sm:$0xff]
  %v6798 = vld [vmem:[%s6661 + $0x62] sm:$0xff]
  %v6799 = vld [vmem:[%s6661 + $0x72] sm:$0xff]
  %v6800 = vld [vmem:[%s6661 + $0xa2] sm:$0xff]
  %v6801 = vld [vmem:[%s6661 + $0xb2] sm:$0xff]
  %v6802 = vld [vmem:[%s6661 + $0xc2] sm:$0xff]
  %v6803 = vld [vmem:[%s6661 + $0xd2] sm:$0xff]
  %v6804 = vld [vmem:[%s6661 + $0xe2] sm:$0xff]
  %v6805 = vld [vmem:[%s6661 + $0xf2] sm:$0xff]
  %v6806 = vld [vmem:[%s6661 + $0x102] sm:$0xff]
  %v6807 = vld [vmem:[%s6661 + $0x112] sm:$0xff]
  %v6808 = vpack.c.bf16 %v6793, %v6792
  %v6809 = vpack.c.bf16 %v6795, %v6794
  %v6810 = vpack.c.bf16 %v6797, %v6796
  %v6811 = vpack.c.bf16 %v6799, %v6798
  %v6812 = vpack.c.bf16 %v6801, %v6800
  %v6813 = vpack.c.bf16 %v6803, %v6802
  %v6814 = vpack.c.bf16 %v6805, %v6804
  %v6815 = vpack.c.bf16 %v6807, %v6806
  %6816 = vst.msk [vmem:[#allocation7 + $0x8] sm:$0xff] %vm6124, %v6808
  %6817 = vst.msk [vmem:[#allocation7 + $0x18] sm:$0xff] %vm6124, %v6809
  %6818 = vst.msk [vmem:[#allocation7 + $0x28] sm:$0xff] %vm6124, %v6810
  %6819 = vst.msk [vmem:[#allocation7 + $0x38] sm:$0xff] %vm6124, %v6811
  %6820 = vst.msk [vmem:[#allocation7 + $0x48] sm:$0xff] %vm6124, %v6812
  %6821 = vst.msk [vmem:[#allocation7 + $0x58] sm:$0xff] %vm6124, %v6813
  %6822 = vst.msk [vmem:[#allocation7 + $0x68] sm:$0xff] %vm6124, %v6814
  %6823 = vst.msk [vmem:[#allocation7 + $0x78] sm:$0xff] %vm6124, %v6815
  %v6824 = vld [vmem:[#allocation7] sm:$0xff]
  %v6825 = vld [vmem:[#allocation7 + $0x8] sm:$0xff]
  %v6826 = vld [vmem:[#allocation7 + $0x10] sm:$0xff]
  %v6827 = vld [vmem:[#allocation7 + $0x18] sm:$0xff]
  %v6828 = vld [vmem:[#allocation7 + $0x20] sm:$0xff]
  %v6829 = vld [vmem:[#allocation7 + $0x28] sm:$0xff]
  %v6830 = vld [vmem:[#allocation7 + $0x30] sm:$0xff]
  %v6831 = vld [vmem:[#allocation7 + $0x38] sm:$0xff]
  %v6832 = vld [vmem:[#allocation7 + $0x40] sm:$0xff]
  %v6833 = vld [vmem:[#allocation7 + $0x48] sm:$0xff]
  %v6834 = vld [vmem:[#allocation7 + $0x50] sm:$0xff]
  %v6835 = vld [vmem:[#allocation7 + $0x58] sm:$0xff]
  %v6836 = vld [vmem:[#allocation7 + $0x60] sm:$0xff]
  %v6837 = vld [vmem:[#allocation7 + $0x68] sm:$0xff]
  %v6838 = vld [vmem:[#allocation7 + $0x70] sm:$0xff]
  %v6839 = vld [vmem:[#allocation7 + $0x78] sm:$0xff]
  %v6840 = vld [vmem:[%s5] sm:$0xf]
  %v6841 = vld [vmem:[%s5 + $0x4] sm:$0xf]
  %v6842 = vld [vmem:[%s5 + $0x8] sm:$0xf]
  %v6843 = vld [vmem:[%s5 + $0xc] sm:$0xf]
  %v6844 = vld [vmem:[%s5 + $0x10] sm:$0xf]
  %v6845 = vld [vmem:[%s5 + $0x14] sm:$0xf]
  %v6846 = vld [vmem:[%s5 + $0x18] sm:$0xf]
  %v6847 = vld [vmem:[%s5 + $0x1c] sm:$0xf]
  %v6848 = vld [vmem:[%s5 + $0x20] sm:$0xf]
  %v6849 = vld [vmem:[%s5 + $0x24] sm:$0xf]
  %v6850 = vld [vmem:[%s5 + $0x28] sm:$0xf]
  %v6851 = vld [vmem:[%s5 + $0x2c] sm:$0xf]
  %v6852 = vld [vmem:[%s5 + $0x30] sm:$0xf]
  %v6853 = vld [vmem:[%s5 + $0x34] sm:$0xf]
  %v6854 = vld [vmem:[%s5 + $0x38] sm:$0xf]
  %v6855 = vld [vmem:[%s5 + $0x3c] sm:$0xf]
  %v6856 = vld [vmem:[%s5 + $0x40] sm:$0xf]
  %v6857 = vld [vmem:[%s5 + $0x44] sm:$0xf]
  %v6858 = vld [vmem:[%s6] sm:$0x1]
  %v6860 = vlaneseq
  %v6861 = vshrl.u32 %v6860, 7
  %v6862 = vsub.s32 0, %v6861
  %v6863 = vrot.slane %v6858, %v6862
  %v6883 = vunpack.c.l.b16 %v6840
  %v6884 = vunpack.c.l.b16 %v6841
  %v6885 = vunpack.c.l.b16 %v6842
  %v6886 = vunpack.c.l.b16 %v6843
  %v6887 = vunpack.c.l.b16 %v6844
  %v6888 = vunpack.c.l.b16 %v6845
  %v6889 = vunpack.c.l.b16 %v6846
  %v6890 = vunpack.c.l.b16 %v6847
  %v6891 = vunpack.c.l.b16 %v6848
  %v6892 = vunpack.c.l.b16 %v6849
  %v6893 = vunpack.c.l.b16 %v6850
  %v6894 = vunpack.c.l.b16 %v6851
  %v6895 = vunpack.c.l.b16 %v6852
  %v6896 = vunpack.c.l.b16 %v6853
  %v6897 = vunpack.c.l.b16 %v6854
  %v6898 = vunpack.c.l.b16 %v6855
  %v6899 = vunpack.c.l.b16 %v6856
  %v6900 = vunpack.c.l.b16 %v6857
  %v6901 = vpack.c.b16 %v6884, %v6883
  %v6902 = vpack.c.b16 %v6886, %v6885
  %v6903 = vpack.c.b16 %v6888, %v6887
  %v6904 = vpack.c.b16 %v6890, %v6889
  %v6905 = vpack.c.b16 %v6892, %v6891
  %v6906 = vpack.c.b16 %v6894, %v6893
  %v6907 = vpack.c.b16 %v6896, %v6895
  %v6908 = vpack.c.b16 %v6898, %v6897
  %v6909 = vpack.c.b16 %v6900, %v6899
  %v6920 = vsel %vm6124, %v6825, 0
  %v6923 = vsel %vm6124, %v6827, 0
  %v6926 = vsel %vm6124, %v6829, 0
  %v6929 = vsel %vm6124, %v6831, 0
  %v6932 = vsel %vm6124, %v6833, 0
  %v6935 = vsel %vm6124, %v6835, 0
  %v6938 = vsel %vm6124, %v6837, 0
  %v6941 = vsel %vm6124, %v6839, 0
  %6943 = vmatprep.subr.bf16.mxu0 0
  %6944 = vmatpush1.bf16.msra.mxu0 %v6901
  %6945 = vmatprep.subr.bf16.mxu0 0
  %6946 = vmatpush1.bf16.msra.mxu0 %v6902
  %6947 = vmatprep.subr.bf16.mxu0 0
  %6948 = vmatpush1.bf16.msra.mxu0 %v6903
  %6949 = vmatprep.subr.bf16.mxu0 0
  %6950 = vmatpush1.bf16.msra.mxu0 %v6904
  %6951 = vmatprep.subr.bf16.mxu0 0
  %6952 = vmatpush1.bf16.msra.mxu0 %v6905
  %6953 = vmatprep.subr.bf16.mxu0 0
  %6954 = vmatpush1.bf16.msra.mxu0 %v6906
  %6955 = vmatprep.subr.bf16.mxu0 0
  %6956 = vmatpush1.bf16.msra.mxu0 %v6907
  %6957 = vmatprep.subr.bf16.mxu0 0
  %6958 = vmatpush1.bf16.msra.mxu0 %v6908
  %6959 = vmatprep.subr.bf16.mxu0 0
  %6960 = vmatpush1.bf16.msra.mxu0 %v6909
  %6961 = vmatprep.subr.bf16.mxu0 0
  %6962 = vmatpush1.bf16.msra.mxu0 0
  %6963 = vmatprep.subr.bf16.mxu0 0
  %6964 = vmatpush1.bf16.msra.mxu0 0
  %6965 = vmatprep.subr.bf16.mxu0 0
  %6966 = vmatpush1.bf16.msra.mxu0 0
  %6967 = vmatprep.subr.bf16.mxu0 0
  %6968 = vmatpush1.bf16.msra.mxu0 0
  %6969 = vmatprep.subr.bf16.mxu0 0
  %6970 = vmatpush1.bf16.msra.mxu0 0
  %6971 = vmatprep.subr.bf16.mxu0 0
  %6972 = vmatpush1.bf16.msra.mxu0 0
  %6973 = vmatprep.subr.bf16.mxu0 0
  %6974 = vmatpush1.bf16.msra.mxu0 0
  %6975 = vmatprep.mubr.bf16.mxu0 %v6920
  %6976 = vmatmul.mubr.bf16.gmra.mrb[0].mxu0 %v6824
  %v6977 = vpop.f32.mrb[0].mxu0
  %v6978 = vadd.f32 %v6863, %v6977
  %v6979 = vpop.f32.mrb[0].mxu0
  %v6980 = vpop.f32.mrb[0].mxu0
  %v6981 = vadd.f32 %v6863, %v6980
  %v6982 = vpop.f32.mrb[0].mxu0
  %6983 = vmatprep.mubr.bf16.mxu0 %v6923
  %6984 = vmatmul.mubr.bf16.gmra.mrb[0].mxu0 %v6826
  %v6985 = vpop.f32.mrb[0].mxu0
  %v6986 = vadd.f32 %v6863, %v6985
  %v6987 = vpop.f32.mrb[0].mxu0
  %v6988 = vpop.f32.mrb[0].mxu0
  %v6989 = vadd.f32 %v6863, %v6988
  %v6990 = vpop.f32.mrb[0].mxu0
  %6991 = vmatprep.mubr.bf16.mxu0 %v6926
  %6992 = vmatmul.mubr.bf16.gmra.mrb[0].mxu0 %v6828
  %v6993 = vpop.f32.mrb[0].mxu0
  %v6994 = vadd.f32 %v6863, %v6993
  %v6995 = vpop.f32.mrb[0].mxu0
  %v6996 = vpop.f32.mrb[0].mxu0
  %v6997 = vadd.f32 %v6863, %v6996
  %v6998 = vpop.f32.mrb[0].mxu0
  %6999 = vmatprep.mubr.bf16.mxu0 %v6929
  %7000 = vmatmul.mubr.bf16.gmra.mrb[0].mxu0 %v6830
  %v7001 = vpop.f32.mrb[0].mxu0
  %v7002 = vadd.f32 %v6863, %v7001
  %v7003 = vpop.f32.mrb[0].mxu0
  %v7004 = vpop.f32.mrb[0].mxu0
  %v7005 = vadd.f32 %v6863, %v7004
  %v7006 = vpop.f32.mrb[0].mxu0
  %7007 = vmatprep.mubr.bf16.mxu0 %v6932
  %7008 = vmatmul.mubr.bf16.gmra.mrb[0].mxu0 %v6832
  %v7009 = vpop.f32.mrb[0].mxu0
  %v7010 = vadd.f32 %v6863, %v7009
  %v7011 = vpop.f32.mrb[0].mxu0
  %v7012 = vpop.f32.mrb[0].mxu0
  %v7013 = vadd.f32 %v6863, %v7012
  %v7014 = vpop.f32.mrb[0].mxu0
  %7015 = vmatprep.mubr.bf16.mxu0 %v6935
  %7016 = vmatmul.mubr.bf16.gmra.mrb[0].mxu0 %v6834
  %v7017 = vpop.f32.mrb[0].mxu0
  %v7018 = vadd.f32 %v6863, %v7017
  %v7019 = vpop.f32.mrb[0].mxu0
  %v7020 = vpop.f32.mrb[0].mxu0
  %v7021 = vadd.f32 %v6863, %v7020
  %v7022 = vpop.f32.mrb[0].mxu0
  %7023 = vmatprep.mubr.bf16.mxu0 %v6938
  %7024 = vmatmul.mubr.bf16.gmra.mrb[0].mxu0 %v6836
  %v7025 = vpop.f32.mrb[0].mxu0
  %v7026 = vadd.f32 %v6863, %v7025
  %v7027 = vpop.f32.mrb[0].mxu0
  %v7028 = vpop.f32.mrb[0].mxu0
  %v7029 = vadd.f32 %v6863, %v7028
  %v7030 = vpop.f32.mrb[0].mxu0
  %7031 = vmatprep.mubr.bf16.mxu0 %v6941
  %7032 = vmatmul.mubr.bf16.gmra.mrb[0].mxu0 %v6838
  %v7033 = vpop.f32.mrb[0].mxu0
  %v7034 = vadd.f32 %v6863, %v7033
  %v7035 = vpop.f32.mrb[0].mxu0
  %v7036 = vpop.f32.mrb[0].mxu0
  %v7037 = vadd.f32 %v6863, %v7036
  %v7038 = vpop.f32.mrb[0].mxu0
  %7039 = vdwg.mxu0
  %v7040 = vmax.f32 %v6978, 0.0
  %v7041 = vmax.f32 %v6981, 0.0
  %v7042 = vmax.f32 %v6986, 0.0
  %v7043 = vmax.f32 %v6989, 0.0
  %v7044 = vmax.f32 %v6994, 0.0
  %v7045 = vmax.f32 %v6997, 0.0
  %v7046 = vmax.f32 %v7002, 0.0
  %v7047 = vmax.f32 %v7005, 0.0
  %v7048 = vmax.f32 %v7010, 0.0
  %v7049 = vmax.f32 %v7013, 0.0
  %v7050 = vmax.f32 %v7018, 0.0
  %v7051 = vmax.f32 %v7021, 0.0
  %v7052 = vmax.f32 %v7026, 0.0
  %v7053 = vmax.f32 %v7029, 0.0
  %v7054 = vmax.f32 %v7034, 0.0
  %v7055 = vmax.f32 %v7037, 0.0
  %v7056 = vmax.f32 %v7040, %v7041
  %v7057 = vmax.f32 %v7042, %v7043
  %v7058 = vmax.f32 %v7044, %v7045
  %v7059 = vmax.f32 %v7046, %v7047
  %v7060 = vmax.f32 %v7048, %v7049
  %v7061 = vmax.f32 %v7050, %v7051
  %v7062 = vmax.f32 %v7052, %v7053
  %v7063 = vmax.f32 %v7054, %v7055
  %vm7064 = vcmask 261120
  %7065 = vst.msk [vmem:[#allocation8] sm:$0xff] %vm7064, %v7056
  %7066 = vst.msk [vmem:[#allocation8 + $0x8] sm:$0xff] %vm7064, %v7057
  %7067 = vst.msk [vmem:[#allocation8 + $0x10] sm:$0xff] %vm7064, %v7058
  %7068 = vst.msk [vmem:[#allocation8 + $0x18] sm:$0xff] %vm7064, %v7059
  %7069 = vst.msk [vmem:[#allocation8 + $0x20] sm:$0xff] %vm7064, %v7060
  %7070 = vst.msk [vmem:[#allocation8 + $0x28] sm:$0xff] %vm7064, %v7061
  %7071 = vst.msk [vmem:[#allocation8 + $0x30] sm:$0xff] %vm7064, %v7062
  %7072 = vst.msk [vmem:[#allocation8 + $0x38] sm:$0xff] %vm7064, %v7063
  %v7073 = vld [vmem:[#allocation8] sm:$0x1]
  %v7074 = vld [vmem:[#allocation8 + $0x20] sm:$0x1]
  %v7075 = vld [vmem:[#allocation8 + $0x1] sm:$0x1]
  %v7076 = vld [vmem:[#allocation8 + $0x21] sm:$0x1]
  %v7077 = vmax.f32 %v7073, %v7075
  %v7078 = vmax.f32 %v7074, %v7076
  %v7082 = vunpack.c.l.s4 1983009808
  %v7083 = vunpack.c.0.s8 %v7082
  %v7084 = vlaneseq
  %v7085 = vshrl.u32 %v7084, 7
  %v7086 = vsub.s32 %v7083, %v7085
  %v7087 = vrot.slane %v7077, %v7086
  %v7089 = vunpack.c.l.s4 1983009808
  %v7090 = vunpack.c.0.s8 %v7089
  %v7091 = vlaneseq
  %v7092 = vshrl.u32 %v7091, 7
  %v7093 = vsub.s32 %v7090, %v7092
  %v7094 = vrot.slane %v7078, %v7093
  %vm7095 = vcmask 1044484
  %v7096 = vsel %vm7095, %v7087, %v7087
  %vm7097 = vcmask 1046534
  %v7098 = vsel %vm7097, %v7087, %v7096
  %v7099 = vrot.slane %v7094, 7
  %vm7100 = vcmask 1041409
  %v7101 = vsel %vm7100, %v7099, %v7098
  %vm7102 = vcmask 1043459
  %v7103 = vsel %vm7102, %v7099, %v7101
  %vm7104 = vcmask 1045509
  %v7105 = vsel %vm7104, %v7099, %v7103
  %vm7106 = vcmask 1047559
  %v7107 = vsel %vm7106, %v7099, %v7105
  %vm7109 = vcmask 254976
  %7110 = vst.msk [vmem:[%s7] sm:$0x3] %vm7109, %v7107
  %v7111 = vld [vmem:[#allocation8 + $0x2] sm:$0x1]
  %v7112 = vld [vmem:[#allocation8 + $0x22] sm:$0x1]
  %v7113 = vld [vmem:[#allocation8 + $0x3] sm:$0x1]
  %v7114 = vld [vmem:[#allocation8 + $0x23] sm:$0x1]
  %v7115 = vmax.f32 %v7111, %v7113
  %v7116 = vmax.f32 %v7112, %v7114
  %v7120 = vunpack.c.l.s4 1983009808
  %v7121 = vunpack.c.0.s8 %v7120
  %v7122 = vlaneseq
  %v7123 = vshrl.u32 %v7122, 7
  %v7124 = vsub.s32 %v7121, %v7123
  %v7125 = vrot.slane %v7115, %v7124
  %v7127 = vunpack.c.l.s4 1983009808
  %v7128 = vunpack.c.0.s8 %v7127
  %v7129 = vlaneseq
  %v7130 = vshrl.u32 %v7129, 7
  %v7131 = vsub.s32 %v7128, %v7130
  %v7132 = vrot.slane %v7116, %v7131
  %v7133 = vsel %vm7095, %v7125, %v7125
  %v7134 = vsel %vm7097, %v7125, %v7133
  %v7135 = vrot.slane %v7132, 7
  %v7136 = vsel %vm7100, %v7135, %v7134
  %v7137 = vsel %vm7102, %v7135, %v7136
  %v7138 = vsel %vm7104, %v7135, %v7137
  %v7139 = vsel %vm7106, %v7135, %v7138
  %7140 = vrot.lane.b32.xlu0 %v7139, 32
  %v7141 = vpop.permute.xlu0 %7140
  %vm7143 = vcmask 517376
  %7144 = vst.msk [vmem:[%s7] sm:$0x3] %vm7143, %v7141
  %v7145 = vld [vmem:[#allocation8 + $0x4] sm:$0x1]
  %v7146 = vld [vmem:[#allocation8 + $0x24] sm:$0x1]
  %v7147 = vld [vmem:[#allocation8 + $0x5] sm:$0x1]
  %v7148 = vld [vmem:[#allocation8 + $0x25] sm:$0x1]
  %v7149 = vmax.f32 %v7145, %v7147
  %v7150 = vmax.f32 %v7146, %v7148
  %v7154 = vunpack.c.l.s4 1983009808
  %v7155 = vunpack.c.0.s8 %v7154
  %v7156 = vlaneseq
  %v7157 = vshrl.u32 %v7156, 7
  %v7158 = vsub.s32 %v7155, %v7157
  %v7159 = vrot.slane %v7149, %v7158
  %v7161 = vunpack.c.l.s4 1983009808
  %v7162 = vunpack.c.0.s8 %v7161
  %v7163 = vlaneseq
  %v7164 = vshrl.u32 %v7163, 7
  %v7165 = vsub.s32 %v7162, %v7164
  %v7166 = vrot.slane %v7150, %v7165
  %v7167 = vsel %vm7095, %v7159, %v7159
  %v7168 = vsel %vm7097, %v7159, %v7167
  %v7169 = vrot.slane %v7166, 7
  %v7170 = vsel %vm7100, %v7169, %v7168
  %v7171 = vsel %vm7102, %v7169, %v7170
  %v7172 = vsel %vm7104, %v7169, %v7171
  %v7173 = vsel %vm7106, %v7169, %v7172
  %7174 = vrot.lane.b32.xlu0 %v7173, 64
  %v7175 = vpop.permute.xlu0 %7174
  %vm7177 = vcmask 779776
  %7178 = vst.msk [vmem:[%s7] sm:$0x3] %vm7177, %v7175
  %v7179 = vld [vmem:[#allocation8 + $0x6] sm:$0x1]
  %v7180 = vld [vmem:[#allocation8 + $0x26] sm:$0x1]
  %v7181 = vld [vmem:[#allocation8 + $0x7] sm:$0x1]
  %v7182 = vld [vmem:[#allocation8 + $0x27] sm:$0x1]
  %v7183 = vmax.f32 %v7179, %v7181
  %v7184 = vmax.f32 %v7180, %v7182
  %v7188 = vunpack.c.l.s4 1983009808
  %v7189 = vunpack.c.0.s8 %v7188
  %v7190 = vlaneseq
  %v7191 = vshrl.u32 %v7190, 7
  %v7192 = vsub.s32 %v7189, %v7191
  %v7193 = vrot.slane %v7183, %v7192
  %v7195 = vunpack.c.l.s4 1983009808
  %v7196 = vunpack.c.0.s8 %v7195
  %v7197 = vlaneseq
  %v7198 = vshrl.u32 %v7197, 7
  %v7199 = vsub.s32 %v7196, %v7198
  %v7200 = vrot.slane %v7184, %v7199
  %v7201 = vsel %vm7095, %v7193, %v7193
  %v7202 = vsel %vm7097, %v7193, %v7201
  %v7203 = vrot.slane %v7200, 7
  %v7204 = vsel %vm7100, %v7203, %v7202
  %v7205 = vsel %vm7102, %v7203, %v7204
  %v7206 = vsel %vm7104, %v7203, %v7205
  %v7207 = vsel %vm7106, %v7203, %v7206
  %7208 = vrot.lane.b32.xlu0 %v7207, 96
  %v7209 = vpop.permute.xlu0 %7208
  %vm7211 = vcmask 1042176
  %7212 = vst.msk [vmem:[%s7] sm:$0x3] %vm7211, %v7209
  %s7213 = scalar_lea.vmem [#allocation8], 8
  %v7214 = vld [vmem:[%s7213] sm:$0x1]
  %v7215 = vld [vmem:[%s7213 + $0x20] sm:$0x1]
  %v7216 = vld [vmem:[%s7213 + $0x1] sm:$0x1]
  %v7217 = vld [vmem:[%s7213 + $0x21] sm:$0x1]
  %v7218 = vmax.f32 %v7214, %v7216
  %v7219 = vmax.f32 %v7215, %v7217
  %v7223 = vunpack.c.l.s4 1983009808
  %v7224 = vunpack.c.0.s8 %v7223
  %v7225 = vlaneseq
  %v7226 = vshrl.u32 %v7225, 7
  %v7227 = vsub.s32 %v7224, %v7226
  %v7228 = vrot.slane %v7218, %v7227
  %v7230 = vunpack.c.l.s4 1983009808
  %v7231 = vunpack.c.0.s8 %v7230
  %v7232 = vlaneseq
  %v7233 = vshrl.u32 %v7232, 7
  %v7234 = vsub.s32 %v7231, %v7233
  %v7235 = vrot.slane %v7219, %v7234
  %v7236 = vsel %vm7095, %v7228, %v7228
  %v7237 = vsel %vm7097, %v7228, %v7236
  %v7238 = vrot.slane %v7235, 7
  %v7239 = vsel %vm7100, %v7238, %v7237
  %v7240 = vsel %vm7102, %v7238, %v7239
  %v7241 = vsel %vm7104, %v7238, %v7240
  %v7242 = vsel %vm7106, %v7238, %v7241
  %7244 = vst.msk [vmem:[%s7 + $0x2] sm:$0x3] %vm7109, %v7242
  %v7245 = vld [vmem:[%s7213 + $0x2] sm:$0x1]
  %v7246 = vld [vmem:[%s7213 + $0x22] sm:$0x1]
  %v7247 = vld [vmem:[%s7213 + $0x3] sm:$0x1]
  %v7248 = vld [vmem:[%s7213 + $0x23] sm:$0x1]
  %v7249 = vmax.f32 %v7245, %v7247
  %v7250 = vmax.f32 %v7246, %v7248
  %v7254 = vunpack.c.l.s4 1983009808
  %v7255 = vunpack.c.0.s8 %v7254
  %v7256 = vlaneseq
  %v7257 = vshrl.u32 %v7256, 7
  %v7258 = vsub.s32 %v7255, %v7257
  %v7259 = vrot.slane %v7249, %v7258
  %v7261 = vunpack.c.l.s4 1983009808
  %v7262 = vunpack.c.0.s8 %v7261
  %v7263 = vlaneseq
  %v7264 = vshrl.u32 %v7263, 7
  %v7265 = vsub.s32 %v7262, %v7264
  %v7266 = vrot.slane %v7250, %v7265
  %v7267 = vsel %vm7095, %v7259, %v7259
  %v7268 = vsel %vm7097, %v7259, %v7267
  %v7269 = vrot.slane %v7266, 7
  %v7270 = vsel %vm7100, %v7269, %v7268
  %v7271 = vsel %vm7102, %v7269, %v7270
  %v7272 = vsel %vm7104, %v7269, %v7271
  %v7273 = vsel %vm7106, %v7269, %v7272
  %7274 = vrot.lane.b32.xlu0 %v7273, 32
  %v7275 = vpop.permute.xlu0 %7274
  %7277 = vst.msk [vmem:[%s7 + $0x2] sm:$0x3] %vm7143, %v7275
  %v7278 = vld [vmem:[%s7213 + $0x4] sm:$0x1]
  %v7279 = vld [vmem:[%s7213 + $0x24] sm:$0x1]
  %v7280 = vld [vmem:[%s7213 + $0x5] sm:$0x1]
  %v7281 = vld [vmem:[%s7213 + $0x25] sm:$0x1]
  %v7282 = vmax.f32 %v7278, %v7280
  %v7283 = vmax.f32 %v7279, %v7281
  %v7287 = vunpack.c.l.s4 1983009808
  %v7288 = vunpack.c.0.s8 %v7287
  %v7289 = vlaneseq
  %v7290 = vshrl.u32 %v7289, 7
  %v7291 = vsub.s32 %v7288, %v7290
  %v7292 = vrot.slane %v7282, %v7291
  %v7294 = vunpack.c.l.s4 1983009808
  %v7295 = vunpack.c.0.s8 %v7294
  %v7296 = vlaneseq
  %v7297 = vshrl.u32 %v7296, 7
  %v7298 = vsub.s32 %v7295, %v7297
  %v7299 = vrot.slane %v7283, %v7298
  %v7300 = vsel %vm7095, %v7292, %v7292
  %v7301 = vsel %vm7097, %v7292, %v7300
  %v7302 = vrot.slane %v7299, 7
  %v7303 = vsel %vm7100, %v7302, %v7301
  %v7304 = vsel %vm7102, %v7302, %v7303
  %v7305 = vsel %vm7104, %v7302, %v7304
  %v7306 = vsel %vm7106, %v7302, %v7305
  %7307 = vrot.lane.b32.xlu0 %v7306, 64
  %v7308 = vpop.permute.xlu0 %7307
  %7310 = vst.msk [vmem:[%s7 + $0x2] sm:$0x3] %vm7177, %v7308
  %v7311 = vld [vmem:[%s7213 + $0x6] sm:$0x1]
  %v7312 = vld [vmem:[%s7213 + $0x26] sm:$0x1]
  %v7313 = vld [vmem:[%s7213 + $0x7] sm:$0x1]
  %v7314 = vld [vmem:[%s7213 + $0x27] sm:$0x1]
  %v7315 = vmax.f32 %v7311, %v7313
  %v7316 = vmax.f32 %v7312, %v7314
  %v7320 = vunpack.c.l.s4 1983009808
  %v7321 = vunpack.c.0.s8 %v7320
  %v7322 = vlaneseq
  %v7323 = vshrl.u32 %v7322, 7
  %v7324 = vsub.s32 %v7321, %v7323
  %v7325 = vrot.slane %v7315, %v7324
  %v7327 = vunpack.c.l.s4 1983009808
  %v7328 = vunpack.c.0.s8 %v7327
  %v7329 = vlaneseq
  %v7330 = vshrl.u32 %v7329, 7
  %v7331 = vsub.s32 %v7328, %v7330
  %v7332 = vrot.slane %v7316, %v7331
  %v7333 = vsel %vm7095, %v7325, %v7325
  %v7334 = vsel %vm7097, %v7325, %v7333
  %v7335 = vrot.slane %v7332, 7
  %v7336 = vsel %vm7100, %v7335, %v7334
  %v7337 = vsel %vm7102, %v7335, %v7336
  %v7338 = vsel %vm7104, %v7335, %v7337
  %v7339 = vsel %vm7106, %v7335, %v7338
  %7340 = vrot.lane.b32.xlu0 %v7339, 96
  %v7341 = vpop.permute.xlu0 %7340
  %7343 = vst.msk [vmem:[%s7 + $0x2] sm:$0x3] %vm7211, %v7341
  %s7344 = scalar_lea.vmem [#allocation8], 16
  %v7345 = vld [vmem:[%s7344] sm:$0x1]
  %v7346 = vld [vmem:[%s7344 + $0x20] sm:$0x1]
  %v7347 = vld [vmem:[%s7344 + $0x1] sm:$0x1]
  %v7348 = vld [vmem:[%s7344 + $0x21] sm:$0x1]
  %v7349 = vmax.f32 %v7345, %v7347
  %v7350 = vmax.f32 %v7346, %v7348
  %v7354 = vunpack.c.l.s4 1983009808
  %v7355 = vunpack.c.0.s8 %v7354
  %v7356 = vlaneseq
  %v7357 = vshrl.u32 %v7356, 7
  %v7358 = vsub.s32 %v7355, %v7357
  %v7359 = vrot.slane %v7349, %v7358
  %v7361 = vunpack.c.l.s4 1983009808
  %v7362 = vunpack.c.0.s8 %v7361
  %v7363 = vlaneseq
  %v7364 = vshrl.u32 %v7363, 7
  %v7365 = vsub.s32 %v7362, %v7364
  %v7366 = vrot.slane %v7350, %v7365
  %v7367 = vsel %vm7095, %v7359, %v7359
  %v7368 = vsel %vm7097, %v7359, %v7367
  %v7369 = vrot.slane %v7366, 7
  %v7370 = vsel %vm7100, %v7369, %v7368
  %v7371 = vsel %vm7102, %v7369, %v7370
  %v7372 = vsel %vm7104, %v7369, %v7371
  %v7373 = vsel %vm7106, %v7369, %v7372
  %7375 = vst.msk [vmem:[%s7 + $0x4] sm:$0x3] %vm7109, %v7373
  %v7376 = vld [vmem:[%s7344 + $0x2] sm:$0x1]
  %v7377 = vld [vmem:[%s7344 + $0x22] sm:$0x1]
  %v7378 = vld [vmem:[%s7344 + $0x3] sm:$0x1]
  %v7379 = vld [vmem:[%s7344 + $0x23] sm:$0x1]
  %v7380 = vmax.f32 %v7376, %v7378
  %v7381 = vmax.f32 %v7377, %v7379
  %v7385 = vunpack.c.l.s4 1983009808
  %v7386 = vunpack.c.0.s8 %v7385
  %v7387 = vlaneseq
  %v7388 = vshrl.u32 %v7387, 7
  %v7389 = vsub.s32 %v7386, %v7388
  %v7390 = vrot.slane %v7380, %v7389
  %v7392 = vunpack.c.l.s4 1983009808
  %v7393 = vunpack.c.0.s8 %v7392
  %v7394 = vlaneseq
  %v7395 = vshrl.u32 %v7394, 7
  %v7396 = vsub.s32 %v7393, %v7395
  %v7397 = vrot.slane %v7381, %v7396
  %v7398 = vsel %vm7095, %v7390, %v7390
  %v7399 = vsel %vm7097, %v7390, %v7398
  %v7400 = vrot.slane %v7397, 7
  %v7401 = vsel %vm7100, %v7400, %v7399
  %v7402 = vsel %vm7102, %v7400, %v7401
  %v7403 = vsel %vm7104, %v7400, %v7402
  %v7404 = vsel %vm7106, %v7400, %v7403
  %7405 = vrot.lane.b32.xlu0 %v7404, 32
  %v7406 = vpop.permute.xlu0 %7405
  %7408 = vst.msk [vmem:[%s7 + $0x4] sm:$0x3] %vm7143, %v7406
  %v7409 = vld [vmem:[%s7344 + $0x4] sm:$0x1]
  %v7410 = vld [vmem:[%s7344 + $0x24] sm:$0x1]
  %v7411 = vld [vmem:[%s7344 + $0x5] sm:$0x1]
  %v7412 = vld [vmem:[%s7344 + $0x25] sm:$0x1]
  %v7413 = vmax.f32 %v7409, %v7411
  %v7414 = vmax.f32 %v7410, %v7412
  %v7418 = vunpack.c.l.s4 1983009808
  %v7419 = vunpack.c.0.s8 %v7418
  %v7420 = vlaneseq
  %v7421 = vshrl.u32 %v7420, 7
  %v7422 = vsub.s32 %v7419, %v7421
  %v7423 = vrot.slane %v7413, %v7422
  %v7425 = vunpack.c.l.s4 1983009808
  %v7426 = vunpack.c.0.s8 %v7425
  %v7427 = vlaneseq
  %v7428 = vshrl.u32 %v7427, 7
  %v7429 = vsub.s32 %v7426, %v7428
  %v7430 = vrot.slane %v7414, %v7429
  %v7431 = vsel %vm7095, %v7423, %v7423
  %v7432 = vsel %vm7097, %v7423, %v7431
  %v7433 = vrot.slane %v7430, 7
  %v7434 = vsel %vm7100, %v7433, %v7432
  %v7435 = vsel %vm7102, %v7433, %v7434
  %v7436 = vsel %vm7104, %v7433, %v7435
  %v7437 = vsel %vm7106, %v7433, %v7436
  %7438 = vrot.lane.b32.xlu0 %v7437, 64
  %v7439 = vpop.permute.xlu0 %7438
  %7441 = vst.msk [vmem:[%s7 + $0x4] sm:$0x3] %vm7177, %v7439
  %v7442 = vld [vmem:[%s7344 + $0x6] sm:$0x1]
  %v7443 = vld [vmem:[%s7344 + $0x26] sm:$0x1]
  %v7444 = vld [vmem:[%s7344 + $0x7] sm:$0x1]
  %v7445 = vld [vmem:[%s7344 + $0x27] sm:$0x1]
  %v7446 = vmax.f32 %v7442, %v7444
  %v7447 = vmax.f32 %v7443, %v7445
  %v7451 = vunpack.c.l.s4 1983009808
  %v7452 = vunpack.c.0.s8 %v7451
  %v7453 = vlaneseq
  %v7454 = vshrl.u32 %v7453, 7
  %v7455 = vsub.s32 %v7452, %v7454
  %v7456 = vrot.slane %v7446, %v7455
  %v7458 = vunpack.c.l.s4 1983009808
  %v7459 = vunpack.c.0.s8 %v7458
  %v7460 = vlaneseq
  %v7461 = vshrl.u32 %v7460, 7
  %v7462 = vsub.s32 %v7459, %v7461
  %v7463 = vrot.slane %v7447, %v7462
  %v7464 = vsel %vm7095, %v7456, %v7456
  %v7465 = vsel %vm7097, %v7456, %v7464
  %v7466 = vrot.slane %v7463, 7
  %v7467 = vsel %vm7100, %v7466, %v7465
  %v7468 = vsel %vm7102, %v7466, %v7467
  %v7469 = vsel %vm7104, %v7466, %v7468
  %v7470 = vsel %vm7106, %v7466, %v7469
  %7471 = vrot.lane.b32.xlu0 %v7470, 96
  %v7472 = vpop.permute.xlu0 %7471
  %7474 = vst.msk [vmem:[%s7 + $0x4] sm:$0x3] %vm7211, %v7472
  %s7475 = scalar_lea.vmem [#allocation8], 24
  %v7476 = vld [vmem:[%s7475] sm:$0x1]
  %v7477 = vld [vmem:[%s7475 + $0x20] sm:$0x1]
  %v7478 = vld [vmem:[%s7475 + $0x1] sm:$0x1]
  %v7479 = vld [vmem:[%s7475 + $0x21] sm:$0x1]
  %v7480 = vmax.f32 %v7476, %v7478
  %v7481 = vmax.f32 %v7477, %v7479
  %v7485 = vunpack.c.l.s4 1983009808
  %v7486 = vunpack.c.0.s8 %v7485
  %v7487 = vlaneseq
  %v7488 = vshrl.u32 %v7487, 7
  %v7489 = vsub.s32 %v7486, %v7488
  %v7490 = vrot.slane %v7480, %v7489
  %v7492 = vunpack.c.l.s4 1983009808
  %v7493 = vunpack.c.0.s8 %v7492
  %v7494 = vlaneseq
  %v7495 = vshrl.u32 %v7494, 7
  %v7496 = vsub.s32 %v7493, %v7495
  %v7497 = vrot.slane %v7481, %v7496
  %v7498 = vsel %vm7095, %v7490, %v7490
  %v7499 = vsel %vm7097, %v7490, %v7498
  %v7500 = vrot.slane %v7497, 7
  %v7501 = vsel %vm7100, %v7500, %v7499
  %v7502 = vsel %vm7102, %v7500, %v7501
  %v7503 = vsel %vm7104, %v7500, %v7502
  %v7504 = vsel %vm7106, %v7500, %v7503
  %7506 = vst.msk [vmem:[%s7 + $0x6] sm:$0x3] %vm7109, %v7504
  %v7507 = vld [vmem:[%s7475 + $0x2] sm:$0x1]
  %v7508 = vld [vmem:[%s7475 + $0x22] sm:$0x1]
  %v7509 = vld [vmem:[%s7475 + $0x3] sm:$0x1]
  %v7510 = vld [vmem:[%s7475 + $0x23] sm:$0x1]
  %v7511 = vmax.f32 %v7507, %v7509
  %v7512 = vmax.f32 %v7508, %v7510
  %v7516 = vunpack.c.l.s4 1983009808
  %v7517 = vunpack.c.0.s8 %v7516
  %v7518 = vlaneseq
  %v7519 = vshrl.u32 %v7518, 7
  %v7520 = vsub.s32 %v7517, %v7519
  %v7521 = vrot.slane %v7511, %v7520
  %v7523 = vunpack.c.l.s4 1983009808
  %v7524 = vunpack.c.0.s8 %v7523
  %v7525 = vlaneseq
  %v7526 = vshrl.u32 %v7525, 7
  %v7527 = vsub.s32 %v7524, %v7526
  %v7528 = vrot.slane %v7512, %v7527
  %v7529 = vsel %vm7095, %v7521, %v7521
  %v7530 = vsel %vm7097, %v7521, %v7529
  %v7531 = vrot.slane %v7528, 7
  %v7532 = vsel %vm7100, %v7531, %v7530
  %v7533 = vsel %vm7102, %v7531, %v7532
  %v7534 = vsel %vm7104, %v7531, %v7533
  %v7535 = vsel %vm7106, %v7531, %v7534
  %7536 = vrot.lane.b32.xlu0 %v7535, 32
  %v7537 = vpop.permute.xlu0 %7536
  %7539 = vst.msk [vmem:[%s7 + $0x6] sm:$0x3] %vm7143, %v7537
  %v7540 = vld [vmem:[%s7475 + $0x4] sm:$0x1]
  %v7541 = vld [vmem:[%s7475 + $0x24] sm:$0x1]
  %v7542 = vld [vmem:[%s7475 + $0x5] sm:$0x1]
  %v7543 = vld [vmem:[%s7475 + $0x25] sm:$0x1]
  %v7544 = vmax.f32 %v7540, %v7542
  %v7545 = vmax.f32 %v7541, %v7543
  %v7549 = vunpack.c.l.s4 1983009808
  %v7550 = vunpack.c.0.s8 %v7549
  %v7551 = vlaneseq
  %v7552 = vshrl.u32 %v7551, 7
  %v7553 = vsub.s32 %v7550, %v7552
  %v7554 = vrot.slane %v7544, %v7553
  %v7556 = vunpack.c.l.s4 1983009808
  %v7557 = vunpack.c.0.s8 %v7556
  %v7558 = vlaneseq
  %v7559 = vshrl.u32 %v7558, 7
  %v7560 = vsub.s32 %v7557, %v7559
  %v7561 = vrot.slane %v7545, %v7560
  %v7562 = vsel %vm7095, %v7554, %v7554
  %v7563 = vsel %vm7097, %v7554, %v7562
  %v7564 = vrot.slane %v7561, 7
  %v7565 = vsel %vm7100, %v7564, %v7563
  %v7566 = vsel %vm7102, %v7564, %v7565
  %v7567 = vsel %vm7104, %v7564, %v7566
  %v7568 = vsel %vm7106, %v7564, %v7567
  %7569 = vrot.lane.b32.xlu0 %v7568, 64
  %v7570 = vpop.permute.xlu0 %7569
  %7572 = vst.msk [vmem:[%s7 + $0x6] sm:$0x3] %vm7177, %v7570
  %v7573 = vld [vmem:[%s7475 + $0x6] sm:$0x1]
  %v7574 = vld [vmem:[%s7475 + $0x26] sm:$0x1]
  %v7575 = vld [vmem:[%s7475 + $0x7] sm:$0x1]
  %v7576 = vld [vmem:[%s7475 + $0x27] sm:$0x1]
  %v7577 = vmax.f32 %v7573, %v7575
  %v7578 = vmax.f32 %v7574, %v7576
  %v7582 = vunpack.c.l.s4 1983009808
  %v7583 = vunpack.c.0.s8 %v7582
  %v7584 = vlaneseq
  %v7585 = vshrl.u32 %v7584, 7
  %v7586 = vsub.s32 %v7583, %v7585
  %v7587 = vrot.slane %v7577, %v7586
  %v7589 = vunpack.c.l.s4 1983009808
  %v7590 = vunpack.c.0.s8 %v7589
  %v7591 = vlaneseq
  %v7592 = vshrl.u32 %v7591, 7
  %v7593 = vsub.s32 %v7590, %v7592
  %v7594 = vrot.slane %v7578, %v7593
  %v7595 = vsel %vm7095, %v7587, %v7587
  %v7596 = vsel %vm7097, %v7587, %v7595
  %v7597 = vrot.slane %v7594, 7
  %v7598 = vsel %vm7100, %v7597, %v7596
  %v7599 = vsel %vm7102, %v7597, %v7598
  %v7600 = vsel %vm7104, %v7597, %v7599
  %v7601 = vsel %vm7106, %v7597, %v7600
  %7602 = vrot.lane.b32.xlu0 %v7601, 96
  %v7603 = vpop.permute.xlu0 %7602
  %7605 = vst.msk [vmem:[%s7 + $0x6] sm:$0x3] %vm7211, %v7603
  // Predicated region
  $region30: #{_lambda_.2} parent=0 // pred_check
    _
  $region31: #{_lambda_.2} parent=0 // pred_check_branch
    %7607 = sbr.rel (0) target = $region33
  $region32: #{_lambda_.2} parent=0 // pred_region
    _
  $region33: #{_lambda_.2} parent=0 // pred_fallthru
    _
  // Predicated region
  $region34: #{_lambda_.2} parent=0 // pred_check
    _
  $region35: #{_lambda_.2} parent=0 // pred_check_branch
    %7609 = sbr.rel (0) target = $region37
  $region36: #{_lambda_.2} parent=0 // pred_region
    _
  $region37: #{_lambda_.2} parent=0 // pred_fallthru
    _

</llo_original>
